<compile_context>
chip_gen: v6e
topology: v6e:2x2x1
jax: 0.10.0
libtpu: 0.0.40
codegen_flags: <defaults>
</compile_context>

<pallas_src>
import functools

import numpy as np

import jax
import jax.numpy as jnp
from jax.experimental import pallas as pl
from jax.experimental.pallas import tpu as pltpu


# ------------------------------ Pallas kernel -------------------------------

def fused_cnn_encoder_kernel(x_ref, mask_ref, poolw_ref,
                             w1_ref, b1_ref, w2_ref, b2_ref,
                             wfc_ref, bfc_ref,
                             o_ref, f1e_ref, *, H, W, Cin, C1):
    """One batch element: conv1+ReLU -> conv2+ReLU -> GAP -> fc, all in VMEM.

    Flattened padded-grid layout: a feature map is stored as (Np, C) with
    Np = (H+2)*(W+2) rows (zero ring around the HxW interior), plus E = W+3
    zero "extension" rows on each side so every 3x3 tap is a contiguous
    row-slice.  `mask` (Np, 1) zeroes the ring; `poolw` (1, Np) = mask/(H*W).
    """
    Wp = W + 2
    Np = (H + 2) * Wp
    E = W + 3

    c1 = w1_ref.shape[1]
    c2 = w2_ref.shape[1]

    # ---- conv1: 3x3 same conv as 9 shifted-slice matmuls, bias folded into
    #      the accumulator init, fused ReLU + ring-mask ----------------------
    acc1 = jnp.broadcast_to(b1_ref[...], (Np, c1)).astype(jnp.float32)
    for k in range(9):
        dh, dw = k // 3, k % 3
        s = E + (dh - 1) * Wp + (dw - 1)
        acc1 = acc1 + jnp.dot(x_ref[0, s:s + Np, :],
                              w1_ref[k * Cin:(k + 1) * Cin, :],
                              preferred_element_type=jnp.float32)
    # zero the padding ring so it acts as conv2's zero padding
    f1 = jnp.maximum(acc1, 0.0) * mask_ref[...]                      # (Np, C1)

    # Stash padded f1 in VMEM scratch (never touches HBM).  Only the two
    # extension slabs need explicit zeroing; the interior ring is already zero
    # via the mask.  Zero them every step so megacore grid-sharding is safe.
    f1e_ref[0:E, :] = jnp.zeros((E, c1), jnp.float32)
    f1e_ref[E + Np:E + Np + E, :] = jnp.zeros((E, c1), jnp.float32)
    f1e_ref[E:E + Np, :] = f1

    # ---- conv2: same structure ----
    acc2 = jnp.broadcast_to(b2_ref[...], (Np, c2)).astype(jnp.float32)
    for k in range(9):
        dh, dw = k // 3, k % 3
        s = E + (dh - 1) * Wp + (dw - 1)
        acc2 = acc2 + jnp.dot(f1e_ref[s:s + Np, :],
                              w2_ref[k * C1:(k + 1) * C1, :],
                              preferred_element_type=jnp.float32)
    f2 = jnp.maximum(acc2, 0.0)                                      # (Np, C2)

    # ---- global average pool (as MXU matmul; poolw zeroes the ring) + fc ----
    pooled = jnp.dot(poolw_ref[...], f2,
                     preferred_element_type=jnp.float32)             # (1, C2)
    out = jnp.dot(pooled, wfc_ref[...],
                  preferred_element_type=jnp.float32) + bfc_ref[...]  # (1, T)
    o_ref[0] = out.astype(o_ref.dtype)


# ------------------------------ JAX wrapper ---------------------------------

@jax.jit
def cnn_encoder_forward(x_nchw, params):
    """Forward pass matching CnnEncoder.forward: backbone features -> myfc."""
    B, Cin, H, W = x_nchw.shape
    C1 = params["w1"].shape[1]
    C2 = params["w2"].shape[1]
    T = params["w_fc"].shape[1]

    Wp = W + 2
    Np = (H + 2) * Wp
    E = W + 3
    Next = Np + 2 * E

    # NCHW -> NHWC, zero-pad the 3x3 ring, flatten spatial, add E-row extension
    x = jnp.transpose(x_nchw, (0, 2, 3, 1))
    xp = jnp.pad(x, ((0, 0), (1, 1), (1, 1), (0, 0)))                # (B,H+2,W+2,Cin)
    x_lin = jnp.pad(xp.reshape(B, Np, Cin), ((0, 0), (E, E), (0, 0)))  # (B,Next,Cin)

    # Constant interior mask / pooling row over padded-grid positions
    # (built with numpy at trace time -> pure constants).
    idx = np.arange(Np)
    r, c = idx // Wp, idx % Wp
    interior = ((r >= 1) & (r <= H) & (c >= 1) & (c <= W)).astype(np.float32)
    mask = jnp.asarray(interior.reshape(Np, 1))
    poolw = jnp.asarray((interior / float(H * W)).reshape(1, Np))

    kernel = functools.partial(fused_cnn_encoder_kernel,
                               H=H, W=W, Cin=Cin, C1=C1)

    flops = 2 * B * Np * (9 * Cin * C1 + 9 * C1 * C2 + C2) + 2 * B * C2 * T
    bytes_accessed = 4 * (B * Next * Cin + 2 * Np + 9 * Cin * C1 + C1
                          + 9 * C1 * C2 + C2 + C2 * T + T + B * T)

    out3 = pl.pallas_call(
        kernel,
        out_shape=jax.ShapeDtypeStruct((B, 1, T), jnp.float32),
        grid=(B,),
        in_specs=[
            pl.BlockSpec((1, Next, Cin), lambda b: (b, 0, 0)),   # per-image input
            pl.BlockSpec((Np, 1), lambda b: (0, 0)),             # interior mask
            pl.BlockSpec((1, Np), lambda b: (0, 0)),             # pooling row
            pl.BlockSpec((9 * Cin, C1), lambda b: (0, 0)),       # conv1 weights
            pl.BlockSpec((1, C1), lambda b: (0, 0)),
            pl.BlockSpec((9 * C1, C2), lambda b: (0, 0)),        # conv2 weights
            pl.BlockSpec((1, C2), lambda b: (0, 0)),
            pl.BlockSpec((C2, T), lambda b: (0, 0)),             # myfc
            pl.BlockSpec((1, T), lambda b: (0, 0)),
        ],
        out_specs=pl.BlockSpec((1, 1, T), lambda b: (b, 0, 0)),
        scratch_shapes=[pltpu.VMEM((Next, C1), jnp.float32)],
        compiler_params=pltpu.CompilerParams(
            dimension_semantics=("parallel",)),
        cost_estimate=pl.CostEstimate(
            flops=flops, transcendentals=0, bytes_accessed=bytes_accessed),
    )(x_lin, mask, poolw,
      params["w1"], params["b1"], params["w2"], params["b2"],
      params["w_fc"], params["b_fc"])
    return out3.reshape(B, T)


# ------------------------------ JAX reference --------------------------------

def jax_reference(x_nchw, params, c1, c2):
    """Pure-JAX reference for numerical verification."""
    x = jnp.transpose(x_nchw, (0, 2, 3, 1))
    w1 = params["w1"].reshape(3, 3, x.shape[-1], c1)          # HWIO
    y = jax.lax.conv_general_dilated(
        x, w1, (1, 1), "SAME",
        dimension_numbers=("NHWC", "HWIO", "NHWC")) + params["b1"]
    y = jnp.maximum(y, 0.0)
    w2 = params["w2"].reshape(3, 3, c1, c2)
    y = jax.lax.conv_general_dilated(
        y, w2, (1, 1), "SAME",
        dimension_numbers=("NHWC", "HWIO", "NHWC")) + params["b2"]
    y = jnp.maximum(y, 0.0)
    pooled = jnp.mean(y, axis=(1, 2))
    return pooled @ params["w_fc"] + params["b_fc"]


# --------------------------------- main --------------------------------------

if __name__ == "__main__":
    # Module config analogue: n_ch=4 input channels, target_num=5 outputs.
    B, n_ch, H, W = 2, 4, 16, 16
    C1, C2, target_num = 32, 64, 5

    key = jax.random.PRNGKey(0)
    k_x, k_w1, k_b1, k_w2, k_b2, k_wfc, k_bfc = jax.random.split(key, 7)

    x = jax.random.normal(k_x, (B, n_ch, H, W), dtype=jnp.float32)  # NCHW

    # Deterministic synthetic parameters (HWIO order, flattened for the GEMM).
    params = {
        "w1": 0.1 * jax.random.normal(k_w1, (3 * 3 * n_ch, C1), jnp.float32),
        "b1": 0.1 * jax.random.normal(k_b1, (1, C1), jnp.float32),
        "w2": 0.05 * jax.random.normal(k_w2, (3 * 3 * C1, C2), jnp.float32),
        "b2": 0.1 * jax.random.normal(k_b2, (1, C2), jnp.float32),
        "w_fc": 0.1 * jax.random.normal(k_wfc, (C2, target_num), jnp.float32),
        "b_fc": 0.1 * jax.random.normal(k_bfc, (1, target_num), jnp.float32),
    }

    out = cnn_encoder_forward(x, params)
    out = jax.block_until_ready(out)
    assert out.shape == (B, target_num), out.shape

    ref = jax_reference(x, params, C1, C2)
    assert jnp.allclose(out, ref, atol=1e-4, rtol=1e-4), (
        "Pallas output mismatch vs JAX reference")

    print("KERNEL_OK")
</pallas_src>

<mosaic_0001>
module attributes {stable_mosaic.version = 11 : i64} {
  func.func @fused_cnn_encoder_kernel(%arg0: i32, %arg1: memref<1x362x4xf32, #tpu.memory_space<vmem>>, %arg2: memref<324x1xf32, #tpu.memory_space<vmem>>, %arg3: memref<1x324xf32, #tpu.memory_space<vmem>>, %arg4: memref<36x32xf32, #tpu.memory_space<vmem>>, %arg5: memref<1x32xf32, #tpu.memory_space<vmem>>, %arg6: memref<288x64xf32, #tpu.memory_space<vmem>>, %arg7: memref<1x64xf32, #tpu.memory_space<vmem>>, %arg8: memref<64x5xf32, #tpu.memory_space<vmem>>, %arg9: memref<1x5xf32, #tpu.memory_space<vmem>>, %arg10: memref<1x1x5xf32, #tpu.memory_space<vmem>>, %arg11: memref<362x32xf32, #tpu.memory_space<vmem>>) attributes {dimension_semantics = [#tpu.dimension_semantics<parallel>], iteration_bounds = array<i64: 2>, scalar_prefetch = 0 : i64, scratch_operands = 1 : i64, tpu.core_type = #tpu.core_type<tc>, window_params = [{transform_indices = @transform_0, window_bounds = array<i64: 1, 362, 4>}, {pipeline_mode = #tpu.pipeline_mode<synchronous>, transform_indices = @transform_1, window_bounds = array<i64: 324, 1>}, {pipeline_mode = #tpu.pipeline_mode<synchronous>, transform_indices = @transform_2, window_bounds = array<i64: 1, 324>}, {pipeline_mode = #tpu.pipeline_mode<synchronous>, transform_indices = @transform_3, window_bounds = array<i64: 36, 32>}, {pipeline_mode = #tpu.pipeline_mode<synchronous>, transform_indices = @transform_4, window_bounds = array<i64: 1, 32>}, {pipeline_mode = #tpu.pipeline_mode<synchronous>, transform_indices = @transform_5, window_bounds = array<i64: 288, 64>}, {pipeline_mode = #tpu.pipeline_mode<synchronous>, transform_indices = @transform_6, window_bounds = array<i64: 1, 64>}, {pipeline_mode = #tpu.pipeline_mode<synchronous>, transform_indices = @transform_7, window_bounds = array<i64: 64, 5>}, {pipeline_mode = #tpu.pipeline_mode<synchronous>, transform_indices = @transform_8, window_bounds = array<i64: 1, 5>}, {transform_indices = @transform_9, window_bounds = array<i64: 1, 1, 5>}]} {
    %c0 = arith.constant 0 : index
    %c0_0 = arith.constant 0 : index
    %0 = vector.load %arg5[%c0, %c0_0] : memref<1x32xf32, #tpu.memory_space<vmem>>, vector<1x32xf32>
    %1 = vector.shape_cast %0 : vector<1x32xf32> to vector<1x32xf32>
    %2 = vector.broadcast %1 : vector<1x32xf32> to vector<324x32xf32>
    %c0_1 = arith.constant 0 : index
    %c0_2 = arith.constant 0 : index
    %c0_3 = arith.constant 0 : index
    %3 = vector.load %arg1[%c0_1, %c0_2, %c0_3] : memref<1x362x4xf32, #tpu.memory_space<vmem>>, vector<1x324x4xf32>
    %4 = vector.shape_cast %3 : vector<1x324x4xf32> to vector<324x4xf32>
    %c0_4 = arith.constant 0 : index
    %c0_5 = arith.constant 0 : index
    %5 = vector.load %arg4[%c0_4, %c0_5] : memref<36x32xf32, #tpu.memory_space<vmem>>, vector<4x32xf32>
    %cst = arith.constant dense<0.000000e+00> : vector<324x32xf32>
    %6 = tpu.matmul %4, %5, %cst {dimension_numbers = #tpu.dot_dimension_numbers<[1], [0], [0], [1], [0, 0, 1, 1], [], []>} : vector<324x4xf32>, vector<4x32xf32>, vector<324x32xf32> -> vector<324x32xf32>
    %7 = arith.addf %2, %6 : vector<324x32xf32>
    %c0_6 = arith.constant 0 : index
    %c1 = arith.constant 1 : index
    %c0_7 = arith.constant 0 : index
    %8 = vector.load %arg1[%c0_6, %c1, %c0_7] : memref<1x362x4xf32, #tpu.memory_space<vmem>>, vector<1x324x4xf32>
    %9 = vector.shape_cast %8 : vector<1x324x4xf32> to vector<324x4xf32>
    %c4 = arith.constant 4 : index
    %c0_8 = arith.constant 0 : index
    %10 = vector.load %arg4[%c4, %c0_8] : memref<36x32xf32, #tpu.memory_space<vmem>>, vector<4x32xf32>
    %cst_9 = arith.constant dense<0.000000e+00> : vector<324x32xf32>
    %11 = tpu.matmul %9, %10, %cst_9 {dimension_numbers = #tpu.dot_dimension_numbers<[1], [0], [0], [1], [0, 0, 1, 1], [], []>} : vector<324x4xf32>, vector<4x32xf32>, vector<324x32xf32> -> vector<324x32xf32>
    %12 = arith.addf %7, %11 : vector<324x32xf32>
    %c0_10 = arith.constant 0 : index
    %c2 = arith.constant 2 : index
    %c0_11 = arith.constant 0 : index
    %13 = vector.load %arg1[%c0_10, %c2, %c0_11] : memref<1x362x4xf32, #tpu.memory_space<vmem>>, vector<1x324x4xf32>
    %14 = vector.shape_cast %13 : vector<1x324x4xf32> to vector<324x4xf32>
    %c8 = arith.constant 8 : index
    %c0_12 = arith.constant 0 : index
    %15 = vector.load %arg4[%c8, %c0_12] : memref<36x32xf32, #tpu.memory_space<vmem>>, vector<4x32xf32>
    %cst_13 = arith.constant dense<0.000000e+00> : vector<324x32xf32>
    %16 = tpu.matmul %14, %15, %cst_13 {dimension_numbers = #tpu.dot_dimension_numbers<[1], [0], [0], [1], [0, 0, 1, 1], [], []>} : vector<324x4xf32>, vector<4x32xf32>, vector<324x32xf32> -> vector<324x32xf32>
    %17 = arith.addf %12, %16 : vector<324x32xf32>
    %c0_14 = arith.constant 0 : index
    %c18 = arith.constant 18 : index
    %c0_15 = arith.constant 0 : index
    %18 = vector.load %arg1[%c0_14, %c18, %c0_15] : memref<1x362x4xf32, #tpu.memory_space<vmem>>, vector<1x324x4xf32>
    %19 = vector.shape_cast %18 : vector<1x324x4xf32> to vector<324x4xf32>
    %c12 = arith.constant 12 : index
    %c0_16 = arith.constant 0 : index
    %20 = vector.load %arg4[%c12, %c0_16] : memref<36x32xf32, #tpu.memory_space<vmem>>, vector<4x32xf32>
    %cst_17 = arith.constant dense<0.000000e+00> : vector<324x32xf32>
    %21 = tpu.matmul %19, %20, %cst_17 {dimension_numbers = #tpu.dot_dimension_numbers<[1], [0], [0], [1], [0, 0, 1, 1], [], []>} : vector<324x4xf32>, vector<4x32xf32>, vector<324x32xf32> -> vector<324x32xf32>
    %22 = arith.addf %17, %21 : vector<324x32xf32>
    %c0_18 = arith.constant 0 : index
    %c19 = arith.constant 19 : index
    %c0_19 = arith.constant 0 : index
    %23 = vector.load %arg1[%c0_18, %c19, %c0_19] : memref<1x362x4xf32, #tpu.memory_space<vmem>>, vector<1x324x4xf32>
    %24 = vector.shape_cast %23 : vector<1x324x4xf32> to vector<324x4xf32>
    %c16 = arith.constant 16 : index
    %c0_20 = arith.constant 0 : index
    %25 = vector.load %arg4[%c16, %c0_20] : memref<36x32xf32, #tpu.memory_space<vmem>>, vector<4x32xf32>
    %cst_21 = arith.constant dense<0.000000e+00> : vector<324x32xf32>
    %26 = tpu.matmul %24, %25, %cst_21 {dimension_numbers = #tpu.dot_dimension_numbers<[1], [0], [0], [1], [0, 0, 1, 1], [], []>} : vector<324x4xf32>, vector<4x32xf32>, vector<324x32xf32> -> vector<324x32xf32>
    %27 = arith.addf %22, %26 : vector<324x32xf32>
    %c0_22 = arith.constant 0 : index
    %c20 = arith.constant 20 : index
    %c0_23 = arith.constant 0 : index
    %28 = vector.load %arg1[%c0_22, %c20, %c0_23] : memref<1x362x4xf32, #tpu.memory_space<vmem>>, vector<1x324x4xf32>
    %29 = vector.shape_cast %28 : vector<1x324x4xf32> to vector<324x4xf32>
    %c20_24 = arith.constant 20 : index
    %c0_25 = arith.constant 0 : index
    %30 = vector.load %arg4[%c20_24, %c0_25] : memref<36x32xf32, #tpu.memory_space<vmem>>, vector<4x32xf32>
    %cst_26 = arith.constant dense<0.000000e+00> : vector<324x32xf32>
    %31 = tpu.matmul %29, %30, %cst_26 {dimension_numbers = #tpu.dot_dimension_numbers<[1], [0], [0], [1], [0, 0, 1, 1], [], []>} : vector<324x4xf32>, vector<4x32xf32>, vector<324x32xf32> -> vector<324x32xf32>
    %32 = arith.addf %27, %31 : vector<324x32xf32>
    %c0_27 = arith.constant 0 : index
    %c36 = arith.constant 36 : index
    %c0_28 = arith.constant 0 : index
    %33 = vector.load %arg1[%c0_27, %c36, %c0_28] : memref<1x362x4xf32, #tpu.memory_space<vmem>>, vector<1x324x4xf32>
    %34 = vector.shape_cast %33 : vector<1x324x4xf32> to vector<324x4xf32>
    %c24 = arith.constant 24 : index
    %c0_29 = arith.constant 0 : index
    %35 = vector.load %arg4[%c24, %c0_29] : memref<36x32xf32, #tpu.memory_space<vmem>>, vector<4x32xf32>
    %cst_30 = arith.constant dense<0.000000e+00> : vector<324x32xf32>
    %36 = tpu.matmul %34, %35, %cst_30 {dimension_numbers = #tpu.dot_dimension_numbers<[1], [0], [0], [1], [0, 0, 1, 1], [], []>} : vector<324x4xf32>, vector<4x32xf32>, vector<324x32xf32> -> vector<324x32xf32>
    %37 = arith.addf %32, %36 : vector<324x32xf32>
    %c0_31 = arith.constant 0 : index
    %c37 = arith.constant 37 : index
    %c0_32 = arith.constant 0 : index
    %38 = vector.load %arg1[%c0_31, %c37, %c0_32] : memref<1x362x4xf32, #tpu.memory_space<vmem>>, vector<1x324x4xf32>
    %39 = vector.shape_cast %38 : vector<1x324x4xf32> to vector<324x4xf32>
    %c28 = arith.constant 28 : index
    %c0_33 = arith.constant 0 : index
    %40 = vector.load %arg4[%c28, %c0_33] : memref<36x32xf32, #tpu.memory_space<vmem>>, vector<4x32xf32>
    %cst_34 = arith.constant dense<0.000000e+00> : vector<324x32xf32>
    %41 = tpu.matmul %39, %40, %cst_34 {dimension_numbers = #tpu.dot_dimension_numbers<[1], [0], [0], [1], [0, 0, 1, 1], [], []>} : vector<324x4xf32>, vector<4x32xf32>, vector<324x32xf32> -> vector<324x32xf32>
    %42 = arith.addf %37, %41 : vector<324x32xf32>
    %c0_35 = arith.constant 0 : index
    %c38 = arith.constant 38 : index
    %c0_36 = arith.constant 0 : index
    %43 = vector.load %arg1[%c0_35, %c38, %c0_36] : memref<1x362x4xf32, #tpu.memory_space<vmem>>, vector<1x324x4xf32>
    %44 = vector.shape_cast %43 : vector<1x324x4xf32> to vector<324x4xf32>
    %c32 = arith.constant 32 : index
    %c0_37 = arith.constant 0 : index
    %45 = vector.load %arg4[%c32, %c0_37] : memref<36x32xf32, #tpu.memory_space<vmem>>, vector<4x32xf32>
    %cst_38 = arith.constant dense<0.000000e+00> : vector<324x32xf32>
    %46 = tpu.matmul %44, %45, %cst_38 {dimension_numbers = #tpu.dot_dimension_numbers<[1], [0], [0], [1], [0, 0, 1, 1], [], []>} : vector<324x4xf32>, vector<4x32xf32>, vector<324x32xf32> -> vector<324x32xf32>
    %47 = arith.addf %42, %46 : vector<324x32xf32>
    %cst_39 = arith.constant 0.000000e+00 : f32
    %48 = vector.broadcast %cst_39 : f32 to vector<324x32xf32>
    %49 = arith.maximumf %47, %48 : vector<324x32xf32>
    %c0_40 = arith.constant 0 : index
    %c0_41 = arith.constant 0 : index
    %50 = vector.load %arg2[%c0_40, %c0_41] : memref<324x1xf32, #tpu.memory_space<vmem>>, vector<324x1xf32>
    %51 = vector.broadcast %50 : vector<324x1xf32> to vector<324x32xf32>
    %52 = arith.mulf %49, %51 : vector<324x32xf32>
    %cst_42 = arith.constant 0.000000e+00 : f32
    %53 = vector.broadcast %cst_42 : f32 to vector<19x32xf32>
    %c0_43 = arith.constant 0 : index
    %c0_44 = arith.constant 0 : index
    %54 = vector.load %arg11[%c0_43, %c0_44] : memref<362x32xf32, #tpu.memory_space<vmem>>, vector<19x32xf32>
    tpu.vector_store %arg11[%c0_43, %c0_44], %53 {strides = array<i32>} : memref<362x32xf32, #tpu.memory_space<vmem>>, vector<19x32xf32>,
    %cst_45 = arith.constant 0.000000e+00 : f32
    %55 = vector.broadcast %cst_45 : f32 to vector<19x32xf32>
    %c343 = arith.constant 343 : index
    %c0_46 = arith.constant 0 : index
    %56 = vector.load %arg11[%c343, %c0_46] : memref<362x32xf32, #tpu.memory_space<vmem>>, vector<19x32xf32>
    tpu.vector_store %arg11[%c343, %c0_46], %55 {strides = array<i32>} : memref<362x32xf32, #tpu.memory_space<vmem>>, vector<19x32xf32>,
    %c19_47 = arith.constant 19 : index
    %c0_48 = arith.constant 0 : index
    %57 = vector.load %arg11[%c19_47, %c0_48] : memref<362x32xf32, #tpu.memory_space<vmem>>, vector<324x32xf32>
    tpu.vector_store %arg11[%c19_47, %c0_48], %52 {strides = array<i32>} : memref<362x32xf32, #tpu.memory_space<vmem>>, vector<324x32xf32>,
    %c0_49 = arith.constant 0 : index
    %c0_50 = arith.constant 0 : index
    %58 = vector.load %arg7[%c0_49, %c0_50] : memref<1x64xf32, #tpu.memory_space<vmem>>, vector<1x64xf32>
    %59 = vector.shape_cast %58 : vector<1x64xf32> to vector<1x64xf32>
    %60 = vector.broadcast %59 : vector<1x64xf32> to vector<324x64xf32>
    %c0_51 = arith.constant 0 : index
    %c0_52 = arith.constant 0 : index
    %61 = vector.load %arg11[%c0_51, %c0_52] : memref<362x32xf32, #tpu.memory_space<vmem>>, vector<324x32xf32>
    %c0_53 = arith.constant 0 : index
    %c0_54 = arith.constant 0 : index
    %62 = vector.load %arg6[%c0_53, %c0_54] : memref<288x64xf32, #tpu.memory_space<vmem>>, vector<32x64xf32>
    %cst_55 = arith.constant dense<0.000000e+00> : vector<324x64xf32>
    %63 = tpu.matmul %61, %62, %cst_55 {dimension_numbers = #tpu.dot_dimension_numbers<[1], [0], [0], [1], [0, 0, 1, 1], [], []>} : vector<324x32xf32>, vector<32x64xf32>, vector<324x64xf32> -> vector<324x64xf32>
    %64 = arith.addf %60, %63 : vector<324x64xf32>
    %c1_56 = arith.constant 1 : index
    %c0_57 = arith.constant 0 : index
    %65 = vector.load %arg11[%c1_56, %c0_57] : memref<362x32xf32, #tpu.memory_space<vmem>>, vector<324x32xf32>
    %c32_58 = arith.constant 32 : index
    %c0_59 = arith.constant 0 : index
    %66 = vector.load %arg6[%c32_58, %c0_59] : memref<288x64xf32, #tpu.memory_space<vmem>>, vector<32x64xf32>
    %cst_60 = arith.constant dense<0.000000e+00> : vector<324x64xf32>
    %67 = tpu.matmul %65, %66, %cst_60 {dimension_numbers = #tpu.dot_dimension_numbers<[1], [0], [0], [1], [0, 0, 1, 1], [], []>} : vector<324x32xf32>, vector<32x64xf32>, vector<324x64xf32> -> vector<324x64xf32>
    %68 = arith.addf %64, %67 : vector<324x64xf32>
    %c2_61 = arith.constant 2 : index
    %c0_62 = arith.constant 0 : index
    %69 = vector.load %arg11[%c2_61, %c0_62] : memref<362x32xf32, #tpu.memory_space<vmem>>, vector<324x32xf32>
    %c64 = arith.constant 64 : index
    %c0_63 = arith.constant 0 : index
    %70 = vector.load %arg6[%c64, %c0_63] : memref<288x64xf32, #tpu.memory_space<vmem>>, vector<32x64xf32>
    %cst_64 = arith.constant dense<0.000000e+00> : vector<324x64xf32>
    %71 = tpu.matmul %69, %70, %cst_64 {dimension_numbers = #tpu.dot_dimension_numbers<[1], [0], [0], [1], [0, 0, 1, 1], [], []>} : vector<324x32xf32>, vector<32x64xf32>, vector<324x64xf32> -> vector<324x64xf32>
    %72 = arith.addf %68, %71 : vector<324x64xf32>
    %c18_65 = arith.constant 18 : index
    %c0_66 = arith.constant 0 : index
    %73 = vector.load %arg11[%c18_65, %c0_66] : memref<362x32xf32, #tpu.memory_space<vmem>>, vector<324x32xf32>
    %c96 = arith.constant 96 : index
    %c0_67 = arith.constant 0 : index
    %74 = vector.load %arg6[%c96, %c0_67] : memref<288x64xf32, #tpu.memory_space<vmem>>, vector<32x64xf32>
    %cst_68 = arith.constant dense<0.000000e+00> : vector<324x64xf32>
    %75 = tpu.matmul %73, %74, %cst_68 {dimension_numbers = #tpu.dot_dimension_numbers<[1], [0], [0], [1], [0, 0, 1, 1], [], []>} : vector<324x32xf32>, vector<32x64xf32>, vector<324x64xf32> -> vector<324x64xf32>
    %76 = arith.addf %72, %75 : vector<324x64xf32>
    %c19_69 = arith.constant 19 : index
    %c0_70 = arith.constant 0 : index
    %77 = vector.load %arg11[%c19_69, %c0_70] : memref<362x32xf32, #tpu.memory_space<vmem>>, vector<324x32xf32>
    %c128 = arith.constant 128 : index
    %c0_71 = arith.constant 0 : index
    %78 = vector.load %arg6[%c128, %c0_71] : memref<288x64xf32, #tpu.memory_space<vmem>>, vector<32x64xf32>
    %cst_72 = arith.constant dense<0.000000e+00> : vector<324x64xf32>
    %79 = tpu.matmul %77, %78, %cst_72 {dimension_numbers = #tpu.dot_dimension_numbers<[1], [0], [0], [1], [0, 0, 1, 1], [], []>} : vector<324x32xf32>, vector<32x64xf32>, vector<324x64xf32> -> vector<324x64xf32>
    %80 = arith.addf %76, %79 : vector<324x64xf32>
    %c20_73 = arith.constant 20 : index
    %c0_74 = arith.constant 0 : index
    %81 = vector.load %arg11[%c20_73, %c0_74] : memref<362x32xf32, #tpu.memory_space<vmem>>, vector<324x32xf32>
    %c160 = arith.constant 160 : index
    %c0_75 = arith.constant 0 : index
    %82 = vector.load %arg6[%c160, %c0_75] : memref<288x64xf32, #tpu.memory_space<vmem>>, vector<32x64xf32>
    %cst_76 = arith.constant dense<0.000000e+00> : vector<324x64xf32>
    %83 = tpu.matmul %81, %82, %cst_76 {dimension_numbers = #tpu.dot_dimension_numbers<[1], [0], [0], [1], [0, 0, 1, 1], [], []>} : vector<324x32xf32>, vector<32x64xf32>, vector<324x64xf32> -> vector<324x64xf32>
    %84 = arith.addf %80, %83 : vector<324x64xf32>
    %c36_77 = arith.constant 36 : index
    %c0_78 = arith.constant 0 : index
    %85 = vector.load %arg11[%c36_77, %c0_78] : memref<362x32xf32, #tpu.memory_space<vmem>>, vector<324x32xf32>
    %c192 = arith.constant 192 : index
    %c0_79 = arith.constant 0 : index
    %86 = vector.load %arg6[%c192, %c0_79] : memref<288x64xf32, #tpu.memory_space<vmem>>, vector<32x64xf32>
    %cst_80 = arith.constant dense<0.000000e+00> : vector<324x64xf32>
    %87 = tpu.matmul %85, %86, %cst_80 {dimension_numbers = #tpu.dot_dimension_numbers<[1], [0], [0], [1], [0, 0, 1, 1], [], []>} : vector<324x32xf32>, vector<32x64xf32>, vector<324x64xf32> -> vector<324x64xf32>
    %88 = arith.addf %84, %87 : vector<324x64xf32>
    %c37_81 = arith.constant 37 : index
    %c0_82 = arith.constant 0 : index
    %89 = vector.load %arg11[%c37_81, %c0_82] : memref<362x32xf32, #tpu.memory_space<vmem>>, vector<324x32xf32>
    %c224 = arith.constant 224 : index
    %c0_83 = arith.constant 0 : index
    %90 = vector.load %arg6[%c224, %c0_83] : memref<288x64xf32, #tpu.memory_space<vmem>>, vector<32x64xf32>
    %cst_84 = arith.constant dense<0.000000e+00> : vector<324x64xf32>
    %91 = tpu.matmul %89, %90, %cst_84 {dimension_numbers = #tpu.dot_dimension_numbers<[1], [0], [0], [1], [0, 0, 1, 1], [], []>} : vector<324x32xf32>, vector<32x64xf32>, vector<324x64xf32> -> vector<324x64xf32>
    %92 = arith.addf %88, %91 : vector<324x64xf32>
    %c38_85 = arith.constant 38 : index
    %c0_86 = arith.constant 0 : index
    %93 = vector.load %arg11[%c38_85, %c0_86] : memref<362x32xf32, #tpu.memory_space<vmem>>, vector<324x32xf32>
    %c256 = arith.constant 256 : index
    %c0_87 = arith.constant 0 : index
    %94 = vector.load %arg6[%c256, %c0_87] : memref<288x64xf32, #tpu.memory_space<vmem>>, vector<32x64xf32>
    %cst_88 = arith.constant dense<0.000000e+00> : vector<324x64xf32>
    %95 = tpu.matmul %93, %94, %cst_88 {dimension_numbers = #tpu.dot_dimension_numbers<[1], [0], [0], [1], [0, 0, 1, 1], [], []>} : vector<324x32xf32>, vector<32x64xf32>, vector<324x64xf32> -> vector<324x64xf32>
    %96 = arith.addf %92, %95 : vector<324x64xf32>
    %cst_89 = arith.constant 0.000000e+00 : f32
    %97 = vector.broadcast %cst_89 : f32 to vector<324x64xf32>
    %98 = arith.maximumf %96, %97 : vector<324x64xf32>
    %c0_90 = arith.constant 0 : index
    %c0_91 = arith.constant 0 : index
    %99 = vector.load %arg3[%c0_90, %c0_91] : memref<1x324xf32, #tpu.memory_space<vmem>>, vector<1x324xf32>
    %cst_92 = arith.constant dense<0.000000e+00> : vector<1x64xf32>
    %100 = tpu.matmul %99, %98, %cst_92 {dimension_numbers = #tpu.dot_dimension_numbers<[1], [0], [0], [1], [0, 0, 1, 1], [], []>} : vector<1x324xf32>, vector<324x64xf32>, vector<1x64xf32> -> vector<1x64xf32>
    %c0_93 = arith.constant 0 : index
    %c0_94 = arith.constant 0 : index
    %101 = vector.load %arg8[%c0_93, %c0_94] : memref<64x5xf32, #tpu.memory_space<vmem>>, vector<64x5xf32>
    %cst_95 = arith.constant dense<0.000000e+00> : vector<1x5xf32>
    %102 = tpu.matmul %100, %101, %cst_95 {dimension_numbers = #tpu.dot_dimension_numbers<[1], [0], [0], [1], [0, 0, 1, 1], [], []>} : vector<1x64xf32>, vector<64x5xf32>, vector<1x5xf32> -> vector<1x5xf32>
    %c0_96 = arith.constant 0 : index
    %c0_97 = arith.constant 0 : index
    %103 = vector.load %arg9[%c0_96, %c0_97] : memref<1x5xf32, #tpu.memory_space<vmem>>, vector<1x5xf32>
    %104 = arith.addf %102, %103 : vector<1x5xf32>
    %c0_98 = arith.constant 0 : index
    %c0_99 = arith.constant 0 : index
    %c0_100 = arith.constant 0 : index
    %105 = vector.load %arg10[%c0_98, %c0_99, %c0_100] : memref<1x1x5xf32, #tpu.memory_space<vmem>>, vector<1x1x5xf32>
    %106 = vector.shape_cast %105 : vector<1x1x5xf32> to vector<1x5xf32>
    %107 = vector.shape_cast %104 : vector<1x5xf32> to vector<1x1x5xf32>
    tpu.vector_store %arg10[%c0_98, %c0_99, %c0_100], %107 {strides = array<i32>} : memref<1x1x5xf32, #tpu.memory_space<vmem>>, vector<1x1x5xf32>,
    return
  }
  func.func @transform_0(%arg0: i32) -> (i32, i32, i32) {
    %c0_i32 = arith.constant 0 : i32
    %c0_i32_0 = arith.constant 0 : i32
    %c0_i32_1 = arith.constant 0 : i32
    return %arg0, %c0_i32, %c0_i32_0 : i32, i32, i32
  }
  func.func @transform_1(%arg0: i32) -> (i32, i32) {
    %c0_i32 = arith.constant 0 : i32
    %c0_i32_0 = arith.constant 0 : i32
    %c0_i32_1 = arith.constant 0 : i32
    return %c0_i32, %c0_i32_0 : i32, i32
  }
  func.func @transform_2(%arg0: i32) -> (i32, i32) {
    %c0_i32 = arith.constant 0 : i32
    %c0_i32_0 = arith.constant 0 : i32
    %c0_i32_1 = arith.constant 0 : i32
    return %c0_i32, %c0_i32_0 : i32, i32
  }
  func.func @transform_3(%arg0: i32) -> (i32, i32) {
    %c0_i32 = arith.constant 0 : i32
    %c0_i32_0 = arith.constant 0 : i32
    %c0_i32_1 = arith.constant 0 : i32
    return %c0_i32, %c0_i32_0 : i32, i32
  }
  func.func @transform_4(%arg0: i32) -> (i32, i32) {
    %c0_i32 = arith.constant 0 : i32
    %c0_i32_0 = arith.constant 0 : i32
    %c0_i32_1 = arith.constant 0 : i32
    return %c0_i32, %c0_i32_0 : i32, i32
  }
  func.func @transform_5(%arg0: i32) -> (i32, i32) {
    %c0_i32 = arith.constant 0 : i32
    %c0_i32_0 = arith.constant 0 : i32
    %c0_i32_1 = arith.constant 0 : i32
    return %c0_i32, %c0_i32_0 : i32, i32
  }
  func.func @transform_6(%arg0: i32) -> (i32, i32) {
    %c0_i32 = arith.constant 0 : i32
    %c0_i32_0 = arith.constant 0 : i32
    %c0_i32_1 = arith.constant 0 : i32
    return %c0_i32, %c0_i32_0 : i32, i32
  }
  func.func @transform_7(%arg0: i32) -> (i32, i32) {
    %c0_i32 = arith.constant 0 : i32
    %c0_i32_0 = arith.constant 0 : i32
    %c0_i32_1 = arith.constant 0 : i32
    return %c0_i32, %c0_i32_0 : i32, i32
  }
  func.func @transform_8(%arg0: i32) -> (i32, i32) {
    %c0_i32 = arith.constant 0 : i32
    %c0_i32_0 = arith.constant 0 : i32
    %c0_i32_1 = arith.constant 0 : i32
    return %c0_i32, %c0_i32_0 : i32, i32
  }
  func.func @transform_9(%arg0: i32) -> (i32, i32, i32) {
    %c0_i32 = arith.constant 0 : i32
    %c0_i32_0 = arith.constant 0 : i32
    %c0_i32_1 = arith.constant 0 : i32
    return %arg0, %c0_i32, %c0_i32_0 : i32, i32, i32
  }
}

</mosaic_0001>

<llo_original>
// kernel: cnn_encoder_forward.1
$region0: #{cnn_encoder_forward.1}
  #allocation0 [shape = 'u32[]', space=smem, size = 0x4, offset = 0x4, fixed_abs, tag = 'smem constant byte address 0x4 - core index']
  #allocation1 [shape = 'u32[144,128]{1,0:T(1,128)}', space=vmem, size = 0x12000, scoped, tag = 'internal scratch']
  #allocation2 [shape = 'f32[362,32]{1,0:T(8,128)}', space=vmem, size = 0x2e000, scoped, tag = 'scratch operand']
  %s0 = inlined_call_operand.vmem [shape: f32[2,362,4], index: 0, kind: input, shape index: {}]
  %s1 = inlined_call_operand.vmem [shape: f32[324,1], index: 1, kind: input, shape index: {}]
  %s2 = inlined_call_operand.vmem [shape: f32[1,324], index: 2, kind: input, shape index: {}]
  %s3 = inlined_call_operand.vmem [shape: f32[36,32], index: 3, kind: input, shape index: {}]
  %s4 = inlined_call_operand.vmem [shape: f32[1,32], index: 4, kind: input, shape index: {}]
  %s5 = inlined_call_operand.vmem [shape: f32[288,64], index: 5, kind: input, shape index: {}]
  %s6 = inlined_call_operand.vmem [shape: f32[1,64], index: 6, kind: input, shape index: {}]
  %s7 = inlined_call_operand.vmem [shape: f32[64,5], index: 7, kind: input, shape index: {}]
  %s8 = inlined_call_operand.vmem [shape: f32[1,5], index: 8, kind: input, shape index: {}]
  %s9 = inlined_call_operand.hbm [shape: f32[2,1,5], index: 9, kind: output, shape index: {}]
  %s10 = sld [smem:[#allocation0]]
  $region69: #{cnn_encoder_forward.1} parent=0
    _
  %s12 = ssub.s32 1, %s10
  %s13 = scalar_select 0, %s12, %s10
  $region1: #{cnn_encoder_forward.1} parent=0
    #allocation3 [shape = 'u8[1024]{0}', space=vmem, size = 0x400, scoped, tag = 'output window, operand 0']
    #allocation4 [shape = 's32[2]{0}', space=sflag, size = 0x8, scoped, tag = 'scoped memory for cnn_encoder_forward.1']
    %14 = vsyncpa [#allocation4], 0
    %s15 = scalar_lea.sflag [#allocation4], 1
    %16 = vsyncpa %s15, 0
    loop: start=0, step=1, limit=4
    $region2: #{cnn_encoder_forward.1} parent=1 // loop_pre_header
      _
    $region3: #{cnn_encoder_forward.1} parent=1 // loop_header
      %s18 = sphi 0, %s22
      %p19 = scmp.ge.s32.totalorder %s18, 4
      %s28 = sphi 0, %s30
      %s31 = sphi 0, %s28
      %s32 = sphi 0, %s31
      %s48 = sphi 0, %s32
      %s52 = sphi 0, %s52
      %s54 = sphi 0, %s52
      %s55 = sphi 0, %s54
      %s69 = sphi 0, %s55
      %s73 = sphi 0, %s73
      %s75 = sphi 0, %s73
      %s76 = sphi 0, %s75
      %s90 = sphi 0, %s76
      %s94 = sphi 0, %s94
      %s96 = sphi 0, %s94
      %s97 = sphi 0, %s96
      %s111 = sphi 0, %s97
      %s115 = sphi 0, %s115
      %s117 = sphi 0, %s115
      %s118 = sphi 0, %s117
      %s132 = sphi 0, %s118
      %s136 = sphi 0, %s136
      %s138 = sphi 0, %s136
      %s139 = sphi 0, %s138
      %s153 = sphi 0, %s139
      %s157 = sphi 0, %s157
      %s159 = sphi 0, %s157
      %s160 = sphi 0, %s159
      %s174 = sphi 0, %s160
      %s178 = sphi 0, %s178
      %s180 = sphi 0, %s178
      %s181 = sphi 0, %s180
      %s195 = sphi 0, %s181
      %s199 = sphi 0, %s199
      %s201 = sphi 0, %s199
      %s202 = sphi 0, %s201
      %s216 = sphi 0, %s202
      %s222 = sphi 0, %s224
      %s225 = sphi 0, %s222
      %s226 = sphi 0, %s225
      %s242 = sphi 0, %s226
    $region4: #{cnn_encoder_forward.1} parent=1 // loop_header_branch
      %21 = sbr.rel (%p19) target = $region8
    $region5: #{cnn_encoder_forward.1} parent=1 // loop_body
      %s23 = ssub.s32 %s18, 1
      %s24 = ssub.s32 %s18, 2
      %s25 = sadd.s32 %s18, 1
      %s26 = ssub.s32 %s18, %s25
      %p27 = scmp.eq.s32.totalorder %s26, 0
      %s29 = sadd.s32 %s28, 1
      %s30 = scalar_select %p27, %s28, %s29
      %p33 = pneg %p27
      %p34 = scmp.eq.s32.totalorder %s18, 1
      %p35 = por %p33, %p34
      %p36 = scmp.ne.s32.totalorder %s28, %s31
      %p37 = scmp.eq.s32.totalorder %s18, 0
      %p38 = por %p36, %p37
      %p39 = scmp.ne.s32.totalorder %s28, %s31
      %p40 = scmp.eq.s32.totalorder %s23, 1
      %p41 = por %p39, %p40
      %p42 = scmp.ne.s32.totalorder %s31, %s32
      %p43 = scmp.eq.s32.totalorder %s23, 0
      %p44 = por %p42, %p43
      %p45 = scmp.ne.s32.totalorder %s31, %s32
      %p46 = scmp.eq.s32.totalorder %s24, 1
      %p47 = por %p45, %p46
      %p49 = scmp.ne.s32.totalorder %s32, %s48
      %p50 = scmp.eq.s32.totalorder %s24, 0
      %p51 = por %p49, %p50
      %s53 = sadd.s32 %s52, 1
      %p56 = scmp.eq.s32.totalorder %s18, 1
      %p57 = scmp.ne.s32.totalorder %s52, %s54
      %p58 = scmp.eq.s32.totalorder %s18, 0
      %p59 = por %p57, %p58
      %p60 = scmp.ne.s32.totalorder %s52, %s54
      %p61 = scmp.eq.s32.totalorder %s23, 1
      %p62 = por %p60, %p61
      %p63 = scmp.ne.s32.totalorder %s54, %s55
      %p64 = scmp.eq.s32.totalorder %s23, 0
      %p65 = por %p63, %p64
      %p66 = scmp.ne.s32.totalorder %s54, %s55
      %p67 = scmp.eq.s32.totalorder %s24, 1
      %p68 = por %p66, %p67
      %p70 = scmp.ne.s32.totalorder %s55, %s69
      %p71 = scmp.eq.s32.totalorder %s24, 0
      %p72 = por %p70, %p71
      %s74 = sadd.s32 %s73, 1
      %p77 = scmp.eq.s32.totalorder %s18, 1
      %p78 = scmp.ne.s32.totalorder %s73, %s75
      %p79 = scmp.eq.s32.totalorder %s18, 0
      %p80 = por %p78, %p79
      %p81 = scmp.ne.s32.totalorder %s73, %s75
      %p82 = scmp.eq.s32.totalorder %s23, 1
      %p83 = por %p81, %p82
      %p84 = scmp.ne.s32.totalorder %s75, %s76
      %p85 = scmp.eq.s32.totalorder %s23, 0
      %p86 = por %p84, %p85
      %p87 = scmp.ne.s32.totalorder %s75, %s76
      %p88 = scmp.eq.s32.totalorder %s24, 1
      %p89 = por %p87, %p88
      %p91 = scmp.ne.s32.totalorder %s76, %s90
      %p92 = scmp.eq.s32.totalorder %s24, 0
      %p93 = por %p91, %p92
      %s95 = sadd.s32 %s94, 1
      %p98 = scmp.eq.s32.totalorder %s18, 1
      %p99 = scmp.ne.s32.totalorder %s94, %s96
      %p100 = scmp.eq.s32.totalorder %s18, 0
      %p101 = por %p99, %p100
      %p102 = scmp.ne.s32.totalorder %s94, %s96
      %p103 = scmp.eq.s32.totalorder %s23, 1
      %p104 = por %p102, %p103
      %p105 = scmp.ne.s32.totalorder %s96, %s97
      %p106 = scmp.eq.s32.totalorder %s23, 0
      %p107 = por %p105, %p106
      %p108 = scmp.ne.s32.totalorder %s96, %s97
      %p109 = scmp.eq.s32.totalorder %s24, 1
      %p110 = por %p108, %p109
      %p112 = scmp.ne.s32.totalorder %s97, %s111
      %p113 = scmp.eq.s32.totalorder %s24, 0
      %p114 = por %p112, %p113
      %s116 = sadd.s32 %s115, 1
      %p119 = scmp.eq.s32.totalorder %s18, 1
      %p120 = scmp.ne.s32.totalorder %s115, %s117
      %p121 = scmp.eq.s32.totalorder %s18, 0
      %p122 = por %p120, %p121
      %p123 = scmp.ne.s32.totalorder %s115, %s117
      %p124 = scmp.eq.s32.totalorder %s23, 1
      %p125 = por %p123, %p124
      %p126 = scmp.ne.s32.totalorder %s117, %s118
      %p127 = scmp.eq.s32.totalorder %s23, 0
      %p128 = por %p126, %p127
      %p129 = scmp.ne.s32.totalorder %s117, %s118
      %p130 = scmp.eq.s32.totalorder %s24, 1
      %p131 = por %p129, %p130
      %p133 = scmp.ne.s32.totalorder %s118, %s132
      %p134 = scmp.eq.s32.totalorder %s24, 0
      %p135 = por %p133, %p134
      %s137 = sadd.s32 %s136, 1
      %p140 = scmp.eq.s32.totalorder %s18, 1
      %p141 = scmp.ne.s32.totalorder %s136, %s138
      %p142 = scmp.eq.s32.totalorder %s18, 0
      %p143 = por %p141, %p142
      %p144 = scmp.ne.s32.totalorder %s136, %s138
      %p145 = scmp.eq.s32.totalorder %s23, 1
      %p146 = por %p144, %p145
      %p147 = scmp.ne.s32.totalorder %s138, %s139
      %p148 = scmp.eq.s32.totalorder %s23, 0
      %p149 = por %p147, %p148
      %p150 = scmp.ne.s32.totalorder %s138, %s139
      %p151 = scmp.eq.s32.totalorder %s24, 1
      %p152 = por %p150, %p151
      %p154 = scmp.ne.s32.totalorder %s139, %s153
      %p155 = scmp.eq.s32.totalorder %s24, 0
      %p156 = por %p154, %p155
      %s158 = sadd.s32 %s157, 1
      %p161 = scmp.eq.s32.totalorder %s18, 1
      %p162 = scmp.ne.s32.totalorder %s157, %s159
      %p163 = scmp.eq.s32.totalorder %s18, 0
      %p164 = por %p162, %p163
      %p165 = scmp.ne.s32.totalorder %s157, %s159
      %p166 = scmp.eq.s32.totalorder %s23, 1
      %p167 = por %p165, %p166
      %p168 = scmp.ne.s32.totalorder %s159, %s160
      %p169 = scmp.eq.s32.totalorder %s23, 0
      %p170 = por %p168, %p169
      %p171 = scmp.ne.s32.totalorder %s159, %s160
      %p172 = scmp.eq.s32.totalorder %s24, 1
      %p173 = por %p171, %p172
      %p175 = scmp.ne.s32.totalorder %s160, %s174
      %p176 = scmp.eq.s32.totalorder %s24, 0
      %p177 = por %p175, %p176
      %s179 = sadd.s32 %s178, 1
      %p182 = scmp.eq.s32.totalorder %s18, 1
      %p183 = scmp.ne.s32.totalorder %s178, %s180
      %p184 = scmp.eq.s32.totalorder %s18, 0
      %p185 = por %p183, %p184
      %p186 = scmp.ne.s32.totalorder %s178, %s180
      %p187 = scmp.eq.s32.totalorder %s23, 1
      %p188 = por %p186, %p187
      %p189 = scmp.ne.s32.totalorder %s180, %s181
      %p190 = scmp.eq.s32.totalorder %s23, 0
      %p191 = por %p189, %p190
      %p192 = scmp.ne.s32.totalorder %s180, %s181
      %p193 = scmp.eq.s32.totalorder %s24, 1
      %p194 = por %p192, %p193
      %p196 = scmp.ne.s32.totalorder %s181, %s195
      %p197 = scmp.eq.s32.totalorder %s24, 0
      %p198 = por %p196, %p197
      %s200 = sadd.s32 %s199, 1
      %p203 = scmp.eq.s32.totalorder %s18, 1
      %p204 = scmp.ne.s32.totalorder %s199, %s201
      %p205 = scmp.eq.s32.totalorder %s18, 0
      %p206 = por %p204, %p205
      %p207 = scmp.ne.s32.totalorder %s199, %s201
      %p208 = scmp.eq.s32.totalorder %s23, 1
      %p209 = por %p207, %p208
      %p210 = scmp.ne.s32.totalorder %s201, %s202
      %p211 = scmp.eq.s32.totalorder %s23, 0
      %p212 = por %p210, %p211
      %p213 = scmp.ne.s32.totalorder %s201, %s202
      %p214 = scmp.eq.s32.totalorder %s24, 1
      %p215 = por %p213, %p214
      %p217 = scmp.ne.s32.totalorder %s202, %s216
      %p218 = scmp.eq.s32.totalorder %s24, 0
      %p219 = por %p217, %p218
      %s220 = ssub.s32 %s18, %s25
      %p221 = scmp.eq.s32.totalorder %s220, 0
      %s223 = sadd.s32 %s222, 1
      %s224 = scalar_select %p221, %s222, %s223
      %p227 = pneg %p221
      %p228 = scmp.eq.s32.totalorder %s18, 1
      %p229 = por %p227, %p228
      %p230 = scmp.ne.s32.totalorder %s222, %s225
      %p231 = scmp.eq.s32.totalorder %s18, 0
      %p232 = por %p230, %p231
      %p233 = scmp.ne.s32.totalorder %s222, %s225
      %p234 = scmp.eq.s32.totalorder %s23, 1
      %p235 = por %p233, %p234
      %p236 = scmp.ne.s32.totalorder %s225, %s226
      %p237 = scmp.eq.s32.totalorder %s23, 0
      %p238 = por %p236, %p237
      %p239 = scmp.ne.s32.totalorder %s225, %s226
      %p240 = scmp.eq.s32.totalorder %s24, 1
      %p241 = por %p239, %p240
      %p243 = scmp.ne.s32.totalorder %s226, %s242
      %p244 = scmp.eq.s32.totalorder %s24, 0
      %p245 = por %p243, %p244
      %p246 = scmp.le.s32.totalorder 1, %s18
      %p247 = scmp.lt.s32.totalorder %s18, 3
      %p248 = pnand %p246, %p247
      %p249 = pneg %p248
      // Predicated region
      $region9: #{cnn_encoder_forward.1} parent=5 // pred_check
        _
      $region10: #{cnn_encoder_forward.1} parent=5 // pred_check_branch
        %251 = sbr.rel (%p248) target = $region12
      $region11: #{cnn_encoder_forward.1} parent=5 // pred_region
        %s252 = ssub.s32 %s18, 1
        // Predicated region
        $region13: #{cnn_encoder_forward.1} parent=11 // pred_check
          %p253 = pneg %p65
        $region14: #{cnn_encoder_forward.1} parent=11 // pred_check_branch
          %255 = sbr.rel (%p253) target = $region16
        $region15: #{cnn_encoder_forward.1} parent=11 // pred_region
          _
        $region16: #{cnn_encoder_forward.1} parent=11 // pred_fallthru
          _
        // Predicated region
        $region17: #{cnn_encoder_forward.1} parent=11 // pred_check
          %p256 = pneg %p86
        $region18: #{cnn_encoder_forward.1} parent=11 // pred_check_branch
          %258 = sbr.rel (%p256) target = $region20
        $region19: #{cnn_encoder_forward.1} parent=11 // pred_region
          _
        $region20: #{cnn_encoder_forward.1} parent=11 // pred_fallthru
          _
        // Predicated region
        $region21: #{cnn_encoder_forward.1} parent=11 // pred_check
          %p259 = pneg %p107
        $region22: #{cnn_encoder_forward.1} parent=11 // pred_check_branch
          %261 = sbr.rel (%p259) target = $region24
        $region23: #{cnn_encoder_forward.1} parent=11 // pred_region
          _
        $region24: #{cnn_encoder_forward.1} parent=11 // pred_fallthru
          _
        // Predicated region
        $region25: #{cnn_encoder_forward.1} parent=11 // pred_check
          %p262 = pneg %p128
        $region26: #{cnn_encoder_forward.1} parent=11 // pred_check_branch
          %264 = sbr.rel (%p262) target = $region28
        $region27: #{cnn_encoder_forward.1} parent=11 // pred_region
          _
        $region28: #{cnn_encoder_forward.1} parent=11 // pred_fallthru
          _
        // Predicated region
        $region29: #{cnn_encoder_forward.1} parent=11 // pred_check
          %p265 = pneg %p149
        $region30: #{cnn_encoder_forward.1} parent=11 // pred_check_branch
          %267 = sbr.rel (%p265) target = $region32
        $region31: #{cnn_encoder_forward.1} parent=11 // pred_region
          _
        $region32: #{cnn_encoder_forward.1} parent=11 // pred_fallthru
          _
        // Predicated region
        $region33: #{cnn_encoder_forward.1} parent=11 // pred_check
          %p268 = pneg %p170
        $region34: #{cnn_encoder_forward.1} parent=11 // pred_check_branch
          %270 = sbr.rel (%p268) target = $region36
        $region35: #{cnn_encoder_forward.1} parent=11 // pred_region
          _
        $region36: #{cnn_encoder_forward.1} parent=11 // pred_fallthru
          _
        // Predicated region
        $region37: #{cnn_encoder_forward.1} parent=11 // pred_check
          %p271 = pneg %p191
        $region38: #{cnn_encoder_forward.1} parent=11 // pred_check_branch
          %273 = sbr.rel (%p271) target = $region40
        $region39: #{cnn_encoder_forward.1} parent=11 // pred_region
          _
        $region40: #{cnn_encoder_forward.1} parent=11 // pred_fallthru
          _
        // Predicated region
        $region41: #{cnn_encoder_forward.1} parent=11 // pred_check
          %p274 = pneg %p212
        $region42: #{cnn_encoder_forward.1} parent=11 // pred_check_branch
          %276 = sbr.rel (%p274) target = $region44
        $region43: #{cnn_encoder_forward.1} parent=11 // pred_region
          _
        $region44: #{cnn_encoder_forward.1} parent=11 // pred_fallthru
          _
      $region12: #{cnn_encoder_forward.1} parent=5 // pred_fallthru
        _
      %p277 = scmp.lt.s32.totalorder %s18, 2
      // Predicated region
      $region45: #{cnn_encoder_forward.1} parent=5 // pred_check
        %p278 = pneg %p277
      $region46: #{cnn_encoder_forward.1} parent=5 // pred_check_branch
        %280 = sbr.rel (%p278) target = $region48
      $region47: #{cnn_encoder_forward.1} parent=5 // pred_region
        // Predicated region
        $region49: #{cnn_encoder_forward.1} parent=47 // pred_check
          %p281 = pneg %p38
        $region50: #{cnn_encoder_forward.1} parent=47 // pred_check_branch
          %283 = sbr.rel (%p281) target = $region52
        $region51: #{cnn_encoder_forward.1} parent=47 // pred_region
          %p284 = scmp.lt.s32.totalorder %s18, 1
          %s285 = scalar_select %p284, %s18, 1
          %s286 = smul.addr %s285, 46
          %s287 = smul.addr %s286, 8
          %s288 = scalar_lea.vmem %s0, %s287
        $region52: #{cnn_encoder_forward.1} parent=47 // pred_fallthru
          _
      $region48: #{cnn_encoder_forward.1} parent=5 // pred_fallthru
        _
      %p289 = scmp.le.s32.totalorder 1, %s18
      %p290 = scmp.lt.s32.totalorder %s18, 3
      %p291 = pnand %p289, %p290
      %p292 = pneg %p291
      // Predicated region
      $region53: #{cnn_encoder_forward.1} parent=5 // pred_check
        _
      $region54: #{cnn_encoder_forward.1} parent=5 // pred_check_branch
        %294 = sbr.rel (%p291) target = $region56
      $region55: #{cnn_encoder_forward.1} parent=5 // pred_region
        %s295 = ssub.s32 %s18, 1
        %p296 = scmp.lt.s32.totalorder %s23, 1
        %s297 = scalar_select %p296, %s23, 1
        %s298 = smul.addr %s297, 46
        %s299 = smul.addr %s298, 8
        %s300 = scalar_lea.vmem %s0, %s299
        %p301 = pneg %p44
        %p302 = pneg %p41
        %p303 = pneg %p65
        %p304 = pneg %p62
        %p305 = pneg %p86
        %p306 = pneg %p83
        %p307 = pneg %p107
        %p308 = pneg %p104
        %p309 = pneg %p128
        %p310 = pneg %p125
        %p311 = pneg %p149
        %p312 = pneg %p146
        %p313 = pneg %p170
        %p314 = pneg %p167
        %p315 = pneg %p191
        %p316 = pneg %p188
        %p317 = pneg %p212
        %p318 = pneg %p209
        %p319 = pneg %p238
        %p320 = pneg %p235
        %s321 = sand.u32 %s225, 1
        %s322 = scalar_lea.sflag [#allocation4], %s321
        %s323 = sand.u32 %s225, 1
        %s324 = scalar_lea.vmem [#allocation3], %s323
        %p325 = scmp.lt.s32.totalorder %s23, 1
        %s326 = scalar_select %p325, %s23, 1
        %s327 = smul.addr %s326, 46
        %s328 = smul.addr %s327, 8
        %s329 = scalar_lea.vmem %s0, %s328
        %v330 = vld [vmem:[%s4] sm:$0x1]
        %v332 = vlaneseq
        %v333 = vshrl.u32 %v332, 7
        %v334 = vsub.s32 0, %v333
        %v335 = vrot.slane %v330, %v334
        %v337 = vld [vmem:[%s329] sm:$0xff]
        %v338 = vld [vmem:[%s329 + $0x8] sm:$0xff]
        %v339 = vld [vmem:[%s329 + $0x10] sm:$0xff]
        %v340 = vld [vmem:[%s329 + $0x18] sm:$0xff]
        %v341 = vld [vmem:[%s329 + $0x20] sm:$0xff]
        %v342 = vld [vmem:[%s329 + $0x28] sm:$0xff]
        %v343 = vld [vmem:[%s329 + $0x30] sm:$0xff]
        %v344 = vld [vmem:[%s329 + $0x38] sm:$0xff]
        %v345 = vld [vmem:[%s329 + $0x40] sm:$0xff]
        %v346 = vld [vmem:[%s329 + $0x48] sm:$0xff]
        %v347 = vld [vmem:[%s329 + $0x50] sm:$0xff]
        %v348 = vld [vmem:[%s329 + $0x58] sm:$0xff]
        %v349 = vld [vmem:[%s329 + $0x60] sm:$0xff]
        %v350 = vld [vmem:[%s329 + $0x68] sm:$0xff]
        %v351 = vld [vmem:[%s329 + $0x70] sm:$0xff]
        %v352 = vld [vmem:[%s329 + $0x78] sm:$0xff]
        %v353 = vld [vmem:[%s329 + $0x80] sm:$0xff]
        %v354 = vld [vmem:[%s329 + $0x88] sm:$0xff]
        %v355 = vld [vmem:[%s329 + $0x90] sm:$0xff]
        %v356 = vld [vmem:[%s329 + $0x98] sm:$0xff]
        %v357 = vld [vmem:[%s329 + $0xa0] sm:$0xff]
        %v358 = vld [vmem:[%s329 + $0xa8] sm:$0xff]
        %v359 = vld [vmem:[%s329 + $0xb0] sm:$0xff]
        %v360 = vld [vmem:[%s329 + $0xb8] sm:$0xff]
        %v361 = vld [vmem:[%s329 + $0xc0] sm:$0xff]
        %v362 = vld [vmem:[%s329 + $0xc8] sm:$0xff]
        %v363 = vld [vmem:[%s329 + $0xd0] sm:$0xff]
        %v364 = vld [vmem:[%s329 + $0xd8] sm:$0xff]
        %v365 = vld [vmem:[%s329 + $0xe0] sm:$0xff]
        %v366 = vld [vmem:[%s329 + $0xe8] sm:$0xff]
        %v367 = vld [vmem:[%s329 + $0xf0] sm:$0xff]
        %v368 = vld [vmem:[%s329 + $0xf8] sm:$0xff]
        %v369 = vld [vmem:[%s329 + $0x100] sm:$0xff]
        %v370 = vld [vmem:[%s329 + $0x108] sm:$0xff]
        %v371 = vld [vmem:[%s329 + $0x110] sm:$0xff]
        %v372 = vld [vmem:[%s329 + $0x118] sm:$0xff]
        %v373 = vld [vmem:[%s329 + $0x120] sm:$0xff]
        %v374 = vld [vmem:[%s329 + $0x128] sm:$0xff]
        %v375 = vld [vmem:[%s329 + $0x130] sm:$0xff]
        %v376 = vld [vmem:[%s329 + $0x138] sm:$0xff]
        %v377 = vld [vmem:[%s329 + $0x140] sm:$0xf]
        %v378 = vld [vmem:[%s3] sm:$0xf]
        %vm379 = vcmask 31744
        %v381 = vsel %vm379, %v337, 0
        %v384 = vsel %vm379, %v338, 0
        %v387 = vsel %vm379, %v339, 0
        %v390 = vsel %vm379, %v340, 0
        %v393 = vsel %vm379, %v341, 0
        %v396 = vsel %vm379, %v342, 0
        %v399 = vsel %vm379, %v343, 0
        %v402 = vsel %vm379, %v344, 0
        %v405 = vsel %vm379, %v345, 0
        %v408 = vsel %vm379, %v346, 0
        %v411 = vsel %vm379, %v347, 0
        %v414 = vsel %vm379, %v348, 0
        %v417 = vsel %vm379, %v349, 0
        %v420 = vsel %vm379, %v350, 0
        %v423 = vsel %vm379, %v351, 0
        %v426 = vsel %vm379, %v352, 0
        %v429 = vsel %vm379, %v353, 0
        %v432 = vsel %vm379, %v354, 0
        %v435 = vsel %vm379, %v355, 0
        %v438 = vsel %vm379, %v356, 0
        %v441 = vsel %vm379, %v357, 0
        %v444 = vsel %vm379, %v358, 0
        %v447 = vsel %vm379, %v359, 0
        %v450 = vsel %vm379, %v360, 0
        %v453 = vsel %vm379, %v361, 0
        %v456 = vsel %vm379, %v362, 0
        %v459 = vsel %vm379, %v363, 0
        %v462 = vsel %vm379, %v364, 0
        %v465 = vsel %vm379, %v365, 0
        %v468 = vsel %vm379, %v366, 0
        %v471 = vsel %vm379, %v367, 0
        %v474 = vsel %vm379, %v368, 0
        %v477 = vsel %vm379, %v369, 0
        %v480 = vsel %vm379, %v370, 0
        %v483 = vsel %vm379, %v371, 0
        %v486 = vsel %vm379, %v372, 0
        %v489 = vsel %vm379, %v373, 0
        %v492 = vsel %vm379, %v374, 0
        %v495 = vsel %vm379, %v375, 0
        %v498 = vsel %vm379, %v376, 0
        %v501 = vsel %vm379, %v377, 0
        %vm503 = vcmask 1043456
        %v505 = vsel %vm503, %v378, 0
        %507 = vmatprep.subr.mxu0 0.0
        %508 = vmatpush1.msra.mxu0 0.0
        %509 = vmatprep.subr.mxu0 0.0
        %510 = vmatpush1.msra.mxu0 0.0
        %511 = vmatprep.subr.mxu0 0.0
        %512 = vmatpush1.msra.mxu0 0.0
        %513 = vmatprep.subr.mxu0 0.0
        %514 = vmatpush1.msra.mxu0 0.0
        %515 = vmatprep.subr.mxu0 0.0
        %516 = vmatpush1.msra.mxu0 0.0
        %517 = vmatprep.subr.mxu0 0.0
        %518 = vmatpush1.msra.mxu0 0.0
        %519 = vmatprep.subr.mxu0 0.0
        %520 = vmatpush1.msra.mxu0 0.0
        %521 = vmatprep.subr.mxu0 0.0
        %522 = vmatpush1.msra.mxu0 0.0
        %523 = vmatprep.subr.mxu0 0.0
        %524 = vmatpush1.msra.mxu0 0.0
        %525 = vmatprep.subr.mxu0 0.0
        %526 = vmatpush1.msra.mxu0 0.0
        %527 = vmatprep.subr.mxu0 0.0
        %528 = vmatpush1.msra.mxu0 0.0
        %529 = vmatprep.subr.mxu0 0.0
        %530 = vmatpush1.msra.mxu0 0.0
        %531 = vmatprep.subr.mxu0 0.0
        %532 = vmatpush1.msra.mxu0 0.0
        %533 = vmatprep.subr.mxu0 0.0
        %534 = vmatpush1.msra.mxu0 0.0
        %535 = vmatprep.subr.mxu0 0.0
        %536 = vmatpush1.msra.mxu0 0.0
        %537 = vmatprep.subr.mxu0 0.0
        %538 = vmatpush1.msra.mxu0 %v505
        %539 = vmatprep.subr.mxu0 0.0
        %540 = vmatpush2.msra.mxu0 0.0
        %541 = vmatprep.subr.mxu0 0.0
        %542 = vmatpush2.msra.mxu0 0.0
        %543 = vmatprep.subr.mxu0 0.0
        %544 = vmatpush2.msra.mxu0 0.0
        %545 = vmatprep.subr.mxu0 0.0
        %546 = vmatpush2.msra.mxu0 0.0
        %547 = vmatprep.subr.mxu0 0.0
        %548 = vmatpush2.msra.mxu0 0.0
        %549 = vmatprep.subr.mxu0 0.0
        %550 = vmatpush2.msra.mxu0 0.0
        %551 = vmatprep.subr.mxu0 0.0
        %552 = vmatpush2.msra.mxu0 0.0
        %553 = vmatprep.subr.mxu0 0.0
        %554 = vmatpush2.msra.mxu0 0.0
        %555 = vmatprep.subr.mxu0 0.0
        %556 = vmatpush2.msra.mxu0 0.0
        %557 = vmatprep.subr.mxu0 0.0
        %558 = vmatpush2.msra.mxu0 0.0
        %559 = vmatprep.subr.mxu0 0.0
        %560 = vmatpush2.msra.mxu0 0.0
        %561 = vmatprep.subr.mxu0 0.0
        %562 = vmatpush2.msra.mxu0 0.0
        %563 = vmatprep.subr.mxu0 0.0
        %564 = vmatpush2.msra.mxu0 0.0
        %565 = vmatprep.subr.mxu0 0.0
        %566 = vmatpush2.msra.mxu0 0.0
        %567 = vmatprep.subr.mxu0 0.0
        %568 = vmatpush2.msra.mxu0 0.0
        %569 = vmatprep.subr.mxu0 0.0
        %570 = vmatpush2.msra.mxu0 0.0
        %571 = vmatprep.mubr.f32.mxu0 0.0
        %572 = vmatmul.mubr.f32.gmra.mxu0 %v381
        %v573 = vpop.f32.mrf.mxu0
        %v574 = vadd.f32 0.0, %v573
        %v575 = vpop.f32.mrf.mxu0
        %576 = vmatprep.mubr.f32.mxu0 0.0
        %577 = vmatmul.mubr.f32.gmra.mxu0 %v384
        %v578 = vpop.f32.mrf.mxu0
        %v579 = vadd.f32 0.0, %v578
        %v580 = vpop.f32.mrf.mxu0
        %581 = vmatprep.mubr.f32.mxu0 0.0
        %582 = vmatmul.mubr.f32.gmra.mxu0 %v387
        %v583 = vpop.f32.mrf.mxu0
        %v584 = vadd.f32 0.0, %v583
        %v585 = vpop.f32.mrf.mxu0
        %586 = vmatprep.mubr.f32.mxu0 0.0
        %587 = vmatmul.mubr.f32.gmra.mxu0 %v390
        %v588 = vpop.f32.mrf.mxu0
        %v589 = vadd.f32 0.0, %v588
        %v590 = vpop.f32.mrf.mxu0
        %591 = vmatprep.mubr.f32.mxu0 0.0
        %592 = vmatmul.mubr.f32.gmra.mxu0 %v393
        %v593 = vpop.f32.mrf.mxu0
        %v594 = vadd.f32 0.0, %v593
        %v595 = vpop.f32.mrf.mxu0
        %596 = vmatprep.mubr.f32.mxu0 0.0
        %597 = vmatmul.mubr.f32.gmra.mxu0 %v396
        %v598 = vpop.f32.mrf.mxu0
        %v599 = vadd.f32 0.0, %v598
        %v600 = vpop.f32.mrf.mxu0
        %601 = vmatprep.mubr.f32.mxu0 0.0
        %602 = vmatmul.mubr.f32.gmra.mxu0 %v399
        %v603 = vpop.f32.mrf.mxu0
        %v604 = vadd.f32 0.0, %v603
        %v605 = vpop.f32.mrf.mxu0
        %606 = vmatprep.mubr.f32.mxu0 0.0
        %607 = vmatmul.mubr.f32.gmra.mxu0 %v402
        %v608 = vpop.f32.mrf.mxu0
        %v609 = vadd.f32 0.0, %v608
        %v610 = vpop.f32.mrf.mxu0
        %611 = vmatprep.mubr.f32.mxu0 0.0
        %612 = vmatmul.mubr.f32.gmra.mxu0 %v405
        %v613 = vpop.f32.mrf.mxu0
        %v614 = vadd.f32 0.0, %v613
        %v615 = vpop.f32.mrf.mxu0
        %616 = vmatprep.mubr.f32.mxu0 0.0
        %617 = vmatmul.mubr.f32.gmra.mxu0 %v408
        %v618 = vpop.f32.mrf.mxu0
        %v619 = vadd.f32 0.0, %v618
        %v620 = vpop.f32.mrf.mxu0
        %621 = vmatprep.mubr.f32.mxu0 0.0
        %622 = vmatmul.mubr.f32.gmra.mxu0 %v411
        %v623 = vpop.f32.mrf.mxu0
        %v624 = vadd.f32 0.0, %v623
        %v625 = vpop.f32.mrf.mxu0
        %626 = vmatprep.mubr.f32.mxu0 0.0
        %627 = vmatmul.mubr.f32.gmra.mxu0 %v414
        %v628 = vpop.f32.mrf.mxu0
        %v629 = vadd.f32 0.0, %v628
        %v630 = vpop.f32.mrf.mxu0
        %631 = vmatprep.mubr.f32.mxu0 0.0
        %632 = vmatmul.mubr.f32.gmra.mxu0 %v417
        %v633 = vpop.f32.mrf.mxu0
        %v634 = vadd.f32 0.0, %v633
        %v635 = vpop.f32.mrf.mxu0
        %636 = vmatprep.mubr.f32.mxu0 0.0
        %637 = vmatmul.mubr.f32.gmra.mxu0 %v420
        %v638 = vpop.f32.mrf.mxu0
        %v639 = vadd.f32 0.0, %v638
        %v640 = vpop.f32.mrf.mxu0
        %641 = vmatprep.mubr.f32.mxu0 0.0
        %642 = vmatmul.mubr.f32.gmra.mxu0 %v423
        %v643 = vpop.f32.mrf.mxu0
        %v644 = vadd.f32 0.0, %v643
        %v645 = vpop.f32.mrf.mxu0
        %646 = vmatprep.mubr.f32.mxu0 0.0
        %647 = vmatmul.mubr.f32.gmra.mxu0 %v426
        %v648 = vpop.f32.mrf.mxu0
        %v649 = vadd.f32 0.0, %v648
        %v650 = vpop.f32.mrf.mxu0
        %651 = vmatprep.mubr.f32.mxu0 0.0
        %652 = vmatmul.mubr.f32.gmra.mxu0 %v429
        %v653 = vpop.f32.mrf.mxu0
        %v654 = vadd.f32 0.0, %v653
        %v655 = vpop.f32.mrf.mxu0
        %656 = vmatprep.mubr.f32.mxu0 0.0
        %657 = vmatmul.mubr.f32.gmra.mxu0 %v432
        %v658 = vpop.f32.mrf.mxu0
        %v659 = vadd.f32 0.0, %v658
        %v660 = vpop.f32.mrf.mxu0
        %661 = vmatprep.mubr.f32.mxu0 0.0
        %662 = vmatmul.mubr.f32.gmra.mxu0 %v435
        %v663 = vpop.f32.mrf.mxu0
        %v664 = vadd.f32 0.0, %v663
        %v665 = vpop.f32.mrf.mxu0
        %666 = vmatprep.mubr.f32.mxu0 0.0
        %667 = vmatmul.mubr.f32.gmra.mxu0 %v438
        %v668 = vpop.f32.mrf.mxu0
        %v669 = vadd.f32 0.0, %v668
        %v670 = vpop.f32.mrf.mxu0
        %671 = vmatprep.mubr.f32.mxu0 0.0
        %672 = vmatmul.mubr.f32.gmra.mxu0 %v441
        %v673 = vpop.f32.mrf.mxu0
        %v674 = vadd.f32 0.0, %v673
        %v675 = vpop.f32.mrf.mxu0
        %676 = vmatprep.mubr.f32.mxu0 0.0
        %677 = vmatmul.mubr.f32.gmra.mxu0 %v444
        %v678 = vpop.f32.mrf.mxu0
        %v679 = vadd.f32 0.0, %v678
        %v680 = vpop.f32.mrf.mxu0
        %681 = vmatprep.mubr.f32.mxu0 0.0
        %682 = vmatmul.mubr.f32.gmra.mxu0 %v447
        %v683 = vpop.f32.mrf.mxu0
        %v684 = vadd.f32 0.0, %v683
        %v685 = vpop.f32.mrf.mxu0
        %686 = vmatprep.mubr.f32.mxu0 0.0
        %687 = vmatmul.mubr.f32.gmra.mxu0 %v450
        %v688 = vpop.f32.mrf.mxu0
        %v689 = vadd.f32 0.0, %v688
        %v690 = vpop.f32.mrf.mxu0
        %691 = vmatprep.mubr.f32.mxu0 0.0
        %692 = vmatmul.mubr.f32.gmra.mxu0 %v453
        %v693 = vpop.f32.mrf.mxu0
        %v694 = vadd.f32 0.0, %v693
        %v695 = vpop.f32.mrf.mxu0
        %696 = vmatprep.mubr.f32.mxu0 0.0
        %697 = vmatmul.mubr.f32.gmra.mxu0 %v456
        %v698 = vpop.f32.mrf.mxu0
        %v699 = vadd.f32 0.0, %v698
        %v700 = vpop.f32.mrf.mxu0
        %701 = vmatprep.mubr.f32.mxu0 0.0
        %702 = vmatmul.mubr.f32.gmra.mxu0 %v459
        %v703 = vpop.f32.mrf.mxu0
        %v704 = vadd.f32 0.0, %v703
        %v705 = vpop.f32.mrf.mxu0
        %706 = vmatprep.mubr.f32.mxu0 0.0
        %707 = vmatmul.mubr.f32.gmra.mxu0 %v462
        %v708 = vpop.f32.mrf.mxu0
        %v709 = vadd.f32 0.0, %v708
        %v710 = vpop.f32.mrf.mxu0
        %711 = vmatprep.mubr.f32.mxu0 0.0
        %712 = vmatmul.mubr.f32.gmra.mxu0 %v465
        %v713 = vpop.f32.mrf.mxu0
        %v714 = vadd.f32 0.0, %v713
        %v715 = vpop.f32.mrf.mxu0
        %716 = vmatprep.mubr.f32.mxu0 0.0
        %717 = vmatmul.mubr.f32.gmra.mxu0 %v468
        %v718 = vpop.f32.mrf.mxu0
        %v719 = vadd.f32 0.0, %v718
        %v720 = vpop.f32.mrf.mxu0
        %721 = vmatprep.mubr.f32.mxu0 0.0
        %722 = vmatmul.mubr.f32.gmra.mxu0 %v471
        %v723 = vpop.f32.mrf.mxu0
        %v724 = vadd.f32 0.0, %v723
        %v725 = vpop.f32.mrf.mxu0
        %726 = vmatprep.mubr.f32.mxu0 0.0
        %727 = vmatmul.mubr.f32.gmra.mxu0 %v474
        %v728 = vpop.f32.mrf.mxu0
        %v729 = vadd.f32 0.0, %v728
        %v730 = vpop.f32.mrf.mxu0
        %731 = vmatprep.mubr.f32.mxu0 0.0
        %732 = vmatmul.mubr.f32.gmra.mxu0 %v477
        %v733 = vpop.f32.mrf.mxu0
        %v734 = vadd.f32 0.0, %v733
        %v735 = vpop.f32.mrf.mxu0
        %736 = vmatprep.mubr.f32.mxu0 0.0
        %737 = vmatmul.mubr.f32.gmra.mxu0 %v480
        %v738 = vpop.f32.mrf.mxu0
        %v739 = vadd.f32 0.0, %v738
        %v740 = vpop.f32.mrf.mxu0
        %741 = vmatprep.mubr.f32.mxu0 0.0
        %742 = vmatmul.mubr.f32.gmra.mxu0 %v483
        %v743 = vpop.f32.mrf.mxu0
        %v744 = vadd.f32 0.0, %v743
        %v745 = vpop.f32.mrf.mxu0
        %746 = vmatprep.mubr.f32.mxu0 0.0
        %747 = vmatmul.mubr.f32.gmra.mxu0 %v486
        %v748 = vpop.f32.mrf.mxu0
        %v749 = vadd.f32 0.0, %v748
        %v750 = vpop.f32.mrf.mxu0
        %751 = vmatprep.mubr.f32.mxu0 0.0
        %752 = vmatmul.mubr.f32.gmra.mxu0 %v489
        %v753 = vpop.f32.mrf.mxu0
        %v754 = vadd.f32 0.0, %v753
        %v755 = vpop.f32.mrf.mxu0
        %756 = vmatprep.mubr.f32.mxu0 0.0
        %757 = vmatmul.mubr.f32.gmra.mxu0 %v492
        %v758 = vpop.f32.mrf.mxu0
        %v759 = vadd.f32 0.0, %v758
        %v760 = vpop.f32.mrf.mxu0
        %761 = vmatprep.mubr.f32.mxu0 0.0
        %762 = vmatmul.mubr.f32.gmra.mxu0 %v495
        %v763 = vpop.f32.mrf.mxu0
        %v764 = vadd.f32 0.0, %v763
        %v765 = vpop.f32.mrf.mxu0
        %766 = vmatprep.mubr.f32.mxu0 0.0
        %767 = vmatmul.mubr.f32.gmra.mxu0 %v498
        %v768 = vpop.f32.mrf.mxu0
        %v769 = vadd.f32 0.0, %v768
        %v770 = vpop.f32.mrf.mxu0
        %771 = vmatprep.mubr.f32.mxu0 0.0
        %772 = vmatmul.mubr.f32.gmra.mxu0 %v501
        %v773 = vpop.f32.mrf.mxu0
        %v774 = vadd.f32 0.0, %v773
        %v775 = vpop.f32.mrf.mxu0
        %776 = vdwg.mxu0
        %v777 = vadd.f32 %v335, %v574
        %v778 = vadd.f32 %v335, %v579
        %v779 = vadd.f32 %v335, %v584
        %v780 = vadd.f32 %v335, %v589
        %v781 = vadd.f32 %v335, %v594
        %v782 = vadd.f32 %v335, %v599
        %v783 = vadd.f32 %v335, %v604
        %v784 = vadd.f32 %v335, %v609
        %v785 = vadd.f32 %v335, %v614
        %v786 = vadd.f32 %v335, %v619
        %v787 = vadd.f32 %v335, %v624
        %v788 = vadd.f32 %v335, %v629
        %v789 = vadd.f32 %v335, %v634
        %v790 = vadd.f32 %v335, %v639
        %v791 = vadd.f32 %v335, %v644
        %v792 = vadd.f32 %v335, %v649
        %v793 = vadd.f32 %v335, %v654
        %v794 = vadd.f32 %v335, %v659
        %v795 = vadd.f32 %v335, %v664
        %v796 = vadd.f32 %v335, %v669
        %v797 = vadd.f32 %v335, %v674
        %v798 = vadd.f32 %v335, %v679
        %v799 = vadd.f32 %v335, %v684
        %v800 = vadd.f32 %v335, %v689
        %v801 = vadd.f32 %v335, %v694
        %v802 = vadd.f32 %v335, %v699
        %v803 = vadd.f32 %v335, %v704
        %v804 = vadd.f32 %v335, %v709
        %v805 = vadd.f32 %v335, %v714
        %v806 = vadd.f32 %v335, %v719
        %v807 = vadd.f32 %v335, %v724
        %v808 = vadd.f32 %v335, %v729
        %v809 = vadd.f32 %v335, %v734
        %v810 = vadd.f32 %v335, %v739
        %v811 = vadd.f32 %v335, %v744
        %v812 = vadd.f32 %v335, %v749
        %v813 = vadd.f32 %v335, %v754
        %v814 = vadd.f32 %v335, %v759
        %v815 = vadd.f32 %v335, %v764
        %v816 = vadd.f32 %v335, %v769
        %v817 = vadd.f32 %v335, %v774
        %v818 = vld [vmem:[%s329 + $0x1] sm:$0xff]
        %v819 = vld [vmem:[%s329 + $0x9] sm:$0xff]
        %v820 = vld [vmem:[%s329 + $0x11] sm:$0xff]
        %v821 = vld [vmem:[%s329 + $0x19] sm:$0xff]
        %v822 = vld [vmem:[%s329 + $0x21] sm:$0xff]
        %v823 = vld [vmem:[%s329 + $0x29] sm:$0xff]
        %v824 = vld [vmem:[%s329 + $0x31] sm:$0xff]
        %v825 = vld [vmem:[%s329 + $0x39] sm:$0xff]
        %v826 = vld [vmem:[%s329 + $0x41] sm:$0xff]
        %v827 = vld [vmem:[%s329 + $0x49] sm:$0xff]
        %v828 = vld [vmem:[%s329 + $0x51] sm:$0xff]
        %v829 = vld [vmem:[%s329 + $0x59] sm:$0xff]
        %v830 = vld [vmem:[%s329 + $0x61] sm:$0xff]
        %v831 = vld [vmem:[%s329 + $0x69] sm:$0xff]
        %v832 = vld [vmem:[%s329 + $0x71] sm:$0xff]
        %v833 = vld [vmem:[%s329 + $0x79] sm:$0xff]
        %v834 = vld [vmem:[%s329 + $0x81] sm:$0xff]
        %v835 = vld [vmem:[%s329 + $0x89] sm:$0xff]
        %v836 = vld [vmem:[%s329 + $0x91] sm:$0xff]
        %v837 = vld [vmem:[%s329 + $0x99] sm:$0xff]
        %v838 = vld [vmem:[%s329 + $0xa1] sm:$0xff]
        %v839 = vld [vmem:[%s329 + $0xa9] sm:$0xff]
        %v840 = vld [vmem:[%s329 + $0xb1] sm:$0xff]
        %v841 = vld [vmem:[%s329 + $0xb9] sm:$0xff]
        %v842 = vld [vmem:[%s329 + $0xc1] sm:$0xff]
        %v843 = vld [vmem:[%s329 + $0xc9] sm:$0xff]
        %v844 = vld [vmem:[%s329 + $0xd1] sm:$0xff]
        %v845 = vld [vmem:[%s329 + $0xd9] sm:$0xff]
        %v846 = vld [vmem:[%s329 + $0xe1] sm:$0xff]
        %v847 = vld [vmem:[%s329 + $0xe9] sm:$0xff]
        %v848 = vld [vmem:[%s329 + $0xf1] sm:$0xff]
        %v849 = vld [vmem:[%s329 + $0xf9] sm:$0xff]
        %v850 = vld [vmem:[%s329 + $0x101] sm:$0xff]
        %v851 = vld [vmem:[%s329 + $0x109] sm:$0xff]
        %v852 = vld [vmem:[%s329 + $0x111] sm:$0xff]
        %v853 = vld [vmem:[%s329 + $0x119] sm:$0xff]
        %v854 = vld [vmem:[%s329 + $0x121] sm:$0xff]
        %v855 = vld [vmem:[%s329 + $0x129] sm:$0xff]
        %v856 = vld [vmem:[%s329 + $0x131] sm:$0xff]
        %v857 = vld [vmem:[%s329 + $0x139] sm:$0xff]
        %v858 = vld [vmem:[%s329 + $0x141] sm:$0xf]
        %v859 = vld [vmem:[%s3 + $0x4] sm:$0xf]
        %v861 = vsel %vm379, %v818, 0
        %v864 = vsel %vm379, %v819, 0
        %v867 = vsel %vm379, %v820, 0
        %v870 = vsel %vm379, %v821, 0
        %v873 = vsel %vm379, %v822, 0
        %v876 = vsel %vm379, %v823, 0
        %v879 = vsel %vm379, %v824, 0
        %v882 = vsel %vm379, %v825, 0
        %v885 = vsel %vm379, %v826, 0
        %v888 = vsel %vm379, %v827, 0
        %v891 = vsel %vm379, %v828, 0
        %v894 = vsel %vm379, %v829, 0
        %v897 = vsel %vm379, %v830, 0
        %v900 = vsel %vm379, %v831, 0
        %v903 = vsel %vm379, %v832, 0
        %v906 = vsel %vm379, %v833, 0
        %v909 = vsel %vm379, %v834, 0
        %v912 = vsel %vm379, %v835, 0
        %v915 = vsel %vm379, %v836, 0
        %v918 = vsel %vm379, %v837, 0
        %v921 = vsel %vm379, %v838, 0
        %v924 = vsel %vm379, %v839, 0
        %v927 = vsel %vm379, %v840, 0
        %v930 = vsel %vm379, %v841, 0
        %v933 = vsel %vm379, %v842, 0
        %v936 = vsel %vm379, %v843, 0
        %v939 = vsel %vm379, %v844, 0
        %v942 = vsel %vm379, %v845, 0
        %v945 = vsel %vm379, %v846, 0
        %v948 = vsel %vm379, %v847, 0
        %v951 = vsel %vm379, %v848, 0
        %v954 = vsel %vm379, %v849, 0
        %v957 = vsel %vm379, %v850, 0
        %v960 = vsel %vm379, %v851, 0
        %v963 = vsel %vm379, %v852, 0
        %v966 = vsel %vm379, %v853, 0
        %v969 = vsel %vm379, %v854, 0
        %v972 = vsel %vm379, %v855, 0
        %v975 = vsel %vm379, %v856, 0
        %v978 = vsel %vm379, %v857, 0
        %v981 = vsel %vm379, %v858, 0
        %v984 = vsel %vm503, %v859, 0
        %986 = vmatprep.subr.mxu0 0.0
        %987 = vmatpush1.msra.mxu0 0.0
        %988 = vmatprep.subr.mxu0 0.0
        %989 = vmatpush1.msra.mxu0 0.0
        %990 = vmatprep.subr.mxu0 0.0
        %991 = vmatpush1.msra.mxu0 0.0
        %992 = vmatprep.subr.mxu0 0.0
        %993 = vmatpush1.msra.mxu0 0.0
        %994 = vmatprep.subr.mxu0 0.0
        %995 = vmatpush1.msra.mxu0 0.0
        %996 = vmatprep.subr.mxu0 0.0
        %997 = vmatpush1.msra.mxu0 0.0
        %998 = vmatprep.subr.mxu0 0.0
        %999 = vmatpush1.msra.mxu0 0.0
        %1000 = vmatprep.subr.mxu0 0.0
        %1001 = vmatpush1.msra.mxu0 0.0
        %1002 = vmatprep.subr.mxu0 0.0
        %1003 = vmatpush1.msra.mxu0 0.0
        %1004 = vmatprep.subr.mxu0 0.0
        %1005 = vmatpush1.msra.mxu0 0.0
        %1006 = vmatprep.subr.mxu0 0.0
        %1007 = vmatpush1.msra.mxu0 0.0
        %1008 = vmatprep.subr.mxu0 0.0
        %1009 = vmatpush1.msra.mxu0 0.0
        %1010 = vmatprep.subr.mxu0 0.0
        %1011 = vmatpush1.msra.mxu0 0.0
        %1012 = vmatprep.subr.mxu0 0.0
        %1013 = vmatpush1.msra.mxu0 0.0
        %1014 = vmatprep.subr.mxu0 0.0
        %1015 = vmatpush1.msra.mxu0 0.0
        %1016 = vmatprep.subr.mxu0 0.0
        %1017 = vmatpush1.msra.mxu0 %v984
        %1018 = vmatprep.subr.mxu0 0.0
        %1019 = vmatpush2.msra.mxu0 0.0
        %1020 = vmatprep.subr.mxu0 0.0
        %1021 = vmatpush2.msra.mxu0 0.0
        %1022 = vmatprep.subr.mxu0 0.0
        %1023 = vmatpush2.msra.mxu0 0.0
        %1024 = vmatprep.subr.mxu0 0.0
        %1025 = vmatpush2.msra.mxu0 0.0
        %1026 = vmatprep.subr.mxu0 0.0
        %1027 = vmatpush2.msra.mxu0 0.0
        %1028 = vmatprep.subr.mxu0 0.0
        %1029 = vmatpush2.msra.mxu0 0.0
        %1030 = vmatprep.subr.mxu0 0.0
        %1031 = vmatpush2.msra.mxu0 0.0
        %1032 = vmatprep.subr.mxu0 0.0
        %1033 = vmatpush2.msra.mxu0 0.0
        %1034 = vmatprep.subr.mxu0 0.0
        %1035 = vmatpush2.msra.mxu0 0.0
        %1036 = vmatprep.subr.mxu0 0.0
        %1037 = vmatpush2.msra.mxu0 0.0
        %1038 = vmatprep.subr.mxu0 0.0
        %1039 = vmatpush2.msra.mxu0 0.0
        %1040 = vmatprep.subr.mxu0 0.0
        %1041 = vmatpush2.msra.mxu0 0.0
        %1042 = vmatprep.subr.mxu0 0.0
        %1043 = vmatpush2.msra.mxu0 0.0
        %1044 = vmatprep.subr.mxu0 0.0
        %1045 = vmatpush2.msra.mxu0 0.0
        %1046 = vmatprep.subr.mxu0 0.0
        %1047 = vmatpush2.msra.mxu0 0.0
        %1048 = vmatprep.subr.mxu0 0.0
        %1049 = vmatpush2.msra.mxu0 0.0
        %1050 = vmatprep.mubr.f32.mxu0 0.0
        %1051 = vmatmul.mubr.f32.gmra.mxu0 %v861
        %v1052 = vpop.f32.mrf.mxu0
        %v1053 = vadd.f32 0.0, %v1052
        %v1054 = vpop.f32.mrf.mxu0
        %1055 = vmatprep.mubr.f32.mxu0 0.0
        %1056 = vmatmul.mubr.f32.gmra.mxu0 %v864
        %v1057 = vpop.f32.mrf.mxu0
        %v1058 = vadd.f32 0.0, %v1057
        %v1059 = vpop.f32.mrf.mxu0
        %1060 = vmatprep.mubr.f32.mxu0 0.0
        %1061 = vmatmul.mubr.f32.gmra.mxu0 %v867
        %v1062 = vpop.f32.mrf.mxu0
        %v1063 = vadd.f32 0.0, %v1062
        %v1064 = vpop.f32.mrf.mxu0
        %1065 = vmatprep.mubr.f32.mxu0 0.0
        %1066 = vmatmul.mubr.f32.gmra.mxu0 %v870
        %v1067 = vpop.f32.mrf.mxu0
        %v1068 = vadd.f32 0.0, %v1067
        %v1069 = vpop.f32.mrf.mxu0
        %1070 = vmatprep.mubr.f32.mxu0 0.0
        %1071 = vmatmul.mubr.f32.gmra.mxu0 %v873
        %v1072 = vpop.f32.mrf.mxu0
        %v1073 = vadd.f32 0.0, %v1072
        %v1074 = vpop.f32.mrf.mxu0
        %1075 = vmatprep.mubr.f32.mxu0 0.0
        %1076 = vmatmul.mubr.f32.gmra.mxu0 %v876
        %v1077 = vpop.f32.mrf.mxu0
        %v1078 = vadd.f32 0.0, %v1077
        %v1079 = vpop.f32.mrf.mxu0
        %1080 = vmatprep.mubr.f32.mxu0 0.0
        %1081 = vmatmul.mubr.f32.gmra.mxu0 %v879
        %v1082 = vpop.f32.mrf.mxu0
        %v1083 = vadd.f32 0.0, %v1082
        %v1084 = vpop.f32.mrf.mxu0
        %1085 = vmatprep.mubr.f32.mxu0 0.0
        %1086 = vmatmul.mubr.f32.gmra.mxu0 %v882
        %v1087 = vpop.f32.mrf.mxu0
        %v1088 = vadd.f32 0.0, %v1087
        %v1089 = vpop.f32.mrf.mxu0
        %1090 = vmatprep.mubr.f32.mxu0 0.0
        %1091 = vmatmul.mubr.f32.gmra.mxu0 %v885
        %v1092 = vpop.f32.mrf.mxu0
        %v1093 = vadd.f32 0.0, %v1092
        %v1094 = vpop.f32.mrf.mxu0
        %1095 = vmatprep.mubr.f32.mxu0 0.0
        %1096 = vmatmul.mubr.f32.gmra.mxu0 %v888
        %v1097 = vpop.f32.mrf.mxu0
        %v1098 = vadd.f32 0.0, %v1097
        %v1099 = vpop.f32.mrf.mxu0
        %1100 = vmatprep.mubr.f32.mxu0 0.0
        %1101 = vmatmul.mubr.f32.gmra.mxu0 %v891
        %v1102 = vpop.f32.mrf.mxu0
        %v1103 = vadd.f32 0.0, %v1102
        %v1104 = vpop.f32.mrf.mxu0
        %1105 = vmatprep.mubr.f32.mxu0 0.0
        %1106 = vmatmul.mubr.f32.gmra.mxu0 %v894
        %v1107 = vpop.f32.mrf.mxu0
        %v1108 = vadd.f32 0.0, %v1107
        %v1109 = vpop.f32.mrf.mxu0
        %1110 = vmatprep.mubr.f32.mxu0 0.0
        %1111 = vmatmul.mubr.f32.gmra.mxu0 %v897
        %v1112 = vpop.f32.mrf.mxu0
        %v1113 = vadd.f32 0.0, %v1112
        %v1114 = vpop.f32.mrf.mxu0
        %1115 = vmatprep.mubr.f32.mxu0 0.0
        %1116 = vmatmul.mubr.f32.gmra.mxu0 %v900
        %v1117 = vpop.f32.mrf.mxu0
        %v1118 = vadd.f32 0.0, %v1117
        %v1119 = vpop.f32.mrf.mxu0
        %1120 = vmatprep.mubr.f32.mxu0 0.0
        %1121 = vmatmul.mubr.f32.gmra.mxu0 %v903
        %v1122 = vpop.f32.mrf.mxu0
        %v1123 = vadd.f32 0.0, %v1122
        %v1124 = vpop.f32.mrf.mxu0
        %1125 = vmatprep.mubr.f32.mxu0 0.0
        %1126 = vmatmul.mubr.f32.gmra.mxu0 %v906
        %v1127 = vpop.f32.mrf.mxu0
        %v1128 = vadd.f32 0.0, %v1127
        %v1129 = vpop.f32.mrf.mxu0
        %1130 = vmatprep.mubr.f32.mxu0 0.0
        %1131 = vmatmul.mubr.f32.gmra.mxu0 %v909
        %v1132 = vpop.f32.mrf.mxu0
        %v1133 = vadd.f32 0.0, %v1132
        %v1134 = vpop.f32.mrf.mxu0
        %1135 = vmatprep.mubr.f32.mxu0 0.0
        %1136 = vmatmul.mubr.f32.gmra.mxu0 %v912
        %v1137 = vpop.f32.mrf.mxu0
        %v1138 = vadd.f32 0.0, %v1137
        %v1139 = vpop.f32.mrf.mxu0
        %1140 = vmatprep.mubr.f32.mxu0 0.0
        %1141 = vmatmul.mubr.f32.gmra.mxu0 %v915
        %v1142 = vpop.f32.mrf.mxu0
        %v1143 = vadd.f32 0.0, %v1142
        %v1144 = vpop.f32.mrf.mxu0
        %1145 = vmatprep.mubr.f32.mxu0 0.0
        %1146 = vmatmul.mubr.f32.gmra.mxu0 %v918
        %v1147 = vpop.f32.mrf.mxu0
        %v1148 = vadd.f32 0.0, %v1147
        %v1149 = vpop.f32.mrf.mxu0
        %1150 = vmatprep.mubr.f32.mxu0 0.0
        %1151 = vmatmul.mubr.f32.gmra.mxu0 %v921
        %v1152 = vpop.f32.mrf.mxu0
        %v1153 = vadd.f32 0.0, %v1152
        %v1154 = vpop.f32.mrf.mxu0
        %1155 = vmatprep.mubr.f32.mxu0 0.0
        %1156 = vmatmul.mubr.f32.gmra.mxu0 %v924
        %v1157 = vpop.f32.mrf.mxu0
        %v1158 = vadd.f32 0.0, %v1157
        %v1159 = vpop.f32.mrf.mxu0
        %1160 = vmatprep.mubr.f32.mxu0 0.0
        %1161 = vmatmul.mubr.f32.gmra.mxu0 %v927
        %v1162 = vpop.f32.mrf.mxu0
        %v1163 = vadd.f32 0.0, %v1162
        %v1164 = vpop.f32.mrf.mxu0
        %1165 = vmatprep.mubr.f32.mxu0 0.0
        %1166 = vmatmul.mubr.f32.gmra.mxu0 %v930
        %v1167 = vpop.f32.mrf.mxu0
        %v1168 = vadd.f32 0.0, %v1167
        %v1169 = vpop.f32.mrf.mxu0
        %1170 = vmatprep.mubr.f32.mxu0 0.0
        %1171 = vmatmul.mubr.f32.gmra.mxu0 %v933
        %v1172 = vpop.f32.mrf.mxu0
        %v1173 = vadd.f32 0.0, %v1172
        %v1174 = vpop.f32.mrf.mxu0
        %1175 = vmatprep.mubr.f32.mxu0 0.0
        %1176 = vmatmul.mubr.f32.gmra.mxu0 %v936
        %v1177 = vpop.f32.mrf.mxu0
        %v1178 = vadd.f32 0.0, %v1177
        %v1179 = vpop.f32.mrf.mxu0
        %1180 = vmatprep.mubr.f32.mxu0 0.0
        %1181 = vmatmul.mubr.f32.gmra.mxu0 %v939
        %v1182 = vpop.f32.mrf.mxu0
        %v1183 = vadd.f32 0.0, %v1182
        %v1184 = vpop.f32.mrf.mxu0
        %1185 = vmatprep.mubr.f32.mxu0 0.0
        %1186 = vmatmul.mubr.f32.gmra.mxu0 %v942
        %v1187 = vpop.f32.mrf.mxu0
        %v1188 = vadd.f32 0.0, %v1187
        %v1189 = vpop.f32.mrf.mxu0
        %1190 = vmatprep.mubr.f32.mxu0 0.0
        %1191 = vmatmul.mubr.f32.gmra.mxu0 %v945
        %v1192 = vpop.f32.mrf.mxu0
        %v1193 = vadd.f32 0.0, %v1192
        %v1194 = vpop.f32.mrf.mxu0
        %1195 = vmatprep.mubr.f32.mxu0 0.0
        %1196 = vmatmul.mubr.f32.gmra.mxu0 %v948
        %v1197 = vpop.f32.mrf.mxu0
        %v1198 = vadd.f32 0.0, %v1197
        %v1199 = vpop.f32.mrf.mxu0
        %1200 = vmatprep.mubr.f32.mxu0 0.0
        %1201 = vmatmul.mubr.f32.gmra.mxu0 %v951
        %v1202 = vpop.f32.mrf.mxu0
        %v1203 = vadd.f32 0.0, %v1202
        %v1204 = vpop.f32.mrf.mxu0
        %1205 = vmatprep.mubr.f32.mxu0 0.0
        %1206 = vmatmul.mubr.f32.gmra.mxu0 %v954
        %v1207 = vpop.f32.mrf.mxu0
        %v1208 = vadd.f32 0.0, %v1207
        %v1209 = vpop.f32.mrf.mxu0
        %1210 = vmatprep.mubr.f32.mxu0 0.0
        %1211 = vmatmul.mubr.f32.gmra.mxu0 %v957
        %v1212 = vpop.f32.mrf.mxu0
        %v1213 = vadd.f32 0.0, %v1212
        %v1214 = vpop.f32.mrf.mxu0
        %1215 = vmatprep.mubr.f32.mxu0 0.0
        %1216 = vmatmul.mubr.f32.gmra.mxu0 %v960
        %v1217 = vpop.f32.mrf.mxu0
        %v1218 = vadd.f32 0.0, %v1217
        %v1219 = vpop.f32.mrf.mxu0
        %1220 = vmatprep.mubr.f32.mxu0 0.0
        %1221 = vmatmul.mubr.f32.gmra.mxu0 %v963
        %v1222 = vpop.f32.mrf.mxu0
        %v1223 = vadd.f32 0.0, %v1222
        %v1224 = vpop.f32.mrf.mxu0
        %1225 = vmatprep.mubr.f32.mxu0 0.0
        %1226 = vmatmul.mubr.f32.gmra.mxu0 %v966
        %v1227 = vpop.f32.mrf.mxu0
        %v1228 = vadd.f32 0.0, %v1227
        %v1229 = vpop.f32.mrf.mxu0
        %1230 = vmatprep.mubr.f32.mxu0 0.0
        %1231 = vmatmul.mubr.f32.gmra.mxu0 %v969
        %v1232 = vpop.f32.mrf.mxu0
        %v1233 = vadd.f32 0.0, %v1232
        %v1234 = vpop.f32.mrf.mxu0
        %1235 = vmatprep.mubr.f32.mxu0 0.0
        %1236 = vmatmul.mubr.f32.gmra.mxu0 %v972
        %v1237 = vpop.f32.mrf.mxu0
        %v1238 = vadd.f32 0.0, %v1237
        %v1239 = vpop.f32.mrf.mxu0
        %1240 = vmatprep.mubr.f32.mxu0 0.0
        %1241 = vmatmul.mubr.f32.gmra.mxu0 %v975
        %v1242 = vpop.f32.mrf.mxu0
        %v1243 = vadd.f32 0.0, %v1242
        %v1244 = vpop.f32.mrf.mxu0
        %1245 = vmatprep.mubr.f32.mxu0 0.0
        %1246 = vmatmul.mubr.f32.gmra.mxu0 %v978
        %v1247 = vpop.f32.mrf.mxu0
        %v1248 = vadd.f32 0.0, %v1247
        %v1249 = vpop.f32.mrf.mxu0
        %1250 = vmatprep.mubr.f32.mxu0 0.0
        %1251 = vmatmul.mubr.f32.gmra.mxu0 %v981
        %v1252 = vpop.f32.mrf.mxu0
        %v1253 = vadd.f32 0.0, %v1252
        %v1254 = vpop.f32.mrf.mxu0
        %1255 = vdwg.mxu0
        %v1256 = vadd.f32 %v777, %v1053
        %v1257 = vadd.f32 %v778, %v1058
        %v1258 = vadd.f32 %v779, %v1063
        %v1259 = vadd.f32 %v780, %v1068
        %v1260 = vadd.f32 %v781, %v1073
        %v1261 = vadd.f32 %v782, %v1078
        %v1262 = vadd.f32 %v783, %v1083
        %v1263 = vadd.f32 %v784, %v1088
        %v1264 = vadd.f32 %v785, %v1093
        %v1265 = vadd.f32 %v786, %v1098
        %v1266 = vadd.f32 %v787, %v1103
        %v1267 = vadd.f32 %v788, %v1108
        %v1268 = vadd.f32 %v789, %v1113
        %v1269 = vadd.f32 %v790, %v1118
        %v1270 = vadd.f32 %v791, %v1123
        %v1271 = vadd.f32 %v792, %v1128
        %v1272 = vadd.f32 %v793, %v1133
        %v1273 = vadd.f32 %v794, %v1138
        %v1274 = vadd.f32 %v795, %v1143
        %v1275 = vadd.f32 %v796, %v1148
        %v1276 = vadd.f32 %v797, %v1153
        %v1277 = vadd.f32 %v798, %v1158
        %v1278 = vadd.f32 %v799, %v1163
        %v1279 = vadd.f32 %v800, %v1168
        %v1280 = vadd.f32 %v801, %v1173
        %v1281 = vadd.f32 %v802, %v1178
        %v1282 = vadd.f32 %v803, %v1183
        %v1283 = vadd.f32 %v804, %v1188
        %v1284 = vadd.f32 %v805, %v1193
        %v1285 = vadd.f32 %v806, %v1198
        %v1286 = vadd.f32 %v807, %v1203
        %v1287 = vadd.f32 %v808, %v1208
        %v1288 = vadd.f32 %v809, %v1213
        %v1289 = vadd.f32 %v810, %v1218
        %v1290 = vadd.f32 %v811, %v1223
        %v1291 = vadd.f32 %v812, %v1228
        %v1292 = vadd.f32 %v813, %v1233
        %v1293 = vadd.f32 %v814, %v1238
        %v1294 = vadd.f32 %v815, %v1243
        %v1295 = vadd.f32 %v816, %v1248
        %v1296 = vadd.f32 %v817, %v1253
        %v1297 = vld [vmem:[%s329 + $0x2] sm:$0xff]
        %v1298 = vld [vmem:[%s329 + $0xa] sm:$0xff]
        %v1299 = vld [vmem:[%s329 + $0x12] sm:$0xff]
        %v1300 = vld [vmem:[%s329 + $0x1a] sm:$0xff]
        %v1301 = vld [vmem:[%s329 + $0x22] sm:$0xff]
        %v1302 = vld [vmem:[%s329 + $0x2a] sm:$0xff]
        %v1303 = vld [vmem:[%s329 + $0x32] sm:$0xff]
        %v1304 = vld [vmem:[%s329 + $0x3a] sm:$0xff]
        %v1305 = vld [vmem:[%s329 + $0x42] sm:$0xff]
        %v1306 = vld [vmem:[%s329 + $0x4a] sm:$0xff]
        %v1307 = vld [vmem:[%s329 + $0x52] sm:$0xff]
        %v1308 = vld [vmem:[%s329 + $0x5a] sm:$0xff]
        %v1309 = vld [vmem:[%s329 + $0x62] sm:$0xff]
        %v1310 = vld [vmem:[%s329 + $0x6a] sm:$0xff]
        %v1311 = vld [vmem:[%s329 + $0x72] sm:$0xff]
        %v1312 = vld [vmem:[%s329 + $0x7a] sm:$0xff]
        %v1313 = vld [vmem:[%s329 + $0x82] sm:$0xff]
        %v1314 = vld [vmem:[%s329 + $0x8a] sm:$0xff]
        %v1315 = vld [vmem:[%s329 + $0x92] sm:$0xff]
        %v1316 = vld [vmem:[%s329 + $0x9a] sm:$0xff]
        %v1317 = vld [vmem:[%s329 + $0xa2] sm:$0xff]
        %v1318 = vld [vmem:[%s329 + $0xaa] sm:$0xff]
        %v1319 = vld [vmem:[%s329 + $0xb2] sm:$0xff]
        %v1320 = vld [vmem:[%s329 + $0xba] sm:$0xff]
        %v1321 = vld [vmem:[%s329 + $0xc2] sm:$0xff]
        %v1322 = vld [vmem:[%s329 + $0xca] sm:$0xff]
        %v1323 = vld [vmem:[%s329 + $0xd2] sm:$0xff]
        %v1324 = vld [vmem:[%s329 + $0xda] sm:$0xff]
        %v1325 = vld [vmem:[%s329 + $0xe2] sm:$0xff]
        %v1326 = vld [vmem:[%s329 + $0xea] sm:$0xff]
        %v1327 = vld [vmem:[%s329 + $0xf2] sm:$0xff]
        %v1328 = vld [vmem:[%s329 + $0xfa] sm:$0xff]
        %v1329 = vld [vmem:[%s329 + $0x102] sm:$0xff]
        %v1330 = vld [vmem:[%s329 + $0x10a] sm:$0xff]
        %v1331 = vld [vmem:[%s329 + $0x112] sm:$0xff]
        %v1332 = vld [vmem:[%s329 + $0x11a] sm:$0xff]
        %v1333 = vld [vmem:[%s329 + $0x122] sm:$0xff]
        %v1334 = vld [vmem:[%s329 + $0x12a] sm:$0xff]
        %v1335 = vld [vmem:[%s329 + $0x132] sm:$0xff]
        %v1336 = vld [vmem:[%s329 + $0x13a] sm:$0xff]
        %v1337 = vld [vmem:[%s329 + $0x142] sm:$0xf]
        %v1338 = vld [vmem:[%s3 + $0x8] sm:$0xf]
        %v1340 = vsel %vm379, %v1297, 0
        %v1343 = vsel %vm379, %v1298, 0
        %v1346 = vsel %vm379, %v1299, 0
        %v1349 = vsel %vm379, %v1300, 0
        %v1352 = vsel %vm379, %v1301, 0
        %v1355 = vsel %vm379, %v1302, 0
        %v1358 = vsel %vm379, %v1303, 0
        %v1361 = vsel %vm379, %v1304, 0
        %v1364 = vsel %vm379, %v1305, 0
        %v1367 = vsel %vm379, %v1306, 0
        %v1370 = vsel %vm379, %v1307, 0
        %v1373 = vsel %vm379, %v1308, 0
        %v1376 = vsel %vm379, %v1309, 0
        %v1379 = vsel %vm379, %v1310, 0
        %v1382 = vsel %vm379, %v1311, 0
        %v1385 = vsel %vm379, %v1312, 0
        %v1388 = vsel %vm379, %v1313, 0
        %v1391 = vsel %vm379, %v1314, 0
        %v1394 = vsel %vm379, %v1315, 0
        %v1397 = vsel %vm379, %v1316, 0
        %v1400 = vsel %vm379, %v1317, 0
        %v1403 = vsel %vm379, %v1318, 0
        %v1406 = vsel %vm379, %v1319, 0
        %v1409 = vsel %vm379, %v1320, 0
        %v1412 = vsel %vm379, %v1321, 0
        %v1415 = vsel %vm379, %v1322, 0
        %v1418 = vsel %vm379, %v1323, 0
        %v1421 = vsel %vm379, %v1324, 0
        %v1424 = vsel %vm379, %v1325, 0
        %v1427 = vsel %vm379, %v1326, 0
        %v1430 = vsel %vm379, %v1327, 0
        %v1433 = vsel %vm379, %v1328, 0
        %v1436 = vsel %vm379, %v1329, 0
        %v1439 = vsel %vm379, %v1330, 0
        %v1442 = vsel %vm379, %v1331, 0
        %v1445 = vsel %vm379, %v1332, 0
        %v1448 = vsel %vm379, %v1333, 0
        %v1451 = vsel %vm379, %v1334, 0
        %v1454 = vsel %vm379, %v1335, 0
        %v1457 = vsel %vm379, %v1336, 0
        %v1460 = vsel %vm379, %v1337, 0
        %v1463 = vsel %vm503, %v1338, 0
        %1465 = vmatprep.subr.mxu0 0.0
        %1466 = vmatpush1.msra.mxu0 0.0
        %1467 = vmatprep.subr.mxu0 0.0
        %1468 = vmatpush1.msra.mxu0 0.0
        %1469 = vmatprep.subr.mxu0 0.0
        %1470 = vmatpush1.msra.mxu0 0.0
        %1471 = vmatprep.subr.mxu0 0.0
        %1472 = vmatpush1.msra.mxu0 0.0
        %1473 = vmatprep.subr.mxu0 0.0
        %1474 = vmatpush1.msra.mxu0 0.0
        %1475 = vmatprep.subr.mxu0 0.0
        %1476 = vmatpush1.msra.mxu0 0.0
        %1477 = vmatprep.subr.mxu0 0.0
        %1478 = vmatpush1.msra.mxu0 0.0
        %1479 = vmatprep.subr.mxu0 0.0
        %1480 = vmatpush1.msra.mxu0 0.0
        %1481 = vmatprep.subr.mxu0 0.0
        %1482 = vmatpush1.msra.mxu0 0.0
        %1483 = vmatprep.subr.mxu0 0.0
        %1484 = vmatpush1.msra.mxu0 0.0
        %1485 = vmatprep.subr.mxu0 0.0
        %1486 = vmatpush1.msra.mxu0 0.0
        %1487 = vmatprep.subr.mxu0 0.0
        %1488 = vmatpush1.msra.mxu0 0.0
        %1489 = vmatprep.subr.mxu0 0.0
        %1490 = vmatpush1.msra.mxu0 0.0
        %1491 = vmatprep.subr.mxu0 0.0
        %1492 = vmatpush1.msra.mxu0 0.0
        %1493 = vmatprep.subr.mxu0 0.0
        %1494 = vmatpush1.msra.mxu0 0.0
        %1495 = vmatprep.subr.mxu0 0.0
        %1496 = vmatpush1.msra.mxu0 %v1463
        %1497 = vmatprep.subr.mxu0 0.0
        %1498 = vmatpush2.msra.mxu0 0.0
        %1499 = vmatprep.subr.mxu0 0.0
        %1500 = vmatpush2.msra.mxu0 0.0
        %1501 = vmatprep.subr.mxu0 0.0
        %1502 = vmatpush2.msra.mxu0 0.0
        %1503 = vmatprep.subr.mxu0 0.0
        %1504 = vmatpush2.msra.mxu0 0.0
        %1505 = vmatprep.subr.mxu0 0.0
        %1506 = vmatpush2.msra.mxu0 0.0
        %1507 = vmatprep.subr.mxu0 0.0
        %1508 = vmatpush2.msra.mxu0 0.0
        %1509 = vmatprep.subr.mxu0 0.0
        %1510 = vmatpush2.msra.mxu0 0.0
        %1511 = vmatprep.subr.mxu0 0.0
        %1512 = vmatpush2.msra.mxu0 0.0
        %1513 = vmatprep.subr.mxu0 0.0
        %1514 = vmatpush2.msra.mxu0 0.0
        %1515 = vmatprep.subr.mxu0 0.0
        %1516 = vmatpush2.msra.mxu0 0.0
        %1517 = vmatprep.subr.mxu0 0.0
        %1518 = vmatpush2.msra.mxu0 0.0
        %1519 = vmatprep.subr.mxu0 0.0
        %1520 = vmatpush2.msra.mxu0 0.0
        %1521 = vmatprep.subr.mxu0 0.0
        %1522 = vmatpush2.msra.mxu0 0.0
        %1523 = vmatprep.subr.mxu0 0.0
        %1524 = vmatpush2.msra.mxu0 0.0
        %1525 = vmatprep.subr.mxu0 0.0
        %1526 = vmatpush2.msra.mxu0 0.0
        %1527 = vmatprep.subr.mxu0 0.0
        %1528 = vmatpush2.msra.mxu0 0.0
        %1529 = vmatprep.mubr.f32.mxu0 0.0
        %1530 = vmatmul.mubr.f32.gmra.mxu0 %v1340
        %v1531 = vpop.f32.mrf.mxu0
        %v1532 = vadd.f32 0.0, %v1531
        %v1533 = vpop.f32.mrf.mxu0
        %1534 = vmatprep.mubr.f32.mxu0 0.0
        %1535 = vmatmul.mubr.f32.gmra.mxu0 %v1343
        %v1536 = vpop.f32.mrf.mxu0
        %v1537 = vadd.f32 0.0, %v1536
        %v1538 = vpop.f32.mrf.mxu0
        %1539 = vmatprep.mubr.f32.mxu0 0.0
        %1540 = vmatmul.mubr.f32.gmra.mxu0 %v1346
        %v1541 = vpop.f32.mrf.mxu0
        %v1542 = vadd.f32 0.0, %v1541
        %v1543 = vpop.f32.mrf.mxu0
        %1544 = vmatprep.mubr.f32.mxu0 0.0
        %1545 = vmatmul.mubr.f32.gmra.mxu0 %v1349
        %v1546 = vpop.f32.mrf.mxu0
        %v1547 = vadd.f32 0.0, %v1546
        %v1548 = vpop.f32.mrf.mxu0
        %1549 = vmatprep.mubr.f32.mxu0 0.0
        %1550 = vmatmul.mubr.f32.gmra.mxu0 %v1352
        %v1551 = vpop.f32.mrf.mxu0
        %v1552 = vadd.f32 0.0, %v1551
        %v1553 = vpop.f32.mrf.mxu0
        %1554 = vmatprep.mubr.f32.mxu0 0.0
        %1555 = vmatmul.mubr.f32.gmra.mxu0 %v1355
        %v1556 = vpop.f32.mrf.mxu0
        %v1557 = vadd.f32 0.0, %v1556
        %v1558 = vpop.f32.mrf.mxu0
        %1559 = vmatprep.mubr.f32.mxu0 0.0
        %1560 = vmatmul.mubr.f32.gmra.mxu0 %v1358
        %v1561 = vpop.f32.mrf.mxu0
        %v1562 = vadd.f32 0.0, %v1561
        %v1563 = vpop.f32.mrf.mxu0
        %1564 = vmatprep.mubr.f32.mxu0 0.0
        %1565 = vmatmul.mubr.f32.gmra.mxu0 %v1361
        %v1566 = vpop.f32.mrf.mxu0
        %v1567 = vadd.f32 0.0, %v1566
        %v1568 = vpop.f32.mrf.mxu0
        %1569 = vmatprep.mubr.f32.mxu0 0.0
        %1570 = vmatmul.mubr.f32.gmra.mxu0 %v1364
        %v1571 = vpop.f32.mrf.mxu0
        %v1572 = vadd.f32 0.0, %v1571
        %v1573 = vpop.f32.mrf.mxu0
        %1574 = vmatprep.mubr.f32.mxu0 0.0
        %1575 = vmatmul.mubr.f32.gmra.mxu0 %v1367
        %v1576 = vpop.f32.mrf.mxu0
        %v1577 = vadd.f32 0.0, %v1576
        %v1578 = vpop.f32.mrf.mxu0
        %1579 = vmatprep.mubr.f32.mxu0 0.0
        %1580 = vmatmul.mubr.f32.gmra.mxu0 %v1370
        %v1581 = vpop.f32.mrf.mxu0
        %v1582 = vadd.f32 0.0, %v1581
        %v1583 = vpop.f32.mrf.mxu0
        %1584 = vmatprep.mubr.f32.mxu0 0.0
        %1585 = vmatmul.mubr.f32.gmra.mxu0 %v1373
        %v1586 = vpop.f32.mrf.mxu0
        %v1587 = vadd.f32 0.0, %v1586
        %v1588 = vpop.f32.mrf.mxu0
        %1589 = vmatprep.mubr.f32.mxu0 0.0
        %1590 = vmatmul.mubr.f32.gmra.mxu0 %v1376
        %v1591 = vpop.f32.mrf.mxu0
        %v1592 = vadd.f32 0.0, %v1591
        %v1593 = vpop.f32.mrf.mxu0
        %1594 = vmatprep.mubr.f32.mxu0 0.0
        %1595 = vmatmul.mubr.f32.gmra.mxu0 %v1379
        %v1596 = vpop.f32.mrf.mxu0
        %v1597 = vadd.f32 0.0, %v1596
        %v1598 = vpop.f32.mrf.mxu0
        %1599 = vmatprep.mubr.f32.mxu0 0.0
        %1600 = vmatmul.mubr.f32.gmra.mxu0 %v1382
        %v1601 = vpop.f32.mrf.mxu0
        %v1602 = vadd.f32 0.0, %v1601
        %v1603 = vpop.f32.mrf.mxu0
        %1604 = vmatprep.mubr.f32.mxu0 0.0
        %1605 = vmatmul.mubr.f32.gmra.mxu0 %v1385
        %v1606 = vpop.f32.mrf.mxu0
        %v1607 = vadd.f32 0.0, %v1606
        %v1608 = vpop.f32.mrf.mxu0
        %1609 = vmatprep.mubr.f32.mxu0 0.0
        %1610 = vmatmul.mubr.f32.gmra.mxu0 %v1388
        %v1611 = vpop.f32.mrf.mxu0
        %v1612 = vadd.f32 0.0, %v1611
        %v1613 = vpop.f32.mrf.mxu0
        %1614 = vmatprep.mubr.f32.mxu0 0.0
        %1615 = vmatmul.mubr.f32.gmra.mxu0 %v1391
        %v1616 = vpop.f32.mrf.mxu0
        %v1617 = vadd.f32 0.0, %v1616
        %v1618 = vpop.f32.mrf.mxu0
        %1619 = vmatprep.mubr.f32.mxu0 0.0
        %1620 = vmatmul.mubr.f32.gmra.mxu0 %v1394
        %v1621 = vpop.f32.mrf.mxu0
        %v1622 = vadd.f32 0.0, %v1621
        %v1623 = vpop.f32.mrf.mxu0
        %1624 = vmatprep.mubr.f32.mxu0 0.0
        %1625 = vmatmul.mubr.f32.gmra.mxu0 %v1397
        %v1626 = vpop.f32.mrf.mxu0
        %v1627 = vadd.f32 0.0, %v1626
        %v1628 = vpop.f32.mrf.mxu0
        %1629 = vmatprep.mubr.f32.mxu0 0.0
        %1630 = vmatmul.mubr.f32.gmra.mxu0 %v1400
        %v1631 = vpop.f32.mrf.mxu0
        %v1632 = vadd.f32 0.0, %v1631
        %v1633 = vpop.f32.mrf.mxu0
        %1634 = vmatprep.mubr.f32.mxu0 0.0
        %1635 = vmatmul.mubr.f32.gmra.mxu0 %v1403
        %v1636 = vpop.f32.mrf.mxu0
        %v1637 = vadd.f32 0.0, %v1636
        %v1638 = vpop.f32.mrf.mxu0
        %1639 = vmatprep.mubr.f32.mxu0 0.0
        %1640 = vmatmul.mubr.f32.gmra.mxu0 %v1406
        %v1641 = vpop.f32.mrf.mxu0
        %v1642 = vadd.f32 0.0, %v1641
        %v1643 = vpop.f32.mrf.mxu0
        %1644 = vmatprep.mubr.f32.mxu0 0.0
        %1645 = vmatmul.mubr.f32.gmra.mxu0 %v1409
        %v1646 = vpop.f32.mrf.mxu0
        %v1647 = vadd.f32 0.0, %v1646
        %v1648 = vpop.f32.mrf.mxu0
        %1649 = vmatprep.mubr.f32.mxu0 0.0
        %1650 = vmatmul.mubr.f32.gmra.mxu0 %v1412
        %v1651 = vpop.f32.mrf.mxu0
        %v1652 = vadd.f32 0.0, %v1651
        %v1653 = vpop.f32.mrf.mxu0
        %1654 = vmatprep.mubr.f32.mxu0 0.0
        %1655 = vmatmul.mubr.f32.gmra.mxu0 %v1415
        %v1656 = vpop.f32.mrf.mxu0
        %v1657 = vadd.f32 0.0, %v1656
        %v1658 = vpop.f32.mrf.mxu0
        %1659 = vmatprep.mubr.f32.mxu0 0.0
        %1660 = vmatmul.mubr.f32.gmra.mxu0 %v1418
        %v1661 = vpop.f32.mrf.mxu0
        %v1662 = vadd.f32 0.0, %v1661
        %v1663 = vpop.f32.mrf.mxu0
        %1664 = vmatprep.mubr.f32.mxu0 0.0
        %1665 = vmatmul.mubr.f32.gmra.mxu0 %v1421
        %v1666 = vpop.f32.mrf.mxu0
        %v1667 = vadd.f32 0.0, %v1666
        %v1668 = vpop.f32.mrf.mxu0
        %1669 = vmatprep.mubr.f32.mxu0 0.0
        %1670 = vmatmul.mubr.f32.gmra.mxu0 %v1424
        %v1671 = vpop.f32.mrf.mxu0
        %v1672 = vadd.f32 0.0, %v1671
        %v1673 = vpop.f32.mrf.mxu0
        %1674 = vmatprep.mubr.f32.mxu0 0.0
        %1675 = vmatmul.mubr.f32.gmra.mxu0 %v1427
        %v1676 = vpop.f32.mrf.mxu0
        %v1677 = vadd.f32 0.0, %v1676
        %v1678 = vpop.f32.mrf.mxu0
        %1679 = vmatprep.mubr.f32.mxu0 0.0
        %1680 = vmatmul.mubr.f32.gmra.mxu0 %v1430
        %v1681 = vpop.f32.mrf.mxu0
        %v1682 = vadd.f32 0.0, %v1681
        %v1683 = vpop.f32.mrf.mxu0
        %1684 = vmatprep.mubr.f32.mxu0 0.0
        %1685 = vmatmul.mubr.f32.gmra.mxu0 %v1433
        %v1686 = vpop.f32.mrf.mxu0
        %v1687 = vadd.f32 0.0, %v1686
        %v1688 = vpop.f32.mrf.mxu0
        %1689 = vmatprep.mubr.f32.mxu0 0.0
        %1690 = vmatmul.mubr.f32.gmra.mxu0 %v1436
        %v1691 = vpop.f32.mrf.mxu0
        %v1692 = vadd.f32 0.0, %v1691
        %v1693 = vpop.f32.mrf.mxu0
        %1694 = vmatprep.mubr.f32.mxu0 0.0
        %1695 = vmatmul.mubr.f32.gmra.mxu0 %v1439
        %v1696 = vpop.f32.mrf.mxu0
        %v1697 = vadd.f32 0.0, %v1696
        %v1698 = vpop.f32.mrf.mxu0
        %1699 = vmatprep.mubr.f32.mxu0 0.0
        %1700 = vmatmul.mubr.f32.gmra.mxu0 %v1442
        %v1701 = vpop.f32.mrf.mxu0
        %v1702 = vadd.f32 0.0, %v1701
        %v1703 = vpop.f32.mrf.mxu0
        %1704 = vmatprep.mubr.f32.mxu0 0.0
        %1705 = vmatmul.mubr.f32.gmra.mxu0 %v1445
        %v1706 = vpop.f32.mrf.mxu0
        %v1707 = vadd.f32 0.0, %v1706
        %v1708 = vpop.f32.mrf.mxu0
        %1709 = vmatprep.mubr.f32.mxu0 0.0
        %1710 = vmatmul.mubr.f32.gmra.mxu0 %v1448
        %v1711 = vpop.f32.mrf.mxu0
        %v1712 = vadd.f32 0.0, %v1711
        %v1713 = vpop.f32.mrf.mxu0
        %1714 = vmatprep.mubr.f32.mxu0 0.0
        %1715 = vmatmul.mubr.f32.gmra.mxu0 %v1451
        %v1716 = vpop.f32.mrf.mxu0
        %v1717 = vadd.f32 0.0, %v1716
        %v1718 = vpop.f32.mrf.mxu0
        %1719 = vmatprep.mubr.f32.mxu0 0.0
        %1720 = vmatmul.mubr.f32.gmra.mxu0 %v1454
        %v1721 = vpop.f32.mrf.mxu0
        %v1722 = vadd.f32 0.0, %v1721
        %v1723 = vpop.f32.mrf.mxu0
        %1724 = vmatprep.mubr.f32.mxu0 0.0
        %1725 = vmatmul.mubr.f32.gmra.mxu0 %v1457
        %v1726 = vpop.f32.mrf.mxu0
        %v1727 = vadd.f32 0.0, %v1726
        %v1728 = vpop.f32.mrf.mxu0
        %1729 = vmatprep.mubr.f32.mxu0 0.0
        %1730 = vmatmul.mubr.f32.gmra.mxu0 %v1460
        %v1731 = vpop.f32.mrf.mxu0
        %v1732 = vadd.f32 0.0, %v1731
        %v1733 = vpop.f32.mrf.mxu0
        %1734 = vdwg.mxu0
        %v1735 = vadd.f32 %v1256, %v1532
        %v1736 = vadd.f32 %v1257, %v1537
        %v1737 = vadd.f32 %v1258, %v1542
        %v1738 = vadd.f32 %v1259, %v1547
        %v1739 = vadd.f32 %v1260, %v1552
        %v1740 = vadd.f32 %v1261, %v1557
        %v1741 = vadd.f32 %v1262, %v1562
        %v1742 = vadd.f32 %v1263, %v1567
        %v1743 = vadd.f32 %v1264, %v1572
        %v1744 = vadd.f32 %v1265, %v1577
        %v1745 = vadd.f32 %v1266, %v1582
        %v1746 = vadd.f32 %v1267, %v1587
        %v1747 = vadd.f32 %v1268, %v1592
        %v1748 = vadd.f32 %v1269, %v1597
        %v1749 = vadd.f32 %v1270, %v1602
        %v1750 = vadd.f32 %v1271, %v1607
        %v1751 = vadd.f32 %v1272, %v1612
        %v1752 = vadd.f32 %v1273, %v1617
        %v1753 = vadd.f32 %v1274, %v1622
        %v1754 = vadd.f32 %v1275, %v1627
        %v1755 = vadd.f32 %v1276, %v1632
        %v1756 = vadd.f32 %v1277, %v1637
        %v1757 = vadd.f32 %v1278, %v1642
        %v1758 = vadd.f32 %v1279, %v1647
        %v1759 = vadd.f32 %v1280, %v1652
        %v1760 = vadd.f32 %v1281, %v1657
        %v1761 = vadd.f32 %v1282, %v1662
        %v1762 = vadd.f32 %v1283, %v1667
        %v1763 = vadd.f32 %v1284, %v1672
        %v1764 = vadd.f32 %v1285, %v1677
        %v1765 = vadd.f32 %v1286, %v1682
        %v1766 = vadd.f32 %v1287, %v1687
        %v1767 = vadd.f32 %v1288, %v1692
        %v1768 = vadd.f32 %v1289, %v1697
        %v1769 = vadd.f32 %v1290, %v1702
        %v1770 = vadd.f32 %v1291, %v1707
        %v1771 = vadd.f32 %v1292, %v1712
        %v1772 = vadd.f32 %v1293, %v1717
        %v1773 = vadd.f32 %v1294, %v1722
        %v1774 = vadd.f32 %v1295, %v1727
        %v1775 = vadd.f32 %v1296, %v1732
        %v1776 = vld [vmem:[%s329 + $0x12] sm:$0xff]
        %v1777 = vld [vmem:[%s329 + $0x1a] sm:$0xff]
        %v1778 = vld [vmem:[%s329 + $0x22] sm:$0xff]
        %v1779 = vld [vmem:[%s329 + $0x2a] sm:$0xff]
        %v1780 = vld [vmem:[%s329 + $0x32] sm:$0xff]
        %v1781 = vld [vmem:[%s329 + $0x3a] sm:$0xff]
        %v1782 = vld [vmem:[%s329 + $0x42] sm:$0xff]
        %v1783 = vld [vmem:[%s329 + $0x4a] sm:$0xff]
        %v1784 = vld [vmem:[%s329 + $0x52] sm:$0xff]
        %v1785 = vld [vmem:[%s329 + $0x5a] sm:$0xff]
        %v1786 = vld [vmem:[%s329 + $0x62] sm:$0xff]
        %v1787 = vld [vmem:[%s329 + $0x6a] sm:$0xff]
        %v1788 = vld [vmem:[%s329 + $0x72] sm:$0xff]
        %v1789 = vld [vmem:[%s329 + $0x7a] sm:$0xff]
        %v1790 = vld [vmem:[%s329 + $0x82] sm:$0xff]
        %v1791 = vld [vmem:[%s329 + $0x8a] sm:$0xff]
        %v1792 = vld [vmem:[%s329 + $0x92] sm:$0xff]
        %v1793 = vld [vmem:[%s329 + $0x9a] sm:$0xff]
        %v1794 = vld [vmem:[%s329 + $0xa2] sm:$0xff]
        %v1795 = vld [vmem:[%s329 + $0xaa] sm:$0xff]
        %v1796 = vld [vmem:[%s329 + $0xb2] sm:$0xff]
        %v1797 = vld [vmem:[%s329 + $0xba] sm:$0xff]
        %v1798 = vld [vmem:[%s329 + $0xc2] sm:$0xff]
        %v1799 = vld [vmem:[%s329 + $0xca] sm:$0xff]
        %v1800 = vld [vmem:[%s329 + $0xd2] sm:$0xff]
        %v1801 = vld [vmem:[%s329 + $0xda] sm:$0xff]
        %v1802 = vld [vmem:[%s329 + $0xe2] sm:$0xff]
        %v1803 = vld [vmem:[%s329 + $0xea] sm:$0xff]
        %v1804 = vld [vmem:[%s329 + $0xf2] sm:$0xff]
        %v1805 = vld [vmem:[%s329 + $0xfa] sm:$0xff]
        %v1806 = vld [vmem:[%s329 + $0x102] sm:$0xff]
        %v1807 = vld [vmem:[%s329 + $0x10a] sm:$0xff]
        %v1808 = vld [vmem:[%s329 + $0x112] sm:$0xff]
        %v1809 = vld [vmem:[%s329 + $0x11a] sm:$0xff]
        %v1810 = vld [vmem:[%s329 + $0x122] sm:$0xff]
        %v1811 = vld [vmem:[%s329 + $0x12a] sm:$0xff]
        %v1812 = vld [vmem:[%s329 + $0x132] sm:$0xff]
        %v1813 = vld [vmem:[%s329 + $0x13a] sm:$0xff]
        %v1814 = vld [vmem:[%s329 + $0x142] sm:$0xff]
        %v1815 = vld [vmem:[%s329 + $0x14a] sm:$0xff]
        %v1816 = vld [vmem:[%s329 + $0x152] sm:$0xf]
        %v1817 = vld [vmem:[%s3 + $0xc] sm:$0xf]
        %v1819 = vsel %vm379, %v1776, 0
        %v1822 = vsel %vm379, %v1777, 0
        %v1825 = vsel %vm379, %v1778, 0
        %v1828 = vsel %vm379, %v1779, 0
        %v1831 = vsel %vm379, %v1780, 0
        %v1834 = vsel %vm379, %v1781, 0
        %v1837 = vsel %vm379, %v1782, 0
        %v1840 = vsel %vm379, %v1783, 0
        %v1843 = vsel %vm379, %v1784, 0
        %v1846 = vsel %vm379, %v1785, 0
        %v1849 = vsel %vm379, %v1786, 0
        %v1852 = vsel %vm379, %v1787, 0
        %v1855 = vsel %vm379, %v1788, 0
        %v1858 = vsel %vm379, %v1789, 0
        %v1861 = vsel %vm379, %v1790, 0
        %v1864 = vsel %vm379, %v1791, 0
        %v1867 = vsel %vm379, %v1792, 0
        %v1870 = vsel %vm379, %v1793, 0
        %v1873 = vsel %vm379, %v1794, 0
        %v1876 = vsel %vm379, %v1795, 0
        %v1879 = vsel %vm379, %v1796, 0
        %v1882 = vsel %vm379, %v1797, 0
        %v1885 = vsel %vm379, %v1798, 0
        %v1888 = vsel %vm379, %v1799, 0
        %v1891 = vsel %vm379, %v1800, 0
        %v1894 = vsel %vm379, %v1801, 0
        %v1897 = vsel %vm379, %v1802, 0
        %v1900 = vsel %vm379, %v1803, 0
        %v1903 = vsel %vm379, %v1804, 0
        %v1906 = vsel %vm379, %v1805, 0
        %v1909 = vsel %vm379, %v1806, 0
        %v1912 = vsel %vm379, %v1807, 0
        %v1915 = vsel %vm379, %v1808, 0
        %v1918 = vsel %vm379, %v1809, 0
        %v1921 = vsel %vm379, %v1810, 0
        %v1924 = vsel %vm379, %v1811, 0
        %v1927 = vsel %vm379, %v1812, 0
        %v1930 = vsel %vm379, %v1813, 0
        %v1933 = vsel %vm379, %v1814, 0
        %v1936 = vsel %vm379, %v1815, 0
        %v1939 = vsel %vm379, %v1816, 0
        %v1942 = vsel %vm503, %v1817, 0
        %1944 = vmatprep.subr.mxu0 0.0
        %1945 = vmatpush1.msra.mxu0 0.0
        %1946 = vmatprep.subr.mxu0 0.0
        %1947 = vmatpush1.msra.mxu0 0.0
        %1948 = vmatprep.subr.mxu0 0.0
        %1949 = vmatpush1.msra.mxu0 0.0
        %1950 = vmatprep.subr.mxu0 0.0
        %1951 = vmatpush1.msra.mxu0 0.0
        %1952 = vmatprep.subr.mxu0 0.0
        %1953 = vmatpush1.msra.mxu0 0.0
        %1954 = vmatprep.subr.mxu0 0.0
        %1955 = vmatpush1.msra.mxu0 0.0
        %1956 = vmatprep.subr.mxu0 0.0
        %1957 = vmatpush1.msra.mxu0 0.0
        %1958 = vmatprep.subr.mxu0 0.0
        %1959 = vmatpush1.msra.mxu0 0.0
        %1960 = vmatprep.subr.mxu0 0.0
        %1961 = vmatpush1.msra.mxu0 0.0
        %1962 = vmatprep.subr.mxu0 0.0
        %1963 = vmatpush1.msra.mxu0 0.0
        %1964 = vmatprep.subr.mxu0 0.0
        %1965 = vmatpush1.msra.mxu0 0.0
        %1966 = vmatprep.subr.mxu0 0.0
        %1967 = vmatpush1.msra.mxu0 0.0
        %1968 = vmatprep.subr.mxu0 0.0
        %1969 = vmatpush1.msra.mxu0 0.0
        %1970 = vmatprep.subr.mxu0 0.0
        %1971 = vmatpush1.msra.mxu0 0.0
        %1972 = vmatprep.subr.mxu0 0.0
        %1973 = vmatpush1.msra.mxu0 0.0
        %1974 = vmatprep.subr.mxu0 0.0
        %1975 = vmatpush1.msra.mxu0 %v1942
        %1976 = vmatprep.subr.mxu0 0.0
        %1977 = vmatpush2.msra.mxu0 0.0
        %1978 = vmatprep.subr.mxu0 0.0
        %1979 = vmatpush2.msra.mxu0 0.0
        %1980 = vmatprep.subr.mxu0 0.0
        %1981 = vmatpush2.msra.mxu0 0.0
        %1982 = vmatprep.subr.mxu0 0.0
        %1983 = vmatpush2.msra.mxu0 0.0
        %1984 = vmatprep.subr.mxu0 0.0
        %1985 = vmatpush2.msra.mxu0 0.0
        %1986 = vmatprep.subr.mxu0 0.0
        %1987 = vmatpush2.msra.mxu0 0.0
        %1988 = vmatprep.subr.mxu0 0.0
        %1989 = vmatpush2.msra.mxu0 0.0
        %1990 = vmatprep.subr.mxu0 0.0
        %1991 = vmatpush2.msra.mxu0 0.0
        %1992 = vmatprep.subr.mxu0 0.0
        %1993 = vmatpush2.msra.mxu0 0.0
        %1994 = vmatprep.subr.mxu0 0.0
        %1995 = vmatpush2.msra.mxu0 0.0
        %1996 = vmatprep.subr.mxu0 0.0
        %1997 = vmatpush2.msra.mxu0 0.0
        %1998 = vmatprep.subr.mxu0 0.0
        %1999 = vmatpush2.msra.mxu0 0.0
        %2000 = vmatprep.subr.mxu0 0.0
        %2001 = vmatpush2.msra.mxu0 0.0
        %2002 = vmatprep.subr.mxu0 0.0
        %2003 = vmatpush2.msra.mxu0 0.0
        %2004 = vmatprep.subr.mxu0 0.0
        %2005 = vmatpush2.msra.mxu0 0.0
        %2006 = vmatprep.subr.mxu0 0.0
        %2007 = vmatpush2.msra.mxu0 0.0
        %2008 = vmatprep.mubr.f32.mxu0 0.0
        %2009 = vmatmul.mubr.f32.gmra.mxu0 %v1819
        %v2010 = vpop.f32.mrf.mxu0
        %v2011 = vadd.f32 0.0, %v2010
        %v2012 = vpop.f32.mrf.mxu0
        %2013 = vmatprep.mubr.f32.mxu0 0.0
        %2014 = vmatmul.mubr.f32.gmra.mxu0 %v1822
        %v2015 = vpop.f32.mrf.mxu0
        %v2016 = vadd.f32 0.0, %v2015
        %v2017 = vpop.f32.mrf.mxu0
        %2018 = vmatprep.mubr.f32.mxu0 0.0
        %2019 = vmatmul.mubr.f32.gmra.mxu0 %v1825
        %v2020 = vpop.f32.mrf.mxu0
        %v2021 = vadd.f32 0.0, %v2020
        %v2022 = vpop.f32.mrf.mxu0
        %2023 = vmatprep.mubr.f32.mxu0 0.0
        %2024 = vmatmul.mubr.f32.gmra.mxu0 %v1828
        %v2025 = vpop.f32.mrf.mxu0
        %v2026 = vadd.f32 0.0, %v2025
        %v2027 = vpop.f32.mrf.mxu0
        %2028 = vmatprep.mubr.f32.mxu0 0.0
        %2029 = vmatmul.mubr.f32.gmra.mxu0 %v1831
        %v2030 = vpop.f32.mrf.mxu0
        %v2031 = vadd.f32 0.0, %v2030
        %v2032 = vpop.f32.mrf.mxu0
        %2033 = vmatprep.mubr.f32.mxu0 0.0
        %2034 = vmatmul.mubr.f32.gmra.mxu0 %v1834
        %v2035 = vpop.f32.mrf.mxu0
        %v2036 = vadd.f32 0.0, %v2035
        %v2037 = vpop.f32.mrf.mxu0
        %2038 = vmatprep.mubr.f32.mxu0 0.0
        %2039 = vmatmul.mubr.f32.gmra.mxu0 %v1837
        %v2040 = vpop.f32.mrf.mxu0
        %v2041 = vadd.f32 0.0, %v2040
        %v2042 = vpop.f32.mrf.mxu0
        %2043 = vmatprep.mubr.f32.mxu0 0.0
        %2044 = vmatmul.mubr.f32.gmra.mxu0 %v1840
        %v2045 = vpop.f32.mrf.mxu0
        %v2046 = vadd.f32 0.0, %v2045
        %v2047 = vpop.f32.mrf.mxu0
        %2048 = vmatprep.mubr.f32.mxu0 0.0
        %2049 = vmatmul.mubr.f32.gmra.mxu0 %v1843
        %v2050 = vpop.f32.mrf.mxu0
        %v2051 = vadd.f32 0.0, %v2050
        %v2052 = vpop.f32.mrf.mxu0
        %2053 = vmatprep.mubr.f32.mxu0 0.0
        %2054 = vmatmul.mubr.f32.gmra.mxu0 %v1846
        %v2055 = vpop.f32.mrf.mxu0
        %v2056 = vadd.f32 0.0, %v2055
        %v2057 = vpop.f32.mrf.mxu0
        %2058 = vmatprep.mubr.f32.mxu0 0.0
        %2059 = vmatmul.mubr.f32.gmra.mxu0 %v1849
        %v2060 = vpop.f32.mrf.mxu0
        %v2061 = vadd.f32 0.0, %v2060
        %v2062 = vpop.f32.mrf.mxu0
        %2063 = vmatprep.mubr.f32.mxu0 0.0
        %2064 = vmatmul.mubr.f32.gmra.mxu0 %v1852
        %v2065 = vpop.f32.mrf.mxu0
        %v2066 = vadd.f32 0.0, %v2065
        %v2067 = vpop.f32.mrf.mxu0
        %2068 = vmatprep.mubr.f32.mxu0 0.0
        %2069 = vmatmul.mubr.f32.gmra.mxu0 %v1855
        %v2070 = vpop.f32.mrf.mxu0
        %v2071 = vadd.f32 0.0, %v2070
        %v2072 = vpop.f32.mrf.mxu0
        %2073 = vmatprep.mubr.f32.mxu0 0.0
        %2074 = vmatmul.mubr.f32.gmra.mxu0 %v1858
        %v2075 = vpop.f32.mrf.mxu0
        %v2076 = vadd.f32 0.0, %v2075
        %v2077 = vpop.f32.mrf.mxu0
        %2078 = vmatprep.mubr.f32.mxu0 0.0
        %2079 = vmatmul.mubr.f32.gmra.mxu0 %v1861
        %v2080 = vpop.f32.mrf.mxu0
        %v2081 = vadd.f32 0.0, %v2080
        %v2082 = vpop.f32.mrf.mxu0
        %2083 = vmatprep.mubr.f32.mxu0 0.0
        %2084 = vmatmul.mubr.f32.gmra.mxu0 %v1864
        %v2085 = vpop.f32.mrf.mxu0
        %v2086 = vadd.f32 0.0, %v2085
        %v2087 = vpop.f32.mrf.mxu0
        %2088 = vmatprep.mubr.f32.mxu0 0.0
        %2089 = vmatmul.mubr.f32.gmra.mxu0 %v1867
        %v2090 = vpop.f32.mrf.mxu0
        %v2091 = vadd.f32 0.0, %v2090
        %v2092 = vpop.f32.mrf.mxu0
        %2093 = vmatprep.mubr.f32.mxu0 0.0
        %2094 = vmatmul.mubr.f32.gmra.mxu0 %v1870
        %v2095 = vpop.f32.mrf.mxu0
        %v2096 = vadd.f32 0.0, %v2095
        %v2097 = vpop.f32.mrf.mxu0
        %2098 = vmatprep.mubr.f32.mxu0 0.0
        %2099 = vmatmul.mubr.f32.gmra.mxu0 %v1873
        %v2100 = vpop.f32.mrf.mxu0
        %v2101 = vadd.f32 0.0, %v2100
        %v2102 = vpop.f32.mrf.mxu0
        %2103 = vmatprep.mubr.f32.mxu0 0.0
        %2104 = vmatmul.mubr.f32.gmra.mxu0 %v1876
        %v2105 = vpop.f32.mrf.mxu0
        %v2106 = vadd.f32 0.0, %v2105
        %v2107 = vpop.f32.mrf.mxu0
        %2108 = vmatprep.mubr.f32.mxu0 0.0
        %2109 = vmatmul.mubr.f32.gmra.mxu0 %v1879
        %v2110 = vpop.f32.mrf.mxu0
        %v2111 = vadd.f32 0.0, %v2110
        %v2112 = vpop.f32.mrf.mxu0
        %2113 = vmatprep.mubr.f32.mxu0 0.0
        %2114 = vmatmul.mubr.f32.gmra.mxu0 %v1882
        %v2115 = vpop.f32.mrf.mxu0
        %v2116 = vadd.f32 0.0, %v2115
        %v2117 = vpop.f32.mrf.mxu0
        %2118 = vmatprep.mubr.f32.mxu0 0.0
        %2119 = vmatmul.mubr.f32.gmra.mxu0 %v1885
        %v2120 = vpop.f32.mrf.mxu0
        %v2121 = vadd.f32 0.0, %v2120
        %v2122 = vpop.f32.mrf.mxu0
        %2123 = vmatprep.mubr.f32.mxu0 0.0
        %2124 = vmatmul.mubr.f32.gmra.mxu0 %v1888
        %v2125 = vpop.f32.mrf.mxu0
        %v2126 = vadd.f32 0.0, %v2125
        %v2127 = vpop.f32.mrf.mxu0
        %2128 = vmatprep.mubr.f32.mxu0 0.0
        %2129 = vmatmul.mubr.f32.gmra.mxu0 %v1891
        %v2130 = vpop.f32.mrf.mxu0
        %v2131 = vadd.f32 0.0, %v2130
        %v2132 = vpop.f32.mrf.mxu0
        %2133 = vmatprep.mubr.f32.mxu0 0.0
        %2134 = vmatmul.mubr.f32.gmra.mxu0 %v1894
        %v2135 = vpop.f32.mrf.mxu0
        %v2136 = vadd.f32 0.0, %v2135
        %v2137 = vpop.f32.mrf.mxu0
        %2138 = vmatprep.mubr.f32.mxu0 0.0
        %2139 = vmatmul.mubr.f32.gmra.mxu0 %v1897
        %v2140 = vpop.f32.mrf.mxu0
        %v2141 = vadd.f32 0.0, %v2140
        %v2142 = vpop.f32.mrf.mxu0
        %2143 = vmatprep.mubr.f32.mxu0 0.0
        %2144 = vmatmul.mubr.f32.gmra.mxu0 %v1900
        %v2145 = vpop.f32.mrf.mxu0
        %v2146 = vadd.f32 0.0, %v2145
        %v2147 = vpop.f32.mrf.mxu0
        %2148 = vmatprep.mubr.f32.mxu0 0.0
        %2149 = vmatmul.mubr.f32.gmra.mxu0 %v1903
        %v2150 = vpop.f32.mrf.mxu0
        %v2151 = vadd.f32 0.0, %v2150
        %v2152 = vpop.f32.mrf.mxu0
        %2153 = vmatprep.mubr.f32.mxu0 0.0
        %2154 = vmatmul.mubr.f32.gmra.mxu0 %v1906
        %v2155 = vpop.f32.mrf.mxu0
        %v2156 = vadd.f32 0.0, %v2155
        %v2157 = vpop.f32.mrf.mxu0
        %2158 = vmatprep.mubr.f32.mxu0 0.0
        %2159 = vmatmul.mubr.f32.gmra.mxu0 %v1909
        %v2160 = vpop.f32.mrf.mxu0
        %v2161 = vadd.f32 0.0, %v2160
        %v2162 = vpop.f32.mrf.mxu0
        %2163 = vmatprep.mubr.f32.mxu0 0.0
        %2164 = vmatmul.mubr.f32.gmra.mxu0 %v1912
        %v2165 = vpop.f32.mrf.mxu0
        %v2166 = vadd.f32 0.0, %v2165
        %v2167 = vpop.f32.mrf.mxu0
        %2168 = vmatprep.mubr.f32.mxu0 0.0
        %2169 = vmatmul.mubr.f32.gmra.mxu0 %v1915
        %v2170 = vpop.f32.mrf.mxu0
        %v2171 = vadd.f32 0.0, %v2170
        %v2172 = vpop.f32.mrf.mxu0
        %2173 = vmatprep.mubr.f32.mxu0 0.0
        %2174 = vmatmul.mubr.f32.gmra.mxu0 %v1918
        %v2175 = vpop.f32.mrf.mxu0
        %v2176 = vadd.f32 0.0, %v2175
        %v2177 = vpop.f32.mrf.mxu0
        %2178 = vmatprep.mubr.f32.mxu0 0.0
        %2179 = vmatmul.mubr.f32.gmra.mxu0 %v1921
        %v2180 = vpop.f32.mrf.mxu0
        %v2181 = vadd.f32 0.0, %v2180
        %v2182 = vpop.f32.mrf.mxu0
        %2183 = vmatprep.mubr.f32.mxu0 0.0
        %2184 = vmatmul.mubr.f32.gmra.mxu0 %v1924
        %v2185 = vpop.f32.mrf.mxu0
        %v2186 = vadd.f32 0.0, %v2185
        %v2187 = vpop.f32.mrf.mxu0
        %2188 = vmatprep.mubr.f32.mxu0 0.0
        %2189 = vmatmul.mubr.f32.gmra.mxu0 %v1927
        %v2190 = vpop.f32.mrf.mxu0
        %v2191 = vadd.f32 0.0, %v2190
        %v2192 = vpop.f32.mrf.mxu0
        %2193 = vmatprep.mubr.f32.mxu0 0.0
        %2194 = vmatmul.mubr.f32.gmra.mxu0 %v1930
        %v2195 = vpop.f32.mrf.mxu0
        %v2196 = vadd.f32 0.0, %v2195
        %v2197 = vpop.f32.mrf.mxu0
        %2198 = vmatprep.mubr.f32.mxu0 0.0
        %2199 = vmatmul.mubr.f32.gmra.mxu0 %v1933
        %v2200 = vpop.f32.mrf.mxu0
        %v2201 = vadd.f32 0.0, %v2200
        %v2202 = vpop.f32.mrf.mxu0
        %2203 = vmatprep.mubr.f32.mxu0 0.0
        %2204 = vmatmul.mubr.f32.gmra.mxu0 %v1936
        %v2205 = vpop.f32.mrf.mxu0
        %v2206 = vadd.f32 0.0, %v2205
        %v2207 = vpop.f32.mrf.mxu0
        %2208 = vmatprep.mubr.f32.mxu0 0.0
        %2209 = vmatmul.mubr.f32.gmra.mxu0 %v1939
        %v2210 = vpop.f32.mrf.mxu0
        %v2211 = vadd.f32 0.0, %v2210
        %v2212 = vpop.f32.mrf.mxu0
        %2213 = vdwg.mxu0
        %v2214 = vadd.f32 %v1735, %v2011
        %v2215 = vadd.f32 %v1736, %v2016
        %v2216 = vadd.f32 %v1737, %v2021
        %v2217 = vadd.f32 %v1738, %v2026
        %v2218 = vadd.f32 %v1739, %v2031
        %v2219 = vadd.f32 %v1740, %v2036
        %v2220 = vadd.f32 %v1741, %v2041
        %v2221 = vadd.f32 %v1742, %v2046
        %v2222 = vadd.f32 %v1743, %v2051
        %v2223 = vadd.f32 %v1744, %v2056
        %v2224 = vadd.f32 %v1745, %v2061
        %v2225 = vadd.f32 %v1746, %v2066
        %v2226 = vadd.f32 %v1747, %v2071
        %v2227 = vadd.f32 %v1748, %v2076
        %v2228 = vadd.f32 %v1749, %v2081
        %v2229 = vadd.f32 %v1750, %v2086
        %v2230 = vadd.f32 %v1751, %v2091
        %v2231 = vadd.f32 %v1752, %v2096
        %v2232 = vadd.f32 %v1753, %v2101
        %v2233 = vadd.f32 %v1754, %v2106
        %v2234 = vadd.f32 %v1755, %v2111
        %v2235 = vadd.f32 %v1756, %v2116
        %v2236 = vadd.f32 %v1757, %v2121
        %v2237 = vadd.f32 %v1758, %v2126
        %v2238 = vadd.f32 %v1759, %v2131
        %v2239 = vadd.f32 %v1760, %v2136
        %v2240 = vadd.f32 %v1761, %v2141
        %v2241 = vadd.f32 %v1762, %v2146
        %v2242 = vadd.f32 %v1763, %v2151
        %v2243 = vadd.f32 %v1764, %v2156
        %v2244 = vadd.f32 %v1765, %v2161
        %v2245 = vadd.f32 %v1766, %v2166
        %v2246 = vadd.f32 %v1767, %v2171
        %v2247 = vadd.f32 %v1768, %v2176
        %v2248 = vadd.f32 %v1769, %v2181
        %v2249 = vadd.f32 %v1770, %v2186
        %v2250 = vadd.f32 %v1771, %v2191
        %v2251 = vadd.f32 %v1772, %v2196
        %v2252 = vadd.f32 %v1773, %v2201
        %v2253 = vadd.f32 %v1774, %v2206
        %v2254 = vadd.f32 %v1775, %v2211
        %v2255 = vld [vmem:[%s329 + $0x13] sm:$0xff]
        %v2256 = vld [vmem:[%s329 + $0x1b] sm:$0xff]
        %v2257 = vld [vmem:[%s329 + $0x23] sm:$0xff]
        %v2258 = vld [vmem:[%s329 + $0x2b] sm:$0xff]
        %v2259 = vld [vmem:[%s329 + $0x33] sm:$0xff]
        %v2260 = vld [vmem:[%s329 + $0x3b] sm:$0xff]
        %v2261 = vld [vmem:[%s329 + $0x43] sm:$0xff]
        %v2262 = vld [vmem:[%s329 + $0x4b] sm:$0xff]
        %v2263 = vld [vmem:[%s329 + $0x53] sm:$0xff]
        %v2264 = vld [vmem:[%s329 + $0x5b] sm:$0xff]
        %v2265 = vld [vmem:[%s329 + $0x63] sm:$0xff]
        %v2266 = vld [vmem:[%s329 + $0x6b] sm:$0xff]
        %v2267 = vld [vmem:[%s329 + $0x73] sm:$0xff]
        %v2268 = vld [vmem:[%s329 + $0x7b] sm:$0xff]
        %v2269 = vld [vmem:[%s329 + $0x83] sm:$0xff]
        %v2270 = vld [vmem:[%s329 + $0x8b] sm:$0xff]
        %v2271 = vld [vmem:[%s329 + $0x93] sm:$0xff]
        %v2272 = vld [vmem:[%s329 + $0x9b] sm:$0xff]
        %v2273 = vld [vmem:[%s329 + $0xa3] sm:$0xff]
        %v2274 = vld [vmem:[%s329 + $0xab] sm:$0xff]
        %v2275 = vld [vmem:[%s329 + $0xb3] sm:$0xff]
        %v2276 = vld [vmem:[%s329 + $0xbb] sm:$0xff]
        %v2277 = vld [vmem:[%s329 + $0xc3] sm:$0xff]
        %v2278 = vld [vmem:[%s329 + $0xcb] sm:$0xff]
        %v2279 = vld [vmem:[%s329 + $0xd3] sm:$0xff]
        %v2280 = vld [vmem:[%s329 + $0xdb] sm:$0xff]
        %v2281 = vld [vmem:[%s329 + $0xe3] sm:$0xff]
        %v2282 = vld [vmem:[%s329 + $0xeb] sm:$0xff]
        %v2283 = vld [vmem:[%s329 + $0xf3] sm:$0xff]
        %v2284 = vld [vmem:[%s329 + $0xfb] sm:$0xff]
        %v2285 = vld [vmem:[%s329 + $0x103] sm:$0xff]
        %v2286 = vld [vmem:[%s329 + $0x10b] sm:$0xff]
        %v2287 = vld [vmem:[%s329 + $0x113] sm:$0xff]
        %v2288 = vld [vmem:[%s329 + $0x11b] sm:$0xff]
        %v2289 = vld [vmem:[%s329 + $0x123] sm:$0xff]
        %v2290 = vld [vmem:[%s329 + $0x12b] sm:$0xff]
        %v2291 = vld [vmem:[%s329 + $0x133] sm:$0xff]
        %v2292 = vld [vmem:[%s329 + $0x13b] sm:$0xff]
        %v2293 = vld [vmem:[%s329 + $0x143] sm:$0xff]
        %v2294 = vld [vmem:[%s329 + $0x14b] sm:$0xff]
        %v2295 = vld [vmem:[%s329 + $0x153] sm:$0xf]
        %v2296 = vld [vmem:[%s3 + $0x10] sm:$0xf]
        %v2298 = vsel %vm379, %v2255, 0
        %v2301 = vsel %vm379, %v2256, 0
        %v2304 = vsel %vm379, %v2257, 0
        %v2307 = vsel %vm379, %v2258, 0
        %v2310 = vsel %vm379, %v2259, 0
        %v2313 = vsel %vm379, %v2260, 0
        %v2316 = vsel %vm379, %v2261, 0
        %v2319 = vsel %vm379, %v2262, 0
        %v2322 = vsel %vm379, %v2263, 0
        %v2325 = vsel %vm379, %v2264, 0
        %v2328 = vsel %vm379, %v2265, 0
        %v2331 = vsel %vm379, %v2266, 0
        %v2334 = vsel %vm379, %v2267, 0
        %v2337 = vsel %vm379, %v2268, 0
        %v2340 = vsel %vm379, %v2269, 0
        %v2343 = vsel %vm379, %v2270, 0
        %v2346 = vsel %vm379, %v2271, 0
        %v2349 = vsel %vm379, %v2272, 0
        %v2352 = vsel %vm379, %v2273, 0
        %v2355 = vsel %vm379, %v2274, 0
        %v2358 = vsel %vm379, %v2275, 0
        %v2361 = vsel %vm379, %v2276, 0
        %v2364 = vsel %vm379, %v2277, 0
        %v2367 = vsel %vm379, %v2278, 0
        %v2370 = vsel %vm379, %v2279, 0
        %v2373 = vsel %vm379, %v2280, 0
        %v2376 = vsel %vm379, %v2281, 0
        %v2379 = vsel %vm379, %v2282, 0
        %v2382 = vsel %vm379, %v2283, 0
        %v2385 = vsel %vm379, %v2284, 0
        %v2388 = vsel %vm379, %v2285, 0
        %v2391 = vsel %vm379, %v2286, 0
        %v2394 = vsel %vm379, %v2287, 0
        %v2397 = vsel %vm379, %v2288, 0
        %v2400 = vsel %vm379, %v2289, 0
        %v2403 = vsel %vm379, %v2290, 0
        %v2406 = vsel %vm379, %v2291, 0
        %v2409 = vsel %vm379, %v2292, 0
        %v2412 = vsel %vm379, %v2293, 0
        %v2415 = vsel %vm379, %v2294, 0
        %v2418 = vsel %vm379, %v2295, 0
        %v2421 = vsel %vm503, %v2296, 0
        %2423 = vmatprep.subr.mxu0 0.0
        %2424 = vmatpush1.msra.mxu0 0.0
        %2425 = vmatprep.subr.mxu0 0.0
        %2426 = vmatpush1.msra.mxu0 0.0
        %2427 = vmatprep.subr.mxu0 0.0
        %2428 = vmatpush1.msra.mxu0 0.0
        %2429 = vmatprep.subr.mxu0 0.0
        %2430 = vmatpush1.msra.mxu0 0.0
        %2431 = vmatprep.subr.mxu0 0.0
        %2432 = vmatpush1.msra.mxu0 0.0
        %2433 = vmatprep.subr.mxu0 0.0
        %2434 = vmatpush1.msra.mxu0 0.0
        %2435 = vmatprep.subr.mxu0 0.0
        %2436 = vmatpush1.msra.mxu0 0.0
        %2437 = vmatprep.subr.mxu0 0.0
        %2438 = vmatpush1.msra.mxu0 0.0
        %2439 = vmatprep.subr.mxu0 0.0
        %2440 = vmatpush1.msra.mxu0 0.0
        %2441 = vmatprep.subr.mxu0 0.0
        %2442 = vmatpush1.msra.mxu0 0.0
        %2443 = vmatprep.subr.mxu0 0.0
        %2444 = vmatpush1.msra.mxu0 0.0
        %2445 = vmatprep.subr.mxu0 0.0
        %2446 = vmatpush1.msra.mxu0 0.0
        %2447 = vmatprep.subr.mxu0 0.0
        %2448 = vmatpush1.msra.mxu0 0.0
        %2449 = vmatprep.subr.mxu0 0.0
        %2450 = vmatpush1.msra.mxu0 0.0
        %2451 = vmatprep.subr.mxu0 0.0
        %2452 = vmatpush1.msra.mxu0 0.0
        %2453 = vmatprep.subr.mxu0 0.0
        %2454 = vmatpush1.msra.mxu0 %v2421
        %2455 = vmatprep.subr.mxu0 0.0
        %2456 = vmatpush2.msra.mxu0 0.0
        %2457 = vmatprep.subr.mxu0 0.0
        %2458 = vmatpush2.msra.mxu0 0.0
        %2459 = vmatprep.subr.mxu0 0.0
        %2460 = vmatpush2.msra.mxu0 0.0
        %2461 = vmatprep.subr.mxu0 0.0
        %2462 = vmatpush2.msra.mxu0 0.0
        %2463 = vmatprep.subr.mxu0 0.0
        %2464 = vmatpush2.msra.mxu0 0.0
        %2465 = vmatprep.subr.mxu0 0.0
        %2466 = vmatpush2.msra.mxu0 0.0
        %2467 = vmatprep.subr.mxu0 0.0
        %2468 = vmatpush2.msra.mxu0 0.0
        %2469 = vmatprep.subr.mxu0 0.0
        %2470 = vmatpush2.msra.mxu0 0.0
        %2471 = vmatprep.subr.mxu0 0.0
        %2472 = vmatpush2.msra.mxu0 0.0
        %2473 = vmatprep.subr.mxu0 0.0
        %2474 = vmatpush2.msra.mxu0 0.0
        %2475 = vmatprep.subr.mxu0 0.0
        %2476 = vmatpush2.msra.mxu0 0.0
        %2477 = vmatprep.subr.mxu0 0.0
        %2478 = vmatpush2.msra.mxu0 0.0
        %2479 = vmatprep.subr.mxu0 0.0
        %2480 = vmatpush2.msra.mxu0 0.0
        %2481 = vmatprep.subr.mxu0 0.0
        %2482 = vmatpush2.msra.mxu0 0.0
        %2483 = vmatprep.subr.mxu0 0.0
        %2484 = vmatpush2.msra.mxu0 0.0
        %2485 = vmatprep.subr.mxu0 0.0
        %2486 = vmatpush2.msra.mxu0 0.0
        %2487 = vmatprep.mubr.f32.mxu0 0.0
        %2488 = vmatmul.mubr.f32.gmra.mxu0 %v2298
        %v2489 = vpop.f32.mrf.mxu0
        %v2490 = vadd.f32 0.0, %v2489
        %v2491 = vpop.f32.mrf.mxu0
        %2492 = vmatprep.mubr.f32.mxu0 0.0
        %2493 = vmatmul.mubr.f32.gmra.mxu0 %v2301
        %v2494 = vpop.f32.mrf.mxu0
        %v2495 = vadd.f32 0.0, %v2494
        %v2496 = vpop.f32.mrf.mxu0
        %2497 = vmatprep.mubr.f32.mxu0 0.0
        %2498 = vmatmul.mubr.f32.gmra.mxu0 %v2304
        %v2499 = vpop.f32.mrf.mxu0
        %v2500 = vadd.f32 0.0, %v2499
        %v2501 = vpop.f32.mrf.mxu0
        %2502 = vmatprep.mubr.f32.mxu0 0.0
        %2503 = vmatmul.mubr.f32.gmra.mxu0 %v2307
        %v2504 = vpop.f32.mrf.mxu0
        %v2505 = vadd.f32 0.0, %v2504
        %v2506 = vpop.f32.mrf.mxu0
        %2507 = vmatprep.mubr.f32.mxu0 0.0
        %2508 = vmatmul.mubr.f32.gmra.mxu0 %v2310
        %v2509 = vpop.f32.mrf.mxu0
        %v2510 = vadd.f32 0.0, %v2509
        %v2511 = vpop.f32.mrf.mxu0
        %2512 = vmatprep.mubr.f32.mxu0 0.0
        %2513 = vmatmul.mubr.f32.gmra.mxu0 %v2313
        %v2514 = vpop.f32.mrf.mxu0
        %v2515 = vadd.f32 0.0, %v2514
        %v2516 = vpop.f32.mrf.mxu0
        %2517 = vmatprep.mubr.f32.mxu0 0.0
        %2518 = vmatmul.mubr.f32.gmra.mxu0 %v2316
        %v2519 = vpop.f32.mrf.mxu0
        %v2520 = vadd.f32 0.0, %v2519
        %v2521 = vpop.f32.mrf.mxu0
        %2522 = vmatprep.mubr.f32.mxu0 0.0
        %2523 = vmatmul.mubr.f32.gmra.mxu0 %v2319
        %v2524 = vpop.f32.mrf.mxu0
        %v2525 = vadd.f32 0.0, %v2524
        %v2526 = vpop.f32.mrf.mxu0
        %2527 = vmatprep.mubr.f32.mxu0 0.0
        %2528 = vmatmul.mubr.f32.gmra.mxu0 %v2322
        %v2529 = vpop.f32.mrf.mxu0
        %v2530 = vadd.f32 0.0, %v2529
        %v2531 = vpop.f32.mrf.mxu0
        %2532 = vmatprep.mubr.f32.mxu0 0.0
        %2533 = vmatmul.mubr.f32.gmra.mxu0 %v2325
        %v2534 = vpop.f32.mrf.mxu0
        %v2535 = vadd.f32 0.0, %v2534
        %v2536 = vpop.f32.mrf.mxu0
        %2537 = vmatprep.mubr.f32.mxu0 0.0
        %2538 = vmatmul.mubr.f32.gmra.mxu0 %v2328
        %v2539 = vpop.f32.mrf.mxu0
        %v2540 = vadd.f32 0.0, %v2539
        %v2541 = vpop.f32.mrf.mxu0
        %2542 = vmatprep.mubr.f32.mxu0 0.0
        %2543 = vmatmul.mubr.f32.gmra.mxu0 %v2331
        %v2544 = vpop.f32.mrf.mxu0
        %v2545 = vadd.f32 0.0, %v2544
        %v2546 = vpop.f32.mrf.mxu0
        %2547 = vmatprep.mubr.f32.mxu0 0.0
        %2548 = vmatmul.mubr.f32.gmra.mxu0 %v2334
        %v2549 = vpop.f32.mrf.mxu0
        %v2550 = vadd.f32 0.0, %v2549
        %v2551 = vpop.f32.mrf.mxu0
        %2552 = vmatprep.mubr.f32.mxu0 0.0
        %2553 = vmatmul.mubr.f32.gmra.mxu0 %v2337
        %v2554 = vpop.f32.mrf.mxu0
        %v2555 = vadd.f32 0.0, %v2554
        %v2556 = vpop.f32.mrf.mxu0
        %2557 = vmatprep.mubr.f32.mxu0 0.0
        %2558 = vmatmul.mubr.f32.gmra.mxu0 %v2340
        %v2559 = vpop.f32.mrf.mxu0
        %v2560 = vadd.f32 0.0, %v2559
        %v2561 = vpop.f32.mrf.mxu0
        %2562 = vmatprep.mubr.f32.mxu0 0.0
        %2563 = vmatmul.mubr.f32.gmra.mxu0 %v2343
        %v2564 = vpop.f32.mrf.mxu0
        %v2565 = vadd.f32 0.0, %v2564
        %v2566 = vpop.f32.mrf.mxu0
        %2567 = vmatprep.mubr.f32.mxu0 0.0
        %2568 = vmatmul.mubr.f32.gmra.mxu0 %v2346
        %v2569 = vpop.f32.mrf.mxu0
        %v2570 = vadd.f32 0.0, %v2569
        %v2571 = vpop.f32.mrf.mxu0
        %2572 = vmatprep.mubr.f32.mxu0 0.0
        %2573 = vmatmul.mubr.f32.gmra.mxu0 %v2349
        %v2574 = vpop.f32.mrf.mxu0
        %v2575 = vadd.f32 0.0, %v2574
        %v2576 = vpop.f32.mrf.mxu0
        %2577 = vmatprep.mubr.f32.mxu0 0.0
        %2578 = vmatmul.mubr.f32.gmra.mxu0 %v2352
        %v2579 = vpop.f32.mrf.mxu0
        %v2580 = vadd.f32 0.0, %v2579
        %v2581 = vpop.f32.mrf.mxu0
        %2582 = vmatprep.mubr.f32.mxu0 0.0
        %2583 = vmatmul.mubr.f32.gmra.mxu0 %v2355
        %v2584 = vpop.f32.mrf.mxu0
        %v2585 = vadd.f32 0.0, %v2584
        %v2586 = vpop.f32.mrf.mxu0
        %2587 = vmatprep.mubr.f32.mxu0 0.0
        %2588 = vmatmul.mubr.f32.gmra.mxu0 %v2358
        %v2589 = vpop.f32.mrf.mxu0
        %v2590 = vadd.f32 0.0, %v2589
        %v2591 = vpop.f32.mrf.mxu0
        %2592 = vmatprep.mubr.f32.mxu0 0.0
        %2593 = vmatmul.mubr.f32.gmra.mxu0 %v2361
        %v2594 = vpop.f32.mrf.mxu0
        %v2595 = vadd.f32 0.0, %v2594
        %v2596 = vpop.f32.mrf.mxu0
        %2597 = vmatprep.mubr.f32.mxu0 0.0
        %2598 = vmatmul.mubr.f32.gmra.mxu0 %v2364
        %v2599 = vpop.f32.mrf.mxu0
        %v2600 = vadd.f32 0.0, %v2599
        %v2601 = vpop.f32.mrf.mxu0
        %2602 = vmatprep.mubr.f32.mxu0 0.0
        %2603 = vmatmul.mubr.f32.gmra.mxu0 %v2367
        %v2604 = vpop.f32.mrf.mxu0
        %v2605 = vadd.f32 0.0, %v2604
        %v2606 = vpop.f32.mrf.mxu0
        %2607 = vmatprep.mubr.f32.mxu0 0.0
        %2608 = vmatmul.mubr.f32.gmra.mxu0 %v2370
        %v2609 = vpop.f32.mrf.mxu0
        %v2610 = vadd.f32 0.0, %v2609
        %v2611 = vpop.f32.mrf.mxu0
        %2612 = vmatprep.mubr.f32.mxu0 0.0
        %2613 = vmatmul.mubr.f32.gmra.mxu0 %v2373
        %v2614 = vpop.f32.mrf.mxu0
        %v2615 = vadd.f32 0.0, %v2614
        %v2616 = vpop.f32.mrf.mxu0
        %2617 = vmatprep.mubr.f32.mxu0 0.0
        %2618 = vmatmul.mubr.f32.gmra.mxu0 %v2376
        %v2619 = vpop.f32.mrf.mxu0
        %v2620 = vadd.f32 0.0, %v2619
        %v2621 = vpop.f32.mrf.mxu0
        %2622 = vmatprep.mubr.f32.mxu0 0.0
        %2623 = vmatmul.mubr.f32.gmra.mxu0 %v2379
        %v2624 = vpop.f32.mrf.mxu0
        %v2625 = vadd.f32 0.0, %v2624
        %v2626 = vpop.f32.mrf.mxu0
        %2627 = vmatprep.mubr.f32.mxu0 0.0
        %2628 = vmatmul.mubr.f32.gmra.mxu0 %v2382
        %v2629 = vpop.f32.mrf.mxu0
        %v2630 = vadd.f32 0.0, %v2629
        %v2631 = vpop.f32.mrf.mxu0
        %2632 = vmatprep.mubr.f32.mxu0 0.0
        %2633 = vmatmul.mubr.f32.gmra.mxu0 %v2385
        %v2634 = vpop.f32.mrf.mxu0
        %v2635 = vadd.f32 0.0, %v2634
        %v2636 = vpop.f32.mrf.mxu0
        %2637 = vmatprep.mubr.f32.mxu0 0.0
        %2638 = vmatmul.mubr.f32.gmra.mxu0 %v2388
        %v2639 = vpop.f32.mrf.mxu0
        %v2640 = vadd.f32 0.0, %v2639
        %v2641 = vpop.f32.mrf.mxu0
        %2642 = vmatprep.mubr.f32.mxu0 0.0
        %2643 = vmatmul.mubr.f32.gmra.mxu0 %v2391
        %v2644 = vpop.f32.mrf.mxu0
        %v2645 = vadd.f32 0.0, %v2644
        %v2646 = vpop.f32.mrf.mxu0
        %2647 = vmatprep.mubr.f32.mxu0 0.0
        %2648 = vmatmul.mubr.f32.gmra.mxu0 %v2394
        %v2649 = vpop.f32.mrf.mxu0
        %v2650 = vadd.f32 0.0, %v2649
        %v2651 = vpop.f32.mrf.mxu0
        %2652 = vmatprep.mubr.f32.mxu0 0.0
        %2653 = vmatmul.mubr.f32.gmra.mxu0 %v2397
        %v2654 = vpop.f32.mrf.mxu0
        %v2655 = vadd.f32 0.0, %v2654
        %v2656 = vpop.f32.mrf.mxu0
        %2657 = vmatprep.mubr.f32.mxu0 0.0
        %2658 = vmatmul.mubr.f32.gmra.mxu0 %v2400
        %v2659 = vpop.f32.mrf.mxu0
        %v2660 = vadd.f32 0.0, %v2659
        %v2661 = vpop.f32.mrf.mxu0
        %2662 = vmatprep.mubr.f32.mxu0 0.0
        %2663 = vmatmul.mubr.f32.gmra.mxu0 %v2403
        %v2664 = vpop.f32.mrf.mxu0
        %v2665 = vadd.f32 0.0, %v2664
        %v2666 = vpop.f32.mrf.mxu0
        %2667 = vmatprep.mubr.f32.mxu0 0.0
        %2668 = vmatmul.mubr.f32.gmra.mxu0 %v2406
        %v2669 = vpop.f32.mrf.mxu0
        %v2670 = vadd.f32 0.0, %v2669
        %v2671 = vpop.f32.mrf.mxu0
        %2672 = vmatprep.mubr.f32.mxu0 0.0
        %2673 = vmatmul.mubr.f32.gmra.mxu0 %v2409
        %v2674 = vpop.f32.mrf.mxu0
        %v2675 = vadd.f32 0.0, %v2674
        %v2676 = vpop.f32.mrf.mxu0
        %2677 = vmatprep.mubr.f32.mxu0 0.0
        %2678 = vmatmul.mubr.f32.gmra.mxu0 %v2412
        %v2679 = vpop.f32.mrf.mxu0
        %v2680 = vadd.f32 0.0, %v2679
        %v2681 = vpop.f32.mrf.mxu0
        %2682 = vmatprep.mubr.f32.mxu0 0.0
        %2683 = vmatmul.mubr.f32.gmra.mxu0 %v2415
        %v2684 = vpop.f32.mrf.mxu0
        %v2685 = vadd.f32 0.0, %v2684
        %v2686 = vpop.f32.mrf.mxu0
        %2687 = vmatprep.mubr.f32.mxu0 0.0
        %2688 = vmatmul.mubr.f32.gmra.mxu0 %v2418
        %v2689 = vpop.f32.mrf.mxu0
        %v2690 = vadd.f32 0.0, %v2689
        %v2691 = vpop.f32.mrf.mxu0
        %2692 = vdwg.mxu0
        %v2693 = vadd.f32 %v2214, %v2490
        %v2694 = vadd.f32 %v2215, %v2495
        %v2695 = vadd.f32 %v2216, %v2500
        %v2696 = vadd.f32 %v2217, %v2505
        %v2697 = vadd.f32 %v2218, %v2510
        %v2698 = vadd.f32 %v2219, %v2515
        %v2699 = vadd.f32 %v2220, %v2520
        %v2700 = vadd.f32 %v2221, %v2525
        %v2701 = vadd.f32 %v2222, %v2530
        %v2702 = vadd.f32 %v2223, %v2535
        %v2703 = vadd.f32 %v2224, %v2540
        %v2704 = vadd.f32 %v2225, %v2545
        %v2705 = vadd.f32 %v2226, %v2550
        %v2706 = vadd.f32 %v2227, %v2555
        %v2707 = vadd.f32 %v2228, %v2560
        %v2708 = vadd.f32 %v2229, %v2565
        %v2709 = vadd.f32 %v2230, %v2570
        %v2710 = vadd.f32 %v2231, %v2575
        %v2711 = vadd.f32 %v2232, %v2580
        %v2712 = vadd.f32 %v2233, %v2585
        %v2713 = vadd.f32 %v2234, %v2590
        %v2714 = vadd.f32 %v2235, %v2595
        %v2715 = vadd.f32 %v2236, %v2600
        %v2716 = vadd.f32 %v2237, %v2605
        %v2717 = vadd.f32 %v2238, %v2610
        %v2718 = vadd.f32 %v2239, %v2615
        %v2719 = vadd.f32 %v2240, %v2620
        %v2720 = vadd.f32 %v2241, %v2625
        %v2721 = vadd.f32 %v2242, %v2630
        %v2722 = vadd.f32 %v2243, %v2635
        %v2723 = vadd.f32 %v2244, %v2640
        %v2724 = vadd.f32 %v2245, %v2645
        %v2725 = vadd.f32 %v2246, %v2650
        %v2726 = vadd.f32 %v2247, %v2655
        %v2727 = vadd.f32 %v2248, %v2660
        %v2728 = vadd.f32 %v2249, %v2665
        %v2729 = vadd.f32 %v2250, %v2670
        %v2730 = vadd.f32 %v2251, %v2675
        %v2731 = vadd.f32 %v2252, %v2680
        %v2732 = vadd.f32 %v2253, %v2685
        %v2733 = vadd.f32 %v2254, %v2690
        %v2734 = vld [vmem:[%s329 + $0x14] sm:$0xff]
        %v2735 = vld [vmem:[%s329 + $0x1c] sm:$0xff]
        %v2736 = vld [vmem:[%s329 + $0x24] sm:$0xff]
        %v2737 = vld [vmem:[%s329 + $0x2c] sm:$0xff]
        %v2738 = vld [vmem:[%s329 + $0x34] sm:$0xff]
        %v2739 = vld [vmem:[%s329 + $0x3c] sm:$0xff]
        %v2740 = vld [vmem:[%s329 + $0x44] sm:$0xff]
        %v2741 = vld [vmem:[%s329 + $0x4c] sm:$0xff]
        %v2742 = vld [vmem:[%s329 + $0x54] sm:$0xff]
        %v2743 = vld [vmem:[%s329 + $0x5c] sm:$0xff]
        %v2744 = vld [vmem:[%s329 + $0x64] sm:$0xff]
        %v2745 = vld [vmem:[%s329 + $0x6c] sm:$0xff]
        %v2746 = vld [vmem:[%s329 + $0x74] sm:$0xff]
        %v2747 = vld [vmem:[%s329 + $0x7c] sm:$0xff]
        %v2748 = vld [vmem:[%s329 + $0x84] sm:$0xff]
        %v2749 = vld [vmem:[%s329 + $0x8c] sm:$0xff]
        %v2750 = vld [vmem:[%s329 + $0x94] sm:$0xff]
        %v2751 = vld [vmem:[%s329 + $0x9c] sm:$0xff]
        %v2752 = vld [vmem:[%s329 + $0xa4] sm:$0xff]
        %v2753 = vld [vmem:[%s329 + $0xac] sm:$0xff]
        %v2754 = vld [vmem:[%s329 + $0xb4] sm:$0xff]
        %v2755 = vld [vmem:[%s329 + $0xbc] sm:$0xff]
        %v2756 = vld [vmem:[%s329 + $0xc4] sm:$0xff]
        %v2757 = vld [vmem:[%s329 + $0xcc] sm:$0xff]
        %v2758 = vld [vmem:[%s329 + $0xd4] sm:$0xff]
        %v2759 = vld [vmem:[%s329 + $0xdc] sm:$0xff]
        %v2760 = vld [vmem:[%s329 + $0xe4] sm:$0xff]
        %v2761 = vld [vmem:[%s329 + $0xec] sm:$0xff]
        %v2762 = vld [vmem:[%s329 + $0xf4] sm:$0xff]
        %v2763 = vld [vmem:[%s329 + $0xfc] sm:$0xff]
        %v2764 = vld [vmem:[%s329 + $0x104] sm:$0xff]
        %v2765 = vld [vmem:[%s329 + $0x10c] sm:$0xff]
        %v2766 = vld [vmem:[%s329 + $0x114] sm:$0xff]
        %v2767 = vld [vmem:[%s329 + $0x11c] sm:$0xff]
        %v2768 = vld [vmem:[%s329 + $0x124] sm:$0xff]
        %v2769 = vld [vmem:[%s329 + $0x12c] sm:$0xff]
        %v2770 = vld [vmem:[%s329 + $0x134] sm:$0xff]
        %v2771 = vld [vmem:[%s329 + $0x13c] sm:$0xff]
        %v2772 = vld [vmem:[%s329 + $0x144] sm:$0xff]
        %v2773 = vld [vmem:[%s329 + $0x14c] sm:$0xff]
        %v2774 = vld [vmem:[%s329 + $0x154] sm:$0xf]
        %v2775 = vld [vmem:[%s3 + $0x14] sm:$0xf]
        %v2777 = vsel %vm379, %v2734, 0
        %v2780 = vsel %vm379, %v2735, 0
        %v2783 = vsel %vm379, %v2736, 0
        %v2786 = vsel %vm379, %v2737, 0
        %v2789 = vsel %vm379, %v2738, 0
        %v2792 = vsel %vm379, %v2739, 0
        %v2795 = vsel %vm379, %v2740, 0
        %v2798 = vsel %vm379, %v2741, 0
        %v2801 = vsel %vm379, %v2742, 0
        %v2804 = vsel %vm379, %v2743, 0
        %v2807 = vsel %vm379, %v2744, 0
        %v2810 = vsel %vm379, %v2745, 0
        %v2813 = vsel %vm379, %v2746, 0
        %v2816 = vsel %vm379, %v2747, 0
        %v2819 = vsel %vm379, %v2748, 0
        %v2822 = vsel %vm379, %v2749, 0
        %v2825 = vsel %vm379, %v2750, 0
        %v2828 = vsel %vm379, %v2751, 0
        %v2831 = vsel %vm379, %v2752, 0
        %v2834 = vsel %vm379, %v2753, 0
        %v2837 = vsel %vm379, %v2754, 0
        %v2840 = vsel %vm379, %v2755, 0
        %v2843 = vsel %vm379, %v2756, 0
        %v2846 = vsel %vm379, %v2757, 0
        %v2849 = vsel %vm379, %v2758, 0
        %v2852 = vsel %vm379, %v2759, 0
        %v2855 = vsel %vm379, %v2760, 0
        %v2858 = vsel %vm379, %v2761, 0
        %v2861 = vsel %vm379, %v2762, 0
        %v2864 = vsel %vm379, %v2763, 0
        %v2867 = vsel %vm379, %v2764, 0
        %v2870 = vsel %vm379, %v2765, 0
        %v2873 = vsel %vm379, %v2766, 0
        %v2876 = vsel %vm379, %v2767, 0
        %v2879 = vsel %vm379, %v2768, 0
        %v2882 = vsel %vm379, %v2769, 0
        %v2885 = vsel %vm379, %v2770, 0
        %v2888 = vsel %vm379, %v2771, 0
        %v2891 = vsel %vm379, %v2772, 0
        %v2894 = vsel %vm379, %v2773, 0
        %v2897 = vsel %vm379, %v2774, 0
        %v2900 = vsel %vm503, %v2775, 0
        %2902 = vmatprep.subr.mxu0 0.0
        %2903 = vmatpush1.msra.mxu0 0.0
        %2904 = vmatprep.subr.mxu0 0.0
        %2905 = vmatpush1.msra.mxu0 0.0
        %2906 = vmatprep.subr.mxu0 0.0
        %2907 = vmatpush1.msra.mxu0 0.0
        %2908 = vmatprep.subr.mxu0 0.0
        %2909 = vmatpush1.msra.mxu0 0.0
        %2910 = vmatprep.subr.mxu0 0.0
        %2911 = vmatpush1.msra.mxu0 0.0
        %2912 = vmatprep.subr.mxu0 0.0
        %2913 = vmatpush1.msra.mxu0 0.0
        %2914 = vmatprep.subr.mxu0 0.0
        %2915 = vmatpush1.msra.mxu0 0.0
        %2916 = vmatprep.subr.mxu0 0.0
        %2917 = vmatpush1.msra.mxu0 0.0
        %2918 = vmatprep.subr.mxu0 0.0
        %2919 = vmatpush1.msra.mxu0 0.0
        %2920 = vmatprep.subr.mxu0 0.0
        %2921 = vmatpush1.msra.mxu0 0.0
        %2922 = vmatprep.subr.mxu0 0.0
        %2923 = vmatpush1.msra.mxu0 0.0
        %2924 = vmatprep.subr.mxu0 0.0
        %2925 = vmatpush1.msra.mxu0 0.0
        %2926 = vmatprep.subr.mxu0 0.0
        %2927 = vmatpush1.msra.mxu0 0.0
        %2928 = vmatprep.subr.mxu0 0.0
        %2929 = vmatpush1.msra.mxu0 0.0
        %2930 = vmatprep.subr.mxu0 0.0
        %2931 = vmatpush1.msra.mxu0 0.0
        %2932 = vmatprep.subr.mxu0 0.0
        %2933 = vmatpush1.msra.mxu0 %v2900
        %2934 = vmatprep.subr.mxu0 0.0
        %2935 = vmatpush2.msra.mxu0 0.0
        %2936 = vmatprep.subr.mxu0 0.0
        %2937 = vmatpush2.msra.mxu0 0.0
        %2938 = vmatprep.subr.mxu0 0.0
        %2939 = vmatpush2.msra.mxu0 0.0
        %2940 = vmatprep.subr.mxu0 0.0
        %2941 = vmatpush2.msra.mxu0 0.0
        %2942 = vmatprep.subr.mxu0 0.0
        %2943 = vmatpush2.msra.mxu0 0.0
        %2944 = vmatprep.subr.mxu0 0.0
        %2945 = vmatpush2.msra.mxu0 0.0
        %2946 = vmatprep.subr.mxu0 0.0
        %2947 = vmatpush2.msra.mxu0 0.0
        %2948 = vmatprep.subr.mxu0 0.0
        %2949 = vmatpush2.msra.mxu0 0.0
        %2950 = vmatprep.subr.mxu0 0.0
        %2951 = vmatpush2.msra.mxu0 0.0
        %2952 = vmatprep.subr.mxu0 0.0
        %2953 = vmatpush2.msra.mxu0 0.0
        %2954 = vmatprep.subr.mxu0 0.0
        %2955 = vmatpush2.msra.mxu0 0.0
        %2956 = vmatprep.subr.mxu0 0.0
        %2957 = vmatpush2.msra.mxu0 0.0
        %2958 = vmatprep.subr.mxu0 0.0
        %2959 = vmatpush2.msra.mxu0 0.0
        %2960 = vmatprep.subr.mxu0 0.0
        %2961 = vmatpush2.msra.mxu0 0.0
        %2962 = vmatprep.subr.mxu0 0.0
        %2963 = vmatpush2.msra.mxu0 0.0
        %2964 = vmatprep.subr.mxu0 0.0
        %2965 = vmatpush2.msra.mxu0 0.0
        %2966 = vmatprep.mubr.f32.mxu0 0.0
        %2967 = vmatmul.mubr.f32.gmra.mxu0 %v2777
        %v2968 = vpop.f32.mrf.mxu0
        %v2969 = vadd.f32 0.0, %v2968
        %v2970 = vpop.f32.mrf.mxu0
        %2971 = vmatprep.mubr.f32.mxu0 0.0
        %2972 = vmatmul.mubr.f32.gmra.mxu0 %v2780
        %v2973 = vpop.f32.mrf.mxu0
        %v2974 = vadd.f32 0.0, %v2973
        %v2975 = vpop.f32.mrf.mxu0
        %2976 = vmatprep.mubr.f32.mxu0 0.0
        %2977 = vmatmul.mubr.f32.gmra.mxu0 %v2783
        %v2978 = vpop.f32.mrf.mxu0
        %v2979 = vadd.f32 0.0, %v2978
        %v2980 = vpop.f32.mrf.mxu0
        %2981 = vmatprep.mubr.f32.mxu0 0.0
        %2982 = vmatmul.mubr.f32.gmra.mxu0 %v2786
        %v2983 = vpop.f32.mrf.mxu0
        %v2984 = vadd.f32 0.0, %v2983
        %v2985 = vpop.f32.mrf.mxu0
        %2986 = vmatprep.mubr.f32.mxu0 0.0
        %2987 = vmatmul.mubr.f32.gmra.mxu0 %v2789
        %v2988 = vpop.f32.mrf.mxu0
        %v2989 = vadd.f32 0.0, %v2988
        %v2990 = vpop.f32.mrf.mxu0
        %2991 = vmatprep.mubr.f32.mxu0 0.0
        %2992 = vmatmul.mubr.f32.gmra.mxu0 %v2792
        %v2993 = vpop.f32.mrf.mxu0
        %v2994 = vadd.f32 0.0, %v2993
        %v2995 = vpop.f32.mrf.mxu0
        %2996 = vmatprep.mubr.f32.mxu0 0.0
        %2997 = vmatmul.mubr.f32.gmra.mxu0 %v2795
        %v2998 = vpop.f32.mrf.mxu0
        %v2999 = vadd.f32 0.0, %v2998
        %v3000 = vpop.f32.mrf.mxu0
        %3001 = vmatprep.mubr.f32.mxu0 0.0
        %3002 = vmatmul.mubr.f32.gmra.mxu0 %v2798
        %v3003 = vpop.f32.mrf.mxu0
        %v3004 = vadd.f32 0.0, %v3003
        %v3005 = vpop.f32.mrf.mxu0
        %3006 = vmatprep.mubr.f32.mxu0 0.0
        %3007 = vmatmul.mubr.f32.gmra.mxu0 %v2801
        %v3008 = vpop.f32.mrf.mxu0
        %v3009 = vadd.f32 0.0, %v3008
        %v3010 = vpop.f32.mrf.mxu0
        %3011 = vmatprep.mubr.f32.mxu0 0.0
        %3012 = vmatmul.mubr.f32.gmra.mxu0 %v2804
        %v3013 = vpop.f32.mrf.mxu0
        %v3014 = vadd.f32 0.0, %v3013
        %v3015 = vpop.f32.mrf.mxu0
        %3016 = vmatprep.mubr.f32.mxu0 0.0
        %3017 = vmatmul.mubr.f32.gmra.mxu0 %v2807
        %v3018 = vpop.f32.mrf.mxu0
        %v3019 = vadd.f32 0.0, %v3018
        %v3020 = vpop.f32.mrf.mxu0
        %3021 = vmatprep.mubr.f32.mxu0 0.0
        %3022 = vmatmul.mubr.f32.gmra.mxu0 %v2810
        %v3023 = vpop.f32.mrf.mxu0
        %v3024 = vadd.f32 0.0, %v3023
        %v3025 = vpop.f32.mrf.mxu0
        %3026 = vmatprep.mubr.f32.mxu0 0.0
        %3027 = vmatmul.mubr.f32.gmra.mxu0 %v2813
        %v3028 = vpop.f32.mrf.mxu0
        %v3029 = vadd.f32 0.0, %v3028
        %v3030 = vpop.f32.mrf.mxu0
        %3031 = vmatprep.mubr.f32.mxu0 0.0
        %3032 = vmatmul.mubr.f32.gmra.mxu0 %v2816
        %v3033 = vpop.f32.mrf.mxu0
        %v3034 = vadd.f32 0.0, %v3033
        %v3035 = vpop.f32.mrf.mxu0
        %3036 = vmatprep.mubr.f32.mxu0 0.0
        %3037 = vmatmul.mubr.f32.gmra.mxu0 %v2819
        %v3038 = vpop.f32.mrf.mxu0
        %v3039 = vadd.f32 0.0, %v3038
        %v3040 = vpop.f32.mrf.mxu0
        %3041 = vmatprep.mubr.f32.mxu0 0.0
        %3042 = vmatmul.mubr.f32.gmra.mxu0 %v2822
        %v3043 = vpop.f32.mrf.mxu0
        %v3044 = vadd.f32 0.0, %v3043
        %v3045 = vpop.f32.mrf.mxu0
        %3046 = vmatprep.mubr.f32.mxu0 0.0
        %3047 = vmatmul.mubr.f32.gmra.mxu0 %v2825
        %v3048 = vpop.f32.mrf.mxu0
        %v3049 = vadd.f32 0.0, %v3048
        %v3050 = vpop.f32.mrf.mxu0
        %3051 = vmatprep.mubr.f32.mxu0 0.0
        %3052 = vmatmul.mubr.f32.gmra.mxu0 %v2828
        %v3053 = vpop.f32.mrf.mxu0
        %v3054 = vadd.f32 0.0, %v3053
        %v3055 = vpop.f32.mrf.mxu0
        %3056 = vmatprep.mubr.f32.mxu0 0.0
        %3057 = vmatmul.mubr.f32.gmra.mxu0 %v2831
        %v3058 = vpop.f32.mrf.mxu0
        %v3059 = vadd.f32 0.0, %v3058
        %v3060 = vpop.f32.mrf.mxu0
        %3061 = vmatprep.mubr.f32.mxu0 0.0
        %3062 = vmatmul.mubr.f32.gmra.mxu0 %v2834
        %v3063 = vpop.f32.mrf.mxu0
        %v3064 = vadd.f32 0.0, %v3063
        %v3065 = vpop.f32.mrf.mxu0
        %3066 = vmatprep.mubr.f32.mxu0 0.0
        %3067 = vmatmul.mubr.f32.gmra.mxu0 %v2837
        %v3068 = vpop.f32.mrf.mxu0
        %v3069 = vadd.f32 0.0, %v3068
        %v3070 = vpop.f32.mrf.mxu0
        %3071 = vmatprep.mubr.f32.mxu0 0.0
        %3072 = vmatmul.mubr.f32.gmra.mxu0 %v2840
        %v3073 = vpop.f32.mrf.mxu0
        %v3074 = vadd.f32 0.0, %v3073
        %v3075 = vpop.f32.mrf.mxu0
        %3076 = vmatprep.mubr.f32.mxu0 0.0
        %3077 = vmatmul.mubr.f32.gmra.mxu0 %v2843
        %v3078 = vpop.f32.mrf.mxu0
        %v3079 = vadd.f32 0.0, %v3078
        %v3080 = vpop.f32.mrf.mxu0
        %3081 = vmatprep.mubr.f32.mxu0 0.0
        %3082 = vmatmul.mubr.f32.gmra.mxu0 %v2846
        %v3083 = vpop.f32.mrf.mxu0
        %v3084 = vadd.f32 0.0, %v3083
        %v3085 = vpop.f32.mrf.mxu0
        %3086 = vmatprep.mubr.f32.mxu0 0.0
        %3087 = vmatmul.mubr.f32.gmra.mxu0 %v2849
        %v3088 = vpop.f32.mrf.mxu0
        %v3089 = vadd.f32 0.0, %v3088
        %v3090 = vpop.f32.mrf.mxu0
        %3091 = vmatprep.mubr.f32.mxu0 0.0
        %3092 = vmatmul.mubr.f32.gmra.mxu0 %v2852
        %v3093 = vpop.f32.mrf.mxu0
        %v3094 = vadd.f32 0.0, %v3093
        %v3095 = vpop.f32.mrf.mxu0
        %3096 = vmatprep.mubr.f32.mxu0 0.0
        %3097 = vmatmul.mubr.f32.gmra.mxu0 %v2855
        %v3098 = vpop.f32.mrf.mxu0
        %v3099 = vadd.f32 0.0, %v3098
        %v3100 = vpop.f32.mrf.mxu0
        %3101 = vmatprep.mubr.f32.mxu0 0.0
        %3102 = vmatmul.mubr.f32.gmra.mxu0 %v2858
        %v3103 = vpop.f32.mrf.mxu0
        %v3104 = vadd.f32 0.0, %v3103
        %v3105 = vpop.f32.mrf.mxu0
        %3106 = vmatprep.mubr.f32.mxu0 0.0
        %3107 = vmatmul.mubr.f32.gmra.mxu0 %v2861
        %v3108 = vpop.f32.mrf.mxu0
        %v3109 = vadd.f32 0.0, %v3108
        %v3110 = vpop.f32.mrf.mxu0
        %3111 = vmatprep.mubr.f32.mxu0 0.0
        %3112 = vmatmul.mubr.f32.gmra.mxu0 %v2864
        %v3113 = vpop.f32.mrf.mxu0
        %v3114 = vadd.f32 0.0, %v3113
        %v3115 = vpop.f32.mrf.mxu0
        %3116 = vmatprep.mubr.f32.mxu0 0.0
        %3117 = vmatmul.mubr.f32.gmra.mxu0 %v2867
        %v3118 = vpop.f32.mrf.mxu0
        %v3119 = vadd.f32 0.0, %v3118
        %v3120 = vpop.f32.mrf.mxu0
        %3121 = vmatprep.mubr.f32.mxu0 0.0
        %3122 = vmatmul.mubr.f32.gmra.mxu0 %v2870
        %v3123 = vpop.f32.mrf.mxu0
        %v3124 = vadd.f32 0.0, %v3123
        %v3125 = vpop.f32.mrf.mxu0
        %3126 = vmatprep.mubr.f32.mxu0 0.0
        %3127 = vmatmul.mubr.f32.gmra.mxu0 %v2873
        %v3128 = vpop.f32.mrf.mxu0
        %v3129 = vadd.f32 0.0, %v3128
        %v3130 = vpop.f32.mrf.mxu0
        %3131 = vmatprep.mubr.f32.mxu0 0.0
        %3132 = vmatmul.mubr.f32.gmra.mxu0 %v2876
        %v3133 = vpop.f32.mrf.mxu0
        %v3134 = vadd.f32 0.0, %v3133
        %v3135 = vpop.f32.mrf.mxu0
        %3136 = vmatprep.mubr.f32.mxu0 0.0
        %3137 = vmatmul.mubr.f32.gmra.mxu0 %v2879
        %v3138 = vpop.f32.mrf.mxu0
        %v3139 = vadd.f32 0.0, %v3138
        %v3140 = vpop.f32.mrf.mxu0
        %3141 = vmatprep.mubr.f32.mxu0 0.0
        %3142 = vmatmul.mubr.f32.gmra.mxu0 %v2882
        %v3143 = vpop.f32.mrf.mxu0
        %v3144 = vadd.f32 0.0, %v3143
        %v3145 = vpop.f32.mrf.mxu0
        %3146 = vmatprep.mubr.f32.mxu0 0.0
        %3147 = vmatmul.mubr.f32.gmra.mxu0 %v2885
        %v3148 = vpop.f32.mrf.mxu0
        %v3149 = vadd.f32 0.0, %v3148
        %v3150 = vpop.f32.mrf.mxu0
        %3151 = vmatprep.mubr.f32.mxu0 0.0
        %3152 = vmatmul.mubr.f32.gmra.mxu0 %v2888
        %v3153 = vpop.f32.mrf.mxu0
        %v3154 = vadd.f32 0.0, %v3153
        %v3155 = vpop.f32.mrf.mxu0
        %3156 = vmatprep.mubr.f32.mxu0 0.0
        %3157 = vmatmul.mubr.f32.gmra.mxu0 %v2891
        %v3158 = vpop.f32.mrf.mxu0
        %v3159 = vadd.f32 0.0, %v3158
        %v3160 = vpop.f32.mrf.mxu0
        %3161 = vmatprep.mubr.f32.mxu0 0.0
        %3162 = vmatmul.mubr.f32.gmra.mxu0 %v2894
        %v3163 = vpop.f32.mrf.mxu0
        %v3164 = vadd.f32 0.0, %v3163
        %v3165 = vpop.f32.mrf.mxu0
        %3166 = vmatprep.mubr.f32.mxu0 0.0
        %3167 = vmatmul.mubr.f32.gmra.mxu0 %v2897
        %v3168 = vpop.f32.mrf.mxu0
        %v3169 = vadd.f32 0.0, %v3168
        %v3170 = vpop.f32.mrf.mxu0
        %3171 = vdwg.mxu0
        %v3172 = vadd.f32 %v2693, %v2969
        %v3173 = vadd.f32 %v2694, %v2974
        %v3174 = vadd.f32 %v2695, %v2979
        %v3175 = vadd.f32 %v2696, %v2984
        %v3176 = vadd.f32 %v2697, %v2989
        %v3177 = vadd.f32 %v2698, %v2994
        %v3178 = vadd.f32 %v2699, %v2999
        %v3179 = vadd.f32 %v2700, %v3004
        %v3180 = vadd.f32 %v2701, %v3009
        %v3181 = vadd.f32 %v2702, %v3014
        %v3182 = vadd.f32 %v2703, %v3019
        %v3183 = vadd.f32 %v2704, %v3024
        %v3184 = vadd.f32 %v2705, %v3029
        %v3185 = vadd.f32 %v2706, %v3034
        %v3186 = vadd.f32 %v2707, %v3039
        %v3187 = vadd.f32 %v2708, %v3044
        %v3188 = vadd.f32 %v2709, %v3049
        %v3189 = vadd.f32 %v2710, %v3054
        %v3190 = vadd.f32 %v2711, %v3059
        %v3191 = vadd.f32 %v2712, %v3064
        %v3192 = vadd.f32 %v2713, %v3069
        %v3193 = vadd.f32 %v2714, %v3074
        %v3194 = vadd.f32 %v2715, %v3079
        %v3195 = vadd.f32 %v2716, %v3084
        %v3196 = vadd.f32 %v2717, %v3089
        %v3197 = vadd.f32 %v2718, %v3094
        %v3198 = vadd.f32 %v2719, %v3099
        %v3199 = vadd.f32 %v2720, %v3104
        %v3200 = vadd.f32 %v2721, %v3109
        %v3201 = vadd.f32 %v2722, %v3114
        %v3202 = vadd.f32 %v2723, %v3119
        %v3203 = vadd.f32 %v2724, %v3124
        %v3204 = vadd.f32 %v2725, %v3129
        %v3205 = vadd.f32 %v2726, %v3134
        %v3206 = vadd.f32 %v2727, %v3139
        %v3207 = vadd.f32 %v2728, %v3144
        %v3208 = vadd.f32 %v2729, %v3149
        %v3209 = vadd.f32 %v2730, %v3154
        %v3210 = vadd.f32 %v2731, %v3159
        %v3211 = vadd.f32 %v2732, %v3164
        %v3212 = vadd.f32 %v2733, %v3169
        %v3213 = vld [vmem:[%s329 + $0x24] sm:$0xff]
        %v3214 = vld [vmem:[%s329 + $0x2c] sm:$0xff]
        %v3215 = vld [vmem:[%s329 + $0x34] sm:$0xff]
        %v3216 = vld [vmem:[%s329 + $0x3c] sm:$0xff]
        %v3217 = vld [vmem:[%s329 + $0x44] sm:$0xff]
        %v3218 = vld [vmem:[%s329 + $0x4c] sm:$0xff]
        %v3219 = vld [vmem:[%s329 + $0x54] sm:$0xff]
        %v3220 = vld [vmem:[%s329 + $0x5c] sm:$0xff]
        %v3221 = vld [vmem:[%s329 + $0x64] sm:$0xff]
        %v3222 = vld [vmem:[%s329 + $0x6c] sm:$0xff]
        %v3223 = vld [vmem:[%s329 + $0x74] sm:$0xff]
        %v3224 = vld [vmem:[%s329 + $0x7c] sm:$0xff]
        %v3225 = vld [vmem:[%s329 + $0x84] sm:$0xff]
        %v3226 = vld [vmem:[%s329 + $0x8c] sm:$0xff]
        %v3227 = vld [vmem:[%s329 + $0x94] sm:$0xff]
        %v3228 = vld [vmem:[%s329 + $0x9c] sm:$0xff]
        %v3229 = vld [vmem:[%s329 + $0xa4] sm:$0xff]
        %v3230 = vld [vmem:[%s329 + $0xac] sm:$0xff]
        %v3231 = vld [vmem:[%s329 + $0xb4] sm:$0xff]
        %v3232 = vld [vmem:[%s329 + $0xbc] sm:$0xff]
        %v3233 = vld [vmem:[%s329 + $0xc4] sm:$0xff]
        %v3234 = vld [vmem:[%s329 + $0xcc] sm:$0xff]
        %v3235 = vld [vmem:[%s329 + $0xd4] sm:$0xff]
        %v3236 = vld [vmem:[%s329 + $0xdc] sm:$0xff]
        %v3237 = vld [vmem:[%s329 + $0xe4] sm:$0xff]
        %v3238 = vld [vmem:[%s329 + $0xec] sm:$0xff]
        %v3239 = vld [vmem:[%s329 + $0xf4] sm:$0xff]
        %v3240 = vld [vmem:[%s329 + $0xfc] sm:$0xff]
        %v3241 = vld [vmem:[%s329 + $0x104] sm:$0xff]
        %v3242 = vld [vmem:[%s329 + $0x10c] sm:$0xff]
        %v3243 = vld [vmem:[%s329 + $0x114] sm:$0xff]
        %v3244 = vld [vmem:[%s329 + $0x11c] sm:$0xff]
        %v3245 = vld [vmem:[%s329 + $0x124] sm:$0xff]
        %v3246 = vld [vmem:[%s329 + $0x12c] sm:$0xff]
        %v3247 = vld [vmem:[%s329 + $0x134] sm:$0xff]
        %v3248 = vld [vmem:[%s329 + $0x13c] sm:$0xff]
        %v3249 = vld [vmem:[%s329 + $0x144] sm:$0xff]
        %v3250 = vld [vmem:[%s329 + $0x14c] sm:$0xff]
        %v3251 = vld [vmem:[%s329 + $0x154] sm:$0xff]
        %v3252 = vld [vmem:[%s329 + $0x15c] sm:$0xff]
        %v3253 = vld [vmem:[%s329 + $0x164] sm:$0xf]
        %v3254 = vld [vmem:[%s3 + $0x18] sm:$0xf]
        %v3256 = vsel %vm379, %v3213, 0
        %v3259 = vsel %vm379, %v3214, 0
        %v3262 = vsel %vm379, %v3215, 0
        %v3265 = vsel %vm379, %v3216, 0
        %v3268 = vsel %vm379, %v3217, 0
        %v3271 = vsel %vm379, %v3218, 0
        %v3274 = vsel %vm379, %v3219, 0
        %v3277 = vsel %vm379, %v3220, 0
        %v3280 = vsel %vm379, %v3221, 0
        %v3283 = vsel %vm379, %v3222, 0
        %v3286 = vsel %vm379, %v3223, 0
        %v3289 = vsel %vm379, %v3224, 0
        %v3292 = vsel %vm379, %v3225, 0
        %v3295 = vsel %vm379, %v3226, 0
        %v3298 = vsel %vm379, %v3227, 0
        %v3301 = vsel %vm379, %v3228, 0
        %v3304 = vsel %vm379, %v3229, 0
        %v3307 = vsel %vm379, %v3230, 0
        %v3310 = vsel %vm379, %v3231, 0
        %v3313 = vsel %vm379, %v3232, 0
        %v3316 = vsel %vm379, %v3233, 0
        %v3319 = vsel %vm379, %v3234, 0
        %v3322 = vsel %vm379, %v3235, 0
        %v3325 = vsel %vm379, %v3236, 0
        %v3328 = vsel %vm379, %v3237, 0
        %v3331 = vsel %vm379, %v3238, 0
        %v3334 = vsel %vm379, %v3239, 0
        %v3337 = vsel %vm379, %v3240, 0
        %v3340 = vsel %vm379, %v3241, 0
        %v3343 = vsel %vm379, %v3242, 0
        %v3346 = vsel %vm379, %v3243, 0
        %v3349 = vsel %vm379, %v3244, 0
        %v3352 = vsel %vm379, %v3245, 0
        %v3355 = vsel %vm379, %v3246, 0
        %v3358 = vsel %vm379, %v3247, 0
        %v3361 = vsel %vm379, %v3248, 0
        %v3364 = vsel %vm379, %v3249, 0
        %v3367 = vsel %vm379, %v3250, 0
        %v3370 = vsel %vm379, %v3251, 0
        %v3373 = vsel %vm379, %v3252, 0
        %v3376 = vsel %vm379, %v3253, 0
        %v3379 = vsel %vm503, %v3254, 0
        %3381 = vmatprep.subr.mxu0 0.0
        %3382 = vmatpush1.msra.mxu0 0.0
        %3383 = vmatprep.subr.mxu0 0.0
        %3384 = vmatpush1.msra.mxu0 0.0
        %3385 = vmatprep.subr.mxu0 0.0
        %3386 = vmatpush1.msra.mxu0 0.0
        %3387 = vmatprep.subr.mxu0 0.0
        %3388 = vmatpush1.msra.mxu0 0.0
        %3389 = vmatprep.subr.mxu0 0.0
        %3390 = vmatpush1.msra.mxu0 0.0
        %3391 = vmatprep.subr.mxu0 0.0
        %3392 = vmatpush1.msra.mxu0 0.0
        %3393 = vmatprep.subr.mxu0 0.0
        %3394 = vmatpush1.msra.mxu0 0.0
        %3395 = vmatprep.subr.mxu0 0.0
        %3396 = vmatpush1.msra.mxu0 0.0
        %3397 = vmatprep.subr.mxu0 0.0
        %3398 = vmatpush1.msra.mxu0 0.0
        %3399 = vmatprep.subr.mxu0 0.0
        %3400 = vmatpush1.msra.mxu0 0.0
        %3401 = vmatprep.subr.mxu0 0.0
        %3402 = vmatpush1.msra.mxu0 0.0
        %3403 = vmatprep.subr.mxu0 0.0
        %3404 = vmatpush1.msra.mxu0 0.0
        %3405 = vmatprep.subr.mxu0 0.0
        %3406 = vmatpush1.msra.mxu0 0.0
        %3407 = vmatprep.subr.mxu0 0.0
        %3408 = vmatpush1.msra.mxu0 0.0
        %3409 = vmatprep.subr.mxu0 0.0
        %3410 = vmatpush1.msra.mxu0 0.0
        %3411 = vmatprep.subr.mxu0 0.0
        %3412 = vmatpush1.msra.mxu0 %v3379
        %3413 = vmatprep.subr.mxu0 0.0
        %3414 = vmatpush2.msra.mxu0 0.0
        %3415 = vmatprep.subr.mxu0 0.0
        %3416 = vmatpush2.msra.mxu0 0.0
        %3417 = vmatprep.subr.mxu0 0.0
        %3418 = vmatpush2.msra.mxu0 0.0
        %3419 = vmatprep.subr.mxu0 0.0
        %3420 = vmatpush2.msra.mxu0 0.0
        %3421 = vmatprep.subr.mxu0 0.0
        %3422 = vmatpush2.msra.mxu0 0.0
        %3423 = vmatprep.subr.mxu0 0.0
        %3424 = vmatpush2.msra.mxu0 0.0
        %3425 = vmatprep.subr.mxu0 0.0
        %3426 = vmatpush2.msra.mxu0 0.0
        %3427 = vmatprep.subr.mxu0 0.0
        %3428 = vmatpush2.msra.mxu0 0.0
        %3429 = vmatprep.subr.mxu0 0.0
        %3430 = vmatpush2.msra.mxu0 0.0
        %3431 = vmatprep.subr.mxu0 0.0
        %3432 = vmatpush2.msra.mxu0 0.0
        %3433 = vmatprep.subr.mxu0 0.0
        %3434 = vmatpush2.msra.mxu0 0.0
        %3435 = vmatprep.subr.mxu0 0.0
        %3436 = vmatpush2.msra.mxu0 0.0
        %3437 = vmatprep.subr.mxu0 0.0
        %3438 = vmatpush2.msra.mxu0 0.0
        %3439 = vmatprep.subr.mxu0 0.0
        %3440 = vmatpush2.msra.mxu0 0.0
        %3441 = vmatprep.subr.mxu0 0.0
        %3442 = vmatpush2.msra.mxu0 0.0
        %3443 = vmatprep.subr.mxu0 0.0
        %3444 = vmatpush2.msra.mxu0 0.0
        %3445 = vmatprep.mubr.f32.mxu0 0.0
        %3446 = vmatmul.mubr.f32.gmra.mxu0 %v3256
        %v3447 = vpop.f32.mrf.mxu0
        %v3448 = vadd.f32 0.0, %v3447
        %v3449 = vpop.f32.mrf.mxu0
        %3450 = vmatprep.mubr.f32.mxu0 0.0
        %3451 = vmatmul.mubr.f32.gmra.mxu0 %v3259
        %v3452 = vpop.f32.mrf.mxu0
        %v3453 = vadd.f32 0.0, %v3452
        %v3454 = vpop.f32.mrf.mxu0
        %3455 = vmatprep.mubr.f32.mxu0 0.0
        %3456 = vmatmul.mubr.f32.gmra.mxu0 %v3262
        %v3457 = vpop.f32.mrf.mxu0
        %v3458 = vadd.f32 0.0, %v3457
        %v3459 = vpop.f32.mrf.mxu0
        %3460 = vmatprep.mubr.f32.mxu0 0.0
        %3461 = vmatmul.mubr.f32.gmra.mxu0 %v3265
        %v3462 = vpop.f32.mrf.mxu0
        %v3463 = vadd.f32 0.0, %v3462
        %v3464 = vpop.f32.mrf.mxu0
        %3465 = vmatprep.mubr.f32.mxu0 0.0
        %3466 = vmatmul.mubr.f32.gmra.mxu0 %v3268
        %v3467 = vpop.f32.mrf.mxu0
        %v3468 = vadd.f32 0.0, %v3467
        %v3469 = vpop.f32.mrf.mxu0
        %3470 = vmatprep.mubr.f32.mxu0 0.0
        %3471 = vmatmul.mubr.f32.gmra.mxu0 %v3271
        %v3472 = vpop.f32.mrf.mxu0
        %v3473 = vadd.f32 0.0, %v3472
        %v3474 = vpop.f32.mrf.mxu0
        %3475 = vmatprep.mubr.f32.mxu0 0.0
        %3476 = vmatmul.mubr.f32.gmra.mxu0 %v3274
        %v3477 = vpop.f32.mrf.mxu0
        %v3478 = vadd.f32 0.0, %v3477
        %v3479 = vpop.f32.mrf.mxu0
        %3480 = vmatprep.mubr.f32.mxu0 0.0
        %3481 = vmatmul.mubr.f32.gmra.mxu0 %v3277
        %v3482 = vpop.f32.mrf.mxu0
        %v3483 = vadd.f32 0.0, %v3482
        %v3484 = vpop.f32.mrf.mxu0
        %3485 = vmatprep.mubr.f32.mxu0 0.0
        %3486 = vmatmul.mubr.f32.gmra.mxu0 %v3280
        %v3487 = vpop.f32.mrf.mxu0
        %v3488 = vadd.f32 0.0, %v3487
        %v3489 = vpop.f32.mrf.mxu0
        %3490 = vmatprep.mubr.f32.mxu0 0.0
        %3491 = vmatmul.mubr.f32.gmra.mxu0 %v3283
        %v3492 = vpop.f32.mrf.mxu0
        %v3493 = vadd.f32 0.0, %v3492
        %v3494 = vpop.f32.mrf.mxu0
        %3495 = vmatprep.mubr.f32.mxu0 0.0
        %3496 = vmatmul.mubr.f32.gmra.mxu0 %v3286
        %v3497 = vpop.f32.mrf.mxu0
        %v3498 = vadd.f32 0.0, %v3497
        %v3499 = vpop.f32.mrf.mxu0
        %3500 = vmatprep.mubr.f32.mxu0 0.0
        %3501 = vmatmul.mubr.f32.gmra.mxu0 %v3289
        %v3502 = vpop.f32.mrf.mxu0
        %v3503 = vadd.f32 0.0, %v3502
        %v3504 = vpop.f32.mrf.mxu0
        %3505 = vmatprep.mubr.f32.mxu0 0.0
        %3506 = vmatmul.mubr.f32.gmra.mxu0 %v3292
        %v3507 = vpop.f32.mrf.mxu0
        %v3508 = vadd.f32 0.0, %v3507
        %v3509 = vpop.f32.mrf.mxu0
        %3510 = vmatprep.mubr.f32.mxu0 0.0
        %3511 = vmatmul.mubr.f32.gmra.mxu0 %v3295
        %v3512 = vpop.f32.mrf.mxu0
        %v3513 = vadd.f32 0.0, %v3512
        %v3514 = vpop.f32.mrf.mxu0
        %3515 = vmatprep.mubr.f32.mxu0 0.0
        %3516 = vmatmul.mubr.f32.gmra.mxu0 %v3298
        %v3517 = vpop.f32.mrf.mxu0
        %v3518 = vadd.f32 0.0, %v3517
        %v3519 = vpop.f32.mrf.mxu0
        %3520 = vmatprep.mubr.f32.mxu0 0.0
        %3521 = vmatmul.mubr.f32.gmra.mxu0 %v3301
        %v3522 = vpop.f32.mrf.mxu0
        %v3523 = vadd.f32 0.0, %v3522
        %v3524 = vpop.f32.mrf.mxu0
        %3525 = vmatprep.mubr.f32.mxu0 0.0
        %3526 = vmatmul.mubr.f32.gmra.mxu0 %v3304
        %v3527 = vpop.f32.mrf.mxu0
        %v3528 = vadd.f32 0.0, %v3527
        %v3529 = vpop.f32.mrf.mxu0
        %3530 = vmatprep.mubr.f32.mxu0 0.0
        %3531 = vmatmul.mubr.f32.gmra.mxu0 %v3307
        %v3532 = vpop.f32.mrf.mxu0
        %v3533 = vadd.f32 0.0, %v3532
        %v3534 = vpop.f32.mrf.mxu0
        %3535 = vmatprep.mubr.f32.mxu0 0.0
        %3536 = vmatmul.mubr.f32.gmra.mxu0 %v3310
        %v3537 = vpop.f32.mrf.mxu0
        %v3538 = vadd.f32 0.0, %v3537
        %v3539 = vpop.f32.mrf.mxu0
        %3540 = vmatprep.mubr.f32.mxu0 0.0
        %3541 = vmatmul.mubr.f32.gmra.mxu0 %v3313
        %v3542 = vpop.f32.mrf.mxu0
        %v3543 = vadd.f32 0.0, %v3542
        %v3544 = vpop.f32.mrf.mxu0
        %3545 = vmatprep.mubr.f32.mxu0 0.0
        %3546 = vmatmul.mubr.f32.gmra.mxu0 %v3316
        %v3547 = vpop.f32.mrf.mxu0
        %v3548 = vadd.f32 0.0, %v3547
        %v3549 = vpop.f32.mrf.mxu0
        %3550 = vmatprep.mubr.f32.mxu0 0.0
        %3551 = vmatmul.mubr.f32.gmra.mxu0 %v3319
        %v3552 = vpop.f32.mrf.mxu0
        %v3553 = vadd.f32 0.0, %v3552
        %v3554 = vpop.f32.mrf.mxu0
        %3555 = vmatprep.mubr.f32.mxu0 0.0
        %3556 = vmatmul.mubr.f32.gmra.mxu0 %v3322
        %v3557 = vpop.f32.mrf.mxu0
        %v3558 = vadd.f32 0.0, %v3557
        %v3559 = vpop.f32.mrf.mxu0
        %3560 = vmatprep.mubr.f32.mxu0 0.0
        %3561 = vmatmul.mubr.f32.gmra.mxu0 %v3325
        %v3562 = vpop.f32.mrf.mxu0
        %v3563 = vadd.f32 0.0, %v3562
        %v3564 = vpop.f32.mrf.mxu0
        %3565 = vmatprep.mubr.f32.mxu0 0.0
        %3566 = vmatmul.mubr.f32.gmra.mxu0 %v3328
        %v3567 = vpop.f32.mrf.mxu0
        %v3568 = vadd.f32 0.0, %v3567
        %v3569 = vpop.f32.mrf.mxu0
        %3570 = vmatprep.mubr.f32.mxu0 0.0
        %3571 = vmatmul.mubr.f32.gmra.mxu0 %v3331
        %v3572 = vpop.f32.mrf.mxu0
        %v3573 = vadd.f32 0.0, %v3572
        %v3574 = vpop.f32.mrf.mxu0
        %3575 = vmatprep.mubr.f32.mxu0 0.0
        %3576 = vmatmul.mubr.f32.gmra.mxu0 %v3334
        %v3577 = vpop.f32.mrf.mxu0
        %v3578 = vadd.f32 0.0, %v3577
        %v3579 = vpop.f32.mrf.mxu0
        %3580 = vmatprep.mubr.f32.mxu0 0.0
        %3581 = vmatmul.mubr.f32.gmra.mxu0 %v3337
        %v3582 = vpop.f32.mrf.mxu0
        %v3583 = vadd.f32 0.0, %v3582
        %v3584 = vpop.f32.mrf.mxu0
        %3585 = vmatprep.mubr.f32.mxu0 0.0
        %3586 = vmatmul.mubr.f32.gmra.mxu0 %v3340
        %v3587 = vpop.f32.mrf.mxu0
        %v3588 = vadd.f32 0.0, %v3587
        %v3589 = vpop.f32.mrf.mxu0
        %3590 = vmatprep.mubr.f32.mxu0 0.0
        %3591 = vmatmul.mubr.f32.gmra.mxu0 %v3343
        %v3592 = vpop.f32.mrf.mxu0
        %v3593 = vadd.f32 0.0, %v3592
        %v3594 = vpop.f32.mrf.mxu0
        %3595 = vmatprep.mubr.f32.mxu0 0.0
        %3596 = vmatmul.mubr.f32.gmra.mxu0 %v3346
        %v3597 = vpop.f32.mrf.mxu0
        %v3598 = vadd.f32 0.0, %v3597
        %v3599 = vpop.f32.mrf.mxu0
        %3600 = vmatprep.mubr.f32.mxu0 0.0
        %3601 = vmatmul.mubr.f32.gmra.mxu0 %v3349
        %v3602 = vpop.f32.mrf.mxu0
        %v3603 = vadd.f32 0.0, %v3602
        %v3604 = vpop.f32.mrf.mxu0
        %3605 = vmatprep.mubr.f32.mxu0 0.0
        %3606 = vmatmul.mubr.f32.gmra.mxu0 %v3352
        %v3607 = vpop.f32.mrf.mxu0
        %v3608 = vadd.f32 0.0, %v3607
        %v3609 = vpop.f32.mrf.mxu0
        %3610 = vmatprep.mubr.f32.mxu0 0.0
        %3611 = vmatmul.mubr.f32.gmra.mxu0 %v3355
        %v3612 = vpop.f32.mrf.mxu0
        %v3613 = vadd.f32 0.0, %v3612
        %v3614 = vpop.f32.mrf.mxu0
        %3615 = vmatprep.mubr.f32.mxu0 0.0
        %3616 = vmatmul.mubr.f32.gmra.mxu0 %v3358
        %v3617 = vpop.f32.mrf.mxu0
        %v3618 = vadd.f32 0.0, %v3617
        %v3619 = vpop.f32.mrf.mxu0
        %3620 = vmatprep.mubr.f32.mxu0 0.0
        %3621 = vmatmul.mubr.f32.gmra.mxu0 %v3361
        %v3622 = vpop.f32.mrf.mxu0
        %v3623 = vadd.f32 0.0, %v3622
        %v3624 = vpop.f32.mrf.mxu0
        %3625 = vmatprep.mubr.f32.mxu0 0.0
        %3626 = vmatmul.mubr.f32.gmra.mxu0 %v3364
        %v3627 = vpop.f32.mrf.mxu0
        %v3628 = vadd.f32 0.0, %v3627
        %v3629 = vpop.f32.mrf.mxu0
        %3630 = vmatprep.mubr.f32.mxu0 0.0
        %3631 = vmatmul.mubr.f32.gmra.mxu0 %v3367
        %v3632 = vpop.f32.mrf.mxu0
        %v3633 = vadd.f32 0.0, %v3632
        %v3634 = vpop.f32.mrf.mxu0
        %3635 = vmatprep.mubr.f32.mxu0 0.0
        %3636 = vmatmul.mubr.f32.gmra.mxu0 %v3370
        %v3637 = vpop.f32.mrf.mxu0
        %v3638 = vadd.f32 0.0, %v3637
        %v3639 = vpop.f32.mrf.mxu0
        %3640 = vmatprep.mubr.f32.mxu0 0.0
        %3641 = vmatmul.mubr.f32.gmra.mxu0 %v3373
        %v3642 = vpop.f32.mrf.mxu0
        %v3643 = vadd.f32 0.0, %v3642
        %v3644 = vpop.f32.mrf.mxu0
        %3645 = vmatprep.mubr.f32.mxu0 0.0
        %3646 = vmatmul.mubr.f32.gmra.mxu0 %v3376
        %v3647 = vpop.f32.mrf.mxu0
        %v3648 = vadd.f32 0.0, %v3647
        %v3649 = vpop.f32.mrf.mxu0
        %3650 = vdwg.mxu0
        %v3651 = vadd.f32 %v3172, %v3448
        %v3652 = vadd.f32 %v3173, %v3453
        %v3653 = vadd.f32 %v3174, %v3458
        %v3654 = vadd.f32 %v3175, %v3463
        %v3655 = vadd.f32 %v3176, %v3468
        %v3656 = vadd.f32 %v3177, %v3473
        %v3657 = vadd.f32 %v3178, %v3478
        %v3658 = vadd.f32 %v3179, %v3483
        %v3659 = vadd.f32 %v3180, %v3488
        %v3660 = vadd.f32 %v3181, %v3493
        %v3661 = vadd.f32 %v3182, %v3498
        %v3662 = vadd.f32 %v3183, %v3503
        %v3663 = vadd.f32 %v3184, %v3508
        %v3664 = vadd.f32 %v3185, %v3513
        %v3665 = vadd.f32 %v3186, %v3518
        %v3666 = vadd.f32 %v3187, %v3523
        %v3667 = vadd.f32 %v3188, %v3528
        %v3668 = vadd.f32 %v3189, %v3533
        %v3669 = vadd.f32 %v3190, %v3538
        %v3670 = vadd.f32 %v3191, %v3543
        %v3671 = vadd.f32 %v3192, %v3548
        %v3672 = vadd.f32 %v3193, %v3553
        %v3673 = vadd.f32 %v3194, %v3558
        %v3674 = vadd.f32 %v3195, %v3563
        %v3675 = vadd.f32 %v3196, %v3568
        %v3676 = vadd.f32 %v3197, %v3573
        %v3677 = vadd.f32 %v3198, %v3578
        %v3678 = vadd.f32 %v3199, %v3583
        %v3679 = vadd.f32 %v3200, %v3588
        %v3680 = vadd.f32 %v3201, %v3593
        %v3681 = vadd.f32 %v3202, %v3598
        %v3682 = vadd.f32 %v3203, %v3603
        %v3683 = vadd.f32 %v3204, %v3608
        %v3684 = vadd.f32 %v3205, %v3613
        %v3685 = vadd.f32 %v3206, %v3618
        %v3686 = vadd.f32 %v3207, %v3623
        %v3687 = vadd.f32 %v3208, %v3628
        %v3688 = vadd.f32 %v3209, %v3633
        %v3689 = vadd.f32 %v3210, %v3638
        %v3690 = vadd.f32 %v3211, %v3643
        %v3691 = vadd.f32 %v3212, %v3648
        %v3692 = vld [vmem:[%s329 + $0x25] sm:$0xff]
        %v3693 = vld [vmem:[%s329 + $0x2d] sm:$0xff]
        %v3694 = vld [vmem:[%s329 + $0x35] sm:$0xff]
        %v3695 = vld [vmem:[%s329 + $0x3d] sm:$0xff]
        %v3696 = vld [vmem:[%s329 + $0x45] sm:$0xff]
        %v3697 = vld [vmem:[%s329 + $0x4d] sm:$0xff]
        %v3698 = vld [vmem:[%s329 + $0x55] sm:$0xff]
        %v3699 = vld [vmem:[%s329 + $0x5d] sm:$0xff]
        %v3700 = vld [vmem:[%s329 + $0x65] sm:$0xff]
        %v3701 = vld [vmem:[%s329 + $0x6d] sm:$0xff]
        %v3702 = vld [vmem:[%s329 + $0x75] sm:$0xff]
        %v3703 = vld [vmem:[%s329 + $0x7d] sm:$0xff]
        %v3704 = vld [vmem:[%s329 + $0x85] sm:$0xff]
        %v3705 = vld [vmem:[%s329 + $0x8d] sm:$0xff]
        %v3706 = vld [vmem:[%s329 + $0x95] sm:$0xff]
        %v3707 = vld [vmem:[%s329 + $0x9d] sm:$0xff]
        %v3708 = vld [vmem:[%s329 + $0xa5] sm:$0xff]
        %v3709 = vld [vmem:[%s329 + $0xad] sm:$0xff]
        %v3710 = vld [vmem:[%s329 + $0xb5] sm:$0xff]
        %v3711 = vld [vmem:[%s329 + $0xbd] sm:$0xff]
        %v3712 = vld [vmem:[%s329 + $0xc5] sm:$0xff]
        %v3713 = vld [vmem:[%s329 + $0xcd] sm:$0xff]
        %v3714 = vld [vmem:[%s329 + $0xd5] sm:$0xff]
        %v3715 = vld [vmem:[%s329 + $0xdd] sm:$0xff]
        %v3716 = vld [vmem:[%s329 + $0xe5] sm:$0xff]
        %v3717 = vld [vmem:[%s329 + $0xed] sm:$0xff]
        %v3718 = vld [vmem:[%s329 + $0xf5] sm:$0xff]
        %v3719 = vld [vmem:[%s329 + $0xfd] sm:$0xff]
        %v3720 = vld [vmem:[%s329 + $0x105] sm:$0xff]
        %v3721 = vld [vmem:[%s329 + $0x10d] sm:$0xff]
        %v3722 = vld [vmem:[%s329 + $0x115] sm:$0xff]
        %v3723 = vld [vmem:[%s329 + $0x11d] sm:$0xff]
        %v3724 = vld [vmem:[%s329 + $0x125] sm:$0xff]
        %v3725 = vld [vmem:[%s329 + $0x12d] sm:$0xff]
        %v3726 = vld [vmem:[%s329 + $0x135] sm:$0xff]
        %v3727 = vld [vmem:[%s329 + $0x13d] sm:$0xff]
        %v3728 = vld [vmem:[%s329 + $0x145] sm:$0xff]
        %v3729 = vld [vmem:[%s329 + $0x14d] sm:$0xff]
        %v3730 = vld [vmem:[%s329 + $0x155] sm:$0xff]
        %v3731 = vld [vmem:[%s329 + $0x15d] sm:$0xff]
        %v3732 = vld [vmem:[%s329 + $0x165] sm:$0xf]
        %v3733 = vld [vmem:[%s3 + $0x1c] sm:$0xf]
        %v3735 = vsel %vm379, %v3692, 0
        %v3738 = vsel %vm379, %v3693, 0
        %v3741 = vsel %vm379, %v3694, 0
        %v3744 = vsel %vm379, %v3695, 0
        %v3747 = vsel %vm379, %v3696, 0
        %v3750 = vsel %vm379, %v3697, 0
        %v3753 = vsel %vm379, %v3698, 0
        %v3756 = vsel %vm379, %v3699, 0
        %v3759 = vsel %vm379, %v3700, 0
        %v3762 = vsel %vm379, %v3701, 0
        %v3765 = vsel %vm379, %v3702, 0
        %v3768 = vsel %vm379, %v3703, 0
        %v3771 = vsel %vm379, %v3704, 0
        %v3774 = vsel %vm379, %v3705, 0
        %v3777 = vsel %vm379, %v3706, 0
        %v3780 = vsel %vm379, %v3707, 0
        %v3783 = vsel %vm379, %v3708, 0
        %v3786 = vsel %vm379, %v3709, 0
        %v3789 = vsel %vm379, %v3710, 0
        %v3792 = vsel %vm379, %v3711, 0
        %v3795 = vsel %vm379, %v3712, 0
        %v3798 = vsel %vm379, %v3713, 0
        %v3801 = vsel %vm379, %v3714, 0
        %v3804 = vsel %vm379, %v3715, 0
        %v3807 = vsel %vm379, %v3716, 0
        %v3810 = vsel %vm379, %v3717, 0
        %v3813 = vsel %vm379, %v3718, 0
        %v3816 = vsel %vm379, %v3719, 0
        %v3819 = vsel %vm379, %v3720, 0
        %v3822 = vsel %vm379, %v3721, 0
        %v3825 = vsel %vm379, %v3722, 0
        %v3828 = vsel %vm379, %v3723, 0
        %v3831 = vsel %vm379, %v3724, 0
        %v3834 = vsel %vm379, %v3725, 0
        %v3837 = vsel %vm379, %v3726, 0
        %v3840 = vsel %vm379, %v3727, 0
        %v3843 = vsel %vm379, %v3728, 0
        %v3846 = vsel %vm379, %v3729, 0
        %v3849 = vsel %vm379, %v3730, 0
        %v3852 = vsel %vm379, %v3731, 0
        %v3855 = vsel %vm379, %v3732, 0
        %v3858 = vsel %vm503, %v3733, 0
        %3860 = vmatprep.subr.mxu0 0.0
        %3861 = vmatpush1.msra.mxu0 0.0
        %3862 = vmatprep.subr.mxu0 0.0
        %3863 = vmatpush1.msra.mxu0 0.0
        %3864 = vmatprep.subr.mxu0 0.0
        %3865 = vmatpush1.msra.mxu0 0.0
        %3866 = vmatprep.subr.mxu0 0.0
        %3867 = vmatpush1.msra.mxu0 0.0
        %3868 = vmatprep.subr.mxu0 0.0
        %3869 = vmatpush1.msra.mxu0 0.0
        %3870 = vmatprep.subr.mxu0 0.0
        %3871 = vmatpush1.msra.mxu0 0.0
        %3872 = vmatprep.subr.mxu0 0.0
        %3873 = vmatpush1.msra.mxu0 0.0
        %3874 = vmatprep.subr.mxu0 0.0
        %3875 = vmatpush1.msra.mxu0 0.0
        %3876 = vmatprep.subr.mxu0 0.0
        %3877 = vmatpush1.msra.mxu0 0.0
        %3878 = vmatprep.subr.mxu0 0.0
        %3879 = vmatpush1.msra.mxu0 0.0
        %3880 = vmatprep.subr.mxu0 0.0
        %3881 = vmatpush1.msra.mxu0 0.0
        %3882 = vmatprep.subr.mxu0 0.0
        %3883 = vmatpush1.msra.mxu0 0.0
        %3884 = vmatprep.subr.mxu0 0.0
        %3885 = vmatpush1.msra.mxu0 0.0
        %3886 = vmatprep.subr.mxu0 0.0
        %3887 = vmatpush1.msra.mxu0 0.0
        %3888 = vmatprep.subr.mxu0 0.0
        %3889 = vmatpush1.msra.mxu0 0.0
        %3890 = vmatprep.subr.mxu0 0.0
        %3891 = vmatpush1.msra.mxu0 %v3858
        %3892 = vmatprep.subr.mxu0 0.0
        %3893 = vmatpush2.msra.mxu0 0.0
        %3894 = vmatprep.subr.mxu0 0.0
        %3895 = vmatpush2.msra.mxu0 0.0
        %3896 = vmatprep.subr.mxu0 0.0
        %3897 = vmatpush2.msra.mxu0 0.0
        %3898 = vmatprep.subr.mxu0 0.0
        %3899 = vmatpush2.msra.mxu0 0.0
        %3900 = vmatprep.subr.mxu0 0.0
        %3901 = vmatpush2.msra.mxu0 0.0
        %3902 = vmatprep.subr.mxu0 0.0
        %3903 = vmatpush2.msra.mxu0 0.0
        %3904 = vmatprep.subr.mxu0 0.0
        %3905 = vmatpush2.msra.mxu0 0.0
        %3906 = vmatprep.subr.mxu0 0.0
        %3907 = vmatpush2.msra.mxu0 0.0
        %3908 = vmatprep.subr.mxu0 0.0
        %3909 = vmatpush2.msra.mxu0 0.0
        %3910 = vmatprep.subr.mxu0 0.0
        %3911 = vmatpush2.msra.mxu0 0.0
        %3912 = vmatprep.subr.mxu0 0.0
        %3913 = vmatpush2.msra.mxu0 0.0
        %3914 = vmatprep.subr.mxu0 0.0
        %3915 = vmatpush2.msra.mxu0 0.0
        %3916 = vmatprep.subr.mxu0 0.0
        %3917 = vmatpush2.msra.mxu0 0.0
        %3918 = vmatprep.subr.mxu0 0.0
        %3919 = vmatpush2.msra.mxu0 0.0
        %3920 = vmatprep.subr.mxu0 0.0
        %3921 = vmatpush2.msra.mxu0 0.0
        %3922 = vmatprep.subr.mxu0 0.0
        %3923 = vmatpush2.msra.mxu0 0.0
        %3924 = vmatprep.mubr.f32.mxu0 0.0
        %3925 = vmatmul.mubr.f32.gmra.mxu0 %v3735
        %v3926 = vpop.f32.mrf.mxu0
        %v3927 = vadd.f32 0.0, %v3926
        %v3928 = vpop.f32.mrf.mxu0
        %3929 = vmatprep.mubr.f32.mxu0 0.0
        %3930 = vmatmul.mubr.f32.gmra.mxu0 %v3738
        %v3931 = vpop.f32.mrf.mxu0
        %v3932 = vadd.f32 0.0, %v3931
        %v3933 = vpop.f32.mrf.mxu0
        %3934 = vmatprep.mubr.f32.mxu0 0.0
        %3935 = vmatmul.mubr.f32.gmra.mxu0 %v3741
        %v3936 = vpop.f32.mrf.mxu0
        %v3937 = vadd.f32 0.0, %v3936
        %v3938 = vpop.f32.mrf.mxu0
        %3939 = vmatprep.mubr.f32.mxu0 0.0
        %3940 = vmatmul.mubr.f32.gmra.mxu0 %v3744
        %v3941 = vpop.f32.mrf.mxu0
        %v3942 = vadd.f32 0.0, %v3941
        %v3943 = vpop.f32.mrf.mxu0
        %3944 = vmatprep.mubr.f32.mxu0 0.0
        %3945 = vmatmul.mubr.f32.gmra.mxu0 %v3747
        %v3946 = vpop.f32.mrf.mxu0
        %v3947 = vadd.f32 0.0, %v3946
        %v3948 = vpop.f32.mrf.mxu0
        %3949 = vmatprep.mubr.f32.mxu0 0.0
        %3950 = vmatmul.mubr.f32.gmra.mxu0 %v3750
        %v3951 = vpop.f32.mrf.mxu0
        %v3952 = vadd.f32 0.0, %v3951
        %v3953 = vpop.f32.mrf.mxu0
        %3954 = vmatprep.mubr.f32.mxu0 0.0
        %3955 = vmatmul.mubr.f32.gmra.mxu0 %v3753
        %v3956 = vpop.f32.mrf.mxu0
        %v3957 = vadd.f32 0.0, %v3956
        %v3958 = vpop.f32.mrf.mxu0
        %3959 = vmatprep.mubr.f32.mxu0 0.0
        %3960 = vmatmul.mubr.f32.gmra.mxu0 %v3756
        %v3961 = vpop.f32.mrf.mxu0
        %v3962 = vadd.f32 0.0, %v3961
        %v3963 = vpop.f32.mrf.mxu0
        %3964 = vmatprep.mubr.f32.mxu0 0.0
        %3965 = vmatmul.mubr.f32.gmra.mxu0 %v3759
        %v3966 = vpop.f32.mrf.mxu0
        %v3967 = vadd.f32 0.0, %v3966
        %v3968 = vpop.f32.mrf.mxu0
        %3969 = vmatprep.mubr.f32.mxu0 0.0
        %3970 = vmatmul.mubr.f32.gmra.mxu0 %v3762
        %v3971 = vpop.f32.mrf.mxu0
        %v3972 = vadd.f32 0.0, %v3971
        %v3973 = vpop.f32.mrf.mxu0
        %3974 = vmatprep.mubr.f32.mxu0 0.0
        %3975 = vmatmul.mubr.f32.gmra.mxu0 %v3765
        %v3976 = vpop.f32.mrf.mxu0
        %v3977 = vadd.f32 0.0, %v3976
        %v3978 = vpop.f32.mrf.mxu0
        %3979 = vmatprep.mubr.f32.mxu0 0.0
        %3980 = vmatmul.mubr.f32.gmra.mxu0 %v3768
        %v3981 = vpop.f32.mrf.mxu0
        %v3982 = vadd.f32 0.0, %v3981
        %v3983 = vpop.f32.mrf.mxu0
        %3984 = vmatprep.mubr.f32.mxu0 0.0
        %3985 = vmatmul.mubr.f32.gmra.mxu0 %v3771
        %v3986 = vpop.f32.mrf.mxu0
        %v3987 = vadd.f32 0.0, %v3986
        %v3988 = vpop.f32.mrf.mxu0
        %3989 = vmatprep.mubr.f32.mxu0 0.0
        %3990 = vmatmul.mubr.f32.gmra.mxu0 %v3774
        %v3991 = vpop.f32.mrf.mxu0
        %v3992 = vadd.f32 0.0, %v3991
        %v3993 = vpop.f32.mrf.mxu0
        %3994 = vmatprep.mubr.f32.mxu0 0.0
        %3995 = vmatmul.mubr.f32.gmra.mxu0 %v3777
        %v3996 = vpop.f32.mrf.mxu0
        %v3997 = vadd.f32 0.0, %v3996
        %v3998 = vpop.f32.mrf.mxu0
        %3999 = vmatprep.mubr.f32.mxu0 0.0
        %4000 = vmatmul.mubr.f32.gmra.mxu0 %v3780
        %v4001 = vpop.f32.mrf.mxu0
        %v4002 = vadd.f32 0.0, %v4001
        %v4003 = vpop.f32.mrf.mxu0
        %4004 = vmatprep.mubr.f32.mxu0 0.0
        %4005 = vmatmul.mubr.f32.gmra.mxu0 %v3783
        %v4006 = vpop.f32.mrf.mxu0
        %v4007 = vadd.f32 0.0, %v4006
        %v4008 = vpop.f32.mrf.mxu0
        %4009 = vmatprep.mubr.f32.mxu0 0.0
        %4010 = vmatmul.mubr.f32.gmra.mxu0 %v3786
        %v4011 = vpop.f32.mrf.mxu0
        %v4012 = vadd.f32 0.0, %v4011
        %v4013 = vpop.f32.mrf.mxu0
        %4014 = vmatprep.mubr.f32.mxu0 0.0
        %4015 = vmatmul.mubr.f32.gmra.mxu0 %v3789
        %v4016 = vpop.f32.mrf.mxu0
        %v4017 = vadd.f32 0.0, %v4016
        %v4018 = vpop.f32.mrf.mxu0
        %4019 = vmatprep.mubr.f32.mxu0 0.0
        %4020 = vmatmul.mubr.f32.gmra.mxu0 %v3792
        %v4021 = vpop.f32.mrf.mxu0
        %v4022 = vadd.f32 0.0, %v4021
        %v4023 = vpop.f32.mrf.mxu0
        %4024 = vmatprep.mubr.f32.mxu0 0.0
        %4025 = vmatmul.mubr.f32.gmra.mxu0 %v3795
        %v4026 = vpop.f32.mrf.mxu0
        %v4027 = vadd.f32 0.0, %v4026
        %v4028 = vpop.f32.mrf.mxu0
        %4029 = vmatprep.mubr.f32.mxu0 0.0
        %4030 = vmatmul.mubr.f32.gmra.mxu0 %v3798
        %v4031 = vpop.f32.mrf.mxu0
        %v4032 = vadd.f32 0.0, %v4031
        %v4033 = vpop.f32.mrf.mxu0
        %4034 = vmatprep.mubr.f32.mxu0 0.0
        %4035 = vmatmul.mubr.f32.gmra.mxu0 %v3801
        %v4036 = vpop.f32.mrf.mxu0
        %v4037 = vadd.f32 0.0, %v4036
        %v4038 = vpop.f32.mrf.mxu0
        %4039 = vmatprep.mubr.f32.mxu0 0.0
        %4040 = vmatmul.mubr.f32.gmra.mxu0 %v3804
        %v4041 = vpop.f32.mrf.mxu0
        %v4042 = vadd.f32 0.0, %v4041
        %v4043 = vpop.f32.mrf.mxu0
        %4044 = vmatprep.mubr.f32.mxu0 0.0
        %4045 = vmatmul.mubr.f32.gmra.mxu0 %v3807
        %v4046 = vpop.f32.mrf.mxu0
        %v4047 = vadd.f32 0.0, %v4046
        %v4048 = vpop.f32.mrf.mxu0
        %4049 = vmatprep.mubr.f32.mxu0 0.0
        %4050 = vmatmul.mubr.f32.gmra.mxu0 %v3810
        %v4051 = vpop.f32.mrf.mxu0
        %v4052 = vadd.f32 0.0, %v4051
        %v4053 = vpop.f32.mrf.mxu0
        %4054 = vmatprep.mubr.f32.mxu0 0.0
        %4055 = vmatmul.mubr.f32.gmra.mxu0 %v3813
        %v4056 = vpop.f32.mrf.mxu0
        %v4057 = vadd.f32 0.0, %v4056
        %v4058 = vpop.f32.mrf.mxu0
        %4059 = vmatprep.mubr.f32.mxu0 0.0
        %4060 = vmatmul.mubr.f32.gmra.mxu0 %v3816
        %v4061 = vpop.f32.mrf.mxu0
        %v4062 = vadd.f32 0.0, %v4061
        %v4063 = vpop.f32.mrf.mxu0
        %4064 = vmatprep.mubr.f32.mxu0 0.0
        %4065 = vmatmul.mubr.f32.gmra.mxu0 %v3819
        %v4066 = vpop.f32.mrf.mxu0
        %v4067 = vadd.f32 0.0, %v4066
        %v4068 = vpop.f32.mrf.mxu0
        %4069 = vmatprep.mubr.f32.mxu0 0.0
        %4070 = vmatmul.mubr.f32.gmra.mxu0 %v3822
        %v4071 = vpop.f32.mrf.mxu0
        %v4072 = vadd.f32 0.0, %v4071
        %v4073 = vpop.f32.mrf.mxu0
        %4074 = vmatprep.mubr.f32.mxu0 0.0
        %4075 = vmatmul.mubr.f32.gmra.mxu0 %v3825
        %v4076 = vpop.f32.mrf.mxu0
        %v4077 = vadd.f32 0.0, %v4076
        %v4078 = vpop.f32.mrf.mxu0
        %4079 = vmatprep.mubr.f32.mxu0 0.0
        %4080 = vmatmul.mubr.f32.gmra.mxu0 %v3828
        %v4081 = vpop.f32.mrf.mxu0
        %v4082 = vadd.f32 0.0, %v4081
        %v4083 = vpop.f32.mrf.mxu0
        %4084 = vmatprep.mubr.f32.mxu0 0.0
        %4085 = vmatmul.mubr.f32.gmra.mxu0 %v3831
        %v4086 = vpop.f32.mrf.mxu0
        %v4087 = vadd.f32 0.0, %v4086
        %v4088 = vpop.f32.mrf.mxu0
        %4089 = vmatprep.mubr.f32.mxu0 0.0
        %4090 = vmatmul.mubr.f32.gmra.mxu0 %v3834
        %v4091 = vpop.f32.mrf.mxu0
        %v4092 = vadd.f32 0.0, %v4091
        %v4093 = vpop.f32.mrf.mxu0
        %4094 = vmatprep.mubr.f32.mxu0 0.0
        %4095 = vmatmul.mubr.f32.gmra.mxu0 %v3837
        %v4096 = vpop.f32.mrf.mxu0
        %v4097 = vadd.f32 0.0, %v4096
        %v4098 = vpop.f32.mrf.mxu0
        %4099 = vmatprep.mubr.f32.mxu0 0.0
        %4100 = vmatmul.mubr.f32.gmra.mxu0 %v3840
        %v4101 = vpop.f32.mrf.mxu0
        %v4102 = vadd.f32 0.0, %v4101
        %v4103 = vpop.f32.mrf.mxu0
        %4104 = vmatprep.mubr.f32.mxu0 0.0
        %4105 = vmatmul.mubr.f32.gmra.mxu0 %v3843
        %v4106 = vpop.f32.mrf.mxu0
        %v4107 = vadd.f32 0.0, %v4106
        %v4108 = vpop.f32.mrf.mxu0
        %4109 = vmatprep.mubr.f32.mxu0 0.0
        %4110 = vmatmul.mubr.f32.gmra.mxu0 %v3846
        %v4111 = vpop.f32.mrf.mxu0
        %v4112 = vadd.f32 0.0, %v4111
        %v4113 = vpop.f32.mrf.mxu0
        %4114 = vmatprep.mubr.f32.mxu0 0.0
        %4115 = vmatmul.mubr.f32.gmra.mxu0 %v3849
        %v4116 = vpop.f32.mrf.mxu0
        %v4117 = vadd.f32 0.0, %v4116
        %v4118 = vpop.f32.mrf.mxu0
        %4119 = vmatprep.mubr.f32.mxu0 0.0
        %4120 = vmatmul.mubr.f32.gmra.mxu0 %v3852
        %v4121 = vpop.f32.mrf.mxu0
        %v4122 = vadd.f32 0.0, %v4121
        %v4123 = vpop.f32.mrf.mxu0
        %4124 = vmatprep.mubr.f32.mxu0 0.0
        %4125 = vmatmul.mubr.f32.gmra.mxu0 %v3855
        %v4126 = vpop.f32.mrf.mxu0
        %v4127 = vadd.f32 0.0, %v4126
        %v4128 = vpop.f32.mrf.mxu0
        %4129 = vdwg.mxu0
        %v4130 = vadd.f32 %v3651, %v3927
        %v4131 = vadd.f32 %v3652, %v3932
        %v4132 = vadd.f32 %v3653, %v3937
        %v4133 = vadd.f32 %v3654, %v3942
        %v4134 = vadd.f32 %v3655, %v3947
        %v4135 = vadd.f32 %v3656, %v3952
        %v4136 = vadd.f32 %v3657, %v3957
        %v4137 = vadd.f32 %v3658, %v3962
        %v4138 = vadd.f32 %v3659, %v3967
        %v4139 = vadd.f32 %v3660, %v3972
        %v4140 = vadd.f32 %v3661, %v3977
        %v4141 = vadd.f32 %v3662, %v3982
        %v4142 = vadd.f32 %v3663, %v3987
        %v4143 = vadd.f32 %v3664, %v3992
        %v4144 = vadd.f32 %v3665, %v3997
        %v4145 = vadd.f32 %v3666, %v4002
        %v4146 = vadd.f32 %v3667, %v4007
        %v4147 = vadd.f32 %v3668, %v4012
        %v4148 = vadd.f32 %v3669, %v4017
        %v4149 = vadd.f32 %v3670, %v4022
        %v4150 = vadd.f32 %v3671, %v4027
        %v4151 = vadd.f32 %v3672, %v4032
        %v4152 = vadd.f32 %v3673, %v4037
        %v4153 = vadd.f32 %v3674, %v4042
        %v4154 = vadd.f32 %v3675, %v4047
        %v4155 = vadd.f32 %v3676, %v4052
        %v4156 = vadd.f32 %v3677, %v4057
        %v4157 = vadd.f32 %v3678, %v4062
        %v4158 = vadd.f32 %v3679, %v4067
        %v4159 = vadd.f32 %v3680, %v4072
        %v4160 = vadd.f32 %v3681, %v4077
        %v4161 = vadd.f32 %v3682, %v4082
        %v4162 = vadd.f32 %v3683, %v4087
        %v4163 = vadd.f32 %v3684, %v4092
        %v4164 = vadd.f32 %v3685, %v4097
        %v4165 = vadd.f32 %v3686, %v4102
        %v4166 = vadd.f32 %v3687, %v4107
        %v4167 = vadd.f32 %v3688, %v4112
        %v4168 = vadd.f32 %v3689, %v4117
        %v4169 = vadd.f32 %v3690, %v4122
        %v4170 = vadd.f32 %v3691, %v4127
        %v4171 = vld [vmem:[%s329 + $0x26] sm:$0xff]
        %v4172 = vld [vmem:[%s329 + $0x2e] sm:$0xff]
        %v4173 = vld [vmem:[%s329 + $0x36] sm:$0xff]
        %v4174 = vld [vmem:[%s329 + $0x3e] sm:$0xff]
        %v4175 = vld [vmem:[%s329 + $0x46] sm:$0xff]
        %v4176 = vld [vmem:[%s329 + $0x4e] sm:$0xff]
        %v4177 = vld [vmem:[%s329 + $0x56] sm:$0xff]
        %v4178 = vld [vmem:[%s329 + $0x5e] sm:$0xff]
        %v4179 = vld [vmem:[%s329 + $0x66] sm:$0xff]
        %v4180 = vld [vmem:[%s329 + $0x6e] sm:$0xff]
        %v4181 = vld [vmem:[%s329 + $0x76] sm:$0xff]
        %v4182 = vld [vmem:[%s329 + $0x7e] sm:$0xff]
        %v4183 = vld [vmem:[%s329 + $0x86] sm:$0xff]
        %v4184 = vld [vmem:[%s329 + $0x8e] sm:$0xff]
        %v4185 = vld [vmem:[%s329 + $0x96] sm:$0xff]
        %v4186 = vld [vmem:[%s329 + $0x9e] sm:$0xff]
        %v4187 = vld [vmem:[%s329 + $0xa6] sm:$0xff]
        %v4188 = vld [vmem:[%s329 + $0xae] sm:$0xff]
        %v4189 = vld [vmem:[%s329 + $0xb6] sm:$0xff]
        %v4190 = vld [vmem:[%s329 + $0xbe] sm:$0xff]
        %v4191 = vld [vmem:[%s329 + $0xc6] sm:$0xff]
        %v4192 = vld [vmem:[%s329 + $0xce] sm:$0xff]
        %v4193 = vld [vmem:[%s329 + $0xd6] sm:$0xff]
        %v4194 = vld [vmem:[%s329 + $0xde] sm:$0xff]
        %v4195 = vld [vmem:[%s329 + $0xe6] sm:$0xff]
        %v4196 = vld [vmem:[%s329 + $0xee] sm:$0xff]
        %v4197 = vld [vmem:[%s329 + $0xf6] sm:$0xff]
        %v4198 = vld [vmem:[%s329 + $0xfe] sm:$0xff]
        %v4199 = vld [vmem:[%s329 + $0x106] sm:$0xff]
        %v4200 = vld [vmem:[%s329 + $0x10e] sm:$0xff]
        %v4201 = vld [vmem:[%s329 + $0x116] sm:$0xff]
        %v4202 = vld [vmem:[%s329 + $0x11e] sm:$0xff]
        %v4203 = vld [vmem:[%s329 + $0x126] sm:$0xff]
        %v4204 = vld [vmem:[%s329 + $0x12e] sm:$0xff]
        %v4205 = vld [vmem:[%s329 + $0x136] sm:$0xff]
        %v4206 = vld [vmem:[%s329 + $0x13e] sm:$0xff]
        %v4207 = vld [vmem:[%s329 + $0x146] sm:$0xff]
        %v4208 = vld [vmem:[%s329 + $0x14e] sm:$0xff]
        %v4209 = vld [vmem:[%s329 + $0x156] sm:$0xff]
        %v4210 = vld [vmem:[%s329 + $0x15e] sm:$0xff]
        %v4211 = vld [vmem:[%s329 + $0x166] sm:$0xf]
        %v4212 = vld [vmem:[%s3 + $0x20] sm:$0xf]
        %v4214 = vsel %vm379, %v4171, 0
        %v4217 = vsel %vm379, %v4172, 0
        %v4220 = vsel %vm379, %v4173, 0
        %v4223 = vsel %vm379, %v4174, 0
        %v4226 = vsel %vm379, %v4175, 0
        %v4229 = vsel %vm379, %v4176, 0
        %v4232 = vsel %vm379, %v4177, 0
        %v4235 = vsel %vm379, %v4178, 0
        %v4238 = vsel %vm379, %v4179, 0
        %v4241 = vsel %vm379, %v4180, 0
        %v4244 = vsel %vm379, %v4181, 0
        %v4247 = vsel %vm379, %v4182, 0
        %v4250 = vsel %vm379, %v4183, 0
        %v4253 = vsel %vm379, %v4184, 0
        %v4256 = vsel %vm379, %v4185, 0
        %v4259 = vsel %vm379, %v4186, 0
        %v4262 = vsel %vm379, %v4187, 0
        %v4265 = vsel %vm379, %v4188, 0
        %v4268 = vsel %vm379, %v4189, 0
        %v4271 = vsel %vm379, %v4190, 0
        %v4274 = vsel %vm379, %v4191, 0
        %v4277 = vsel %vm379, %v4192, 0
        %v4280 = vsel %vm379, %v4193, 0
        %v4283 = vsel %vm379, %v4194, 0
        %v4286 = vsel %vm379, %v4195, 0
        %v4289 = vsel %vm379, %v4196, 0
        %v4292 = vsel %vm379, %v4197, 0
        %v4295 = vsel %vm379, %v4198, 0
        %v4298 = vsel %vm379, %v4199, 0
        %v4301 = vsel %vm379, %v4200, 0
        %v4304 = vsel %vm379, %v4201, 0
        %v4307 = vsel %vm379, %v4202, 0
        %v4310 = vsel %vm379, %v4203, 0
        %v4313 = vsel %vm379, %v4204, 0
        %v4316 = vsel %vm379, %v4205, 0
        %v4319 = vsel %vm379, %v4206, 0
        %v4322 = vsel %vm379, %v4207, 0
        %v4325 = vsel %vm379, %v4208, 0
        %v4328 = vsel %vm379, %v4209, 0
        %v4331 = vsel %vm379, %v4210, 0
        %v4334 = vsel %vm379, %v4211, 0
        %v4337 = vsel %vm503, %v4212, 0
        %4339 = vmatprep.subr.mxu0 0.0
        %4340 = vmatpush1.msra.mxu0 0.0
        %4341 = vmatprep.subr.mxu0 0.0
        %4342 = vmatpush1.msra.mxu0 0.0
        %4343 = vmatprep.subr.mxu0 0.0
        %4344 = vmatpush1.msra.mxu0 0.0
        %4345 = vmatprep.subr.mxu0 0.0
        %4346 = vmatpush1.msra.mxu0 0.0
        %4347 = vmatprep.subr.mxu0 0.0
        %4348 = vmatpush1.msra.mxu0 0.0
        %4349 = vmatprep.subr.mxu0 0.0
        %4350 = vmatpush1.msra.mxu0 0.0
        %4351 = vmatprep.subr.mxu0 0.0
        %4352 = vmatpush1.msra.mxu0 0.0
        %4353 = vmatprep.subr.mxu0 0.0
        %4354 = vmatpush1.msra.mxu0 0.0
        %4355 = vmatprep.subr.mxu0 0.0
        %4356 = vmatpush1.msra.mxu0 0.0
        %4357 = vmatprep.subr.mxu0 0.0
        %4358 = vmatpush1.msra.mxu0 0.0
        %4359 = vmatprep.subr.mxu0 0.0
        %4360 = vmatpush1.msra.mxu0 0.0
        %4361 = vmatprep.subr.mxu0 0.0
        %4362 = vmatpush1.msra.mxu0 0.0
        %4363 = vmatprep.subr.mxu0 0.0
        %4364 = vmatpush1.msra.mxu0 0.0
        %4365 = vmatprep.subr.mxu0 0.0
        %4366 = vmatpush1.msra.mxu0 0.0
        %4367 = vmatprep.subr.mxu0 0.0
        %4368 = vmatpush1.msra.mxu0 0.0
        %4369 = vmatprep.subr.mxu0 0.0
        %4370 = vmatpush1.msra.mxu0 %v4337
        %4371 = vmatprep.subr.mxu0 0.0
        %4372 = vmatpush2.msra.mxu0 0.0
        %4373 = vmatprep.subr.mxu0 0.0
        %4374 = vmatpush2.msra.mxu0 0.0
        %4375 = vmatprep.subr.mxu0 0.0
        %4376 = vmatpush2.msra.mxu0 0.0
        %4377 = vmatprep.subr.mxu0 0.0
        %4378 = vmatpush2.msra.mxu0 0.0
        %4379 = vmatprep.subr.mxu0 0.0
        %4380 = vmatpush2.msra.mxu0 0.0
        %4381 = vmatprep.subr.mxu0 0.0
        %4382 = vmatpush2.msra.mxu0 0.0
        %4383 = vmatprep.subr.mxu0 0.0
        %4384 = vmatpush2.msra.mxu0 0.0
        %4385 = vmatprep.subr.mxu0 0.0
        %4386 = vmatpush2.msra.mxu0 0.0
        %4387 = vmatprep.subr.mxu0 0.0
        %4388 = vmatpush2.msra.mxu0 0.0
        %4389 = vmatprep.subr.mxu0 0.0
        %4390 = vmatpush2.msra.mxu0 0.0
        %4391 = vmatprep.subr.mxu0 0.0
        %4392 = vmatpush2.msra.mxu0 0.0
        %4393 = vmatprep.subr.mxu0 0.0
        %4394 = vmatpush2.msra.mxu0 0.0
        %4395 = vmatprep.subr.mxu0 0.0
        %4396 = vmatpush2.msra.mxu0 0.0
        %4397 = vmatprep.subr.mxu0 0.0
        %4398 = vmatpush2.msra.mxu0 0.0
        %4399 = vmatprep.subr.mxu0 0.0
        %4400 = vmatpush2.msra.mxu0 0.0
        %4401 = vmatprep.subr.mxu0 0.0
        %4402 = vmatpush2.msra.mxu0 0.0
        %4403 = vmatprep.mubr.f32.mxu0 0.0
        %4404 = vmatmul.mubr.f32.gmra.mxu0 %v4214
        %v4405 = vpop.f32.mrf.mxu0
        %v4406 = vadd.f32 0.0, %v4405
        %v4407 = vpop.f32.mrf.mxu0
        %4408 = vmatprep.mubr.f32.mxu0 0.0
        %4409 = vmatmul.mubr.f32.gmra.mxu0 %v4217
        %v4410 = vpop.f32.mrf.mxu0
        %v4411 = vadd.f32 0.0, %v4410
        %v4412 = vpop.f32.mrf.mxu0
        %4413 = vmatprep.mubr.f32.mxu0 0.0
        %4414 = vmatmul.mubr.f32.gmra.mxu0 %v4220
        %v4415 = vpop.f32.mrf.mxu0
        %v4416 = vadd.f32 0.0, %v4415
        %v4417 = vpop.f32.mrf.mxu0
        %4418 = vmatprep.mubr.f32.mxu0 0.0
        %4419 = vmatmul.mubr.f32.gmra.mxu0 %v4223
        %v4420 = vpop.f32.mrf.mxu0
        %v4421 = vadd.f32 0.0, %v4420
        %v4422 = vpop.f32.mrf.mxu0
        %4423 = vmatprep.mubr.f32.mxu0 0.0
        %4424 = vmatmul.mubr.f32.gmra.mxu0 %v4226
        %v4425 = vpop.f32.mrf.mxu0
        %v4426 = vadd.f32 0.0, %v4425
        %v4427 = vpop.f32.mrf.mxu0
        %4428 = vmatprep.mubr.f32.mxu0 0.0
        %4429 = vmatmul.mubr.f32.gmra.mxu0 %v4229
        %v4430 = vpop.f32.mrf.mxu0
        %v4431 = vadd.f32 0.0, %v4430
        %v4432 = vpop.f32.mrf.mxu0
        %4433 = vmatprep.mubr.f32.mxu0 0.0
        %4434 = vmatmul.mubr.f32.gmra.mxu0 %v4232
        %v4435 = vpop.f32.mrf.mxu0
        %v4436 = vadd.f32 0.0, %v4435
        %v4437 = vpop.f32.mrf.mxu0
        %4438 = vmatprep.mubr.f32.mxu0 0.0
        %4439 = vmatmul.mubr.f32.gmra.mxu0 %v4235
        %v4440 = vpop.f32.mrf.mxu0
        %v4441 = vadd.f32 0.0, %v4440
        %v4442 = vpop.f32.mrf.mxu0
        %4443 = vmatprep.mubr.f32.mxu0 0.0
        %4444 = vmatmul.mubr.f32.gmra.mxu0 %v4238
        %v4445 = vpop.f32.mrf.mxu0
        %v4446 = vadd.f32 0.0, %v4445
        %v4447 = vpop.f32.mrf.mxu0
        %4448 = vmatprep.mubr.f32.mxu0 0.0
        %4449 = vmatmul.mubr.f32.gmra.mxu0 %v4241
        %v4450 = vpop.f32.mrf.mxu0
        %v4451 = vadd.f32 0.0, %v4450
        %v4452 = vpop.f32.mrf.mxu0
        %4453 = vmatprep.mubr.f32.mxu0 0.0
        %4454 = vmatmul.mubr.f32.gmra.mxu0 %v4244
        %v4455 = vpop.f32.mrf.mxu0
        %v4456 = vadd.f32 0.0, %v4455
        %v4457 = vpop.f32.mrf.mxu0
        %4458 = vmatprep.mubr.f32.mxu0 0.0
        %4459 = vmatmul.mubr.f32.gmra.mxu0 %v4247
        %v4460 = vpop.f32.mrf.mxu0
        %v4461 = vadd.f32 0.0, %v4460
        %v4462 = vpop.f32.mrf.mxu0
        %4463 = vmatprep.mubr.f32.mxu0 0.0
        %4464 = vmatmul.mubr.f32.gmra.mxu0 %v4250
        %v4465 = vpop.f32.mrf.mxu0
        %v4466 = vadd.f32 0.0, %v4465
        %v4467 = vpop.f32.mrf.mxu0
        %4468 = vmatprep.mubr.f32.mxu0 0.0
        %4469 = vmatmul.mubr.f32.gmra.mxu0 %v4253
        %v4470 = vpop.f32.mrf.mxu0
        %v4471 = vadd.f32 0.0, %v4470
        %v4472 = vpop.f32.mrf.mxu0
        %4473 = vmatprep.mubr.f32.mxu0 0.0
        %4474 = vmatmul.mubr.f32.gmra.mxu0 %v4256
        %v4475 = vpop.f32.mrf.mxu0
        %v4476 = vadd.f32 0.0, %v4475
        %v4477 = vpop.f32.mrf.mxu0
        %4478 = vmatprep.mubr.f32.mxu0 0.0
        %4479 = vmatmul.mubr.f32.gmra.mxu0 %v4259
        %v4480 = vpop.f32.mrf.mxu0
        %v4481 = vadd.f32 0.0, %v4480
        %v4482 = vpop.f32.mrf.mxu0
        %4483 = vmatprep.mubr.f32.mxu0 0.0
        %4484 = vmatmul.mubr.f32.gmra.mxu0 %v4262
        %v4485 = vpop.f32.mrf.mxu0
        %v4486 = vadd.f32 0.0, %v4485
        %v4487 = vpop.f32.mrf.mxu0
        %4488 = vmatprep.mubr.f32.mxu0 0.0
        %4489 = vmatmul.mubr.f32.gmra.mxu0 %v4265
        %v4490 = vpop.f32.mrf.mxu0
        %v4491 = vadd.f32 0.0, %v4490
        %v4492 = vpop.f32.mrf.mxu0
        %4493 = vmatprep.mubr.f32.mxu0 0.0
        %4494 = vmatmul.mubr.f32.gmra.mxu0 %v4268
        %v4495 = vpop.f32.mrf.mxu0
        %v4496 = vadd.f32 0.0, %v4495
        %v4497 = vpop.f32.mrf.mxu0
        %4498 = vmatprep.mubr.f32.mxu0 0.0
        %4499 = vmatmul.mubr.f32.gmra.mxu0 %v4271
        %v4500 = vpop.f32.mrf.mxu0
        %v4501 = vadd.f32 0.0, %v4500
        %v4502 = vpop.f32.mrf.mxu0
        %4503 = vmatprep.mubr.f32.mxu0 0.0
        %4504 = vmatmul.mubr.f32.gmra.mxu0 %v4274
        %v4505 = vpop.f32.mrf.mxu0
        %v4506 = vadd.f32 0.0, %v4505
        %v4507 = vpop.f32.mrf.mxu0
        %4508 = vmatprep.mubr.f32.mxu0 0.0
        %4509 = vmatmul.mubr.f32.gmra.mxu0 %v4277
        %v4510 = vpop.f32.mrf.mxu0
        %v4511 = vadd.f32 0.0, %v4510
        %v4512 = vpop.f32.mrf.mxu0
        %4513 = vmatprep.mubr.f32.mxu0 0.0
        %4514 = vmatmul.mubr.f32.gmra.mxu0 %v4280
        %v4515 = vpop.f32.mrf.mxu0
        %v4516 = vadd.f32 0.0, %v4515
        %v4517 = vpop.f32.mrf.mxu0
        %4518 = vmatprep.mubr.f32.mxu0 0.0
        %4519 = vmatmul.mubr.f32.gmra.mxu0 %v4283
        %v4520 = vpop.f32.mrf.mxu0
        %v4521 = vadd.f32 0.0, %v4520
        %v4522 = vpop.f32.mrf.mxu0
        %4523 = vmatprep.mubr.f32.mxu0 0.0
        %4524 = vmatmul.mubr.f32.gmra.mxu0 %v4286
        %v4525 = vpop.f32.mrf.mxu0
        %v4526 = vadd.f32 0.0, %v4525
        %v4527 = vpop.f32.mrf.mxu0
        %4528 = vmatprep.mubr.f32.mxu0 0.0
        %4529 = vmatmul.mubr.f32.gmra.mxu0 %v4289
        %v4530 = vpop.f32.mrf.mxu0
        %v4531 = vadd.f32 0.0, %v4530
        %v4532 = vpop.f32.mrf.mxu0
        %4533 = vmatprep.mubr.f32.mxu0 0.0
        %4534 = vmatmul.mubr.f32.gmra.mxu0 %v4292
        %v4535 = vpop.f32.mrf.mxu0
        %v4536 = vadd.f32 0.0, %v4535
        %v4537 = vpop.f32.mrf.mxu0
        %4538 = vmatprep.mubr.f32.mxu0 0.0
        %4539 = vmatmul.mubr.f32.gmra.mxu0 %v4295
        %v4540 = vpop.f32.mrf.mxu0
        %v4541 = vadd.f32 0.0, %v4540
        %v4542 = vpop.f32.mrf.mxu0
        %4543 = vmatprep.mubr.f32.mxu0 0.0
        %4544 = vmatmul.mubr.f32.gmra.mxu0 %v4298
        %v4545 = vpop.f32.mrf.mxu0
        %v4546 = vadd.f32 0.0, %v4545
        %v4547 = vpop.f32.mrf.mxu0
        %4548 = vmatprep.mubr.f32.mxu0 0.0
        %4549 = vmatmul.mubr.f32.gmra.mxu0 %v4301
        %v4550 = vpop.f32.mrf.mxu0
        %v4551 = vadd.f32 0.0, %v4550
        %v4552 = vpop.f32.mrf.mxu0
        %4553 = vmatprep.mubr.f32.mxu0 0.0
        %4554 = vmatmul.mubr.f32.gmra.mxu0 %v4304
        %v4555 = vpop.f32.mrf.mxu0
        %v4556 = vadd.f32 0.0, %v4555
        %v4557 = vpop.f32.mrf.mxu0
        %4558 = vmatprep.mubr.f32.mxu0 0.0
        %4559 = vmatmul.mubr.f32.gmra.mxu0 %v4307
        %v4560 = vpop.f32.mrf.mxu0
        %v4561 = vadd.f32 0.0, %v4560
        %v4562 = vpop.f32.mrf.mxu0
        %4563 = vmatprep.mubr.f32.mxu0 0.0
        %4564 = vmatmul.mubr.f32.gmra.mxu0 %v4310
        %v4565 = vpop.f32.mrf.mxu0
        %v4566 = vadd.f32 0.0, %v4565
        %v4567 = vpop.f32.mrf.mxu0
        %4568 = vmatprep.mubr.f32.mxu0 0.0
        %4569 = vmatmul.mubr.f32.gmra.mxu0 %v4313
        %v4570 = vpop.f32.mrf.mxu0
        %v4571 = vadd.f32 0.0, %v4570
        %v4572 = vpop.f32.mrf.mxu0
        %4573 = vmatprep.mubr.f32.mxu0 0.0
        %4574 = vmatmul.mubr.f32.gmra.mxu0 %v4316
        %v4575 = vpop.f32.mrf.mxu0
        %v4576 = vadd.f32 0.0, %v4575
        %v4577 = vpop.f32.mrf.mxu0
        %4578 = vmatprep.mubr.f32.mxu0 0.0
        %4579 = vmatmul.mubr.f32.gmra.mxu0 %v4319
        %v4580 = vpop.f32.mrf.mxu0
        %v4581 = vadd.f32 0.0, %v4580
        %v4582 = vpop.f32.mrf.mxu0
        %4583 = vmatprep.mubr.f32.mxu0 0.0
        %4584 = vmatmul.mubr.f32.gmra.mxu0 %v4322
        %v4585 = vpop.f32.mrf.mxu0
        %v4586 = vadd.f32 0.0, %v4585
        %v4587 = vpop.f32.mrf.mxu0
        %4588 = vmatprep.mubr.f32.mxu0 0.0
        %4589 = vmatmul.mubr.f32.gmra.mxu0 %v4325
        %v4590 = vpop.f32.mrf.mxu0
        %v4591 = vadd.f32 0.0, %v4590
        %v4592 = vpop.f32.mrf.mxu0
        %4593 = vmatprep.mubr.f32.mxu0 0.0
        %4594 = vmatmul.mubr.f32.gmra.mxu0 %v4328
        %v4595 = vpop.f32.mrf.mxu0
        %v4596 = vadd.f32 0.0, %v4595
        %v4597 = vpop.f32.mrf.mxu0
        %4598 = vmatprep.mubr.f32.mxu0 0.0
        %4599 = vmatmul.mubr.f32.gmra.mxu0 %v4331
        %v4600 = vpop.f32.mrf.mxu0
        %v4601 = vadd.f32 0.0, %v4600
        %v4602 = vpop.f32.mrf.mxu0
        %4603 = vmatprep.mubr.f32.mxu0 0.0
        %4604 = vmatmul.mubr.f32.gmra.mxu0 %v4334
        %v4605 = vpop.f32.mrf.mxu0
        %v4606 = vadd.f32 0.0, %v4605
        %v4607 = vpop.f32.mrf.mxu0
        %4608 = vdwg.mxu0
        %v4609 = vadd.f32 %v4130, %v4406
        %v4610 = vadd.f32 %v4131, %v4411
        %v4611 = vadd.f32 %v4132, %v4416
        %v4612 = vadd.f32 %v4133, %v4421
        %v4613 = vadd.f32 %v4134, %v4426
        %v4614 = vadd.f32 %v4135, %v4431
        %v4615 = vadd.f32 %v4136, %v4436
        %v4616 = vadd.f32 %v4137, %v4441
        %v4617 = vadd.f32 %v4138, %v4446
        %v4618 = vadd.f32 %v4139, %v4451
        %v4619 = vadd.f32 %v4140, %v4456
        %v4620 = vadd.f32 %v4141, %v4461
        %v4621 = vadd.f32 %v4142, %v4466
        %v4622 = vadd.f32 %v4143, %v4471
        %v4623 = vadd.f32 %v4144, %v4476
        %v4624 = vadd.f32 %v4145, %v4481
        %v4625 = vadd.f32 %v4146, %v4486
        %v4626 = vadd.f32 %v4147, %v4491
        %v4627 = vadd.f32 %v4148, %v4496
        %v4628 = vadd.f32 %v4149, %v4501
        %v4629 = vadd.f32 %v4150, %v4506
        %v4630 = vadd.f32 %v4151, %v4511
        %v4631 = vadd.f32 %v4152, %v4516
        %v4632 = vadd.f32 %v4153, %v4521
        %v4633 = vadd.f32 %v4154, %v4526
        %v4634 = vadd.f32 %v4155, %v4531
        %v4635 = vadd.f32 %v4156, %v4536
        %v4636 = vadd.f32 %v4157, %v4541
        %v4637 = vadd.f32 %v4158, %v4546
        %v4638 = vadd.f32 %v4159, %v4551
        %v4639 = vadd.f32 %v4160, %v4556
        %v4640 = vadd.f32 %v4161, %v4561
        %v4641 = vadd.f32 %v4162, %v4566
        %v4642 = vadd.f32 %v4163, %v4571
        %v4643 = vadd.f32 %v4164, %v4576
        %v4644 = vadd.f32 %v4165, %v4581
        %v4645 = vadd.f32 %v4166, %v4586
        %v4646 = vadd.f32 %v4167, %v4591
        %v4647 = vadd.f32 %v4168, %v4596
        %v4648 = vadd.f32 %v4169, %v4601
        %v4649 = vadd.f32 %v4170, %v4606
        %v4650 = vmax.f32 %v4609, 0.0
        %v4651 = vmax.f32 %v4610, 0.0
        %v4652 = vmax.f32 %v4611, 0.0
        %v4653 = vmax.f32 %v4612, 0.0
        %v4654 = vmax.f32 %v4613, 0.0
        %v4655 = vmax.f32 %v4614, 0.0
        %v4656 = vmax.f32 %v4615, 0.0
        %v4657 = vmax.f32 %v4616, 0.0
        %v4658 = vmax.f32 %v4617, 0.0
        %v4659 = vmax.f32 %v4618, 0.0
        %v4660 = vmax.f32 %v4619, 0.0
        %v4661 = vmax.f32 %v4620, 0.0
        %v4662 = vmax.f32 %v4621, 0.0
        %v4663 = vmax.f32 %v4622, 0.0
        %v4664 = vmax.f32 %v4623, 0.0
        %v4665 = vmax.f32 %v4624, 0.0
        %v4666 = vmax.f32 %v4625, 0.0
        %v4667 = vmax.f32 %v4626, 0.0
        %v4668 = vmax.f32 %v4627, 0.0
        %v4669 = vmax.f32 %v4628, 0.0
        %v4670 = vmax.f32 %v4629, 0.0
        %v4671 = vmax.f32 %v4630, 0.0
        %v4672 = vmax.f32 %v4631, 0.0
        %v4673 = vmax.f32 %v4632, 0.0
        %v4674 = vmax.f32 %v4633, 0.0
        %v4675 = vmax.f32 %v4634, 0.0
        %v4676 = vmax.f32 %v4635, 0.0
        %v4677 = vmax.f32 %v4636, 0.0
        %v4678 = vmax.f32 %v4637, 0.0
        %v4679 = vmax.f32 %v4638, 0.0
        %v4680 = vmax.f32 %v4639, 0.0
        %v4681 = vmax.f32 %v4640, 0.0
        %v4682 = vmax.f32 %v4641, 0.0
        %v4683 = vmax.f32 %v4642, 0.0
        %v4684 = vmax.f32 %v4643, 0.0
        %v4685 = vmax.f32 %v4644, 0.0
        %v4686 = vmax.f32 %v4645, 0.0
        %v4687 = vmax.f32 %v4646, 0.0
        %v4688 = vmax.f32 %v4647, 0.0
        %v4689 = vmax.f32 %v4648, 0.0
        %v4690 = vmax.f32 %v4649, 0.0
        %v4691 = vld [vmem:[%s1] sm:$0xff]
        %v4692 = vld [vmem:[%s1 + $0x8] sm:$0xff]
        %v4693 = vld [vmem:[%s1 + $0x10] sm:$0xff]
        %v4694 = vld [vmem:[%s1 + $0x18] sm:$0xff]
        %v4695 = vld [vmem:[%s1 + $0x20] sm:$0xff]
        %v4696 = vld [vmem:[%s1 + $0x28] sm:$0xff]
        %v4697 = vld [vmem:[%s1 + $0x30] sm:$0xff]
        %v4698 = vld [vmem:[%s1 + $0x38] sm:$0xff]
        %v4699 = vld [vmem:[%s1 + $0x40] sm:$0xff]
        %v4700 = vld [vmem:[%s1 + $0x48] sm:$0xff]
        %v4701 = vld [vmem:[%s1 + $0x50] sm:$0xff]
        %v4702 = vld [vmem:[%s1 + $0x58] sm:$0xff]
        %v4703 = vld [vmem:[%s1 + $0x60] sm:$0xff]
        %v4704 = vld [vmem:[%s1 + $0x68] sm:$0xff]
        %v4705 = vld [vmem:[%s1 + $0x70] sm:$0xff]
        %v4706 = vld [vmem:[%s1 + $0x78] sm:$0xff]
        %v4707 = vld [vmem:[%s1 + $0x80] sm:$0xff]
        %v4708 = vld [vmem:[%s1 + $0x88] sm:$0xff]
        %v4709 = vld [vmem:[%s1 + $0x90] sm:$0xff]
        %v4710 = vld [vmem:[%s1 + $0x98] sm:$0xff]
        %v4711 = vld [vmem:[%s1 + $0xa0] sm:$0xff]
        %v4712 = vld [vmem:[%s1 + $0xa8] sm:$0xff]
        %v4713 = vld [vmem:[%s1 + $0xb0] sm:$0xff]
        %v4714 = vld [vmem:[%s1 + $0xb8] sm:$0xff]
        %v4715 = vld [vmem:[%s1 + $0xc0] sm:$0xff]
        %v4716 = vld [vmem:[%s1 + $0xc8] sm:$0xff]
        %v4717 = vld [vmem:[%s1 + $0xd0] sm:$0xff]
        %v4718 = vld [vmem:[%s1 + $0xd8] sm:$0xff]
        %v4719 = vld [vmem:[%s1 + $0xe0] sm:$0xff]
        %v4720 = vld [vmem:[%s1 + $0xe8] sm:$0xff]
        %v4721 = vld [vmem:[%s1 + $0xf0] sm:$0xff]
        %v4722 = vld [vmem:[%s1 + $0xf8] sm:$0xff]
        %v4723 = vld [vmem:[%s1 + $0x100] sm:$0xff]
        %v4724 = vld [vmem:[%s1 + $0x108] sm:$0xff]
        %v4725 = vld [vmem:[%s1 + $0x110] sm:$0xff]
        %v4726 = vld [vmem:[%s1 + $0x118] sm:$0xff]
        %v4727 = vld [vmem:[%s1 + $0x120] sm:$0xff]
        %v4728 = vld [vmem:[%s1 + $0x128] sm:$0xff]
        %v4729 = vld [vmem:[%s1 + $0x130] sm:$0xff]
        %v4730 = vld [vmem:[%s1 + $0x138] sm:$0xff]
        %v4731 = vld [vmem:[%s1 + $0x140] sm:$0xf]
        %4733 = vset.pattern.permute.xlu0 0
        %4734 = vperm.xlu0 %4733, %v4691
        %v4735 = vpop.permute.xlu0 %4734
        %4738 = vset.pattern.permute.xlu0 0
        %4739 = vperm.xlu0 %4738, %v4692
        %v4740 = vpop.permute.xlu0 %4739
        %4743 = vset.pattern.permute.xlu0 0
        %4744 = vperm.xlu0 %4743, %v4693
        %v4745 = vpop.permute.xlu0 %4744
        %4748 = vset.pattern.permute.xlu0 0
        %4749 = vperm.xlu0 %4748, %v4694
        %v4750 = vpop.permute.xlu0 %4749
        %4753 = vset.pattern.permute.xlu0 0
        %4754 = vperm.xlu0 %4753, %v4695
        %v4755 = vpop.permute.xlu0 %4754
        %4758 = vset.pattern.permute.xlu0 0
        %4759 = vperm.xlu0 %4758, %v4696
        %v4760 = vpop.permute.xlu0 %4759
        %4763 = vset.pattern.permute.xlu0 0
        %4764 = vperm.xlu0 %4763, %v4697
        %v4765 = vpop.permute.xlu0 %4764
        %4768 = vset.pattern.permute.xlu0 0
        %4769 = vperm.xlu0 %4768, %v4698
        %v4770 = vpop.permute.xlu0 %4769
        %4773 = vset.pattern.permute.xlu0 0
        %4774 = vperm.xlu0 %4773, %v4699
        %v4775 = vpop.permute.xlu0 %4774
        %4778 = vset.pattern.permute.xlu0 0
        %4779 = vperm.xlu0 %4778, %v4700
        %v4780 = vpop.permute.xlu0 %4779
        %4783 = vset.pattern.permute.xlu0 0
        %4784 = vperm.xlu0 %4783, %v4701
        %v4785 = vpop.permute.xlu0 %4784
        %4788 = vset.pattern.permute.xlu0 0
        %4789 = vperm.xlu0 %4788, %v4702
        %v4790 = vpop.permute.xlu0 %4789
        %4793 = vset.pattern.permute.xlu0 0
        %4794 = vperm.xlu0 %4793, %v4703
        %v4795 = vpop.permute.xlu0 %4794
        %4798 = vset.pattern.permute.xlu0 0
        %4799 = vperm.xlu0 %4798, %v4704
        %v4800 = vpop.permute.xlu0 %4799
        %4803 = vset.pattern.permute.xlu0 0
        %4804 = vperm.xlu0 %4803, %v4705
        %v4805 = vpop.permute.xlu0 %4804
        %4808 = vset.pattern.permute.xlu0 0
        %4809 = vperm.xlu0 %4808, %v4706
        %v4810 = vpop.permute.xlu0 %4809
        %4813 = vset.pattern.permute.xlu0 0
        %4814 = vperm.xlu0 %4813, %v4707
        %v4815 = vpop.permute.xlu0 %4814
        %4818 = vset.pattern.permute.xlu0 0
        %4819 = vperm.xlu0 %4818, %v4708
        %v4820 = vpop.permute.xlu0 %4819
        %4823 = vset.pattern.permute.xlu0 0
        %4824 = vperm.xlu0 %4823, %v4709
        %v4825 = vpop.permute.xlu0 %4824
        %4828 = vset.pattern.permute.xlu0 0
        %4829 = vperm.xlu0 %4828, %v4710
        %v4830 = vpop.permute.xlu0 %4829
        %4833 = vset.pattern.permute.xlu0 0
        %4834 = vperm.xlu0 %4833, %v4711
        %v4835 = vpop.permute.xlu0 %4834
        %4838 = vset.pattern.permute.xlu0 0
        %4839 = vperm.xlu0 %4838, %v4712
        %v4840 = vpop.permute.xlu0 %4839
        %4843 = vset.pattern.permute.xlu0 0
        %4844 = vperm.xlu0 %4843, %v4713
        %v4845 = vpop.permute.xlu0 %4844
        %4848 = vset.pattern.permute.xlu0 0
        %4849 = vperm.xlu0 %4848, %v4714
        %v4850 = vpop.permute.xlu0 %4849
        %4853 = vset.pattern.permute.xlu0 0
        %4854 = vperm.xlu0 %4853, %v4715
        %v4855 = vpop.permute.xlu0 %4854
        %4858 = vset.pattern.permute.xlu0 0
        %4859 = vperm.xlu0 %4858, %v4716
        %v4860 = vpop.permute.xlu0 %4859
        %4863 = vset.pattern.permute.xlu0 0
        %4864 = vperm.xlu0 %4863, %v4717
        %v4865 = vpop.permute.xlu0 %4864
        %4868 = vset.pattern.permute.xlu0 0
        %4869 = vperm.xlu0 %4868, %v4718
        %v4870 = vpop.permute.xlu0 %4869
        %4873 = vset.pattern.permute.xlu0 0
        %4874 = vperm.xlu0 %4873, %v4719
        %v4875 = vpop.permute.xlu0 %4874
        %4878 = vset.pattern.permute.xlu0 0
        %4879 = vperm.xlu0 %4878, %v4720
        %v4880 = vpop.permute.xlu0 %4879
        %4883 = vset.pattern.permute.xlu0 0
        %4884 = vperm.xlu0 %4883, %v4721
        %v4885 = vpop.permute.xlu0 %4884
        %4888 = vset.pattern.permute.xlu0 0
        %4889 = vperm.xlu0 %4888, %v4722
        %v4890 = vpop.permute.xlu0 %4889
        %4893 = vset.pattern.permute.xlu0 0
        %4894 = vperm.xlu0 %4893, %v4723
        %v4895 = vpop.permute.xlu0 %4894
        %4898 = vset.pattern.permute.xlu0 0
        %4899 = vperm.xlu0 %4898, %v4724
        %v4900 = vpop.permute.xlu0 %4899
        %4903 = vset.pattern.permute.xlu0 0
        %4904 = vperm.xlu0 %4903, %v4725
        %v4905 = vpop.permute.xlu0 %4904
        %4908 = vset.pattern.permute.xlu0 0
        %4909 = vperm.xlu0 %4908, %v4726
        %v4910 = vpop.permute.xlu0 %4909
        %4913 = vset.pattern.permute.xlu0 0
        %4914 = vperm.xlu0 %4913, %v4727
        %v4915 = vpop.permute.xlu0 %4914
        %4918 = vset.pattern.permute.xlu0 0
        %4919 = vperm.xlu0 %4918, %v4728
        %v4920 = vpop.permute.xlu0 %4919
        %4923 = vset.pattern.permute.xlu0 0
        %4924 = vperm.xlu0 %4923, %v4729
        %v4925 = vpop.permute.xlu0 %4924
        %4928 = vset.pattern.permute.xlu0 0
        %4929 = vperm.xlu0 %4928, %v4730
        %v4930 = vpop.permute.xlu0 %4929
        %4933 = vset.pattern.permute.xlu0 0
        %4934 = vperm.xlu0 %4933, %v4731
        %v4935 = vpop.permute.xlu0 %4934
        %v4937 = vmul.f32 %v4650, %v4735
        %v4938 = vmul.f32 %v4651, %v4740
        %v4939 = vmul.f32 %v4652, %v4745
        %v4940 = vmul.f32 %v4653, %v4750
        %v4941 = vmul.f32 %v4654, %v4755
        %v4942 = vmul.f32 %v4655, %v4760
        %v4943 = vmul.f32 %v4656, %v4765
        %v4944 = vmul.f32 %v4657, %v4770
        %v4945 = vmul.f32 %v4658, %v4775
        %v4946 = vmul.f32 %v4659, %v4780
        %v4947 = vmul.f32 %v4660, %v4785
        %v4948 = vmul.f32 %v4661, %v4790
        %v4949 = vmul.f32 %v4662, %v4795
        %v4950 = vmul.f32 %v4663, %v4800
        %v4951 = vmul.f32 %v4664, %v4805
        %v4952 = vmul.f32 %v4665, %v4810
        %v4953 = vmul.f32 %v4666, %v4815
        %v4954 = vmul.f32 %v4667, %v4820
        %v4955 = vmul.f32 %v4668, %v4825
        %v4956 = vmul.f32 %v4669, %v4830
        %v4957 = vmul.f32 %v4670, %v4835
        %v4958 = vmul.f32 %v4671, %v4840
        %v4959 = vmul.f32 %v4672, %v4845
        %v4960 = vmul.f32 %v4673, %v4850
        %v4961 = vmul.f32 %v4674, %v4855
        %v4962 = vmul.f32 %v4675, %v4860
        %v4963 = vmul.f32 %v4676, %v4865
        %v4964 = vmul.f32 %v4677, %v4870
        %v4965 = vmul.f32 %v4678, %v4875
        %v4966 = vmul.f32 %v4679, %v4880
        %v4967 = vmul.f32 %v4680, %v4885
        %v4968 = vmul.f32 %v4681, %v4890
        %v4969 = vmul.f32 %v4682, %v4895
        %v4970 = vmul.f32 %v4683, %v4900
        %v4971 = vmul.f32 %v4684, %v4905
        %v4972 = vmul.f32 %v4685, %v4910
        %v4973 = vmul.f32 %v4686, %v4915
        %v4974 = vmul.f32 %v4687, %v4920
        %v4975 = vmul.f32 %v4688, %v4925
        %v4976 = vmul.f32 %v4689, %v4930
        %v4977 = vmul.f32 %v4690, %v4935
        %vm4978 = vcmask 261120
        %4979 = vst.msk [vmem:[#allocation2] sm:$0xff] %vm4978, 0.0
        %4980 = vst.msk [vmem:[#allocation2 + $0x8] sm:$0xff] %vm4978, 0.0
        %vm4981 = vcmask 256000
        %4982 = vst.msk [vmem:[#allocation2 + $0x10] sm:$0x7] %vm4981, 0.0
        %4983 = vst.msk [vmem:[#allocation2 + $0x157] sm:$0xff] %vm4978, 0.0
        %4984 = vst.msk [vmem:[#allocation2 + $0x15f] sm:$0xff] %vm4978, 0.0
        %4985 = vst.msk [vmem:[#allocation2 + $0x167] sm:$0x7] %vm4981, 0.0
        %4986 = vst.msk [vmem:[#allocation2 + $0x13] sm:$0xff] %vm4978, %v4937
        %4987 = vst.msk [vmem:[#allocation2 + $0x1b] sm:$0xff] %vm4978, %v4938
        %4988 = vst.msk [vmem:[#allocation2 + $0x23] sm:$0xff] %vm4978, %v4939
        %4989 = vst.msk [vmem:[#allocation2 + $0x2b] sm:$0xff] %vm4978, %v4940
        %4990 = vst.msk [vmem:[#allocation2 + $0x33] sm:$0xff] %vm4978, %v4941
        %4991 = vst.msk [vmem:[#allocation2 + $0x3b] sm:$0xff] %vm4978, %v4942
        %4992 = vst.msk [vmem:[#allocation2 + $0x43] sm:$0xff] %vm4978, %v4943
        %4993 = vst.msk [vmem:[#allocation2 + $0x4b] sm:$0xff] %vm4978, %v4944
        %4994 = vst.msk [vmem:[#allocation2 + $0x53] sm:$0xff] %vm4978, %v4945
        %4995 = vst.msk [vmem:[#allocation2 + $0x5b] sm:$0xff] %vm4978, %v4946
        %4996 = vst.msk [vmem:[#allocation2 + $0x63] sm:$0xff] %vm4978, %v4947
        %4997 = vst.msk [vmem:[#allocation2 + $0x6b] sm:$0xff] %vm4978, %v4948
        %4998 = vst.msk [vmem:[#allocation2 + $0x73] sm:$0xff] %vm4978, %v4949
        %4999 = vst.msk [vmem:[#allocation2 + $0x7b] sm:$0xff] %vm4978, %v4950
        %5000 = vst.msk [vmem:[#allocation2 + $0x83] sm:$0xff] %vm4978, %v4951
        %5001 = vst.msk [vmem:[#allocation2 + $0x8b] sm:$0xff] %vm4978, %v4952
        %5002 = vst.msk [vmem:[#allocation2 + $0x93] sm:$0xff] %vm4978, %v4953
        %5003 = vst.msk [vmem:[#allocation2 + $0x9b] sm:$0xff] %vm4978, %v4954
        %5004 = vst.msk [vmem:[#allocation2 + $0xa3] sm:$0xff] %vm4978, %v4955
        %5005 = vst.msk [vmem:[#allocation2 + $0xab] sm:$0xff] %vm4978, %v4956
        %5006 = vst.msk [vmem:[#allocation2 + $0xb3] sm:$0xff] %vm4978, %v4957
        %5007 = vst.msk [vmem:[#allocation2 + $0xbb] sm:$0xff] %vm4978, %v4958
        %5008 = vst.msk [vmem:[#allocation2 + $0xc3] sm:$0xff] %vm4978, %v4959
        %5009 = vst.msk [vmem:[#allocation2 + $0xcb] sm:$0xff] %vm4978, %v4960
        %5010 = vst.msk [vmem:[#allocation2 + $0xd3] sm:$0xff] %vm4978, %v4961
        %5011 = vst.msk [vmem:[#allocation2 + $0xdb] sm:$0xff] %vm4978, %v4962
        %5012 = vst.msk [vmem:[#allocation2 + $0xe3] sm:$0xff] %vm4978, %v4963
        %5013 = vst.msk [vmem:[#allocation2 + $0xeb] sm:$0xff] %vm4978, %v4964
        %5014 = vst.msk [vmem:[#allocation2 + $0xf3] sm:$0xff] %vm4978, %v4965
        %5015 = vst.msk [vmem:[#allocation2 + $0xfb] sm:$0xff] %vm4978, %v4966
        %5016 = vst.msk [vmem:[#allocation2 + $0x103] sm:$0xff] %vm4978, %v4967
        %5017 = vst.msk [vmem:[#allocation2 + $0x10b] sm:$0xff] %vm4978, %v4968
        %5018 = vst.msk [vmem:[#allocation2 + $0x113] sm:$0xff] %vm4978, %v4969
        %5019 = vst.msk [vmem:[#allocation2 + $0x11b] sm:$0xff] %vm4978, %v4970
        %5020 = vst.msk [vmem:[#allocation2 + $0x123] sm:$0xff] %vm4978, %v4971
        %5021 = vst.msk [vmem:[#allocation2 + $0x12b] sm:$0xff] %vm4978, %v4972
        %5022 = vst.msk [vmem:[#allocation2 + $0x133] sm:$0xff] %vm4978, %v4973
        %5023 = vst.msk [vmem:[#allocation2 + $0x13b] sm:$0xff] %vm4978, %v4974
        %5024 = vst.msk [vmem:[#allocation2 + $0x143] sm:$0xff] %vm4978, %v4975
        %5025 = vst.msk [vmem:[#allocation2 + $0x14b] sm:$0xff] %vm4978, %v4976
        %vm5026 = vcmask 257024
        %5027 = vst.msk [vmem:[#allocation2 + $0x153] sm:$0xf] %vm5026, %v4977
        %v5028 = vld [vmem:[%s6] sm:$0x1]
        %v5030 = vlaneseq
        %v5031 = vshrl.u32 %v5030, 7
        %v5032 = vsub.s32 0, %v5031
        %v5033 = vrot.slane %v5028, %v5032
        %v5035 = vld [vmem:[#allocation2] sm:$0xff]
        %v5036 = vld [vmem:[#allocation2 + $0x8] sm:$0xff]
        %v5037 = vld [vmem:[#allocation2 + $0x10] sm:$0xff]
        %v5038 = vld [vmem:[#allocation2 + $0x18] sm:$0xff]
        %v5039 = vld [vmem:[#allocation2 + $0x20] sm:$0xff]
        %v5040 = vld [vmem:[#allocation2 + $0x28] sm:$0xff]
        %v5041 = vld [vmem:[#allocation2 + $0x30] sm:$0xff]
        %v5042 = vld [vmem:[#allocation2 + $0x38] sm:$0xff]
        %v5043 = vld [vmem:[#allocation2 + $0x40] sm:$0xff]
        %v5044 = vld [vmem:[#allocation2 + $0x48] sm:$0xff]
        %v5045 = vld [vmem:[#allocation2 + $0x50] sm:$0xff]
        %v5046 = vld [vmem:[#allocation2 + $0x58] sm:$0xff]
        %v5047 = vld [vmem:[#allocation2 + $0x60] sm:$0xff]
        %v5048 = vld [vmem:[#allocation2 + $0x68] sm:$0xff]
        %v5049 = vld [vmem:[#allocation2 + $0x70] sm:$0xff]
        %v5050 = vld [vmem:[#allocation2 + $0x78] sm:$0xff]
        %v5051 = vld [vmem:[#allocation2 + $0x80] sm:$0xff]
        %v5052 = vld [vmem:[#allocation2 + $0x88] sm:$0xff]
        %v5053 = vld [vmem:[#allocation2 + $0x90] sm:$0xff]
        %v5054 = vld [vmem:[#allocation2 + $0x98] sm:$0xff]
        %v5055 = vld [vmem:[#allocation2 + $0xa0] sm:$0xff]
        %v5056 = vld [vmem:[#allocation2 + $0xa8] sm:$0xff]
        %v5057 = vld [vmem:[#allocation2 + $0xb0] sm:$0xff]
        %v5058 = vld [vmem:[#allocation2 + $0xb8] sm:$0xff]
        %v5059 = vld [vmem:[#allocation2 + $0xc0] sm:$0xff]
        %v5060 = vld [vmem:[#allocation2 + $0xc8] sm:$0xff]
        %v5061 = vld [vmem:[#allocation2 + $0xd0] sm:$0xff]
        %v5062 = vld [vmem:[#allocation2 + $0xd8] sm:$0xff]
        %v5063 = vld [vmem:[#allocation2 + $0xe0] sm:$0xff]
        %v5064 = vld [vmem:[#allocation2 + $0xe8] sm:$0xff]
        %v5065 = vld [vmem:[#allocation2 + $0xf0] sm:$0xff]
        %v5066 = vld [vmem:[#allocation2 + $0xf8] sm:$0xff]
        %v5067 = vld [vmem:[#allocation2 + $0x100] sm:$0xff]
        %v5068 = vld [vmem:[#allocation2 + $0x108] sm:$0xff]
        %v5069 = vld [vmem:[#allocation2 + $0x110] sm:$0xff]
        %v5070 = vld [vmem:[#allocation2 + $0x118] sm:$0xff]
        %v5071 = vld [vmem:[#allocation2 + $0x120] sm:$0xff]
        %v5072 = vld [vmem:[#allocation2 + $0x128] sm:$0xff]
        %v5073 = vld [vmem:[#allocation2 + $0x130] sm:$0xff]
        %v5074 = vld [vmem:[#allocation2 + $0x138] sm:$0xff]
        %v5075 = vld [vmem:[#allocation2 + $0x140] sm:$0xf]
        %v5076 = vld [vmem:[%s5] sm:$0xff]
        %v5077 = vld [vmem:[%s5 + $0x8] sm:$0xff]
        %v5078 = vld [vmem:[%s5 + $0x10] sm:$0xff]
        %v5079 = vld [vmem:[%s5 + $0x18] sm:$0xff]
        %v5081 = vsel %vm4978, %v5035, 0
        %v5084 = vsel %vm4978, %v5036, 0
        %v5087 = vsel %vm4978, %v5037, 0
        %v5090 = vsel %vm4978, %v5038, 0
        %v5093 = vsel %vm4978, %v5039, 0
        %v5096 = vsel %vm4978, %v5040, 0
        %v5099 = vsel %vm4978, %v5041, 0
        %v5102 = vsel %vm4978, %v5042, 0
        %v5105 = vsel %vm4978, %v5043, 0
        %v5108 = vsel %vm4978, %v5044, 0
        %v5111 = vsel %vm4978, %v5045, 0
        %v5114 = vsel %vm4978, %v5046, 0
        %v5117 = vsel %vm4978, %v5047, 0
        %v5120 = vsel %vm4978, %v5048, 0
        %v5123 = vsel %vm4978, %v5049, 0
        %v5126 = vsel %vm4978, %v5050, 0
        %v5129 = vsel %vm4978, %v5051, 0
        %v5132 = vsel %vm4978, %v5052, 0
        %v5135 = vsel %vm4978, %v5053, 0
        %v5138 = vsel %vm4978, %v5054, 0
        %v5141 = vsel %vm4978, %v5055, 0
        %v5144 = vsel %vm4978, %v5056, 0
        %v5147 = vsel %vm4978, %v5057, 0
        %v5150 = vsel %vm4978, %v5058, 0
        %v5153 = vsel %vm4978, %v5059, 0
        %v5156 = vsel %vm4978, %v5060, 0
        %v5159 = vsel %vm4978, %v5061, 0
        %v5162 = vsel %vm4978, %v5062, 0
        %v5165 = vsel %vm4978, %v5063, 0
        %v5168 = vsel %vm4978, %v5064, 0
        %v5171 = vsel %vm4978, %v5065, 0
        %v5174 = vsel %vm4978, %v5066, 0
        %v5177 = vsel %vm4978, %v5067, 0
        %v5180 = vsel %vm4978, %v5068, 0
        %v5183 = vsel %vm4978, %v5069, 0
        %v5186 = vsel %vm4978, %v5070, 0
        %v5189 = vsel %vm4978, %v5071, 0
        %v5192 = vsel %vm4978, %v5072, 0
        %v5195 = vsel %vm4978, %v5073, 0
        %v5198 = vsel %vm4978, %v5074, 0
        %v5201 = vsel %vm4978, %v5075, 0
        %5203 = vmatprep.subr.mxu0 0.0
        %5204 = vmatpush1.msra.mxu0 0.0
        %5205 = vmatprep.subr.mxu0 0.0
        %5206 = vmatpush1.msra.mxu0 0.0
        %5207 = vmatprep.subr.mxu0 0.0
        %5208 = vmatpush1.msra.mxu0 0.0
        %5209 = vmatprep.subr.mxu0 0.0
        %5210 = vmatpush1.msra.mxu0 0.0
        %5211 = vmatprep.subr.mxu0 0.0
        %5212 = vmatpush1.msra.mxu0 0.0
        %5213 = vmatprep.subr.mxu0 0.0
        %5214 = vmatpush1.msra.mxu0 0.0
        %5215 = vmatprep.subr.mxu0 0.0
        %5216 = vmatpush1.msra.mxu0 0.0
        %5217 = vmatprep.subr.mxu0 0.0
        %5218 = vmatpush1.msra.mxu0 0.0
        %5219 = vmatprep.subr.mxu0 0.0
        %5220 = vmatpush1.msra.mxu0 0.0
        %5221 = vmatprep.subr.mxu0 0.0
        %5222 = vmatpush1.msra.mxu0 0.0
        %5223 = vmatprep.subr.mxu0 0.0
        %5224 = vmatpush1.msra.mxu0 0.0
        %5225 = vmatprep.subr.mxu0 0.0
        %5226 = vmatpush1.msra.mxu0 0.0
        %5227 = vmatprep.subr.mxu0 0.0
        %5228 = vmatpush1.msra.mxu0 %v5079
        %5229 = vmatprep.subr.mxu0 0.0
        %5230 = vmatpush1.msra.mxu0 %v5078
        %5231 = vmatprep.subr.mxu0 0.0
        %5232 = vmatpush1.msra.mxu0 %v5077
        %5233 = vmatprep.subr.mxu0 0.0
        %5234 = vmatpush1.msra.mxu0 %v5076
        %5235 = vmatprep.subr.mxu0 0.0
        %5236 = vmatpush2.msra.mxu0 0.0
        %5237 = vmatprep.subr.mxu0 0.0
        %5238 = vmatpush2.msra.mxu0 0.0
        %5239 = vmatprep.subr.mxu0 0.0
        %5240 = vmatpush2.msra.mxu0 0.0
        %5241 = vmatprep.subr.mxu0 0.0
        %5242 = vmatpush2.msra.mxu0 0.0
        %5243 = vmatprep.subr.mxu0 0.0
        %5244 = vmatpush2.msra.mxu0 0.0
        %5245 = vmatprep.subr.mxu0 0.0
        %5246 = vmatpush2.msra.mxu0 0.0
        %5247 = vmatprep.subr.mxu0 0.0
        %5248 = vmatpush2.msra.mxu0 0.0
        %5249 = vmatprep.subr.mxu0 0.0
        %5250 = vmatpush2.msra.mxu0 0.0
        %5251 = vmatprep.subr.mxu0 0.0
        %5252 = vmatpush2.msra.mxu0 0.0
        %5253 = vmatprep.subr.mxu0 0.0
        %5254 = vmatpush2.msra.mxu0 0.0
        %5255 = vmatprep.subr.mxu0 0.0
        %5256 = vmatpush2.msra.mxu0 0.0
        %5257 = vmatprep.subr.mxu0 0.0
        %5258 = vmatpush2.msra.mxu0 0.0
        %5259 = vmatprep.subr.mxu0 0.0
        %5260 = vmatpush2.msra.mxu0 0.0
        %5261 = vmatprep.subr.mxu0 0.0
        %5262 = vmatpush2.msra.mxu0 0.0
        %5263 = vmatprep.subr.mxu0 0.0
        %5264 = vmatpush2.msra.mxu0 0.0
        %5265 = vmatprep.subr.mxu0 0.0
        %5266 = vmatpush2.msra.mxu0 0.0
        %5267 = vmatprep.mubr.f32.mxu0 0.0
        %5268 = vmatmul.mubr.f32.gmra.mxu0 %v5081
        %v5269 = vpop.f32.mrf.mxu0
        %v5270 = vadd.f32 0.0, %v5269
        %v5271 = vpop.f32.mrf.mxu0
        %5272 = vmatprep.mubr.f32.mxu0 0.0
        %5273 = vmatmul.mubr.f32.gmra.mxu0 %v5084
        %v5274 = vpop.f32.mrf.mxu0
        %v5275 = vadd.f32 0.0, %v5274
        %v5276 = vpop.f32.mrf.mxu0
        %5277 = vmatprep.mubr.f32.mxu0 0.0
        %5278 = vmatmul.mubr.f32.gmra.mxu0 %v5087
        %v5279 = vpop.f32.mrf.mxu0
        %v5280 = vadd.f32 0.0, %v5279
        %v5281 = vpop.f32.mrf.mxu0
        %5282 = vmatprep.mubr.f32.mxu0 0.0
        %5283 = vmatmul.mubr.f32.gmra.mxu0 %v5090
        %v5284 = vpop.f32.mrf.mxu0
        %v5285 = vadd.f32 0.0, %v5284
        %v5286 = vpop.f32.mrf.mxu0
        %5287 = vmatprep.mubr.f32.mxu0 0.0
        %5288 = vmatmul.mubr.f32.gmra.mxu0 %v5093
        %v5289 = vpop.f32.mrf.mxu0
        %v5290 = vadd.f32 0.0, %v5289
        %v5291 = vpop.f32.mrf.mxu0
        %5292 = vmatprep.mubr.f32.mxu0 0.0
        %5293 = vmatmul.mubr.f32.gmra.mxu0 %v5096
        %v5294 = vpop.f32.mrf.mxu0
        %v5295 = vadd.f32 0.0, %v5294
        %v5296 = vpop.f32.mrf.mxu0
        %5297 = vmatprep.mubr.f32.mxu0 0.0
        %5298 = vmatmul.mubr.f32.gmra.mxu0 %v5099
        %v5299 = vpop.f32.mrf.mxu0
        %v5300 = vadd.f32 0.0, %v5299
        %v5301 = vpop.f32.mrf.mxu0
        %5302 = vmatprep.mubr.f32.mxu0 0.0
        %5303 = vmatmul.mubr.f32.gmra.mxu0 %v5102
        %v5304 = vpop.f32.mrf.mxu0
        %v5305 = vadd.f32 0.0, %v5304
        %v5306 = vpop.f32.mrf.mxu0
        %5307 = vmatprep.mubr.f32.mxu0 0.0
        %5308 = vmatmul.mubr.f32.gmra.mxu0 %v5105
        %v5309 = vpop.f32.mrf.mxu0
        %v5310 = vadd.f32 0.0, %v5309
        %v5311 = vpop.f32.mrf.mxu0
        %5312 = vmatprep.mubr.f32.mxu0 0.0
        %5313 = vmatmul.mubr.f32.gmra.mxu0 %v5108
        %v5314 = vpop.f32.mrf.mxu0
        %v5315 = vadd.f32 0.0, %v5314
        %v5316 = vpop.f32.mrf.mxu0
        %5317 = vmatprep.mubr.f32.mxu0 0.0
        %5318 = vmatmul.mubr.f32.gmra.mxu0 %v5111
        %v5319 = vpop.f32.mrf.mxu0
        %v5320 = vadd.f32 0.0, %v5319
        %v5321 = vpop.f32.mrf.mxu0
        %5322 = vmatprep.mubr.f32.mxu0 0.0
        %5323 = vmatmul.mubr.f32.gmra.mxu0 %v5114
        %v5324 = vpop.f32.mrf.mxu0
        %v5325 = vadd.f32 0.0, %v5324
        %v5326 = vpop.f32.mrf.mxu0
        %5327 = vmatprep.mubr.f32.mxu0 0.0
        %5328 = vmatmul.mubr.f32.gmra.mxu0 %v5117
        %v5329 = vpop.f32.mrf.mxu0
        %v5330 = vadd.f32 0.0, %v5329
        %v5331 = vpop.f32.mrf.mxu0
        %5332 = vmatprep.mubr.f32.mxu0 0.0
        %5333 = vmatmul.mubr.f32.gmra.mxu0 %v5120
        %v5334 = vpop.f32.mrf.mxu0
        %v5335 = vadd.f32 0.0, %v5334
        %v5336 = vpop.f32.mrf.mxu0
        %5337 = vmatprep.mubr.f32.mxu0 0.0
        %5338 = vmatmul.mubr.f32.gmra.mxu0 %v5123
        %v5339 = vpop.f32.mrf.mxu0
        %v5340 = vadd.f32 0.0, %v5339
        %v5341 = vpop.f32.mrf.mxu0
        %5342 = vmatprep.mubr.f32.mxu0 0.0
        %5343 = vmatmul.mubr.f32.gmra.mxu0 %v5126
        %v5344 = vpop.f32.mrf.mxu0
        %v5345 = vadd.f32 0.0, %v5344
        %v5346 = vpop.f32.mrf.mxu0
        %5347 = vmatprep.mubr.f32.mxu0 0.0
        %5348 = vmatmul.mubr.f32.gmra.mxu0 %v5129
        %v5349 = vpop.f32.mrf.mxu0
        %v5350 = vadd.f32 0.0, %v5349
        %v5351 = vpop.f32.mrf.mxu0
        %5352 = vmatprep.mubr.f32.mxu0 0.0
        %5353 = vmatmul.mubr.f32.gmra.mxu0 %v5132
        %v5354 = vpop.f32.mrf.mxu0
        %v5355 = vadd.f32 0.0, %v5354
        %v5356 = vpop.f32.mrf.mxu0
        %5357 = vmatprep.mubr.f32.mxu0 0.0
        %5358 = vmatmul.mubr.f32.gmra.mxu0 %v5135
        %v5359 = vpop.f32.mrf.mxu0
        %v5360 = vadd.f32 0.0, %v5359
        %v5361 = vpop.f32.mrf.mxu0
        %5362 = vmatprep.mubr.f32.mxu0 0.0
        %5363 = vmatmul.mubr.f32.gmra.mxu0 %v5138
        %v5364 = vpop.f32.mrf.mxu0
        %v5365 = vadd.f32 0.0, %v5364
        %v5366 = vpop.f32.mrf.mxu0
        %5367 = vmatprep.mubr.f32.mxu0 0.0
        %5368 = vmatmul.mubr.f32.gmra.mxu0 %v5141
        %v5369 = vpop.f32.mrf.mxu0
        %v5370 = vadd.f32 0.0, %v5369
        %v5371 = vpop.f32.mrf.mxu0
        %5372 = vmatprep.mubr.f32.mxu0 0.0
        %5373 = vmatmul.mubr.f32.gmra.mxu0 %v5144
        %v5374 = vpop.f32.mrf.mxu0
        %v5375 = vadd.f32 0.0, %v5374
        %v5376 = vpop.f32.mrf.mxu0
        %5377 = vmatprep.mubr.f32.mxu0 0.0
        %5378 = vmatmul.mubr.f32.gmra.mxu0 %v5147
        %v5379 = vpop.f32.mrf.mxu0
        %v5380 = vadd.f32 0.0, %v5379
        %v5381 = vpop.f32.mrf.mxu0
        %5382 = vmatprep.mubr.f32.mxu0 0.0
        %5383 = vmatmul.mubr.f32.gmra.mxu0 %v5150
        %v5384 = vpop.f32.mrf.mxu0
        %v5385 = vadd.f32 0.0, %v5384
        %v5386 = vpop.f32.mrf.mxu0
        %5387 = vmatprep.mubr.f32.mxu0 0.0
        %5388 = vmatmul.mubr.f32.gmra.mxu0 %v5153
        %v5389 = vpop.f32.mrf.mxu0
        %v5390 = vadd.f32 0.0, %v5389
        %v5391 = vpop.f32.mrf.mxu0
        %5392 = vmatprep.mubr.f32.mxu0 0.0
        %5393 = vmatmul.mubr.f32.gmra.mxu0 %v5156
        %v5394 = vpop.f32.mrf.mxu0
        %v5395 = vadd.f32 0.0, %v5394
        %v5396 = vpop.f32.mrf.mxu0
        %5397 = vmatprep.mubr.f32.mxu0 0.0
        %5398 = vmatmul.mubr.f32.gmra.mxu0 %v5159
        %v5399 = vpop.f32.mrf.mxu0
        %v5400 = vadd.f32 0.0, %v5399
        %v5401 = vpop.f32.mrf.mxu0
        %5402 = vmatprep.mubr.f32.mxu0 0.0
        %5403 = vmatmul.mubr.f32.gmra.mxu0 %v5162
        %v5404 = vpop.f32.mrf.mxu0
        %v5405 = vadd.f32 0.0, %v5404
        %v5406 = vpop.f32.mrf.mxu0
        %5407 = vmatprep.mubr.f32.mxu0 0.0
        %5408 = vmatmul.mubr.f32.gmra.mxu0 %v5165
        %v5409 = vpop.f32.mrf.mxu0
        %v5410 = vadd.f32 0.0, %v5409
        %v5411 = vpop.f32.mrf.mxu0
        %5412 = vmatprep.mubr.f32.mxu0 0.0
        %5413 = vmatmul.mubr.f32.gmra.mxu0 %v5168
        %v5414 = vpop.f32.mrf.mxu0
        %v5415 = vadd.f32 0.0, %v5414
        %v5416 = vpop.f32.mrf.mxu0
        %5417 = vmatprep.mubr.f32.mxu0 0.0
        %5418 = vmatmul.mubr.f32.gmra.mxu0 %v5171
        %v5419 = vpop.f32.mrf.mxu0
        %v5420 = vadd.f32 0.0, %v5419
        %v5421 = vpop.f32.mrf.mxu0
        %5422 = vmatprep.mubr.f32.mxu0 0.0
        %5423 = vmatmul.mubr.f32.gmra.mxu0 %v5174
        %v5424 = vpop.f32.mrf.mxu0
        %v5425 = vadd.f32 0.0, %v5424
        %v5426 = vpop.f32.mrf.mxu0
        %5427 = vmatprep.mubr.f32.mxu0 0.0
        %5428 = vmatmul.mubr.f32.gmra.mxu0 %v5177
        %v5429 = vpop.f32.mrf.mxu0
        %v5430 = vadd.f32 0.0, %v5429
        %v5431 = vpop.f32.mrf.mxu0
        %5432 = vmatprep.mubr.f32.mxu0 0.0
        %5433 = vmatmul.mubr.f32.gmra.mxu0 %v5180
        %v5434 = vpop.f32.mrf.mxu0
        %v5435 = vadd.f32 0.0, %v5434
        %v5436 = vpop.f32.mrf.mxu0
        %5437 = vmatprep.mubr.f32.mxu0 0.0
        %5438 = vmatmul.mubr.f32.gmra.mxu0 %v5183
        %v5439 = vpop.f32.mrf.mxu0
        %v5440 = vadd.f32 0.0, %v5439
        %v5441 = vpop.f32.mrf.mxu0
        %5442 = vmatprep.mubr.f32.mxu0 0.0
        %5443 = vmatmul.mubr.f32.gmra.mxu0 %v5186
        %v5444 = vpop.f32.mrf.mxu0
        %v5445 = vadd.f32 0.0, %v5444
        %v5446 = vpop.f32.mrf.mxu0
        %5447 = vmatprep.mubr.f32.mxu0 0.0
        %5448 = vmatmul.mubr.f32.gmra.mxu0 %v5189
        %v5449 = vpop.f32.mrf.mxu0
        %v5450 = vadd.f32 0.0, %v5449
        %v5451 = vpop.f32.mrf.mxu0
        %5452 = vmatprep.mubr.f32.mxu0 0.0
        %5453 = vmatmul.mubr.f32.gmra.mxu0 %v5192
        %v5454 = vpop.f32.mrf.mxu0
        %v5455 = vadd.f32 0.0, %v5454
        %v5456 = vpop.f32.mrf.mxu0
        %5457 = vmatprep.mubr.f32.mxu0 0.0
        %5458 = vmatmul.mubr.f32.gmra.mxu0 %v5195
        %v5459 = vpop.f32.mrf.mxu0
        %v5460 = vadd.f32 0.0, %v5459
        %v5461 = vpop.f32.mrf.mxu0
        %5462 = vmatprep.mubr.f32.mxu0 0.0
        %5463 = vmatmul.mubr.f32.gmra.mxu0 %v5198
        %v5464 = vpop.f32.mrf.mxu0
        %v5465 = vadd.f32 0.0, %v5464
        %v5466 = vpop.f32.mrf.mxu0
        %5467 = vmatprep.mubr.f32.mxu0 0.0
        %5468 = vmatmul.mubr.f32.gmra.mxu0 %v5201
        %v5469 = vpop.f32.mrf.mxu0
        %v5470 = vadd.f32 0.0, %v5469
        %v5471 = vpop.f32.mrf.mxu0
        %5472 = vdwg.mxu0
        %v5473 = vadd.f32 %v5033, %v5270
        %v5474 = vadd.f32 %v5033, %v5275
        %v5475 = vadd.f32 %v5033, %v5280
        %v5476 = vadd.f32 %v5033, %v5285
        %v5477 = vadd.f32 %v5033, %v5290
        %v5478 = vadd.f32 %v5033, %v5295
        %v5479 = vadd.f32 %v5033, %v5300
        %v5480 = vadd.f32 %v5033, %v5305
        %v5481 = vadd.f32 %v5033, %v5310
        %v5482 = vadd.f32 %v5033, %v5315
        %v5483 = vadd.f32 %v5033, %v5320
        %v5484 = vadd.f32 %v5033, %v5325
        %v5485 = vadd.f32 %v5033, %v5330
        %v5486 = vadd.f32 %v5033, %v5335
        %v5487 = vadd.f32 %v5033, %v5340
        %v5488 = vadd.f32 %v5033, %v5345
        %v5489 = vadd.f32 %v5033, %v5350
        %v5490 = vadd.f32 %v5033, %v5355
        %v5491 = vadd.f32 %v5033, %v5360
        %v5492 = vadd.f32 %v5033, %v5365
        %v5493 = vadd.f32 %v5033, %v5370
        %v5494 = vadd.f32 %v5033, %v5375
        %v5495 = vadd.f32 %v5033, %v5380
        %v5496 = vadd.f32 %v5033, %v5385
        %v5497 = vadd.f32 %v5033, %v5390
        %v5498 = vadd.f32 %v5033, %v5395
        %v5499 = vadd.f32 %v5033, %v5400
        %v5500 = vadd.f32 %v5033, %v5405
        %v5501 = vadd.f32 %v5033, %v5410
        %v5502 = vadd.f32 %v5033, %v5415
        %v5503 = vadd.f32 %v5033, %v5420
        %v5504 = vadd.f32 %v5033, %v5425
        %v5505 = vadd.f32 %v5033, %v5430
        %v5506 = vadd.f32 %v5033, %v5435
        %v5507 = vadd.f32 %v5033, %v5440
        %v5508 = vadd.f32 %v5033, %v5445
        %v5509 = vadd.f32 %v5033, %v5450
        %v5510 = vadd.f32 %v5033, %v5455
        %v5511 = vadd.f32 %v5033, %v5460
        %v5512 = vadd.f32 %v5033, %v5465
        %v5513 = vadd.f32 %v5033, %v5470
        %v5514 = vld [vmem:[#allocation2 + $0x1] sm:$0xff]
        %v5515 = vld [vmem:[#allocation2 + $0x9] sm:$0xff]
        %v5516 = vld [vmem:[#allocation2 + $0x11] sm:$0xff]
        %v5517 = vld [vmem:[#allocation2 + $0x19] sm:$0xff]
        %v5518 = vld [vmem:[#allocation2 + $0x21] sm:$0xff]
        %v5519 = vld [vmem:[#allocation2 + $0x29] sm:$0xff]
        %v5520 = vld [vmem:[#allocation2 + $0x31] sm:$0xff]
        %v5521 = vld [vmem:[#allocation2 + $0x39] sm:$0xff]
        %v5522 = vld [vmem:[#allocation2 + $0x41] sm:$0xff]
        %v5523 = vld [vmem:[#allocation2 + $0x49] sm:$0xff]
        %v5524 = vld [vmem:[#allocation2 + $0x51] sm:$0xff]
        %v5525 = vld [vmem:[#allocation2 + $0x59] sm:$0xff]
        %v5526 = vld [vmem:[#allocation2 + $0x61] sm:$0xff]
        %v5527 = vld [vmem:[#allocation2 + $0x69] sm:$0xff]
        %v5528 = vld [vmem:[#allocation2 + $0x71] sm:$0xff]
        %v5529 = vld [vmem:[#allocation2 + $0x79] sm:$0xff]
        %v5530 = vld [vmem:[#allocation2 + $0x81] sm:$0xff]
        %v5531 = vld [vmem:[#allocation2 + $0x89] sm:$0xff]
        %v5532 = vld [vmem:[#allocation2 + $0x91] sm:$0xff]
        %v5533 = vld [vmem:[#allocation2 + $0x99] sm:$0xff]
        %v5534 = vld [vmem:[#allocation2 + $0xa1] sm:$0xff]
        %v5535 = vld [vmem:[#allocation2 + $0xa9] sm:$0xff]
        %v5536 = vld [vmem:[#allocation2 + $0xb1] sm:$0xff]
        %v5537 = vld [vmem:[#allocation2 + $0xb9] sm:$0xff]
        %v5538 = vld [vmem:[#allocation2 + $0xc1] sm:$0xff]
        %v5539 = vld [vmem:[#allocation2 + $0xc9] sm:$0xff]
        %v5540 = vld [vmem:[#allocation2 + $0xd1] sm:$0xff]
        %v5541 = vld [vmem:[#allocation2 + $0xd9] sm:$0xff]
        %v5542 = vld [vmem:[#allocation2 + $0xe1] sm:$0xff]
        %v5543 = vld [vmem:[#allocation2 + $0xe9] sm:$0xff]
        %v5544 = vld [vmem:[#allocation2 + $0xf1] sm:$0xff]
        %v5545 = vld [vmem:[#allocation2 + $0xf9] sm:$0xff]
        %v5546 = vld [vmem:[#allocation2 + $0x101] sm:$0xff]
        %v5547 = vld [vmem:[#allocation2 + $0x109] sm:$0xff]
        %v5548 = vld [vmem:[#allocation2 + $0x111] sm:$0xff]
        %v5549 = vld [vmem:[#allocation2 + $0x119] sm:$0xff]
        %v5550 = vld [vmem:[#allocation2 + $0x121] sm:$0xff]
        %v5551 = vld [vmem:[#allocation2 + $0x129] sm:$0xff]
        %v5552 = vld [vmem:[#allocation2 + $0x131] sm:$0xff]
        %v5553 = vld [vmem:[#allocation2 + $0x139] sm:$0xff]
        %v5554 = vld [vmem:[#allocation2 + $0x141] sm:$0xf]
        %v5555 = vld [vmem:[%s5 + $0x20] sm:$0xff]
        %v5556 = vld [vmem:[%s5 + $0x28] sm:$0xff]
        %v5557 = vld [vmem:[%s5 + $0x30] sm:$0xff]
        %v5558 = vld [vmem:[%s5 + $0x38] sm:$0xff]
        %v5560 = vsel %vm4978, %v5514, 0
        %v5563 = vsel %vm4978, %v5515, 0
        %v5566 = vsel %vm4978, %v5516, 0
        %v5569 = vsel %vm4978, %v5517, 0
        %v5572 = vsel %vm4978, %v5518, 0
        %v5575 = vsel %vm4978, %v5519, 0
        %v5578 = vsel %vm4978, %v5520, 0
        %v5581 = vsel %vm4978, %v5521, 0
        %v5584 = vsel %vm4978, %v5522, 0
        %v5587 = vsel %vm4978, %v5523, 0
        %v5590 = vsel %vm4978, %v5524, 0
        %v5593 = vsel %vm4978, %v5525, 0
        %v5596 = vsel %vm4978, %v5526, 0
        %v5599 = vsel %vm4978, %v5527, 0
        %v5602 = vsel %vm4978, %v5528, 0
        %v5605 = vsel %vm4978, %v5529, 0
        %v5608 = vsel %vm4978, %v5530, 0
        %v5611 = vsel %vm4978, %v5531, 0
        %v5614 = vsel %vm4978, %v5532, 0
        %v5617 = vsel %vm4978, %v5533, 0
        %v5620 = vsel %vm4978, %v5534, 0
        %v5623 = vsel %vm4978, %v5535, 0
        %v5626 = vsel %vm4978, %v5536, 0
        %v5629 = vsel %vm4978, %v5537, 0
        %v5632 = vsel %vm4978, %v5538, 0
        %v5635 = vsel %vm4978, %v5539, 0
        %v5638 = vsel %vm4978, %v5540, 0
        %v5641 = vsel %vm4978, %v5541, 0
        %v5644 = vsel %vm4978, %v5542, 0
        %v5647 = vsel %vm4978, %v5543, 0
        %v5650 = vsel %vm4978, %v5544, 0
        %v5653 = vsel %vm4978, %v5545, 0
        %v5656 = vsel %vm4978, %v5546, 0
        %v5659 = vsel %vm4978, %v5547, 0
        %v5662 = vsel %vm4978, %v5548, 0
        %v5665 = vsel %vm4978, %v5549, 0
        %v5668 = vsel %vm4978, %v5550, 0
        %v5671 = vsel %vm4978, %v5551, 0
        %v5674 = vsel %vm4978, %v5552, 0
        %v5677 = vsel %vm4978, %v5553, 0
        %v5680 = vsel %vm4978, %v5554, 0
        %5682 = vmatprep.subr.mxu0 0.0
        %5683 = vmatpush1.msra.mxu0 0.0
        %5684 = vmatprep.subr.mxu0 0.0
        %5685 = vmatpush1.msra.mxu0 0.0
        %5686 = vmatprep.subr.mxu0 0.0
        %5687 = vmatpush1.msra.mxu0 0.0
        %5688 = vmatprep.subr.mxu0 0.0
        %5689 = vmatpush1.msra.mxu0 0.0
        %5690 = vmatprep.subr.mxu0 0.0
        %5691 = vmatpush1.msra.mxu0 0.0
        %5692 = vmatprep.subr.mxu0 0.0
        %5693 = vmatpush1.msra.mxu0 0.0
        %5694 = vmatprep.subr.mxu0 0.0
        %5695 = vmatpush1.msra.mxu0 0.0
        %5696 = vmatprep.subr.mxu0 0.0
        %5697 = vmatpush1.msra.mxu0 0.0
        %5698 = vmatprep.subr.mxu0 0.0
        %5699 = vmatpush1.msra.mxu0 0.0
        %5700 = vmatprep.subr.mxu0 0.0
        %5701 = vmatpush1.msra.mxu0 0.0
        %5702 = vmatprep.subr.mxu0 0.0
        %5703 = vmatpush1.msra.mxu0 0.0
        %5704 = vmatprep.subr.mxu0 0.0
        %5705 = vmatpush1.msra.mxu0 0.0
        %5706 = vmatprep.subr.mxu0 0.0
        %5707 = vmatpush1.msra.mxu0 %v5558
        %5708 = vmatprep.subr.mxu0 0.0
        %5709 = vmatpush1.msra.mxu0 %v5557
        %5710 = vmatprep.subr.mxu0 0.0
        %5711 = vmatpush1.msra.mxu0 %v5556
        %5712 = vmatprep.subr.mxu0 0.0
        %5713 = vmatpush1.msra.mxu0 %v5555
        %5714 = vmatprep.subr.mxu0 0.0
        %5715 = vmatpush2.msra.mxu0 0.0
        %5716 = vmatprep.subr.mxu0 0.0
        %5717 = vmatpush2.msra.mxu0 0.0
        %5718 = vmatprep.subr.mxu0 0.0
        %5719 = vmatpush2.msra.mxu0 0.0
        %5720 = vmatprep.subr.mxu0 0.0
        %5721 = vmatpush2.msra.mxu0 0.0
        %5722 = vmatprep.subr.mxu0 0.0
        %5723 = vmatpush2.msra.mxu0 0.0
        %5724 = vmatprep.subr.mxu0 0.0
        %5725 = vmatpush2.msra.mxu0 0.0
        %5726 = vmatprep.subr.mxu0 0.0
        %5727 = vmatpush2.msra.mxu0 0.0
        %5728 = vmatprep.subr.mxu0 0.0
        %5729 = vmatpush2.msra.mxu0 0.0
        %5730 = vmatprep.subr.mxu0 0.0
        %5731 = vmatpush2.msra.mxu0 0.0
        %5732 = vmatprep.subr.mxu0 0.0
        %5733 = vmatpush2.msra.mxu0 0.0
        %5734 = vmatprep.subr.mxu0 0.0
        %5735 = vmatpush2.msra.mxu0 0.0
        %5736 = vmatprep.subr.mxu0 0.0
        %5737 = vmatpush2.msra.mxu0 0.0
        %5738 = vmatprep.subr.mxu0 0.0
        %5739 = vmatpush2.msra.mxu0 0.0
        %5740 = vmatprep.subr.mxu0 0.0
        %5741 = vmatpush2.msra.mxu0 0.0
        %5742 = vmatprep.subr.mxu0 0.0
        %5743 = vmatpush2.msra.mxu0 0.0
        %5744 = vmatprep.subr.mxu0 0.0
        %5745 = vmatpush2.msra.mxu0 0.0
        %5746 = vmatprep.mubr.f32.mxu0 0.0
        %5747 = vmatmul.mubr.f32.gmra.mxu0 %v5560
        %v5748 = vpop.f32.mrf.mxu0
        %v5749 = vadd.f32 0.0, %v5748
        %v5750 = vpop.f32.mrf.mxu0
        %5751 = vmatprep.mubr.f32.mxu0 0.0
        %5752 = vmatmul.mubr.f32.gmra.mxu0 %v5563
        %v5753 = vpop.f32.mrf.mxu0
        %v5754 = vadd.f32 0.0, %v5753
        %v5755 = vpop.f32.mrf.mxu0
        %5756 = vmatprep.mubr.f32.mxu0 0.0
        %5757 = vmatmul.mubr.f32.gmra.mxu0 %v5566
        %v5758 = vpop.f32.mrf.mxu0
        %v5759 = vadd.f32 0.0, %v5758
        %v5760 = vpop.f32.mrf.mxu0
        %5761 = vmatprep.mubr.f32.mxu0 0.0
        %5762 = vmatmul.mubr.f32.gmra.mxu0 %v5569
        %v5763 = vpop.f32.mrf.mxu0
        %v5764 = vadd.f32 0.0, %v5763
        %v5765 = vpop.f32.mrf.mxu0
        %5766 = vmatprep.mubr.f32.mxu0 0.0
        %5767 = vmatmul.mubr.f32.gmra.mxu0 %v5572
        %v5768 = vpop.f32.mrf.mxu0
        %v5769 = vadd.f32 0.0, %v5768
        %v5770 = vpop.f32.mrf.mxu0
        %5771 = vmatprep.mubr.f32.mxu0 0.0
        %5772 = vmatmul.mubr.f32.gmra.mxu0 %v5575
        %v5773 = vpop.f32.mrf.mxu0
        %v5774 = vadd.f32 0.0, %v5773
        %v5775 = vpop.f32.mrf.mxu0
        %5776 = vmatprep.mubr.f32.mxu0 0.0
        %5777 = vmatmul.mubr.f32.gmra.mxu0 %v5578
        %v5778 = vpop.f32.mrf.mxu0
        %v5779 = vadd.f32 0.0, %v5778
        %v5780 = vpop.f32.mrf.mxu0
        %5781 = vmatprep.mubr.f32.mxu0 0.0
        %5782 = vmatmul.mubr.f32.gmra.mxu0 %v5581
        %v5783 = vpop.f32.mrf.mxu0
        %v5784 = vadd.f32 0.0, %v5783
        %v5785 = vpop.f32.mrf.mxu0
        %5786 = vmatprep.mubr.f32.mxu0 0.0
        %5787 = vmatmul.mubr.f32.gmra.mxu0 %v5584
        %v5788 = vpop.f32.mrf.mxu0
        %v5789 = vadd.f32 0.0, %v5788
        %v5790 = vpop.f32.mrf.mxu0
        %5791 = vmatprep.mubr.f32.mxu0 0.0
        %5792 = vmatmul.mubr.f32.gmra.mxu0 %v5587
        %v5793 = vpop.f32.mrf.mxu0
        %v5794 = vadd.f32 0.0, %v5793
        %v5795 = vpop.f32.mrf.mxu0
        %5796 = vmatprep.mubr.f32.mxu0 0.0
        %5797 = vmatmul.mubr.f32.gmra.mxu0 %v5590
        %v5798 = vpop.f32.mrf.mxu0
        %v5799 = vadd.f32 0.0, %v5798
        %v5800 = vpop.f32.mrf.mxu0
        %5801 = vmatprep.mubr.f32.mxu0 0.0
        %5802 = vmatmul.mubr.f32.gmra.mxu0 %v5593
        %v5803 = vpop.f32.mrf.mxu0
        %v5804 = vadd.f32 0.0, %v5803
        %v5805 = vpop.f32.mrf.mxu0
        %5806 = vmatprep.mubr.f32.mxu0 0.0
        %5807 = vmatmul.mubr.f32.gmra.mxu0 %v5596
        %v5808 = vpop.f32.mrf.mxu0
        %v5809 = vadd.f32 0.0, %v5808
        %v5810 = vpop.f32.mrf.mxu0
        %5811 = vmatprep.mubr.f32.mxu0 0.0
        %5812 = vmatmul.mubr.f32.gmra.mxu0 %v5599
        %v5813 = vpop.f32.mrf.mxu0
        %v5814 = vadd.f32 0.0, %v5813
        %v5815 = vpop.f32.mrf.mxu0
        %5816 = vmatprep.mubr.f32.mxu0 0.0
        %5817 = vmatmul.mubr.f32.gmra.mxu0 %v5602
        %v5818 = vpop.f32.mrf.mxu0
        %v5819 = vadd.f32 0.0, %v5818
        %v5820 = vpop.f32.mrf.mxu0
        %5821 = vmatprep.mubr.f32.mxu0 0.0
        %5822 = vmatmul.mubr.f32.gmra.mxu0 %v5605
        %v5823 = vpop.f32.mrf.mxu0
        %v5824 = vadd.f32 0.0, %v5823
        %v5825 = vpop.f32.mrf.mxu0
        %5826 = vmatprep.mubr.f32.mxu0 0.0
        %5827 = vmatmul.mubr.f32.gmra.mxu0 %v5608
        %v5828 = vpop.f32.mrf.mxu0
        %v5829 = vadd.f32 0.0, %v5828
        %v5830 = vpop.f32.mrf.mxu0
        %5831 = vmatprep.mubr.f32.mxu0 0.0
        %5832 = vmatmul.mubr.f32.gmra.mxu0 %v5611
        %v5833 = vpop.f32.mrf.mxu0
        %v5834 = vadd.f32 0.0, %v5833
        %v5835 = vpop.f32.mrf.mxu0
        %5836 = vmatprep.mubr.f32.mxu0 0.0
        %5837 = vmatmul.mubr.f32.gmra.mxu0 %v5614
        %v5838 = vpop.f32.mrf.mxu0
        %v5839 = vadd.f32 0.0, %v5838
        %v5840 = vpop.f32.mrf.mxu0
        %5841 = vmatprep.mubr.f32.mxu0 0.0
        %5842 = vmatmul.mubr.f32.gmra.mxu0 %v5617
        %v5843 = vpop.f32.mrf.mxu0
        %v5844 = vadd.f32 0.0, %v5843
        %v5845 = vpop.f32.mrf.mxu0
        %5846 = vmatprep.mubr.f32.mxu0 0.0
        %5847 = vmatmul.mubr.f32.gmra.mxu0 %v5620
        %v5848 = vpop.f32.mrf.mxu0
        %v5849 = vadd.f32 0.0, %v5848
        %v5850 = vpop.f32.mrf.mxu0
        %5851 = vmatprep.mubr.f32.mxu0 0.0
        %5852 = vmatmul.mubr.f32.gmra.mxu0 %v5623
        %v5853 = vpop.f32.mrf.mxu0
        %v5854 = vadd.f32 0.0, %v5853
        %v5855 = vpop.f32.mrf.mxu0
        %5856 = vmatprep.mubr.f32.mxu0 0.0
        %5857 = vmatmul.mubr.f32.gmra.mxu0 %v5626
        %v5858 = vpop.f32.mrf.mxu0
        %v5859 = vadd.f32 0.0, %v5858
        %v5860 = vpop.f32.mrf.mxu0
        %5861 = vmatprep.mubr.f32.mxu0 0.0
        %5862 = vmatmul.mubr.f32.gmra.mxu0 %v5629
        %v5863 = vpop.f32.mrf.mxu0
        %v5864 = vadd.f32 0.0, %v5863
        %v5865 = vpop.f32.mrf.mxu0
        %5866 = vmatprep.mubr.f32.mxu0 0.0
        %5867 = vmatmul.mubr.f32.gmra.mxu0 %v5632
        %v5868 = vpop.f32.mrf.mxu0
        %v5869 = vadd.f32 0.0, %v5868
        %v5870 = vpop.f32.mrf.mxu0
        %5871 = vmatprep.mubr.f32.mxu0 0.0
        %5872 = vmatmul.mubr.f32.gmra.mxu0 %v5635
        %v5873 = vpop.f32.mrf.mxu0
        %v5874 = vadd.f32 0.0, %v5873
        %v5875 = vpop.f32.mrf.mxu0
        %5876 = vmatprep.mubr.f32.mxu0 0.0
        %5877 = vmatmul.mubr.f32.gmra.mxu0 %v5638
        %v5878 = vpop.f32.mrf.mxu0
        %v5879 = vadd.f32 0.0, %v5878
        %v5880 = vpop.f32.mrf.mxu0
        %5881 = vmatprep.mubr.f32.mxu0 0.0
        %5882 = vmatmul.mubr.f32.gmra.mxu0 %v5641
        %v5883 = vpop.f32.mrf.mxu0
        %v5884 = vadd.f32 0.0, %v5883
        %v5885 = vpop.f32.mrf.mxu0
        %5886 = vmatprep.mubr.f32.mxu0 0.0
        %5887 = vmatmul.mubr.f32.gmra.mxu0 %v5644
        %v5888 = vpop.f32.mrf.mxu0
        %v5889 = vadd.f32 0.0, %v5888
        %v5890 = vpop.f32.mrf.mxu0
        %5891 = vmatprep.mubr.f32.mxu0 0.0
        %5892 = vmatmul.mubr.f32.gmra.mxu0 %v5647
        %v5893 = vpop.f32.mrf.mxu0
        %v5894 = vadd.f32 0.0, %v5893
        %v5895 = vpop.f32.mrf.mxu0
        %5896 = vmatprep.mubr.f32.mxu0 0.0
        %5897 = vmatmul.mubr.f32.gmra.mxu0 %v5650
        %v5898 = vpop.f32.mrf.mxu0
        %v5899 = vadd.f32 0.0, %v5898
        %v5900 = vpop.f32.mrf.mxu0
        %5901 = vmatprep.mubr.f32.mxu0 0.0
        %5902 = vmatmul.mubr.f32.gmra.mxu0 %v5653
        %v5903 = vpop.f32.mrf.mxu0
        %v5904 = vadd.f32 0.0, %v5903
        %v5905 = vpop.f32.mrf.mxu0
        %5906 = vmatprep.mubr.f32.mxu0 0.0
        %5907 = vmatmul.mubr.f32.gmra.mxu0 %v5656
        %v5908 = vpop.f32.mrf.mxu0
        %v5909 = vadd.f32 0.0, %v5908
        %v5910 = vpop.f32.mrf.mxu0
        %5911 = vmatprep.mubr.f32.mxu0 0.0
        %5912 = vmatmul.mubr.f32.gmra.mxu0 %v5659
        %v5913 = vpop.f32.mrf.mxu0
        %v5914 = vadd.f32 0.0, %v5913
        %v5915 = vpop.f32.mrf.mxu0
        %5916 = vmatprep.mubr.f32.mxu0 0.0
        %5917 = vmatmul.mubr.f32.gmra.mxu0 %v5662
        %v5918 = vpop.f32.mrf.mxu0
        %v5919 = vadd.f32 0.0, %v5918
        %v5920 = vpop.f32.mrf.mxu0
        %5921 = vmatprep.mubr.f32.mxu0 0.0
        %5922 = vmatmul.mubr.f32.gmra.mxu0 %v5665
        %v5923 = vpop.f32.mrf.mxu0
        %v5924 = vadd.f32 0.0, %v5923
        %v5925 = vpop.f32.mrf.mxu0
        %5926 = vmatprep.mubr.f32.mxu0 0.0
        %5927 = vmatmul.mubr.f32.gmra.mxu0 %v5668
        %v5928 = vpop.f32.mrf.mxu0
        %v5929 = vadd.f32 0.0, %v5928
        %v5930 = vpop.f32.mrf.mxu0
        %5931 = vmatprep.mubr.f32.mxu0 0.0
        %5932 = vmatmul.mubr.f32.gmra.mxu0 %v5671
        %v5933 = vpop.f32.mrf.mxu0
        %v5934 = vadd.f32 0.0, %v5933
        %v5935 = vpop.f32.mrf.mxu0
        %5936 = vmatprep.mubr.f32.mxu0 0.0
        %5937 = vmatmul.mubr.f32.gmra.mxu0 %v5674
        %v5938 = vpop.f32.mrf.mxu0
        %v5939 = vadd.f32 0.0, %v5938
        %v5940 = vpop.f32.mrf.mxu0
        %5941 = vmatprep.mubr.f32.mxu0 0.0
        %5942 = vmatmul.mubr.f32.gmra.mxu0 %v5677
        %v5943 = vpop.f32.mrf.mxu0
        %v5944 = vadd.f32 0.0, %v5943
        %v5945 = vpop.f32.mrf.mxu0
        %5946 = vmatprep.mubr.f32.mxu0 0.0
        %5947 = vmatmul.mubr.f32.gmra.mxu0 %v5680
        %v5948 = vpop.f32.mrf.mxu0
        %v5949 = vadd.f32 0.0, %v5948
        %v5950 = vpop.f32.mrf.mxu0
        %5951 = vdwg.mxu0
        %v5952 = vadd.f32 %v5473, %v5749
        %v5953 = vadd.f32 %v5474, %v5754
        %v5954 = vadd.f32 %v5475, %v5759
        %v5955 = vadd.f32 %v5476, %v5764
        %v5956 = vadd.f32 %v5477, %v5769
        %v5957 = vadd.f32 %v5478, %v5774
        %v5958 = vadd.f32 %v5479, %v5779
        %v5959 = vadd.f32 %v5480, %v5784
        %v5960 = vadd.f32 %v5481, %v5789
        %v5961 = vadd.f32 %v5482, %v5794
        %v5962 = vadd.f32 %v5483, %v5799
        %v5963 = vadd.f32 %v5484, %v5804
        %v5964 = vadd.f32 %v5485, %v5809
        %v5965 = vadd.f32 %v5486, %v5814
        %v5966 = vadd.f32 %v5487, %v5819
        %v5967 = vadd.f32 %v5488, %v5824
        %v5968 = vadd.f32 %v5489, %v5829
        %v5969 = vadd.f32 %v5490, %v5834
        %v5970 = vadd.f32 %v5491, %v5839
        %v5971 = vadd.f32 %v5492, %v5844
        %v5972 = vadd.f32 %v5493, %v5849
        %v5973 = vadd.f32 %v5494, %v5854
        %v5974 = vadd.f32 %v5495, %v5859
        %v5975 = vadd.f32 %v5496, %v5864
        %v5976 = vadd.f32 %v5497, %v5869
        %v5977 = vadd.f32 %v5498, %v5874
        %v5978 = vadd.f32 %v5499, %v5879
        %v5979 = vadd.f32 %v5500, %v5884
        %v5980 = vadd.f32 %v5501, %v5889
        %v5981 = vadd.f32 %v5502, %v5894
        %v5982 = vadd.f32 %v5503, %v5899
        %v5983 = vadd.f32 %v5504, %v5904
        %v5984 = vadd.f32 %v5505, %v5909
        %v5985 = vadd.f32 %v5506, %v5914
        %v5986 = vadd.f32 %v5507, %v5919
        %v5987 = vadd.f32 %v5508, %v5924
        %v5988 = vadd.f32 %v5509, %v5929
        %v5989 = vadd.f32 %v5510, %v5934
        %v5990 = vadd.f32 %v5511, %v5939
        %v5991 = vadd.f32 %v5512, %v5944
        %v5992 = vadd.f32 %v5513, %v5949
        %v5993 = vld [vmem:[#allocation2 + $0x2] sm:$0xff]
        %v5994 = vld [vmem:[#allocation2 + $0xa] sm:$0xff]
        %v5995 = vld [vmem:[#allocation2 + $0x12] sm:$0xff]
        %v5996 = vld [vmem:[#allocation2 + $0x1a] sm:$0xff]
        %v5997 = vld [vmem:[#allocation2 + $0x22] sm:$0xff]
        %v5998 = vld [vmem:[#allocation2 + $0x2a] sm:$0xff]
        %v5999 = vld [vmem:[#allocation2 + $0x32] sm:$0xff]
        %v6000 = vld [vmem:[#allocation2 + $0x3a] sm:$0xff]
        %v6001 = vld [vmem:[#allocation2 + $0x42] sm:$0xff]
        %v6002 = vld [vmem:[#allocation2 + $0x4a] sm:$0xff]
        %v6003 = vld [vmem:[#allocation2 + $0x52] sm:$0xff]
        %v6004 = vld [vmem:[#allocation2 + $0x5a] sm:$0xff]
        %v6005 = vld [vmem:[#allocation2 + $0x62] sm:$0xff]
        %v6006 = vld [vmem:[#allocation2 + $0x6a] sm:$0xff]
        %v6007 = vld [vmem:[#allocation2 + $0x72] sm:$0xff]
        %v6008 = vld [vmem:[#allocation2 + $0x7a] sm:$0xff]
        %v6009 = vld [vmem:[#allocation2 + $0x82] sm:$0xff]
        %v6010 = vld [vmem:[#allocation2 + $0x8a] sm:$0xff]
        %v6011 = vld [vmem:[#allocation2 + $0x92] sm:$0xff]
        %v6012 = vld [vmem:[#allocation2 + $0x9a] sm:$0xff]
        %v6013 = vld [vmem:[#allocation2 + $0xa2] sm:$0xff]
        %v6014 = vld [vmem:[#allocation2 + $0xaa] sm:$0xff]
        %v6015 = vld [vmem:[#allocation2 + $0xb2] sm:$0xff]
        %v6016 = vld [vmem:[#allocation2 + $0xba] sm:$0xff]
        %v6017 = vld [vmem:[#allocation2 + $0xc2] sm:$0xff]
        %v6018 = vld [vmem:[#allocation2 + $0xca] sm:$0xff]
        %v6019 = vld [vmem:[#allocation2 + $0xd2] sm:$0xff]
        %v6020 = vld [vmem:[#allocation2 + $0xda] sm:$0xff]
        %v6021 = vld [vmem:[#allocation2 + $0xe2] sm:$0xff]
        %v6022 = vld [vmem:[#allocation2 + $0xea] sm:$0xff]
        %v6023 = vld [vmem:[#allocation2 + $0xf2] sm:$0xff]
        %v6024 = vld [vmem:[#allocation2 + $0xfa] sm:$0xff]
        %v6025 = vld [vmem:[#allocation2 + $0x102] sm:$0xff]
        %v6026 = vld [vmem:[#allocation2 + $0x10a] sm:$0xff]
        %v6027 = vld [vmem:[#allocation2 + $0x112] sm:$0xff]
        %v6028 = vld [vmem:[#allocation2 + $0x11a] sm:$0xff]
        %v6029 = vld [vmem:[#allocation2 + $0x122] sm:$0xff]
        %v6030 = vld [vmem:[#allocation2 + $0x12a] sm:$0xff]
        %v6031 = vld [vmem:[#allocation2 + $0x132] sm:$0xff]
        %v6032 = vld [vmem:[#allocation2 + $0x13a] sm:$0xff]
        %v6033 = vld [vmem:[#allocation2 + $0x142] sm:$0xf]
        %v6034 = vld [vmem:[%s5 + $0x40] sm:$0xff]
        %v6035 = vld [vmem:[%s5 + $0x48] sm:$0xff]
        %v6036 = vld [vmem:[%s5 + $0x50] sm:$0xff]
        %v6037 = vld [vmem:[%s5 + $0x58] sm:$0xff]
        %v6039 = vsel %vm4978, %v5993, 0
        %v6042 = vsel %vm4978, %v5994, 0
        %v6045 = vsel %vm4978, %v5995, 0
        %v6048 = vsel %vm4978, %v5996, 0
        %v6051 = vsel %vm4978, %v5997, 0
        %v6054 = vsel %vm4978, %v5998, 0
        %v6057 = vsel %vm4978, %v5999, 0
        %v6060 = vsel %vm4978, %v6000, 0
        %v6063 = vsel %vm4978, %v6001, 0
        %v6066 = vsel %vm4978, %v6002, 0
        %v6069 = vsel %vm4978, %v6003, 0
        %v6072 = vsel %vm4978, %v6004, 0
        %v6075 = vsel %vm4978, %v6005, 0
        %v6078 = vsel %vm4978, %v6006, 0
        %v6081 = vsel %vm4978, %v6007, 0
        %v6084 = vsel %vm4978, %v6008, 0
        %v6087 = vsel %vm4978, %v6009, 0
        %v6090 = vsel %vm4978, %v6010, 0
        %v6093 = vsel %vm4978, %v6011, 0
        %v6096 = vsel %vm4978, %v6012, 0
        %v6099 = vsel %vm4978, %v6013, 0
        %v6102 = vsel %vm4978, %v6014, 0
        %v6105 = vsel %vm4978, %v6015, 0
        %v6108 = vsel %vm4978, %v6016, 0
        %v6111 = vsel %vm4978, %v6017, 0
        %v6114 = vsel %vm4978, %v6018, 0
        %v6117 = vsel %vm4978, %v6019, 0
        %v6120 = vsel %vm4978, %v6020, 0
        %v6123 = vsel %vm4978, %v6021, 0
        %v6126 = vsel %vm4978, %v6022, 0
        %v6129 = vsel %vm4978, %v6023, 0
        %v6132 = vsel %vm4978, %v6024, 0
        %v6135 = vsel %vm4978, %v6025, 0
        %v6138 = vsel %vm4978, %v6026, 0
        %v6141 = vsel %vm4978, %v6027, 0
        %v6144 = vsel %vm4978, %v6028, 0
        %v6147 = vsel %vm4978, %v6029, 0
        %v6150 = vsel %vm4978, %v6030, 0
        %v6153 = vsel %vm4978, %v6031, 0
        %v6156 = vsel %vm4978, %v6032, 0
        %v6159 = vsel %vm4978, %v6033, 0
        %6161 = vmatprep.subr.mxu0 0.0
        %6162 = vmatpush1.msra.mxu0 0.0
        %6163 = vmatprep.subr.mxu0 0.0
        %6164 = vmatpush1.msra.mxu0 0.0
        %6165 = vmatprep.subr.mxu0 0.0
        %6166 = vmatpush1.msra.mxu0 0.0
        %6167 = vmatprep.subr.mxu0 0.0
        %6168 = vmatpush1.msra.mxu0 0.0
        %6169 = vmatprep.subr.mxu0 0.0
        %6170 = vmatpush1.msra.mxu0 0.0
        %6171 = vmatprep.subr.mxu0 0.0
        %6172 = vmatpush1.msra.mxu0 0.0
        %6173 = vmatprep.subr.mxu0 0.0
        %6174 = vmatpush1.msra.mxu0 0.0
        %6175 = vmatprep.subr.mxu0 0.0
        %6176 = vmatpush1.msra.mxu0 0.0
        %6177 = vmatprep.subr.mxu0 0.0
        %6178 = vmatpush1.msra.mxu0 0.0
        %6179 = vmatprep.subr.mxu0 0.0
        %6180 = vmatpush1.msra.mxu0 0.0
        %6181 = vmatprep.subr.mxu0 0.0
        %6182 = vmatpush1.msra.mxu0 0.0
        %6183 = vmatprep.subr.mxu0 0.0
        %6184 = vmatpush1.msra.mxu0 0.0
        %6185 = vmatprep.subr.mxu0 0.0
        %6186 = vmatpush1.msra.mxu0 %v6037
        %6187 = vmatprep.subr.mxu0 0.0
        %6188 = vmatpush1.msra.mxu0 %v6036
        %6189 = vmatprep.subr.mxu0 0.0
        %6190 = vmatpush1.msra.mxu0 %v6035
        %6191 = vmatprep.subr.mxu0 0.0
        %6192 = vmatpush1.msra.mxu0 %v6034
        %6193 = vmatprep.subr.mxu0 0.0
        %6194 = vmatpush2.msra.mxu0 0.0
        %6195 = vmatprep.subr.mxu0 0.0
        %6196 = vmatpush2.msra.mxu0 0.0
        %6197 = vmatprep.subr.mxu0 0.0
        %6198 = vmatpush2.msra.mxu0 0.0
        %6199 = vmatprep.subr.mxu0 0.0
        %6200 = vmatpush2.msra.mxu0 0.0
        %6201 = vmatprep.subr.mxu0 0.0
        %6202 = vmatpush2.msra.mxu0 0.0
        %6203 = vmatprep.subr.mxu0 0.0
        %6204 = vmatpush2.msra.mxu0 0.0
        %6205 = vmatprep.subr.mxu0 0.0
        %6206 = vmatpush2.msra.mxu0 0.0
        %6207 = vmatprep.subr.mxu0 0.0
        %6208 = vmatpush2.msra.mxu0 0.0
        %6209 = vmatprep.subr.mxu0 0.0
        %6210 = vmatpush2.msra.mxu0 0.0
        %6211 = vmatprep.subr.mxu0 0.0
        %6212 = vmatpush2.msra.mxu0 0.0
        %6213 = vmatprep.subr.mxu0 0.0
        %6214 = vmatpush2.msra.mxu0 0.0
        %6215 = vmatprep.subr.mxu0 0.0
        %6216 = vmatpush2.msra.mxu0 0.0
        %6217 = vmatprep.subr.mxu0 0.0
        %6218 = vmatpush2.msra.mxu0 0.0
        %6219 = vmatprep.subr.mxu0 0.0
        %6220 = vmatpush2.msra.mxu0 0.0
        %6221 = vmatprep.subr.mxu0 0.0
        %6222 = vmatpush2.msra.mxu0 0.0
        %6223 = vmatprep.subr.mxu0 0.0
        %6224 = vmatpush2.msra.mxu0 0.0
        %6225 = vmatprep.mubr.f32.mxu0 0.0
        %6226 = vmatmul.mubr.f32.gmra.mxu0 %v6039
        %v6227 = vpop.f32.mrf.mxu0
        %v6228 = vadd.f32 0.0, %v6227
        %v6229 = vpop.f32.mrf.mxu0
        %6230 = vmatprep.mubr.f32.mxu0 0.0
        %6231 = vmatmul.mubr.f32.gmra.mxu0 %v6042
        %v6232 = vpop.f32.mrf.mxu0
        %v6233 = vadd.f32 0.0, %v6232
        %v6234 = vpop.f32.mrf.mxu0
        %6235 = vmatprep.mubr.f32.mxu0 0.0
        %6236 = vmatmul.mubr.f32.gmra.mxu0 %v6045
        %v6237 = vpop.f32.mrf.mxu0
        %v6238 = vadd.f32 0.0, %v6237
        %v6239 = vpop.f32.mrf.mxu0
        %6240 = vmatprep.mubr.f32.mxu0 0.0
        %6241 = vmatmul.mubr.f32.gmra.mxu0 %v6048
        %v6242 = vpop.f32.mrf.mxu0
        %v6243 = vadd.f32 0.0, %v6242
        %v6244 = vpop.f32.mrf.mxu0
        %6245 = vmatprep.mubr.f32.mxu0 0.0
        %6246 = vmatmul.mubr.f32.gmra.mxu0 %v6051
        %v6247 = vpop.f32.mrf.mxu0
        %v6248 = vadd.f32 0.0, %v6247
        %v6249 = vpop.f32.mrf.mxu0
        %6250 = vmatprep.mubr.f32.mxu0 0.0
        %6251 = vmatmul.mubr.f32.gmra.mxu0 %v6054
        %v6252 = vpop.f32.mrf.mxu0
        %v6253 = vadd.f32 0.0, %v6252
        %v6254 = vpop.f32.mrf.mxu0
        %6255 = vmatprep.mubr.f32.mxu0 0.0
        %6256 = vmatmul.mubr.f32.gmra.mxu0 %v6057
        %v6257 = vpop.f32.mrf.mxu0
        %v6258 = vadd.f32 0.0, %v6257
        %v6259 = vpop.f32.mrf.mxu0
        %6260 = vmatprep.mubr.f32.mxu0 0.0
        %6261 = vmatmul.mubr.f32.gmra.mxu0 %v6060
        %v6262 = vpop.f32.mrf.mxu0
        %v6263 = vadd.f32 0.0, %v6262
        %v6264 = vpop.f32.mrf.mxu0
        %6265 = vmatprep.mubr.f32.mxu0 0.0
        %6266 = vmatmul.mubr.f32.gmra.mxu0 %v6063
        %v6267 = vpop.f32.mrf.mxu0
        %v6268 = vadd.f32 0.0, %v6267
        %v6269 = vpop.f32.mrf.mxu0
        %6270 = vmatprep.mubr.f32.mxu0 0.0
        %6271 = vmatmul.mubr.f32.gmra.mxu0 %v6066
        %v6272 = vpop.f32.mrf.mxu0
        %v6273 = vadd.f32 0.0, %v6272
        %v6274 = vpop.f32.mrf.mxu0
        %6275 = vmatprep.mubr.f32.mxu0 0.0
        %6276 = vmatmul.mubr.f32.gmra.mxu0 %v6069
        %v6277 = vpop.f32.mrf.mxu0
        %v6278 = vadd.f32 0.0, %v6277
        %v6279 = vpop.f32.mrf.mxu0
        %6280 = vmatprep.mubr.f32.mxu0 0.0
        %6281 = vmatmul.mubr.f32.gmra.mxu0 %v6072
        %v6282 = vpop.f32.mrf.mxu0
        %v6283 = vadd.f32 0.0, %v6282
        %v6284 = vpop.f32.mrf.mxu0
        %6285 = vmatprep.mubr.f32.mxu0 0.0
        %6286 = vmatmul.mubr.f32.gmra.mxu0 %v6075
        %v6287 = vpop.f32.mrf.mxu0
        %v6288 = vadd.f32 0.0, %v6287
        %v6289 = vpop.f32.mrf.mxu0
        %6290 = vmatprep.mubr.f32.mxu0 0.0
        %6291 = vmatmul.mubr.f32.gmra.mxu0 %v6078
        %v6292 = vpop.f32.mrf.mxu0
        %v6293 = vadd.f32 0.0, %v6292
        %v6294 = vpop.f32.mrf.mxu0
        %6295 = vmatprep.mubr.f32.mxu0 0.0
        %6296 = vmatmul.mubr.f32.gmra.mxu0 %v6081
        %v6297 = vpop.f32.mrf.mxu0
        %v6298 = vadd.f32 0.0, %v6297
        %v6299 = vpop.f32.mrf.mxu0
        %6300 = vmatprep.mubr.f32.mxu0 0.0
        %6301 = vmatmul.mubr.f32.gmra.mxu0 %v6084
        %v6302 = vpop.f32.mrf.mxu0
        %v6303 = vadd.f32 0.0, %v6302
        %v6304 = vpop.f32.mrf.mxu0
        %6305 = vmatprep.mubr.f32.mxu0 0.0
        %6306 = vmatmul.mubr.f32.gmra.mxu0 %v6087
        %v6307 = vpop.f32.mrf.mxu0
        %v6308 = vadd.f32 0.0, %v6307
        %v6309 = vpop.f32.mrf.mxu0
        %6310 = vmatprep.mubr.f32.mxu0 0.0
        %6311 = vmatmul.mubr.f32.gmra.mxu0 %v6090
        %v6312 = vpop.f32.mrf.mxu0
        %v6313 = vadd.f32 0.0, %v6312
        %v6314 = vpop.f32.mrf.mxu0
        %6315 = vmatprep.mubr.f32.mxu0 0.0
        %6316 = vmatmul.mubr.f32.gmra.mxu0 %v6093
        %v6317 = vpop.f32.mrf.mxu0
        %v6318 = vadd.f32 0.0, %v6317
        %v6319 = vpop.f32.mrf.mxu0
        %6320 = vmatprep.mubr.f32.mxu0 0.0
        %6321 = vmatmul.mubr.f32.gmra.mxu0 %v6096
        %v6322 = vpop.f32.mrf.mxu0
        %v6323 = vadd.f32 0.0, %v6322
        %v6324 = vpop.f32.mrf.mxu0
        %6325 = vmatprep.mubr.f32.mxu0 0.0
        %6326 = vmatmul.mubr.f32.gmra.mxu0 %v6099
        %v6327 = vpop.f32.mrf.mxu0
        %v6328 = vadd.f32 0.0, %v6327
        %v6329 = vpop.f32.mrf.mxu0
        %6330 = vmatprep.mubr.f32.mxu0 0.0
        %6331 = vmatmul.mubr.f32.gmra.mxu0 %v6102
        %v6332 = vpop.f32.mrf.mxu0
        %v6333 = vadd.f32 0.0, %v6332
        %v6334 = vpop.f32.mrf.mxu0
        %6335 = vmatprep.mubr.f32.mxu0 0.0
        %6336 = vmatmul.mubr.f32.gmra.mxu0 %v6105
        %v6337 = vpop.f32.mrf.mxu0
        %v6338 = vadd.f32 0.0, %v6337
        %v6339 = vpop.f32.mrf.mxu0
        %6340 = vmatprep.mubr.f32.mxu0 0.0
        %6341 = vmatmul.mubr.f32.gmra.mxu0 %v6108
        %v6342 = vpop.f32.mrf.mxu0
        %v6343 = vadd.f32 0.0, %v6342
        %v6344 = vpop.f32.mrf.mxu0
        %6345 = vmatprep.mubr.f32.mxu0 0.0
        %6346 = vmatmul.mubr.f32.gmra.mxu0 %v6111
        %v6347 = vpop.f32.mrf.mxu0
        %v6348 = vadd.f32 0.0, %v6347
        %v6349 = vpop.f32.mrf.mxu0
        %6350 = vmatprep.mubr.f32.mxu0 0.0
        %6351 = vmatmul.mubr.f32.gmra.mxu0 %v6114
        %v6352 = vpop.f32.mrf.mxu0
        %v6353 = vadd.f32 0.0, %v6352
        %v6354 = vpop.f32.mrf.mxu0
        %6355 = vmatprep.mubr.f32.mxu0 0.0
        %6356 = vmatmul.mubr.f32.gmra.mxu0 %v6117
        %v6357 = vpop.f32.mrf.mxu0
        %v6358 = vadd.f32 0.0, %v6357
        %v6359 = vpop.f32.mrf.mxu0
        %6360 = vmatprep.mubr.f32.mxu0 0.0
        %6361 = vmatmul.mubr.f32.gmra.mxu0 %v6120
        %v6362 = vpop.f32.mrf.mxu0
        %v6363 = vadd.f32 0.0, %v6362
        %v6364 = vpop.f32.mrf.mxu0
        %6365 = vmatprep.mubr.f32.mxu0 0.0
        %6366 = vmatmul.mubr.f32.gmra.mxu0 %v6123
        %v6367 = vpop.f32.mrf.mxu0
        %v6368 = vadd.f32 0.0, %v6367
        %v6369 = vpop.f32.mrf.mxu0
        %6370 = vmatprep.mubr.f32.mxu0 0.0
        %6371 = vmatmul.mubr.f32.gmra.mxu0 %v6126
        %v6372 = vpop.f32.mrf.mxu0
        %v6373 = vadd.f32 0.0, %v6372
        %v6374 = vpop.f32.mrf.mxu0
        %6375 = vmatprep.mubr.f32.mxu0 0.0
        %6376 = vmatmul.mubr.f32.gmra.mxu0 %v6129
        %v6377 = vpop.f32.mrf.mxu0
        %v6378 = vadd.f32 0.0, %v6377
        %v6379 = vpop.f32.mrf.mxu0
        %6380 = vmatprep.mubr.f32.mxu0 0.0
        %6381 = vmatmul.mubr.f32.gmra.mxu0 %v6132
        %v6382 = vpop.f32.mrf.mxu0
        %v6383 = vadd.f32 0.0, %v6382
        %v6384 = vpop.f32.mrf.mxu0
        %6385 = vmatprep.mubr.f32.mxu0 0.0
        %6386 = vmatmul.mubr.f32.gmra.mxu0 %v6135
        %v6387 = vpop.f32.mrf.mxu0
        %v6388 = vadd.f32 0.0, %v6387
        %v6389 = vpop.f32.mrf.mxu0
        %6390 = vmatprep.mubr.f32.mxu0 0.0
        %6391 = vmatmul.mubr.f32.gmra.mxu0 %v6138
        %v6392 = vpop.f32.mrf.mxu0
        %v6393 = vadd.f32 0.0, %v6392
        %v6394 = vpop.f32.mrf.mxu0
        %6395 = vmatprep.mubr.f32.mxu0 0.0
        %6396 = vmatmul.mubr.f32.gmra.mxu0 %v6141
        %v6397 = vpop.f32.mrf.mxu0
        %v6398 = vadd.f32 0.0, %v6397
        %v6399 = vpop.f32.mrf.mxu0
        %6400 = vmatprep.mubr.f32.mxu0 0.0
        %6401 = vmatmul.mubr.f32.gmra.mxu0 %v6144
        %v6402 = vpop.f32.mrf.mxu0
        %v6403 = vadd.f32 0.0, %v6402
        %v6404 = vpop.f32.mrf.mxu0
        %6405 = vmatprep.mubr.f32.mxu0 0.0
        %6406 = vmatmul.mubr.f32.gmra.mxu0 %v6147
        %v6407 = vpop.f32.mrf.mxu0
        %v6408 = vadd.f32 0.0, %v6407
        %v6409 = vpop.f32.mrf.mxu0
        %6410 = vmatprep.mubr.f32.mxu0 0.0
        %6411 = vmatmul.mubr.f32.gmra.mxu0 %v6150
        %v6412 = vpop.f32.mrf.mxu0
        %v6413 = vadd.f32 0.0, %v6412
        %v6414 = vpop.f32.mrf.mxu0
        %6415 = vmatprep.mubr.f32.mxu0 0.0
        %6416 = vmatmul.mubr.f32.gmra.mxu0 %v6153
        %v6417 = vpop.f32.mrf.mxu0
        %v6418 = vadd.f32 0.0, %v6417
        %v6419 = vpop.f32.mrf.mxu0
        %6420 = vmatprep.mubr.f32.mxu0 0.0
        %6421 = vmatmul.mubr.f32.gmra.mxu0 %v6156
        %v6422 = vpop.f32.mrf.mxu0
        %v6423 = vadd.f32 0.0, %v6422
        %v6424 = vpop.f32.mrf.mxu0
        %6425 = vmatprep.mubr.f32.mxu0 0.0
        %6426 = vmatmul.mubr.f32.gmra.mxu0 %v6159
        %v6427 = vpop.f32.mrf.mxu0
        %v6428 = vadd.f32 0.0, %v6427
        %v6429 = vpop.f32.mrf.mxu0
        %6430 = vdwg.mxu0
        %v6431 = vadd.f32 %v5952, %v6228
        %v6432 = vadd.f32 %v5953, %v6233
        %v6433 = vadd.f32 %v5954, %v6238
        %v6434 = vadd.f32 %v5955, %v6243
        %v6435 = vadd.f32 %v5956, %v6248
        %v6436 = vadd.f32 %v5957, %v6253
        %v6437 = vadd.f32 %v5958, %v6258
        %v6438 = vadd.f32 %v5959, %v6263
        %v6439 = vadd.f32 %v5960, %v6268
        %v6440 = vadd.f32 %v5961, %v6273
        %v6441 = vadd.f32 %v5962, %v6278
        %v6442 = vadd.f32 %v5963, %v6283
        %v6443 = vadd.f32 %v5964, %v6288
        %v6444 = vadd.f32 %v5965, %v6293
        %v6445 = vadd.f32 %v5966, %v6298
        %v6446 = vadd.f32 %v5967, %v6303
        %v6447 = vadd.f32 %v5968, %v6308
        %v6448 = vadd.f32 %v5969, %v6313
        %v6449 = vadd.f32 %v5970, %v6318
        %v6450 = vadd.f32 %v5971, %v6323
        %v6451 = vadd.f32 %v5972, %v6328
        %v6452 = vadd.f32 %v5973, %v6333
        %v6453 = vadd.f32 %v5974, %v6338
        %v6454 = vadd.f32 %v5975, %v6343
        %v6455 = vadd.f32 %v5976, %v6348
        %v6456 = vadd.f32 %v5977, %v6353
        %v6457 = vadd.f32 %v5978, %v6358
        %v6458 = vadd.f32 %v5979, %v6363
        %v6459 = vadd.f32 %v5980, %v6368
        %v6460 = vadd.f32 %v5981, %v6373
        %v6461 = vadd.f32 %v5982, %v6378
        %v6462 = vadd.f32 %v5983, %v6383
        %v6463 = vadd.f32 %v5984, %v6388
        %v6464 = vadd.f32 %v5985, %v6393
        %v6465 = vadd.f32 %v5986, %v6398
        %v6466 = vadd.f32 %v5987, %v6403
        %v6467 = vadd.f32 %v5988, %v6408
        %v6468 = vadd.f32 %v5989, %v6413
        %v6469 = vadd.f32 %v5990, %v6418
        %v6470 = vadd.f32 %v5991, %v6423
        %v6471 = vadd.f32 %v5992, %v6428
        %v6472 = vld [vmem:[#allocation2 + $0x12] sm:$0xff]
        %v6473 = vld [vmem:[#allocation2 + $0x1a] sm:$0xff]
        %v6474 = vld [vmem:[#allocation2 + $0x22] sm:$0xff]
        %v6475 = vld [vmem:[#allocation2 + $0x2a] sm:$0xff]
        %v6476 = vld [vmem:[#allocation2 + $0x32] sm:$0xff]
        %v6477 = vld [vmem:[#allocation2 + $0x3a] sm:$0xff]
        %v6478 = vld [vmem:[#allocation2 + $0x42] sm:$0xff]
        %v6479 = vld [vmem:[#allocation2 + $0x4a] sm:$0xff]
        %v6480 = vld [vmem:[#allocation2 + $0x52] sm:$0xff]
        %v6481 = vld [vmem:[#allocation2 + $0x5a] sm:$0xff]
        %v6482 = vld [vmem:[#allocation2 + $0x62] sm:$0xff]
        %v6483 = vld [vmem:[#allocation2 + $0x6a] sm:$0xff]
        %v6484 = vld [vmem:[#allocation2 + $0x72] sm:$0xff]
        %v6485 = vld [vmem:[#allocation2 + $0x7a] sm:$0xff]
        %v6486 = vld [vmem:[#allocation2 + $0x82] sm:$0xff]
        %v6487 = vld [vmem:[#allocation2 + $0x8a] sm:$0xff]
        %v6488 = vld [vmem:[#allocation2 + $0x92] sm:$0xff]
        %v6489 = vld [vmem:[#allocation2 + $0x9a] sm:$0xff]
        %v6490 = vld [vmem:[#allocation2 + $0xa2] sm:$0xff]
        %v6491 = vld [vmem:[#allocation2 + $0xaa] sm:$0xff]
        %v6492 = vld [vmem:[#allocation2 + $0xb2] sm:$0xff]
        %v6493 = vld [vmem:[#allocation2 + $0xba] sm:$0xff]
        %v6494 = vld [vmem:[#allocation2 + $0xc2] sm:$0xff]
        %v6495 = vld [vmem:[#allocation2 + $0xca] sm:$0xff]
        %v6496 = vld [vmem:[#allocation2 + $0xd2] sm:$0xff]
        %v6497 = vld [vmem:[#allocation2 + $0xda] sm:$0xff]
        %v6498 = vld [vmem:[#allocation2 + $0xe2] sm:$0xff]
        %v6499 = vld [vmem:[#allocation2 + $0xea] sm:$0xff]
        %v6500 = vld [vmem:[#allocation2 + $0xf2] sm:$0xff]
        %v6501 = vld [vmem:[#allocation2 + $0xfa] sm:$0xff]
        %v6502 = vld [vmem:[#allocation2 + $0x102] sm:$0xff]
        %v6503 = vld [vmem:[#allocation2 + $0x10a] sm:$0xff]
        %v6504 = vld [vmem:[#allocation2 + $0x112] sm:$0xff]
        %v6505 = vld [vmem:[#allocation2 + $0x11a] sm:$0xff]
        %v6506 = vld [vmem:[#allocation2 + $0x122] sm:$0xff]
        %v6507 = vld [vmem:[#allocation2 + $0x12a] sm:$0xff]
        %v6508 = vld [vmem:[#allocation2 + $0x132] sm:$0xff]
        %v6509 = vld [vmem:[#allocation2 + $0x13a] sm:$0xff]
        %v6510 = vld [vmem:[#allocation2 + $0x142] sm:$0xff]
        %v6511 = vld [vmem:[#allocation2 + $0x14a] sm:$0xff]
        %v6512 = vld [vmem:[#allocation2 + $0x152] sm:$0xf]
        %v6513 = vld [vmem:[%s5 + $0x60] sm:$0xff]
        %v6514 = vld [vmem:[%s5 + $0x68] sm:$0xff]
        %v6515 = vld [vmem:[%s5 + $0x70] sm:$0xff]
        %v6516 = vld [vmem:[%s5 + $0x78] sm:$0xff]
        %v6518 = vsel %vm4978, %v6472, 0
        %v6521 = vsel %vm4978, %v6473, 0
        %v6524 = vsel %vm4978, %v6474, 0
        %v6527 = vsel %vm4978, %v6475, 0
        %v6530 = vsel %vm4978, %v6476, 0
        %v6533 = vsel %vm4978, %v6477, 0
        %v6536 = vsel %vm4978, %v6478, 0
        %v6539 = vsel %vm4978, %v6479, 0
        %v6542 = vsel %vm4978, %v6480, 0
        %v6545 = vsel %vm4978, %v6481, 0
        %v6548 = vsel %vm4978, %v6482, 0
        %v6551 = vsel %vm4978, %v6483, 0
        %v6554 = vsel %vm4978, %v6484, 0
        %v6557 = vsel %vm4978, %v6485, 0
        %v6560 = vsel %vm4978, %v6486, 0
        %v6563 = vsel %vm4978, %v6487, 0
        %v6566 = vsel %vm4978, %v6488, 0
        %v6569 = vsel %vm4978, %v6489, 0
        %v6572 = vsel %vm4978, %v6490, 0
        %v6575 = vsel %vm4978, %v6491, 0
        %v6578 = vsel %vm4978, %v6492, 0
        %v6581 = vsel %vm4978, %v6493, 0
        %v6584 = vsel %vm4978, %v6494, 0
        %v6587 = vsel %vm4978, %v6495, 0
        %v6590 = vsel %vm4978, %v6496, 0
        %v6593 = vsel %vm4978, %v6497, 0
        %v6596 = vsel %vm4978, %v6498, 0
        %v6599 = vsel %vm4978, %v6499, 0
        %v6602 = vsel %vm4978, %v6500, 0
        %v6605 = vsel %vm4978, %v6501, 0
        %v6608 = vsel %vm4978, %v6502, 0
        %v6611 = vsel %vm4978, %v6503, 0
        %v6614 = vsel %vm4978, %v6504, 0
        %v6617 = vsel %vm4978, %v6505, 0
        %v6620 = vsel %vm4978, %v6506, 0
        %v6623 = vsel %vm4978, %v6507, 0
        %v6626 = vsel %vm4978, %v6508, 0
        %v6629 = vsel %vm4978, %v6509, 0
        %v6632 = vsel %vm4978, %v6510, 0
        %v6635 = vsel %vm4978, %v6511, 0
        %v6638 = vsel %vm4978, %v6512, 0
        %6640 = vmatprep.subr.mxu0 0.0
        %6641 = vmatpush1.msra.mxu0 0.0
        %6642 = vmatprep.subr.mxu0 0.0
        %6643 = vmatpush1.msra.mxu0 0.0
        %6644 = vmatprep.subr.mxu0 0.0
        %6645 = vmatpush1.msra.mxu0 0.0
        %6646 = vmatprep.subr.mxu0 0.0
        %6647 = vmatpush1.msra.mxu0 0.0
        %6648 = vmatprep.subr.mxu0 0.0
        %6649 = vmatpush1.msra.mxu0 0.0
        %6650 = vmatprep.subr.mxu0 0.0
        %6651 = vmatpush1.msra.mxu0 0.0
        %6652 = vmatprep.subr.mxu0 0.0
        %6653 = vmatpush1.msra.mxu0 0.0
        %6654 = vmatprep.subr.mxu0 0.0
        %6655 = vmatpush1.msra.mxu0 0.0
        %6656 = vmatprep.subr.mxu0 0.0
        %6657 = vmatpush1.msra.mxu0 0.0
        %6658 = vmatprep.subr.mxu0 0.0
        %6659 = vmatpush1.msra.mxu0 0.0
        %6660 = vmatprep.subr.mxu0 0.0
        %6661 = vmatpush1.msra.mxu0 0.0
        %6662 = vmatprep.subr.mxu0 0.0
        %6663 = vmatpush1.msra.mxu0 0.0
        %6664 = vmatprep.subr.mxu0 0.0
        %6665 = vmatpush1.msra.mxu0 %v6516
        %6666 = vmatprep.subr.mxu0 0.0
        %6667 = vmatpush1.msra.mxu0 %v6515
        %6668 = vmatprep.subr.mxu0 0.0
        %6669 = vmatpush1.msra.mxu0 %v6514
        %6670 = vmatprep.subr.mxu0 0.0
        %6671 = vmatpush1.msra.mxu0 %v6513
        %6672 = vmatprep.subr.mxu0 0.0
        %6673 = vmatpush2.msra.mxu0 0.0
        %6674 = vmatprep.subr.mxu0 0.0
        %6675 = vmatpush2.msra.mxu0 0.0
        %6676 = vmatprep.subr.mxu0 0.0
        %6677 = vmatpush2.msra.mxu0 0.0
        %6678 = vmatprep.subr.mxu0 0.0
        %6679 = vmatpush2.msra.mxu0 0.0
        %6680 = vmatprep.subr.mxu0 0.0
        %6681 = vmatpush2.msra.mxu0 0.0
        %6682 = vmatprep.subr.mxu0 0.0
        %6683 = vmatpush2.msra.mxu0 0.0
        %6684 = vmatprep.subr.mxu0 0.0
        %6685 = vmatpush2.msra.mxu0 0.0
        %6686 = vmatprep.subr.mxu0 0.0
        %6687 = vmatpush2.msra.mxu0 0.0
        %6688 = vmatprep.subr.mxu0 0.0
        %6689 = vmatpush2.msra.mxu0 0.0
        %6690 = vmatprep.subr.mxu0 0.0
        %6691 = vmatpush2.msra.mxu0 0.0
        %6692 = vmatprep.subr.mxu0 0.0
        %6693 = vmatpush2.msra.mxu0 0.0
        %6694 = vmatprep.subr.mxu0 0.0
        %6695 = vmatpush2.msra.mxu0 0.0
        %6696 = vmatprep.subr.mxu0 0.0
        %6697 = vmatpush2.msra.mxu0 0.0
        %6698 = vmatprep.subr.mxu0 0.0
        %6699 = vmatpush2.msra.mxu0 0.0
        %6700 = vmatprep.subr.mxu0 0.0
        %6701 = vmatpush2.msra.mxu0 0.0
        %6702 = vmatprep.subr.mxu0 0.0
        %6703 = vmatpush2.msra.mxu0 0.0
        %6704 = vmatprep.mubr.f32.mxu0 0.0
        %6705 = vmatmul.mubr.f32.gmra.mxu0 %v6518
        %v6706 = vpop.f32.mrf.mxu0
        %v6707 = vadd.f32 0.0, %v6706
        %v6708 = vpop.f32.mrf.mxu0
        %6709 = vmatprep.mubr.f32.mxu0 0.0
        %6710 = vmatmul.mubr.f32.gmra.mxu0 %v6521
        %v6711 = vpop.f32.mrf.mxu0
        %v6712 = vadd.f32 0.0, %v6711
        %v6713 = vpop.f32.mrf.mxu0
        %6714 = vmatprep.mubr.f32.mxu0 0.0
        %6715 = vmatmul.mubr.f32.gmra.mxu0 %v6524
        %v6716 = vpop.f32.mrf.mxu0
        %v6717 = vadd.f32 0.0, %v6716
        %v6718 = vpop.f32.mrf.mxu0
        %6719 = vmatprep.mubr.f32.mxu0 0.0
        %6720 = vmatmul.mubr.f32.gmra.mxu0 %v6527
        %v6721 = vpop.f32.mrf.mxu0
        %v6722 = vadd.f32 0.0, %v6721
        %v6723 = vpop.f32.mrf.mxu0
        %6724 = vmatprep.mubr.f32.mxu0 0.0
        %6725 = vmatmul.mubr.f32.gmra.mxu0 %v6530
        %v6726 = vpop.f32.mrf.mxu0
        %v6727 = vadd.f32 0.0, %v6726
        %v6728 = vpop.f32.mrf.mxu0
        %6729 = vmatprep.mubr.f32.mxu0 0.0
        %6730 = vmatmul.mubr.f32.gmra.mxu0 %v6533
        %v6731 = vpop.f32.mrf.mxu0
        %v6732 = vadd.f32 0.0, %v6731
        %v6733 = vpop.f32.mrf.mxu0
        %6734 = vmatprep.mubr.f32.mxu0 0.0
        %6735 = vmatmul.mubr.f32.gmra.mxu0 %v6536
        %v6736 = vpop.f32.mrf.mxu0
        %v6737 = vadd.f32 0.0, %v6736
        %v6738 = vpop.f32.mrf.mxu0
        %6739 = vmatprep.mubr.f32.mxu0 0.0
        %6740 = vmatmul.mubr.f32.gmra.mxu0 %v6539
        %v6741 = vpop.f32.mrf.mxu0
        %v6742 = vadd.f32 0.0, %v6741
        %v6743 = vpop.f32.mrf.mxu0
        %6744 = vmatprep.mubr.f32.mxu0 0.0
        %6745 = vmatmul.mubr.f32.gmra.mxu0 %v6542
        %v6746 = vpop.f32.mrf.mxu0
        %v6747 = vadd.f32 0.0, %v6746
        %v6748 = vpop.f32.mrf.mxu0
        %6749 = vmatprep.mubr.f32.mxu0 0.0
        %6750 = vmatmul.mubr.f32.gmra.mxu0 %v6545
        %v6751 = vpop.f32.mrf.mxu0
        %v6752 = vadd.f32 0.0, %v6751
        %v6753 = vpop.f32.mrf.mxu0
        %6754 = vmatprep.mubr.f32.mxu0 0.0
        %6755 = vmatmul.mubr.f32.gmra.mxu0 %v6548
        %v6756 = vpop.f32.mrf.mxu0
        %v6757 = vadd.f32 0.0, %v6756
        %v6758 = vpop.f32.mrf.mxu0
        %6759 = vmatprep.mubr.f32.mxu0 0.0
        %6760 = vmatmul.mubr.f32.gmra.mxu0 %v6551
        %v6761 = vpop.f32.mrf.mxu0
        %v6762 = vadd.f32 0.0, %v6761
        %v6763 = vpop.f32.mrf.mxu0
        %6764 = vmatprep.mubr.f32.mxu0 0.0
        %6765 = vmatmul.mubr.f32.gmra.mxu0 %v6554
        %v6766 = vpop.f32.mrf.mxu0
        %v6767 = vadd.f32 0.0, %v6766
        %v6768 = vpop.f32.mrf.mxu0
        %6769 = vmatprep.mubr.f32.mxu0 0.0
        %6770 = vmatmul.mubr.f32.gmra.mxu0 %v6557
        %v6771 = vpop.f32.mrf.mxu0
        %v6772 = vadd.f32 0.0, %v6771
        %v6773 = vpop.f32.mrf.mxu0
        %6774 = vmatprep.mubr.f32.mxu0 0.0
        %6775 = vmatmul.mubr.f32.gmra.mxu0 %v6560
        %v6776 = vpop.f32.mrf.mxu0
        %v6777 = vadd.f32 0.0, %v6776
        %v6778 = vpop.f32.mrf.mxu0
        %6779 = vmatprep.mubr.f32.mxu0 0.0
        %6780 = vmatmul.mubr.f32.gmra.mxu0 %v6563
        %v6781 = vpop.f32.mrf.mxu0
        %v6782 = vadd.f32 0.0, %v6781
        %v6783 = vpop.f32.mrf.mxu0
        %6784 = vmatprep.mubr.f32.mxu0 0.0
        %6785 = vmatmul.mubr.f32.gmra.mxu0 %v6566
        %v6786 = vpop.f32.mrf.mxu0
        %v6787 = vadd.f32 0.0, %v6786
        %v6788 = vpop.f32.mrf.mxu0
        %6789 = vmatprep.mubr.f32.mxu0 0.0
        %6790 = vmatmul.mubr.f32.gmra.mxu0 %v6569
        %v6791 = vpop.f32.mrf.mxu0
        %v6792 = vadd.f32 0.0, %v6791
        %v6793 = vpop.f32.mrf.mxu0
        %6794 = vmatprep.mubr.f32.mxu0 0.0
        %6795 = vmatmul.mubr.f32.gmra.mxu0 %v6572
        %v6796 = vpop.f32.mrf.mxu0
        %v6797 = vadd.f32 0.0, %v6796
        %v6798 = vpop.f32.mrf.mxu0
        %6799 = vmatprep.mubr.f32.mxu0 0.0
        %6800 = vmatmul.mubr.f32.gmra.mxu0 %v6575
        %v6801 = vpop.f32.mrf.mxu0
        %v6802 = vadd.f32 0.0, %v6801
        %v6803 = vpop.f32.mrf.mxu0
        %6804 = vmatprep.mubr.f32.mxu0 0.0
        %6805 = vmatmul.mubr.f32.gmra.mxu0 %v6578
        %v6806 = vpop.f32.mrf.mxu0
        %v6807 = vadd.f32 0.0, %v6806
        %v6808 = vpop.f32.mrf.mxu0
        %6809 = vmatprep.mubr.f32.mxu0 0.0
        %6810 = vmatmul.mubr.f32.gmra.mxu0 %v6581
        %v6811 = vpop.f32.mrf.mxu0
        %v6812 = vadd.f32 0.0, %v6811
        %v6813 = vpop.f32.mrf.mxu0
        %6814 = vmatprep.mubr.f32.mxu0 0.0
        %6815 = vmatmul.mubr.f32.gmra.mxu0 %v6584
        %v6816 = vpop.f32.mrf.mxu0
        %v6817 = vadd.f32 0.0, %v6816
        %v6818 = vpop.f32.mrf.mxu0
        %6819 = vmatprep.mubr.f32.mxu0 0.0
        %6820 = vmatmul.mubr.f32.gmra.mxu0 %v6587
        %v6821 = vpop.f32.mrf.mxu0
        %v6822 = vadd.f32 0.0, %v6821
        %v6823 = vpop.f32.mrf.mxu0
        %6824 = vmatprep.mubr.f32.mxu0 0.0
        %6825 = vmatmul.mubr.f32.gmra.mxu0 %v6590
        %v6826 = vpop.f32.mrf.mxu0
        %v6827 = vadd.f32 0.0, %v6826
        %v6828 = vpop.f32.mrf.mxu0
        %6829 = vmatprep.mubr.f32.mxu0 0.0
        %6830 = vmatmul.mubr.f32.gmra.mxu0 %v6593
        %v6831 = vpop.f32.mrf.mxu0
        %v6832 = vadd.f32 0.0, %v6831
        %v6833 = vpop.f32.mrf.mxu0
        %6834 = vmatprep.mubr.f32.mxu0 0.0
        %6835 = vmatmul.mubr.f32.gmra.mxu0 %v6596
        %v6836 = vpop.f32.mrf.mxu0
        %v6837 = vadd.f32 0.0, %v6836
        %v6838 = vpop.f32.mrf.mxu0
        %6839 = vmatprep.mubr.f32.mxu0 0.0
        %6840 = vmatmul.mubr.f32.gmra.mxu0 %v6599
        %v6841 = vpop.f32.mrf.mxu0
        %v6842 = vadd.f32 0.0, %v6841
        %v6843 = vpop.f32.mrf.mxu0
        %6844 = vmatprep.mubr.f32.mxu0 0.0
        %6845 = vmatmul.mubr.f32.gmra.mxu0 %v6602
        %v6846 = vpop.f32.mrf.mxu0
        %v6847 = vadd.f32 0.0, %v6846
        %v6848 = vpop.f32.mrf.mxu0
        %6849 = vmatprep.mubr.f32.mxu0 0.0
        %6850 = vmatmul.mubr.f32.gmra.mxu0 %v6605
        %v6851 = vpop.f32.mrf.mxu0
        %v6852 = vadd.f32 0.0, %v6851
        %v6853 = vpop.f32.mrf.mxu0
        %6854 = vmatprep.mubr.f32.mxu0 0.0
        %6855 = vmatmul.mubr.f32.gmra.mxu0 %v6608
        %v6856 = vpop.f32.mrf.mxu0
        %v6857 = vadd.f32 0.0, %v6856
        %v6858 = vpop.f32.mrf.mxu0
        %6859 = vmatprep.mubr.f32.mxu0 0.0
        %6860 = vmatmul.mubr.f32.gmra.mxu0 %v6611
        %v6861 = vpop.f32.mrf.mxu0
        %v6862 = vadd.f32 0.0, %v6861
        %v6863 = vpop.f32.mrf.mxu0
        %6864 = vmatprep.mubr.f32.mxu0 0.0
        %6865 = vmatmul.mubr.f32.gmra.mxu0 %v6614
        %v6866 = vpop.f32.mrf.mxu0
        %v6867 = vadd.f32 0.0, %v6866
        %v6868 = vpop.f32.mrf.mxu0
        %6869 = vmatprep.mubr.f32.mxu0 0.0
        %6870 = vmatmul.mubr.f32.gmra.mxu0 %v6617
        %v6871 = vpop.f32.mrf.mxu0
        %v6872 = vadd.f32 0.0, %v6871
        %v6873 = vpop.f32.mrf.mxu0
        %6874 = vmatprep.mubr.f32.mxu0 0.0
        %6875 = vmatmul.mubr.f32.gmra.mxu0 %v6620
        %v6876 = vpop.f32.mrf.mxu0
        %v6877 = vadd.f32 0.0, %v6876
        %v6878 = vpop.f32.mrf.mxu0
        %6879 = vmatprep.mubr.f32.mxu0 0.0
        %6880 = vmatmul.mubr.f32.gmra.mxu0 %v6623
        %v6881 = vpop.f32.mrf.mxu0
        %v6882 = vadd.f32 0.0, %v6881
        %v6883 = vpop.f32.mrf.mxu0
        %6884 = vmatprep.mubr.f32.mxu0 0.0
        %6885 = vmatmul.mubr.f32.gmra.mxu0 %v6626
        %v6886 = vpop.f32.mrf.mxu0
        %v6887 = vadd.f32 0.0, %v6886
        %v6888 = vpop.f32.mrf.mxu0
        %6889 = vmatprep.mubr.f32.mxu0 0.0
        %6890 = vmatmul.mubr.f32.gmra.mxu0 %v6629
        %v6891 = vpop.f32.mrf.mxu0
        %v6892 = vadd.f32 0.0, %v6891
        %v6893 = vpop.f32.mrf.mxu0
        %6894 = vmatprep.mubr.f32.mxu0 0.0
        %6895 = vmatmul.mubr.f32.gmra.mxu0 %v6632
        %v6896 = vpop.f32.mrf.mxu0
        %v6897 = vadd.f32 0.0, %v6896
        %v6898 = vpop.f32.mrf.mxu0
        %6899 = vmatprep.mubr.f32.mxu0 0.0
        %6900 = vmatmul.mubr.f32.gmra.mxu0 %v6635
        %v6901 = vpop.f32.mrf.mxu0
        %v6902 = vadd.f32 0.0, %v6901
        %v6903 = vpop.f32.mrf.mxu0
        %6904 = vmatprep.mubr.f32.mxu0 0.0
        %6905 = vmatmul.mubr.f32.gmra.mxu0 %v6638
        %v6906 = vpop.f32.mrf.mxu0
        %v6907 = vadd.f32 0.0, %v6906
        %v6908 = vpop.f32.mrf.mxu0
        %6909 = vdwg.mxu0
        %v6910 = vadd.f32 %v6431, %v6707
        %v6911 = vadd.f32 %v6432, %v6712
        %v6912 = vadd.f32 %v6433, %v6717
        %v6913 = vadd.f32 %v6434, %v6722
        %v6914 = vadd.f32 %v6435, %v6727
        %v6915 = vadd.f32 %v6436, %v6732
        %v6916 = vadd.f32 %v6437, %v6737
        %v6917 = vadd.f32 %v6438, %v6742
        %v6918 = vadd.f32 %v6439, %v6747
        %v6919 = vadd.f32 %v6440, %v6752
        %v6920 = vadd.f32 %v6441, %v6757
        %v6921 = vadd.f32 %v6442, %v6762
        %v6922 = vadd.f32 %v6443, %v6767
        %v6923 = vadd.f32 %v6444, %v6772
        %v6924 = vadd.f32 %v6445, %v6777
        %v6925 = vadd.f32 %v6446, %v6782
        %v6926 = vadd.f32 %v6447, %v6787
        %v6927 = vadd.f32 %v6448, %v6792
        %v6928 = vadd.f32 %v6449, %v6797
        %v6929 = vadd.f32 %v6450, %v6802
        %v6930 = vadd.f32 %v6451, %v6807
        %v6931 = vadd.f32 %v6452, %v6812
        %v6932 = vadd.f32 %v6453, %v6817
        %v6933 = vadd.f32 %v6454, %v6822
        %v6934 = vadd.f32 %v6455, %v6827
        %v6935 = vadd.f32 %v6456, %v6832
        %v6936 = vadd.f32 %v6457, %v6837
        %v6937 = vadd.f32 %v6458, %v6842
        %v6938 = vadd.f32 %v6459, %v6847
        %v6939 = vadd.f32 %v6460, %v6852
        %v6940 = vadd.f32 %v6461, %v6857
        %v6941 = vadd.f32 %v6462, %v6862
        %v6942 = vadd.f32 %v6463, %v6867
        %v6943 = vadd.f32 %v6464, %v6872
        %v6944 = vadd.f32 %v6465, %v6877
        %v6945 = vadd.f32 %v6466, %v6882
        %v6946 = vadd.f32 %v6467, %v6887
        %v6947 = vadd.f32 %v6468, %v6892
        %v6948 = vadd.f32 %v6469, %v6897
        %v6949 = vadd.f32 %v6470, %v6902
        %v6950 = vadd.f32 %v6471, %v6907
        %v6951 = vld [vmem:[#allocation2 + $0x13] sm:$0xff]
        %v6952 = vld [vmem:[#allocation2 + $0x1b] sm:$0xff]
        %v6953 = vld [vmem:[#allocation2 + $0x23] sm:$0xff]
        %v6954 = vld [vmem:[#allocation2 + $0x2b] sm:$0xff]
        %v6955 = vld [vmem:[#allocation2 + $0x33] sm:$0xff]
        %v6956 = vld [vmem:[#allocation2 + $0x3b] sm:$0xff]
        %v6957 = vld [vmem:[#allocation2 + $0x43] sm:$0xff]
        %v6958 = vld [vmem:[#allocation2 + $0x4b] sm:$0xff]
        %v6959 = vld [vmem:[#allocation2 + $0x53] sm:$0xff]
        %v6960 = vld [vmem:[#allocation2 + $0x5b] sm:$0xff]
        %v6961 = vld [vmem:[#allocation2 + $0x63] sm:$0xff]
        %v6962 = vld [vmem:[#allocation2 + $0x6b] sm:$0xff]
        %v6963 = vld [vmem:[#allocation2 + $0x73] sm:$0xff]
        %v6964 = vld [vmem:[#allocation2 + $0x7b] sm:$0xff]
        %v6965 = vld [vmem:[#allocation2 + $0x83] sm:$0xff]
        %v6966 = vld [vmem:[#allocation2 + $0x8b] sm:$0xff]
        %v6967 = vld [vmem:[#allocation2 + $0x93] sm:$0xff]
        %v6968 = vld [vmem:[#allocation2 + $0x9b] sm:$0xff]
        %v6969 = vld [vmem:[#allocation2 + $0xa3] sm:$0xff]
        %v6970 = vld [vmem:[#allocation2 + $0xab] sm:$0xff]
        %v6971 = vld [vmem:[#allocation2 + $0xb3] sm:$0xff]
        %v6972 = vld [vmem:[#allocation2 + $0xbb] sm:$0xff]
        %v6973 = vld [vmem:[#allocation2 + $0xc3] sm:$0xff]
        %v6974 = vld [vmem:[#allocation2 + $0xcb] sm:$0xff]
        %v6975 = vld [vmem:[#allocation2 + $0xd3] sm:$0xff]
        %v6976 = vld [vmem:[#allocation2 + $0xdb] sm:$0xff]
        %v6977 = vld [vmem:[#allocation2 + $0xe3] sm:$0xff]
        %v6978 = vld [vmem:[#allocation2 + $0xeb] sm:$0xff]
        %v6979 = vld [vmem:[#allocation2 + $0xf3] sm:$0xff]
        %v6980 = vld [vmem:[#allocation2 + $0xfb] sm:$0xff]
        %v6981 = vld [vmem:[#allocation2 + $0x103] sm:$0xff]
        %v6982 = vld [vmem:[#allocation2 + $0x10b] sm:$0xff]
        %v6983 = vld [vmem:[#allocation2 + $0x113] sm:$0xff]
        %v6984 = vld [vmem:[#allocation2 + $0x11b] sm:$0xff]
        %v6985 = vld [vmem:[#allocation2 + $0x123] sm:$0xff]
        %v6986 = vld [vmem:[#allocation2 + $0x12b] sm:$0xff]
        %v6987 = vld [vmem:[#allocation2 + $0x133] sm:$0xff]
        %v6988 = vld [vmem:[#allocation2 + $0x13b] sm:$0xff]
        %v6989 = vld [vmem:[#allocation2 + $0x143] sm:$0xff]
        %v6990 = vld [vmem:[#allocation2 + $0x14b] sm:$0xff]
        %v6991 = vld [vmem:[#allocation2 + $0x153] sm:$0xf]
        %v6992 = vld [vmem:[%s5 + $0x80] sm:$0xff]
        %v6993 = vld [vmem:[%s5 + $0x88] sm:$0xff]
        %v6994 = vld [vmem:[%s5 + $0x90] sm:$0xff]
        %v6995 = vld [vmem:[%s5 + $0x98] sm:$0xff]
        %v6997 = vsel %vm4978, %v6951, 0
        %v7000 = vsel %vm4978, %v6952, 0
        %v7003 = vsel %vm4978, %v6953, 0
        %v7006 = vsel %vm4978, %v6954, 0
        %v7009 = vsel %vm4978, %v6955, 0
        %v7012 = vsel %vm4978, %v6956, 0
        %v7015 = vsel %vm4978, %v6957, 0
        %v7018 = vsel %vm4978, %v6958, 0
        %v7021 = vsel %vm4978, %v6959, 0
        %v7024 = vsel %vm4978, %v6960, 0
        %v7027 = vsel %vm4978, %v6961, 0
        %v7030 = vsel %vm4978, %v6962, 0
        %v7033 = vsel %vm4978, %v6963, 0
        %v7036 = vsel %vm4978, %v6964, 0
        %v7039 = vsel %vm4978, %v6965, 0
        %v7042 = vsel %vm4978, %v6966, 0
        %v7045 = vsel %vm4978, %v6967, 0
        %v7048 = vsel %vm4978, %v6968, 0
        %v7051 = vsel %vm4978, %v6969, 0
        %v7054 = vsel %vm4978, %v6970, 0
        %v7057 = vsel %vm4978, %v6971, 0
        %v7060 = vsel %vm4978, %v6972, 0
        %v7063 = vsel %vm4978, %v6973, 0
        %v7066 = vsel %vm4978, %v6974, 0
        %v7069 = vsel %vm4978, %v6975, 0
        %v7072 = vsel %vm4978, %v6976, 0
        %v7075 = vsel %vm4978, %v6977, 0
        %v7078 = vsel %vm4978, %v6978, 0
        %v7081 = vsel %vm4978, %v6979, 0
        %v7084 = vsel %vm4978, %v6980, 0
        %v7087 = vsel %vm4978, %v6981, 0
        %v7090 = vsel %vm4978, %v6982, 0
        %v7093 = vsel %vm4978, %v6983, 0
        %v7096 = vsel %vm4978, %v6984, 0
        %v7099 = vsel %vm4978, %v6985, 0
        %v7102 = vsel %vm4978, %v6986, 0
        %v7105 = vsel %vm4978, %v6987, 0
        %v7108 = vsel %vm4978, %v6988, 0
        %v7111 = vsel %vm4978, %v6989, 0
        %v7114 = vsel %vm4978, %v6990, 0
        %v7117 = vsel %vm4978, %v6991, 0
        %7119 = vmatprep.subr.mxu0 0.0
        %7120 = vmatpush1.msra.mxu0 0.0
        %7121 = vmatprep.subr.mxu0 0.0
        %7122 = vmatpush1.msra.mxu0 0.0
        %7123 = vmatprep.subr.mxu0 0.0
        %7124 = vmatpush1.msra.mxu0 0.0
        %7125 = vmatprep.subr.mxu0 0.0
        %7126 = vmatpush1.msra.mxu0 0.0
        %7127 = vmatprep.subr.mxu0 0.0
        %7128 = vmatpush1.msra.mxu0 0.0
        %7129 = vmatprep.subr.mxu0 0.0
        %7130 = vmatpush1.msra.mxu0 0.0
        %7131 = vmatprep.subr.mxu0 0.0
        %7132 = vmatpush1.msra.mxu0 0.0
        %7133 = vmatprep.subr.mxu0 0.0
        %7134 = vmatpush1.msra.mxu0 0.0
        %7135 = vmatprep.subr.mxu0 0.0
        %7136 = vmatpush1.msra.mxu0 0.0
        %7137 = vmatprep.subr.mxu0 0.0
        %7138 = vmatpush1.msra.mxu0 0.0
        %7139 = vmatprep.subr.mxu0 0.0
        %7140 = vmatpush1.msra.mxu0 0.0
        %7141 = vmatprep.subr.mxu0 0.0
        %7142 = vmatpush1.msra.mxu0 0.0
        %7143 = vmatprep.subr.mxu0 0.0
        %7144 = vmatpush1.msra.mxu0 %v6995
        %7145 = vmatprep.subr.mxu0 0.0
        %7146 = vmatpush1.msra.mxu0 %v6994
        %7147 = vmatprep.subr.mxu0 0.0
        %7148 = vmatpush1.msra.mxu0 %v6993
        %7149 = vmatprep.subr.mxu0 0.0
        %7150 = vmatpush1.msra.mxu0 %v6992
        %7151 = vmatprep.subr.mxu0 0.0
        %7152 = vmatpush2.msra.mxu0 0.0
        %7153 = vmatprep.subr.mxu0 0.0
        %7154 = vmatpush2.msra.mxu0 0.0
        %7155 = vmatprep.subr.mxu0 0.0
        %7156 = vmatpush2.msra.mxu0 0.0
        %7157 = vmatprep.subr.mxu0 0.0
        %7158 = vmatpush2.msra.mxu0 0.0
        %7159 = vmatprep.subr.mxu0 0.0
        %7160 = vmatpush2.msra.mxu0 0.0
        %7161 = vmatprep.subr.mxu0 0.0
        %7162 = vmatpush2.msra.mxu0 0.0
        %7163 = vmatprep.subr.mxu0 0.0
        %7164 = vmatpush2.msra.mxu0 0.0
        %7165 = vmatprep.subr.mxu0 0.0
        %7166 = vmatpush2.msra.mxu0 0.0
        %7167 = vmatprep.subr.mxu0 0.0
        %7168 = vmatpush2.msra.mxu0 0.0
        %7169 = vmatprep.subr.mxu0 0.0
        %7170 = vmatpush2.msra.mxu0 0.0
        %7171 = vmatprep.subr.mxu0 0.0
        %7172 = vmatpush2.msra.mxu0 0.0
        %7173 = vmatprep.subr.mxu0 0.0
        %7174 = vmatpush2.msra.mxu0 0.0
        %7175 = vmatprep.subr.mxu0 0.0
        %7176 = vmatpush2.msra.mxu0 0.0
        %7177 = vmatprep.subr.mxu0 0.0
        %7178 = vmatpush2.msra.mxu0 0.0
        %7179 = vmatprep.subr.mxu0 0.0
        %7180 = vmatpush2.msra.mxu0 0.0
        %7181 = vmatprep.subr.mxu0 0.0
        %7182 = vmatpush2.msra.mxu0 0.0
        %7183 = vmatprep.mubr.f32.mxu0 0.0
        %7184 = vmatmul.mubr.f32.gmra.mxu0 %v6997
        %v7185 = vpop.f32.mrf.mxu0
        %v7186 = vadd.f32 0.0, %v7185
        %v7187 = vpop.f32.mrf.mxu0
        %7188 = vmatprep.mubr.f32.mxu0 0.0
        %7189 = vmatmul.mubr.f32.gmra.mxu0 %v7000
        %v7190 = vpop.f32.mrf.mxu0
        %v7191 = vadd.f32 0.0, %v7190
        %v7192 = vpop.f32.mrf.mxu0
        %7193 = vmatprep.mubr.f32.mxu0 0.0
        %7194 = vmatmul.mubr.f32.gmra.mxu0 %v7003
        %v7195 = vpop.f32.mrf.mxu0
        %v7196 = vadd.f32 0.0, %v7195
        %v7197 = vpop.f32.mrf.mxu0
        %7198 = vmatprep.mubr.f32.mxu0 0.0
        %7199 = vmatmul.mubr.f32.gmra.mxu0 %v7006
        %v7200 = vpop.f32.mrf.mxu0
        %v7201 = vadd.f32 0.0, %v7200
        %v7202 = vpop.f32.mrf.mxu0
        %7203 = vmatprep.mubr.f32.mxu0 0.0
        %7204 = vmatmul.mubr.f32.gmra.mxu0 %v7009
        %v7205 = vpop.f32.mrf.mxu0
        %v7206 = vadd.f32 0.0, %v7205
        %v7207 = vpop.f32.mrf.mxu0
        %7208 = vmatprep.mubr.f32.mxu0 0.0
        %7209 = vmatmul.mubr.f32.gmra.mxu0 %v7012
        %v7210 = vpop.f32.mrf.mxu0
        %v7211 = vadd.f32 0.0, %v7210
        %v7212 = vpop.f32.mrf.mxu0
        %7213 = vmatprep.mubr.f32.mxu0 0.0
        %7214 = vmatmul.mubr.f32.gmra.mxu0 %v7015
        %v7215 = vpop.f32.mrf.mxu0
        %v7216 = vadd.f32 0.0, %v7215
        %v7217 = vpop.f32.mrf.mxu0
        %7218 = vmatprep.mubr.f32.mxu0 0.0
        %7219 = vmatmul.mubr.f32.gmra.mxu0 %v7018
        %v7220 = vpop.f32.mrf.mxu0
        %v7221 = vadd.f32 0.0, %v7220
        %v7222 = vpop.f32.mrf.mxu0
        %7223 = vmatprep.mubr.f32.mxu0 0.0
        %7224 = vmatmul.mubr.f32.gmra.mxu0 %v7021
        %v7225 = vpop.f32.mrf.mxu0
        %v7226 = vadd.f32 0.0, %v7225
        %v7227 = vpop.f32.mrf.mxu0
        %7228 = vmatprep.mubr.f32.mxu0 0.0
        %7229 = vmatmul.mubr.f32.gmra.mxu0 %v7024
        %v7230 = vpop.f32.mrf.mxu0
        %v7231 = vadd.f32 0.0, %v7230
        %v7232 = vpop.f32.mrf.mxu0
        %7233 = vmatprep.mubr.f32.mxu0 0.0
        %7234 = vmatmul.mubr.f32.gmra.mxu0 %v7027
        %v7235 = vpop.f32.mrf.mxu0
        %v7236 = vadd.f32 0.0, %v7235
        %v7237 = vpop.f32.mrf.mxu0
        %7238 = vmatprep.mubr.f32.mxu0 0.0
        %7239 = vmatmul.mubr.f32.gmra.mxu0 %v7030
        %v7240 = vpop.f32.mrf.mxu0
        %v7241 = vadd.f32 0.0, %v7240
        %v7242 = vpop.f32.mrf.mxu0
        %7243 = vmatprep.mubr.f32.mxu0 0.0
        %7244 = vmatmul.mubr.f32.gmra.mxu0 %v7033
        %v7245 = vpop.f32.mrf.mxu0
        %v7246 = vadd.f32 0.0, %v7245
        %v7247 = vpop.f32.mrf.mxu0
        %7248 = vmatprep.mubr.f32.mxu0 0.0
        %7249 = vmatmul.mubr.f32.gmra.mxu0 %v7036
        %v7250 = vpop.f32.mrf.mxu0
        %v7251 = vadd.f32 0.0, %v7250
        %v7252 = vpop.f32.mrf.mxu0
        %7253 = vmatprep.mubr.f32.mxu0 0.0
        %7254 = vmatmul.mubr.f32.gmra.mxu0 %v7039
        %v7255 = vpop.f32.mrf.mxu0
        %v7256 = vadd.f32 0.0, %v7255
        %v7257 = vpop.f32.mrf.mxu0
        %7258 = vmatprep.mubr.f32.mxu0 0.0
        %7259 = vmatmul.mubr.f32.gmra.mxu0 %v7042
        %v7260 = vpop.f32.mrf.mxu0
        %v7261 = vadd.f32 0.0, %v7260
        %v7262 = vpop.f32.mrf.mxu0
        %7263 = vmatprep.mubr.f32.mxu0 0.0
        %7264 = vmatmul.mubr.f32.gmra.mxu0 %v7045
        %v7265 = vpop.f32.mrf.mxu0
        %v7266 = vadd.f32 0.0, %v7265
        %v7267 = vpop.f32.mrf.mxu0
        %7268 = vmatprep.mubr.f32.mxu0 0.0
        %7269 = vmatmul.mubr.f32.gmra.mxu0 %v7048
        %v7270 = vpop.f32.mrf.mxu0
        %v7271 = vadd.f32 0.0, %v7270
        %v7272 = vpop.f32.mrf.mxu0
        %7273 = vmatprep.mubr.f32.mxu0 0.0
        %7274 = vmatmul.mubr.f32.gmra.mxu0 %v7051
        %v7275 = vpop.f32.mrf.mxu0
        %v7276 = vadd.f32 0.0, %v7275
        %v7277 = vpop.f32.mrf.mxu0
        %7278 = vmatprep.mubr.f32.mxu0 0.0
        %7279 = vmatmul.mubr.f32.gmra.mxu0 %v7054
        %v7280 = vpop.f32.mrf.mxu0
        %v7281 = vadd.f32 0.0, %v7280
        %v7282 = vpop.f32.mrf.mxu0
        %7283 = vmatprep.mubr.f32.mxu0 0.0
        %7284 = vmatmul.mubr.f32.gmra.mxu0 %v7057
        %v7285 = vpop.f32.mrf.mxu0
        %v7286 = vadd.f32 0.0, %v7285
        %v7287 = vpop.f32.mrf.mxu0
        %7288 = vmatprep.mubr.f32.mxu0 0.0
        %7289 = vmatmul.mubr.f32.gmra.mxu0 %v7060
        %v7290 = vpop.f32.mrf.mxu0
        %v7291 = vadd.f32 0.0, %v7290
        %v7292 = vpop.f32.mrf.mxu0
        %7293 = vmatprep.mubr.f32.mxu0 0.0
        %7294 = vmatmul.mubr.f32.gmra.mxu0 %v7063
        %v7295 = vpop.f32.mrf.mxu0
        %v7296 = vadd.f32 0.0, %v7295
        %v7297 = vpop.f32.mrf.mxu0
        %7298 = vmatprep.mubr.f32.mxu0 0.0
        %7299 = vmatmul.mubr.f32.gmra.mxu0 %v7066
        %v7300 = vpop.f32.mrf.mxu0
        %v7301 = vadd.f32 0.0, %v7300
        %v7302 = vpop.f32.mrf.mxu0
        %7303 = vmatprep.mubr.f32.mxu0 0.0
        %7304 = vmatmul.mubr.f32.gmra.mxu0 %v7069
        %v7305 = vpop.f32.mrf.mxu0
        %v7306 = vadd.f32 0.0, %v7305
        %v7307 = vpop.f32.mrf.mxu0
        %7308 = vmatprep.mubr.f32.mxu0 0.0
        %7309 = vmatmul.mubr.f32.gmra.mxu0 %v7072
        %v7310 = vpop.f32.mrf.mxu0
        %v7311 = vadd.f32 0.0, %v7310
        %v7312 = vpop.f32.mrf.mxu0
        %7313 = vmatprep.mubr.f32.mxu0 0.0
        %7314 = vmatmul.mubr.f32.gmra.mxu0 %v7075
        %v7315 = vpop.f32.mrf.mxu0
        %v7316 = vadd.f32 0.0, %v7315
        %v7317 = vpop.f32.mrf.mxu0
        %7318 = vmatprep.mubr.f32.mxu0 0.0
        %7319 = vmatmul.mubr.f32.gmra.mxu0 %v7078
        %v7320 = vpop.f32.mrf.mxu0
        %v7321 = vadd.f32 0.0, %v7320
        %v7322 = vpop.f32.mrf.mxu0
        %7323 = vmatprep.mubr.f32.mxu0 0.0
        %7324 = vmatmul.mubr.f32.gmra.mxu0 %v7081
        %v7325 = vpop.f32.mrf.mxu0
        %v7326 = vadd.f32 0.0, %v7325
        %v7327 = vpop.f32.mrf.mxu0
        %7328 = vmatprep.mubr.f32.mxu0 0.0
        %7329 = vmatmul.mubr.f32.gmra.mxu0 %v7084
        %v7330 = vpop.f32.mrf.mxu0
        %v7331 = vadd.f32 0.0, %v7330
        %v7332 = vpop.f32.mrf.mxu0
        %7333 = vmatprep.mubr.f32.mxu0 0.0
        %7334 = vmatmul.mubr.f32.gmra.mxu0 %v7087
        %v7335 = vpop.f32.mrf.mxu0
        %v7336 = vadd.f32 0.0, %v7335
        %v7337 = vpop.f32.mrf.mxu0
        %7338 = vmatprep.mubr.f32.mxu0 0.0
        %7339 = vmatmul.mubr.f32.gmra.mxu0 %v7090
        %v7340 = vpop.f32.mrf.mxu0
        %v7341 = vadd.f32 0.0, %v7340
        %v7342 = vpop.f32.mrf.mxu0
        %7343 = vmatprep.mubr.f32.mxu0 0.0
        %7344 = vmatmul.mubr.f32.gmra.mxu0 %v7093
        %v7345 = vpop.f32.mrf.mxu0
        %v7346 = vadd.f32 0.0, %v7345
        %v7347 = vpop.f32.mrf.mxu0
        %7348 = vmatprep.mubr.f32.mxu0 0.0
        %7349 = vmatmul.mubr.f32.gmra.mxu0 %v7096
        %v7350 = vpop.f32.mrf.mxu0
        %v7351 = vadd.f32 0.0, %v7350
        %v7352 = vpop.f32.mrf.mxu0
        %7353 = vmatprep.mubr.f32.mxu0 0.0
        %7354 = vmatmul.mubr.f32.gmra.mxu0 %v7099
        %v7355 = vpop.f32.mrf.mxu0
        %v7356 = vadd.f32 0.0, %v7355
        %v7357 = vpop.f32.mrf.mxu0
        %7358 = vmatprep.mubr.f32.mxu0 0.0
        %7359 = vmatmul.mubr.f32.gmra.mxu0 %v7102
        %v7360 = vpop.f32.mrf.mxu0
        %v7361 = vadd.f32 0.0, %v7360
        %v7362 = vpop.f32.mrf.mxu0
        %7363 = vmatprep.mubr.f32.mxu0 0.0
        %7364 = vmatmul.mubr.f32.gmra.mxu0 %v7105
        %v7365 = vpop.f32.mrf.mxu0
        %v7366 = vadd.f32 0.0, %v7365
        %v7367 = vpop.f32.mrf.mxu0
        %7368 = vmatprep.mubr.f32.mxu0 0.0
        %7369 = vmatmul.mubr.f32.gmra.mxu0 %v7108
        %v7370 = vpop.f32.mrf.mxu0
        %v7371 = vadd.f32 0.0, %v7370
        %v7372 = vpop.f32.mrf.mxu0
        %7373 = vmatprep.mubr.f32.mxu0 0.0
        %7374 = vmatmul.mubr.f32.gmra.mxu0 %v7111
        %v7375 = vpop.f32.mrf.mxu0
        %v7376 = vadd.f32 0.0, %v7375
        %v7377 = vpop.f32.mrf.mxu0
        %7378 = vmatprep.mubr.f32.mxu0 0.0
        %7379 = vmatmul.mubr.f32.gmra.mxu0 %v7114
        %v7380 = vpop.f32.mrf.mxu0
        %v7381 = vadd.f32 0.0, %v7380
        %v7382 = vpop.f32.mrf.mxu0
        %7383 = vmatprep.mubr.f32.mxu0 0.0
        %7384 = vmatmul.mubr.f32.gmra.mxu0 %v7117
        %v7385 = vpop.f32.mrf.mxu0
        %v7386 = vadd.f32 0.0, %v7385
        %v7387 = vpop.f32.mrf.mxu0
        %7388 = vdwg.mxu0
        %v7389 = vadd.f32 %v6910, %v7186
        %v7390 = vadd.f32 %v6911, %v7191
        %v7391 = vadd.f32 %v6912, %v7196
        %v7392 = vadd.f32 %v6913, %v7201
        %v7393 = vadd.f32 %v6914, %v7206
        %v7394 = vadd.f32 %v6915, %v7211
        %v7395 = vadd.f32 %v6916, %v7216
        %v7396 = vadd.f32 %v6917, %v7221
        %v7397 = vadd.f32 %v6918, %v7226
        %v7398 = vadd.f32 %v6919, %v7231
        %v7399 = vadd.f32 %v6920, %v7236
        %v7400 = vadd.f32 %v6921, %v7241
        %v7401 = vadd.f32 %v6922, %v7246
        %v7402 = vadd.f32 %v6923, %v7251
        %v7403 = vadd.f32 %v6924, %v7256
        %v7404 = vadd.f32 %v6925, %v7261
        %v7405 = vadd.f32 %v6926, %v7266
        %v7406 = vadd.f32 %v6927, %v7271
        %v7407 = vadd.f32 %v6928, %v7276
        %v7408 = vadd.f32 %v6929, %v7281
        %v7409 = vadd.f32 %v6930, %v7286
        %v7410 = vadd.f32 %v6931, %v7291
        %v7411 = vadd.f32 %v6932, %v7296
        %v7412 = vadd.f32 %v6933, %v7301
        %v7413 = vadd.f32 %v6934, %v7306
        %v7414 = vadd.f32 %v6935, %v7311
        %v7415 = vadd.f32 %v6936, %v7316
        %v7416 = vadd.f32 %v6937, %v7321
        %v7417 = vadd.f32 %v6938, %v7326
        %v7418 = vadd.f32 %v6939, %v7331
        %v7419 = vadd.f32 %v6940, %v7336
        %v7420 = vadd.f32 %v6941, %v7341
        %v7421 = vadd.f32 %v6942, %v7346
        %v7422 = vadd.f32 %v6943, %v7351
        %v7423 = vadd.f32 %v6944, %v7356
        %v7424 = vadd.f32 %v6945, %v7361
        %v7425 = vadd.f32 %v6946, %v7366
        %v7426 = vadd.f32 %v6947, %v7371
        %v7427 = vadd.f32 %v6948, %v7376
        %v7428 = vadd.f32 %v6949, %v7381
        %v7429 = vadd.f32 %v6950, %v7386
        %v7430 = vld [vmem:[#allocation2 + $0x14] sm:$0xff]
        %v7431 = vld [vmem:[#allocation2 + $0x1c] sm:$0xff]
        %v7432 = vld [vmem:[#allocation2 + $0x24] sm:$0xff]
        %v7433 = vld [vmem:[#allocation2 + $0x2c] sm:$0xff]
        %v7434 = vld [vmem:[#allocation2 + $0x34] sm:$0xff]
        %v7435 = vld [vmem:[#allocation2 + $0x3c] sm:$0xff]
        %v7436 = vld [vmem:[#allocation2 + $0x44] sm:$0xff]
        %v7437 = vld [vmem:[#allocation2 + $0x4c] sm:$0xff]
        %v7438 = vld [vmem:[#allocation2 + $0x54] sm:$0xff]
        %v7439 = vld [vmem:[#allocation2 + $0x5c] sm:$0xff]
        %v7440 = vld [vmem:[#allocation2 + $0x64] sm:$0xff]
        %v7441 = vld [vmem:[#allocation2 + $0x6c] sm:$0xff]
        %v7442 = vld [vmem:[#allocation2 + $0x74] sm:$0xff]
        %v7443 = vld [vmem:[#allocation2 + $0x7c] sm:$0xff]
        %v7444 = vld [vmem:[#allocation2 + $0x84] sm:$0xff]
        %v7445 = vld [vmem:[#allocation2 + $0x8c] sm:$0xff]
        %v7446 = vld [vmem:[#allocation2 + $0x94] sm:$0xff]
        %v7447 = vld [vmem:[#allocation2 + $0x9c] sm:$0xff]
        %v7448 = vld [vmem:[#allocation2 + $0xa4] sm:$0xff]
        %v7449 = vld [vmem:[#allocation2 + $0xac] sm:$0xff]
        %v7450 = vld [vmem:[#allocation2 + $0xb4] sm:$0xff]
        %v7451 = vld [vmem:[#allocation2 + $0xbc] sm:$0xff]
        %v7452 = vld [vmem:[#allocation2 + $0xc4] sm:$0xff]
        %v7453 = vld [vmem:[#allocation2 + $0xcc] sm:$0xff]
        %v7454 = vld [vmem:[#allocation2 + $0xd4] sm:$0xff]
        %v7455 = vld [vmem:[#allocation2 + $0xdc] sm:$0xff]
        %v7456 = vld [vmem:[#allocation2 + $0xe4] sm:$0xff]
        %v7457 = vld [vmem:[#allocation2 + $0xec] sm:$0xff]
        %v7458 = vld [vmem:[#allocation2 + $0xf4] sm:$0xff]
        %v7459 = vld [vmem:[#allocation2 + $0xfc] sm:$0xff]
        %v7460 = vld [vmem:[#allocation2 + $0x104] sm:$0xff]
        %v7461 = vld [vmem:[#allocation2 + $0x10c] sm:$0xff]
        %v7462 = vld [vmem:[#allocation2 + $0x114] sm:$0xff]
        %v7463 = vld [vmem:[#allocation2 + $0x11c] sm:$0xff]
        %v7464 = vld [vmem:[#allocation2 + $0x124] sm:$0xff]
        %v7465 = vld [vmem:[#allocation2 + $0x12c] sm:$0xff]
        %v7466 = vld [vmem:[#allocation2 + $0x134] sm:$0xff]
        %v7467 = vld [vmem:[#allocation2 + $0x13c] sm:$0xff]
        %v7468 = vld [vmem:[#allocation2 + $0x144] sm:$0xff]
        %v7469 = vld [vmem:[#allocation2 + $0x14c] sm:$0xff]
        %v7470 = vld [vmem:[#allocation2 + $0x154] sm:$0xf]
        %v7471 = vld [vmem:[%s5 + $0xa0] sm:$0xff]
        %v7472 = vld [vmem:[%s5 + $0xa8] sm:$0xff]
        %v7473 = vld [vmem:[%s5 + $0xb0] sm:$0xff]
        %v7474 = vld [vmem:[%s5 + $0xb8] sm:$0xff]
        %v7476 = vsel %vm4978, %v7430, 0
        %v7479 = vsel %vm4978, %v7431, 0
        %v7482 = vsel %vm4978, %v7432, 0
        %v7485 = vsel %vm4978, %v7433, 0
        %v7488 = vsel %vm4978, %v7434, 0
        %v7491 = vsel %vm4978, %v7435, 0
        %v7494 = vsel %vm4978, %v7436, 0
        %v7497 = vsel %vm4978, %v7437, 0
        %v7500 = vsel %vm4978, %v7438, 0
        %v7503 = vsel %vm4978, %v7439, 0
        %v7506 = vsel %vm4978, %v7440, 0
        %v7509 = vsel %vm4978, %v7441, 0
        %v7512 = vsel %vm4978, %v7442, 0
        %v7515 = vsel %vm4978, %v7443, 0
        %v7518 = vsel %vm4978, %v7444, 0
        %v7521 = vsel %vm4978, %v7445, 0
        %v7524 = vsel %vm4978, %v7446, 0
        %v7527 = vsel %vm4978, %v7447, 0
        %v7530 = vsel %vm4978, %v7448, 0
        %v7533 = vsel %vm4978, %v7449, 0
        %v7536 = vsel %vm4978, %v7450, 0
        %v7539 = vsel %vm4978, %v7451, 0
        %v7542 = vsel %vm4978, %v7452, 0
        %v7545 = vsel %vm4978, %v7453, 0
        %v7548 = vsel %vm4978, %v7454, 0
        %v7551 = vsel %vm4978, %v7455, 0
        %v7554 = vsel %vm4978, %v7456, 0
        %v7557 = vsel %vm4978, %v7457, 0
        %v7560 = vsel %vm4978, %v7458, 0
        %v7563 = vsel %vm4978, %v7459, 0
        %v7566 = vsel %vm4978, %v7460, 0
        %v7569 = vsel %vm4978, %v7461, 0
        %v7572 = vsel %vm4978, %v7462, 0
        %v7575 = vsel %vm4978, %v7463, 0
        %v7578 = vsel %vm4978, %v7464, 0
        %v7581 = vsel %vm4978, %v7465, 0
        %v7584 = vsel %vm4978, %v7466, 0
        %v7587 = vsel %vm4978, %v7467, 0
        %v7590 = vsel %vm4978, %v7468, 0
        %v7593 = vsel %vm4978, %v7469, 0
        %v7596 = vsel %vm4978, %v7470, 0
        %7598 = vmatprep.subr.mxu0 0.0
        %7599 = vmatpush1.msra.mxu0 0.0
        %7600 = vmatprep.subr.mxu0 0.0
        %7601 = vmatpush1.msra.mxu0 0.0
        %7602 = vmatprep.subr.mxu0 0.0
        %7603 = vmatpush1.msra.mxu0 0.0
        %7604 = vmatprep.subr.mxu0 0.0
        %7605 = vmatpush1.msra.mxu0 0.0
        %7606 = vmatprep.subr.mxu0 0.0
        %7607 = vmatpush1.msra.mxu0 0.0
        %7608 = vmatprep.subr.mxu0 0.0
        %7609 = vmatpush1.msra.mxu0 0.0
        %7610 = vmatprep.subr.mxu0 0.0
        %7611 = vmatpush1.msra.mxu0 0.0
        %7612 = vmatprep.subr.mxu0 0.0
        %7613 = vmatpush1.msra.mxu0 0.0
        %7614 = vmatprep.subr.mxu0 0.0
        %7615 = vmatpush1.msra.mxu0 0.0
        %7616 = vmatprep.subr.mxu0 0.0
        %7617 = vmatpush1.msra.mxu0 0.0
        %7618 = vmatprep.subr.mxu0 0.0
        %7619 = vmatpush1.msra.mxu0 0.0
        %7620 = vmatprep.subr.mxu0 0.0
        %7621 = vmatpush1.msra.mxu0 0.0
        %7622 = vmatprep.subr.mxu0 0.0
        %7623 = vmatpush1.msra.mxu0 %v7474
        %7624 = vmatprep.subr.mxu0 0.0
        %7625 = vmatpush1.msra.mxu0 %v7473
        %7626 = vmatprep.subr.mxu0 0.0
        %7627 = vmatpush1.msra.mxu0 %v7472
        %7628 = vmatprep.subr.mxu0 0.0
        %7629 = vmatpush1.msra.mxu0 %v7471
        %7630 = vmatprep.subr.mxu0 0.0
        %7631 = vmatpush2.msra.mxu0 0.0
        %7632 = vmatprep.subr.mxu0 0.0
        %7633 = vmatpush2.msra.mxu0 0.0
        %7634 = vmatprep.subr.mxu0 0.0
        %7635 = vmatpush2.msra.mxu0 0.0
        %7636 = vmatprep.subr.mxu0 0.0
        %7637 = vmatpush2.msra.mxu0 0.0
        %7638 = vmatprep.subr.mxu0 0.0
        %7639 = vmatpush2.msra.mxu0 0.0
        %7640 = vmatprep.subr.mxu0 0.0
        %7641 = vmatpush2.msra.mxu0 0.0
        %7642 = vmatprep.subr.mxu0 0.0
        %7643 = vmatpush2.msra.mxu0 0.0
        %7644 = vmatprep.subr.mxu0 0.0
        %7645 = vmatpush2.msra.mxu0 0.0
        %7646 = vmatprep.subr.mxu0 0.0
        %7647 = vmatpush2.msra.mxu0 0.0
        %7648 = vmatprep.subr.mxu0 0.0
        %7649 = vmatpush2.msra.mxu0 0.0
        %7650 = vmatprep.subr.mxu0 0.0
        %7651 = vmatpush2.msra.mxu0 0.0
        %7652 = vmatprep.subr.mxu0 0.0
        %7653 = vmatpush2.msra.mxu0 0.0
        %7654 = vmatprep.subr.mxu0 0.0
        %7655 = vmatpush2.msra.mxu0 0.0
        %7656 = vmatprep.subr.mxu0 0.0
        %7657 = vmatpush2.msra.mxu0 0.0
        %7658 = vmatprep.subr.mxu0 0.0
        %7659 = vmatpush2.msra.mxu0 0.0
        %7660 = vmatprep.subr.mxu0 0.0
        %7661 = vmatpush2.msra.mxu0 0.0
        %7662 = vmatprep.mubr.f32.mxu0 0.0
        %7663 = vmatmul.mubr.f32.gmra.mxu0 %v7476
        %v7664 = vpop.f32.mrf.mxu0
        %v7665 = vadd.f32 0.0, %v7664
        %v7666 = vpop.f32.mrf.mxu0
        %7667 = vmatprep.mubr.f32.mxu0 0.0
        %7668 = vmatmul.mubr.f32.gmra.mxu0 %v7479
        %v7669 = vpop.f32.mrf.mxu0
        %v7670 = vadd.f32 0.0, %v7669
        %v7671 = vpop.f32.mrf.mxu0
        %7672 = vmatprep.mubr.f32.mxu0 0.0
        %7673 = vmatmul.mubr.f32.gmra.mxu0 %v7482
        %v7674 = vpop.f32.mrf.mxu0
        %v7675 = vadd.f32 0.0, %v7674
        %v7676 = vpop.f32.mrf.mxu0
        %7677 = vmatprep.mubr.f32.mxu0 0.0
        %7678 = vmatmul.mubr.f32.gmra.mxu0 %v7485
        %v7679 = vpop.f32.mrf.mxu0
        %v7680 = vadd.f32 0.0, %v7679
        %v7681 = vpop.f32.mrf.mxu0
        %7682 = vmatprep.mubr.f32.mxu0 0.0
        %7683 = vmatmul.mubr.f32.gmra.mxu0 %v7488
        %v7684 = vpop.f32.mrf.mxu0
        %v7685 = vadd.f32 0.0, %v7684
        %v7686 = vpop.f32.mrf.mxu0
        %7687 = vmatprep.mubr.f32.mxu0 0.0
        %7688 = vmatmul.mubr.f32.gmra.mxu0 %v7491
        %v7689 = vpop.f32.mrf.mxu0
        %v7690 = vadd.f32 0.0, %v7689
        %v7691 = vpop.f32.mrf.mxu0
        %7692 = vmatprep.mubr.f32.mxu0 0.0
        %7693 = vmatmul.mubr.f32.gmra.mxu0 %v7494
        %v7694 = vpop.f32.mrf.mxu0
        %v7695 = vadd.f32 0.0, %v7694
        %v7696 = vpop.f32.mrf.mxu0
        %7697 = vmatprep.mubr.f32.mxu0 0.0
        %7698 = vmatmul.mubr.f32.gmra.mxu0 %v7497
        %v7699 = vpop.f32.mrf.mxu0
        %v7700 = vadd.f32 0.0, %v7699
        %v7701 = vpop.f32.mrf.mxu0
        %7702 = vmatprep.mubr.f32.mxu0 0.0
        %7703 = vmatmul.mubr.f32.gmra.mxu0 %v7500
        %v7704 = vpop.f32.mrf.mxu0
        %v7705 = vadd.f32 0.0, %v7704
        %v7706 = vpop.f32.mrf.mxu0
        %7707 = vmatprep.mubr.f32.mxu0 0.0
        %7708 = vmatmul.mubr.f32.gmra.mxu0 %v7503
        %v7709 = vpop.f32.mrf.mxu0
        %v7710 = vadd.f32 0.0, %v7709
        %v7711 = vpop.f32.mrf.mxu0
        %7712 = vmatprep.mubr.f32.mxu0 0.0
        %7713 = vmatmul.mubr.f32.gmra.mxu0 %v7506
        %v7714 = vpop.f32.mrf.mxu0
        %v7715 = vadd.f32 0.0, %v7714
        %v7716 = vpop.f32.mrf.mxu0
        %7717 = vmatprep.mubr.f32.mxu0 0.0
        %7718 = vmatmul.mubr.f32.gmra.mxu0 %v7509
        %v7719 = vpop.f32.mrf.mxu0
        %v7720 = vadd.f32 0.0, %v7719
        %v7721 = vpop.f32.mrf.mxu0
        %7722 = vmatprep.mubr.f32.mxu0 0.0
        %7723 = vmatmul.mubr.f32.gmra.mxu0 %v7512
        %v7724 = vpop.f32.mrf.mxu0
        %v7725 = vadd.f32 0.0, %v7724
        %v7726 = vpop.f32.mrf.mxu0
        %7727 = vmatprep.mubr.f32.mxu0 0.0
        %7728 = vmatmul.mubr.f32.gmra.mxu0 %v7515
        %v7729 = vpop.f32.mrf.mxu0
        %v7730 = vadd.f32 0.0, %v7729
        %v7731 = vpop.f32.mrf.mxu0
        %7732 = vmatprep.mubr.f32.mxu0 0.0
        %7733 = vmatmul.mubr.f32.gmra.mxu0 %v7518
        %v7734 = vpop.f32.mrf.mxu0
        %v7735 = vadd.f32 0.0, %v7734
        %v7736 = vpop.f32.mrf.mxu0
        %7737 = vmatprep.mubr.f32.mxu0 0.0
        %7738 = vmatmul.mubr.f32.gmra.mxu0 %v7521
        %v7739 = vpop.f32.mrf.mxu0
        %v7740 = vadd.f32 0.0, %v7739
        %v7741 = vpop.f32.mrf.mxu0
        %7742 = vmatprep.mubr.f32.mxu0 0.0
        %7743 = vmatmul.mubr.f32.gmra.mxu0 %v7524
        %v7744 = vpop.f32.mrf.mxu0
        %v7745 = vadd.f32 0.0, %v7744
        %v7746 = vpop.f32.mrf.mxu0
        %7747 = vmatprep.mubr.f32.mxu0 0.0
        %7748 = vmatmul.mubr.f32.gmra.mxu0 %v7527
        %v7749 = vpop.f32.mrf.mxu0
        %v7750 = vadd.f32 0.0, %v7749
        %v7751 = vpop.f32.mrf.mxu0
        %7752 = vmatprep.mubr.f32.mxu0 0.0
        %7753 = vmatmul.mubr.f32.gmra.mxu0 %v7530
        %v7754 = vpop.f32.mrf.mxu0
        %v7755 = vadd.f32 0.0, %v7754
        %v7756 = vpop.f32.mrf.mxu0
        %7757 = vmatprep.mubr.f32.mxu0 0.0
        %7758 = vmatmul.mubr.f32.gmra.mxu0 %v7533
        %v7759 = vpop.f32.mrf.mxu0
        %v7760 = vadd.f32 0.0, %v7759
        %v7761 = vpop.f32.mrf.mxu0
        %7762 = vmatprep.mubr.f32.mxu0 0.0
        %7763 = vmatmul.mubr.f32.gmra.mxu0 %v7536
        %v7764 = vpop.f32.mrf.mxu0
        %v7765 = vadd.f32 0.0, %v7764
        %v7766 = vpop.f32.mrf.mxu0
        %7767 = vmatprep.mubr.f32.mxu0 0.0
        %7768 = vmatmul.mubr.f32.gmra.mxu0 %v7539
        %v7769 = vpop.f32.mrf.mxu0
        %v7770 = vadd.f32 0.0, %v7769
        %v7771 = vpop.f32.mrf.mxu0
        %7772 = vmatprep.mubr.f32.mxu0 0.0
        %7773 = vmatmul.mubr.f32.gmra.mxu0 %v7542
        %v7774 = vpop.f32.mrf.mxu0
        %v7775 = vadd.f32 0.0, %v7774
        %v7776 = vpop.f32.mrf.mxu0
        %7777 = vmatprep.mubr.f32.mxu0 0.0
        %7778 = vmatmul.mubr.f32.gmra.mxu0 %v7545
        %v7779 = vpop.f32.mrf.mxu0
        %v7780 = vadd.f32 0.0, %v7779
        %v7781 = vpop.f32.mrf.mxu0
        %7782 = vmatprep.mubr.f32.mxu0 0.0
        %7783 = vmatmul.mubr.f32.gmra.mxu0 %v7548
        %v7784 = vpop.f32.mrf.mxu0
        %v7785 = vadd.f32 0.0, %v7784
        %v7786 = vpop.f32.mrf.mxu0
        %7787 = vmatprep.mubr.f32.mxu0 0.0
        %7788 = vmatmul.mubr.f32.gmra.mxu0 %v7551
        %v7789 = vpop.f32.mrf.mxu0
        %v7790 = vadd.f32 0.0, %v7789
        %v7791 = vpop.f32.mrf.mxu0
        %7792 = vmatprep.mubr.f32.mxu0 0.0
        %7793 = vmatmul.mubr.f32.gmra.mxu0 %v7554
        %v7794 = vpop.f32.mrf.mxu0
        %v7795 = vadd.f32 0.0, %v7794
        %v7796 = vpop.f32.mrf.mxu0
        %7797 = vmatprep.mubr.f32.mxu0 0.0
        %7798 = vmatmul.mubr.f32.gmra.mxu0 %v7557
        %v7799 = vpop.f32.mrf.mxu0
        %v7800 = vadd.f32 0.0, %v7799
        %v7801 = vpop.f32.mrf.mxu0
        %7802 = vmatprep.mubr.f32.mxu0 0.0
        %7803 = vmatmul.mubr.f32.gmra.mxu0 %v7560
        %v7804 = vpop.f32.mrf.mxu0
        %v7805 = vadd.f32 0.0, %v7804
        %v7806 = vpop.f32.mrf.mxu0
        %7807 = vmatprep.mubr.f32.mxu0 0.0
        %7808 = vmatmul.mubr.f32.gmra.mxu0 %v7563
        %v7809 = vpop.f32.mrf.mxu0
        %v7810 = vadd.f32 0.0, %v7809
        %v7811 = vpop.f32.mrf.mxu0
        %7812 = vmatprep.mubr.f32.mxu0 0.0
        %7813 = vmatmul.mubr.f32.gmra.mxu0 %v7566
        %v7814 = vpop.f32.mrf.mxu0
        %v7815 = vadd.f32 0.0, %v7814
        %v7816 = vpop.f32.mrf.mxu0
        %7817 = vmatprep.mubr.f32.mxu0 0.0
        %7818 = vmatmul.mubr.f32.gmra.mxu0 %v7569
        %v7819 = vpop.f32.mrf.mxu0
        %v7820 = vadd.f32 0.0, %v7819
        %v7821 = vpop.f32.mrf.mxu0
        %7822 = vmatprep.mubr.f32.mxu0 0.0
        %7823 = vmatmul.mubr.f32.gmra.mxu0 %v7572
        %v7824 = vpop.f32.mrf.mxu0
        %v7825 = vadd.f32 0.0, %v7824
        %v7826 = vpop.f32.mrf.mxu0
        %7827 = vmatprep.mubr.f32.mxu0 0.0
        %7828 = vmatmul.mubr.f32.gmra.mxu0 %v7575
        %v7829 = vpop.f32.mrf.mxu0
        %v7830 = vadd.f32 0.0, %v7829
        %v7831 = vpop.f32.mrf.mxu0
        %7832 = vmatprep.mubr.f32.mxu0 0.0
        %7833 = vmatmul.mubr.f32.gmra.mxu0 %v7578
        %v7834 = vpop.f32.mrf.mxu0
        %v7835 = vadd.f32 0.0, %v7834
        %v7836 = vpop.f32.mrf.mxu0
        %7837 = vmatprep.mubr.f32.mxu0 0.0
        %7838 = vmatmul.mubr.f32.gmra.mxu0 %v7581
        %v7839 = vpop.f32.mrf.mxu0
        %v7840 = vadd.f32 0.0, %v7839
        %v7841 = vpop.f32.mrf.mxu0
        %7842 = vmatprep.mubr.f32.mxu0 0.0
        %7843 = vmatmul.mubr.f32.gmra.mxu0 %v7584
        %v7844 = vpop.f32.mrf.mxu0
        %v7845 = vadd.f32 0.0, %v7844
        %v7846 = vpop.f32.mrf.mxu0
        %7847 = vmatprep.mubr.f32.mxu0 0.0
        %7848 = vmatmul.mubr.f32.gmra.mxu0 %v7587
        %v7849 = vpop.f32.mrf.mxu0
        %v7850 = vadd.f32 0.0, %v7849
        %v7851 = vpop.f32.mrf.mxu0
        %7852 = vmatprep.mubr.f32.mxu0 0.0
        %7853 = vmatmul.mubr.f32.gmra.mxu0 %v7590
        %v7854 = vpop.f32.mrf.mxu0
        %v7855 = vadd.f32 0.0, %v7854
        %v7856 = vpop.f32.mrf.mxu0
        %7857 = vmatprep.mubr.f32.mxu0 0.0
        %7858 = vmatmul.mubr.f32.gmra.mxu0 %v7593
        %v7859 = vpop.f32.mrf.mxu0
        %v7860 = vadd.f32 0.0, %v7859
        %v7861 = vpop.f32.mrf.mxu0
        %7862 = vmatprep.mubr.f32.mxu0 0.0
        %7863 = vmatmul.mubr.f32.gmra.mxu0 %v7596
        %v7864 = vpop.f32.mrf.mxu0
        %v7865 = vadd.f32 0.0, %v7864
        %v7866 = vpop.f32.mrf.mxu0
        %7867 = vdwg.mxu0
        %v7868 = vadd.f32 %v7389, %v7665
        %v7869 = vadd.f32 %v7390, %v7670
        %v7870 = vadd.f32 %v7391, %v7675
        %v7871 = vadd.f32 %v7392, %v7680
        %v7872 = vadd.f32 %v7393, %v7685
        %v7873 = vadd.f32 %v7394, %v7690
        %v7874 = vadd.f32 %v7395, %v7695
        %v7875 = vadd.f32 %v7396, %v7700
        %v7876 = vadd.f32 %v7397, %v7705
        %v7877 = vadd.f32 %v7398, %v7710
        %v7878 = vadd.f32 %v7399, %v7715
        %v7879 = vadd.f32 %v7400, %v7720
        %v7880 = vadd.f32 %v7401, %v7725
        %v7881 = vadd.f32 %v7402, %v7730
        %v7882 = vadd.f32 %v7403, %v7735
        %v7883 = vadd.f32 %v7404, %v7740
        %v7884 = vadd.f32 %v7405, %v7745
        %v7885 = vadd.f32 %v7406, %v7750
        %v7886 = vadd.f32 %v7407, %v7755
        %v7887 = vadd.f32 %v7408, %v7760
        %v7888 = vadd.f32 %v7409, %v7765
        %v7889 = vadd.f32 %v7410, %v7770
        %v7890 = vadd.f32 %v7411, %v7775
        %v7891 = vadd.f32 %v7412, %v7780
        %v7892 = vadd.f32 %v7413, %v7785
        %v7893 = vadd.f32 %v7414, %v7790
        %v7894 = vadd.f32 %v7415, %v7795
        %v7895 = vadd.f32 %v7416, %v7800
        %v7896 = vadd.f32 %v7417, %v7805
        %v7897 = vadd.f32 %v7418, %v7810
        %v7898 = vadd.f32 %v7419, %v7815
        %v7899 = vadd.f32 %v7420, %v7820
        %v7900 = vadd.f32 %v7421, %v7825
        %v7901 = vadd.f32 %v7422, %v7830
        %v7902 = vadd.f32 %v7423, %v7835
        %v7903 = vadd.f32 %v7424, %v7840
        %v7904 = vadd.f32 %v7425, %v7845
        %v7905 = vadd.f32 %v7426, %v7850
        %v7906 = vadd.f32 %v7427, %v7855
        %v7907 = vadd.f32 %v7428, %v7860
        %v7908 = vadd.f32 %v7429, %v7865
        %v7909 = vld [vmem:[#allocation2 + $0x24] sm:$0xff]
        %v7910 = vld [vmem:[#allocation2 + $0x2c] sm:$0xff]
        %v7911 = vld [vmem:[#allocation2 + $0x34] sm:$0xff]
        %v7912 = vld [vmem:[#allocation2 + $0x3c] sm:$0xff]
        %v7913 = vld [vmem:[#allocation2 + $0x44] sm:$0xff]
        %v7914 = vld [vmem:[#allocation2 + $0x4c] sm:$0xff]
        %v7915 = vld [vmem:[#allocation2 + $0x54] sm:$0xff]
        %v7916 = vld [vmem:[#allocation2 + $0x5c] sm:$0xff]
        %v7917 = vld [vmem:[#allocation2 + $0x64] sm:$0xff]
        %v7918 = vld [vmem:[#allocation2 + $0x6c] sm:$0xff]
        %v7919 = vld [vmem:[#allocation2 + $0x74] sm:$0xff]
        %v7920 = vld [vmem:[#allocation2 + $0x7c] sm:$0xff]
        %v7921 = vld [vmem:[#allocation2 + $0x84] sm:$0xff]
        %v7922 = vld [vmem:[#allocation2 + $0x8c] sm:$0xff]
        %v7923 = vld [vmem:[#allocation2 + $0x94] sm:$0xff]
        %v7924 = vld [vmem:[#allocation2 + $0x9c] sm:$0xff]
        %v7925 = vld [vmem:[#allocation2 + $0xa4] sm:$0xff]
        %v7926 = vld [vmem:[#allocation2 + $0xac] sm:$0xff]
        %v7927 = vld [vmem:[#allocation2 + $0xb4] sm:$0xff]
        %v7928 = vld [vmem:[#allocation2 + $0xbc] sm:$0xff]
        %v7929 = vld [vmem:[#allocation2 + $0xc4] sm:$0xff]
        %v7930 = vld [vmem:[#allocation2 + $0xcc] sm:$0xff]
        %v7931 = vld [vmem:[#allocation2 + $0xd4] sm:$0xff]
        %v7932 = vld [vmem:[#allocation2 + $0xdc] sm:$0xff]
        %v7933 = vld [vmem:[#allocation2 + $0xe4] sm:$0xff]
        %v7934 = vld [vmem:[#allocation2 + $0xec] sm:$0xff]
        %v7935 = vld [vmem:[#allocation2 + $0xf4] sm:$0xff]
        %v7936 = vld [vmem:[#allocation2 + $0xfc] sm:$0xff]
        %v7937 = vld [vmem:[#allocation2 + $0x104] sm:$0xff]
        %v7938 = vld [vmem:[#allocation2 + $0x10c] sm:$0xff]
        %v7939 = vld [vmem:[#allocation2 + $0x114] sm:$0xff]
        %v7940 = vld [vmem:[#allocation2 + $0x11c] sm:$0xff]
        %v7941 = vld [vmem:[#allocation2 + $0x124] sm:$0xff]
        %v7942 = vld [vmem:[#allocation2 + $0x12c] sm:$0xff]
        %v7943 = vld [vmem:[#allocation2 + $0x134] sm:$0xff]
        %v7944 = vld [vmem:[#allocation2 + $0x13c] sm:$0xff]
        %v7945 = vld [vmem:[#allocation2 + $0x144] sm:$0xff]
        %v7946 = vld [vmem:[#allocation2 + $0x14c] sm:$0xff]
        %v7947 = vld [vmem:[#allocation2 + $0x154] sm:$0xff]
        %v7948 = vld [vmem:[#allocation2 + $0x15c] sm:$0xff]
        %v7949 = vld [vmem:[#allocation2 + $0x164] sm:$0xf]
        %v7950 = vld [vmem:[%s5 + $0xc0] sm:$0xff]
        %v7951 = vld [vmem:[%s5 + $0xc8] sm:$0xff]
        %v7952 = vld [vmem:[%s5 + $0xd0] sm:$0xff]
        %v7953 = vld [vmem:[%s5 + $0xd8] sm:$0xff]
        %v7955 = vsel %vm4978, %v7909, 0
        %v7958 = vsel %vm4978, %v7910, 0
        %v7961 = vsel %vm4978, %v7911, 0
        %v7964 = vsel %vm4978, %v7912, 0
        %v7967 = vsel %vm4978, %v7913, 0
        %v7970 = vsel %vm4978, %v7914, 0
        %v7973 = vsel %vm4978, %v7915, 0
        %v7976 = vsel %vm4978, %v7916, 0
        %v7979 = vsel %vm4978, %v7917, 0
        %v7982 = vsel %vm4978, %v7918, 0
        %v7985 = vsel %vm4978, %v7919, 0
        %v7988 = vsel %vm4978, %v7920, 0
        %v7991 = vsel %vm4978, %v7921, 0
        %v7994 = vsel %vm4978, %v7922, 0
        %v7997 = vsel %vm4978, %v7923, 0
        %v8000 = vsel %vm4978, %v7924, 0
        %v8003 = vsel %vm4978, %v7925, 0
        %v8006 = vsel %vm4978, %v7926, 0
        %v8009 = vsel %vm4978, %v7927, 0
        %v8012 = vsel %vm4978, %v7928, 0
        %v8015 = vsel %vm4978, %v7929, 0
        %v8018 = vsel %vm4978, %v7930, 0
        %v8021 = vsel %vm4978, %v7931, 0
        %v8024 = vsel %vm4978, %v7932, 0
        %v8027 = vsel %vm4978, %v7933, 0
        %v8030 = vsel %vm4978, %v7934, 0
        %v8033 = vsel %vm4978, %v7935, 0
        %v8036 = vsel %vm4978, %v7936, 0
        %v8039 = vsel %vm4978, %v7937, 0
        %v8042 = vsel %vm4978, %v7938, 0
        %v8045 = vsel %vm4978, %v7939, 0
        %v8048 = vsel %vm4978, %v7940, 0
        %v8051 = vsel %vm4978, %v7941, 0
        %v8054 = vsel %vm4978, %v7942, 0
        %v8057 = vsel %vm4978, %v7943, 0
        %v8060 = vsel %vm4978, %v7944, 0
        %v8063 = vsel %vm4978, %v7945, 0
        %v8066 = vsel %vm4978, %v7946, 0
        %v8069 = vsel %vm4978, %v7947, 0
        %v8072 = vsel %vm4978, %v7948, 0
        %v8075 = vsel %vm4978, %v7949, 0
        %8077 = vmatprep.subr.mxu0 0.0
        %8078 = vmatpush1.msra.mxu0 0.0
        %8079 = vmatprep.subr.mxu0 0.0
        %8080 = vmatpush1.msra.mxu0 0.0
        %8081 = vmatprep.subr.mxu0 0.0
        %8082 = vmatpush1.msra.mxu0 0.0
        %8083 = vmatprep.subr.mxu0 0.0
        %8084 = vmatpush1.msra.mxu0 0.0
        %8085 = vmatprep.subr.mxu0 0.0
        %8086 = vmatpush1.msra.mxu0 0.0
        %8087 = vmatprep.subr.mxu0 0.0
        %8088 = vmatpush1.msra.mxu0 0.0
        %8089 = vmatprep.subr.mxu0 0.0
        %8090 = vmatpush1.msra.mxu0 0.0
        %8091 = vmatprep.subr.mxu0 0.0
        %8092 = vmatpush1.msra.mxu0 0.0
        %8093 = vmatprep.subr.mxu0 0.0
        %8094 = vmatpush1.msra.mxu0 0.0
        %8095 = vmatprep.subr.mxu0 0.0
        %8096 = vmatpush1.msra.mxu0 0.0
        %8097 = vmatprep.subr.mxu0 0.0
        %8098 = vmatpush1.msra.mxu0 0.0
        %8099 = vmatprep.subr.mxu0 0.0
        %8100 = vmatpush1.msra.mxu0 0.0
        %8101 = vmatprep.subr.mxu0 0.0
        %8102 = vmatpush1.msra.mxu0 %v7953
        %8103 = vmatprep.subr.mxu0 0.0
        %8104 = vmatpush1.msra.mxu0 %v7952
        %8105 = vmatprep.subr.mxu0 0.0
        %8106 = vmatpush1.msra.mxu0 %v7951
        %8107 = vmatprep.subr.mxu0 0.0
        %8108 = vmatpush1.msra.mxu0 %v7950
        %8109 = vmatprep.subr.mxu0 0.0
        %8110 = vmatpush2.msra.mxu0 0.0
        %8111 = vmatprep.subr.mxu0 0.0
        %8112 = vmatpush2.msra.mxu0 0.0
        %8113 = vmatprep.subr.mxu0 0.0
        %8114 = vmatpush2.msra.mxu0 0.0
        %8115 = vmatprep.subr.mxu0 0.0
        %8116 = vmatpush2.msra.mxu0 0.0
        %8117 = vmatprep.subr.mxu0 0.0
        %8118 = vmatpush2.msra.mxu0 0.0
        %8119 = vmatprep.subr.mxu0 0.0
        %8120 = vmatpush2.msra.mxu0 0.0
        %8121 = vmatprep.subr.mxu0 0.0
        %8122 = vmatpush2.msra.mxu0 0.0
        %8123 = vmatprep.subr.mxu0 0.0
        %8124 = vmatpush2.msra.mxu0 0.0
        %8125 = vmatprep.subr.mxu0 0.0
        %8126 = vmatpush2.msra.mxu0 0.0
        %8127 = vmatprep.subr.mxu0 0.0
        %8128 = vmatpush2.msra.mxu0 0.0
        %8129 = vmatprep.subr.mxu0 0.0
        %8130 = vmatpush2.msra.mxu0 0.0
        %8131 = vmatprep.subr.mxu0 0.0
        %8132 = vmatpush2.msra.mxu0 0.0
        %8133 = vmatprep.subr.mxu0 0.0
        %8134 = vmatpush2.msra.mxu0 0.0
        %8135 = vmatprep.subr.mxu0 0.0
        %8136 = vmatpush2.msra.mxu0 0.0
        %8137 = vmatprep.subr.mxu0 0.0
        %8138 = vmatpush2.msra.mxu0 0.0
        %8139 = vmatprep.subr.mxu0 0.0
        %8140 = vmatpush2.msra.mxu0 0.0
        %8141 = vmatprep.mubr.f32.mxu0 0.0
        %8142 = vmatmul.mubr.f32.gmra.mxu0 %v7955
        %v8143 = vpop.f32.mrf.mxu0
        %v8144 = vadd.f32 0.0, %v8143
        %v8145 = vpop.f32.mrf.mxu0
        %8146 = vmatprep.mubr.f32.mxu0 0.0
        %8147 = vmatmul.mubr.f32.gmra.mxu0 %v7958
        %v8148 = vpop.f32.mrf.mxu0
        %v8149 = vadd.f32 0.0, %v8148
        %v8150 = vpop.f32.mrf.mxu0
        %8151 = vmatprep.mubr.f32.mxu0 0.0
        %8152 = vmatmul.mubr.f32.gmra.mxu0 %v7961
        %v8153 = vpop.f32.mrf.mxu0
        %v8154 = vadd.f32 0.0, %v8153
        %v8155 = vpop.f32.mrf.mxu0
        %8156 = vmatprep.mubr.f32.mxu0 0.0
        %8157 = vmatmul.mubr.f32.gmra.mxu0 %v7964
        %v8158 = vpop.f32.mrf.mxu0
        %v8159 = vadd.f32 0.0, %v8158
        %v8160 = vpop.f32.mrf.mxu0
        %8161 = vmatprep.mubr.f32.mxu0 0.0
        %8162 = vmatmul.mubr.f32.gmra.mxu0 %v7967
        %v8163 = vpop.f32.mrf.mxu0
        %v8164 = vadd.f32 0.0, %v8163
        %v8165 = vpop.f32.mrf.mxu0
        %8166 = vmatprep.mubr.f32.mxu0 0.0
        %8167 = vmatmul.mubr.f32.gmra.mxu0 %v7970
        %v8168 = vpop.f32.mrf.mxu0
        %v8169 = vadd.f32 0.0, %v8168
        %v8170 = vpop.f32.mrf.mxu0
        %8171 = vmatprep.mubr.f32.mxu0 0.0
        %8172 = vmatmul.mubr.f32.gmra.mxu0 %v7973
        %v8173 = vpop.f32.mrf.mxu0
        %v8174 = vadd.f32 0.0, %v8173
        %v8175 = vpop.f32.mrf.mxu0
        %8176 = vmatprep.mubr.f32.mxu0 0.0
        %8177 = vmatmul.mubr.f32.gmra.mxu0 %v7976
        %v8178 = vpop.f32.mrf.mxu0
        %v8179 = vadd.f32 0.0, %v8178
        %v8180 = vpop.f32.mrf.mxu0
        %8181 = vmatprep.mubr.f32.mxu0 0.0
        %8182 = vmatmul.mubr.f32.gmra.mxu0 %v7979
        %v8183 = vpop.f32.mrf.mxu0
        %v8184 = vadd.f32 0.0, %v8183
        %v8185 = vpop.f32.mrf.mxu0
        %8186 = vmatprep.mubr.f32.mxu0 0.0
        %8187 = vmatmul.mubr.f32.gmra.mxu0 %v7982
        %v8188 = vpop.f32.mrf.mxu0
        %v8189 = vadd.f32 0.0, %v8188
        %v8190 = vpop.f32.mrf.mxu0
        %8191 = vmatprep.mubr.f32.mxu0 0.0
        %8192 = vmatmul.mubr.f32.gmra.mxu0 %v7985
        %v8193 = vpop.f32.mrf.mxu0
        %v8194 = vadd.f32 0.0, %v8193
        %v8195 = vpop.f32.mrf.mxu0
        %8196 = vmatprep.mubr.f32.mxu0 0.0
        %8197 = vmatmul.mubr.f32.gmra.mxu0 %v7988
        %v8198 = vpop.f32.mrf.mxu0
        %v8199 = vadd.f32 0.0, %v8198
        %v8200 = vpop.f32.mrf.mxu0
        %8201 = vmatprep.mubr.f32.mxu0 0.0
        %8202 = vmatmul.mubr.f32.gmra.mxu0 %v7991
        %v8203 = vpop.f32.mrf.mxu0
        %v8204 = vadd.f32 0.0, %v8203
        %v8205 = vpop.f32.mrf.mxu0
        %8206 = vmatprep.mubr.f32.mxu0 0.0
        %8207 = vmatmul.mubr.f32.gmra.mxu0 %v7994
        %v8208 = vpop.f32.mrf.mxu0
        %v8209 = vadd.f32 0.0, %v8208
        %v8210 = vpop.f32.mrf.mxu0
        %8211 = vmatprep.mubr.f32.mxu0 0.0
        %8212 = vmatmul.mubr.f32.gmra.mxu0 %v7997
        %v8213 = vpop.f32.mrf.mxu0
        %v8214 = vadd.f32 0.0, %v8213
        %v8215 = vpop.f32.mrf.mxu0
        %8216 = vmatprep.mubr.f32.mxu0 0.0
        %8217 = vmatmul.mubr.f32.gmra.mxu0 %v8000
        %v8218 = vpop.f32.mrf.mxu0
        %v8219 = vadd.f32 0.0, %v8218
        %v8220 = vpop.f32.mrf.mxu0
        %8221 = vmatprep.mubr.f32.mxu0 0.0
        %8222 = vmatmul.mubr.f32.gmra.mxu0 %v8003
        %v8223 = vpop.f32.mrf.mxu0
        %v8224 = vadd.f32 0.0, %v8223
        %v8225 = vpop.f32.mrf.mxu0
        %8226 = vmatprep.mubr.f32.mxu0 0.0
        %8227 = vmatmul.mubr.f32.gmra.mxu0 %v8006
        %v8228 = vpop.f32.mrf.mxu0
        %v8229 = vadd.f32 0.0, %v8228
        %v8230 = vpop.f32.mrf.mxu0
        %8231 = vmatprep.mubr.f32.mxu0 0.0
        %8232 = vmatmul.mubr.f32.gmra.mxu0 %v8009
        %v8233 = vpop.f32.mrf.mxu0
        %v8234 = vadd.f32 0.0, %v8233
        %v8235 = vpop.f32.mrf.mxu0
        %8236 = vmatprep.mubr.f32.mxu0 0.0
        %8237 = vmatmul.mubr.f32.gmra.mxu0 %v8012
        %v8238 = vpop.f32.mrf.mxu0
        %v8239 = vadd.f32 0.0, %v8238
        %v8240 = vpop.f32.mrf.mxu0
        %8241 = vmatprep.mubr.f32.mxu0 0.0
        %8242 = vmatmul.mubr.f32.gmra.mxu0 %v8015
        %v8243 = vpop.f32.mrf.mxu0
        %v8244 = vadd.f32 0.0, %v8243
        %v8245 = vpop.f32.mrf.mxu0
        %8246 = vmatprep.mubr.f32.mxu0 0.0
        %8247 = vmatmul.mubr.f32.gmra.mxu0 %v8018
        %v8248 = vpop.f32.mrf.mxu0
        %v8249 = vadd.f32 0.0, %v8248
        %v8250 = vpop.f32.mrf.mxu0
        %8251 = vmatprep.mubr.f32.mxu0 0.0
        %8252 = vmatmul.mubr.f32.gmra.mxu0 %v8021
        %v8253 = vpop.f32.mrf.mxu0
        %v8254 = vadd.f32 0.0, %v8253
        %v8255 = vpop.f32.mrf.mxu0
        %8256 = vmatprep.mubr.f32.mxu0 0.0
        %8257 = vmatmul.mubr.f32.gmra.mxu0 %v8024
        %v8258 = vpop.f32.mrf.mxu0
        %v8259 = vadd.f32 0.0, %v8258
        %v8260 = vpop.f32.mrf.mxu0
        %8261 = vmatprep.mubr.f32.mxu0 0.0
        %8262 = vmatmul.mubr.f32.gmra.mxu0 %v8027
        %v8263 = vpop.f32.mrf.mxu0
        %v8264 = vadd.f32 0.0, %v8263
        %v8265 = vpop.f32.mrf.mxu0
        %8266 = vmatprep.mubr.f32.mxu0 0.0
        %8267 = vmatmul.mubr.f32.gmra.mxu0 %v8030
        %v8268 = vpop.f32.mrf.mxu0
        %v8269 = vadd.f32 0.0, %v8268
        %v8270 = vpop.f32.mrf.mxu0
        %8271 = vmatprep.mubr.f32.mxu0 0.0
        %8272 = vmatmul.mubr.f32.gmra.mxu0 %v8033
        %v8273 = vpop.f32.mrf.mxu0
        %v8274 = vadd.f32 0.0, %v8273
        %v8275 = vpop.f32.mrf.mxu0
        %8276 = vmatprep.mubr.f32.mxu0 0.0
        %8277 = vmatmul.mubr.f32.gmra.mxu0 %v8036
        %v8278 = vpop.f32.mrf.mxu0
        %v8279 = vadd.f32 0.0, %v8278
        %v8280 = vpop.f32.mrf.mxu0
        %8281 = vmatprep.mubr.f32.mxu0 0.0
        %8282 = vmatmul.mubr.f32.gmra.mxu0 %v8039
        %v8283 = vpop.f32.mrf.mxu0
        %v8284 = vadd.f32 0.0, %v8283
        %v8285 = vpop.f32.mrf.mxu0
        %8286 = vmatprep.mubr.f32.mxu0 0.0
        %8287 = vmatmul.mubr.f32.gmra.mxu0 %v8042
        %v8288 = vpop.f32.mrf.mxu0
        %v8289 = vadd.f32 0.0, %v8288
        %v8290 = vpop.f32.mrf.mxu0
        %8291 = vmatprep.mubr.f32.mxu0 0.0
        %8292 = vmatmul.mubr.f32.gmra.mxu0 %v8045
        %v8293 = vpop.f32.mrf.mxu0
        %v8294 = vadd.f32 0.0, %v8293
        %v8295 = vpop.f32.mrf.mxu0
        %8296 = vmatprep.mubr.f32.mxu0 0.0
        %8297 = vmatmul.mubr.f32.gmra.mxu0 %v8048
        %v8298 = vpop.f32.mrf.mxu0
        %v8299 = vadd.f32 0.0, %v8298
        %v8300 = vpop.f32.mrf.mxu0
        %8301 = vmatprep.mubr.f32.mxu0 0.0
        %8302 = vmatmul.mubr.f32.gmra.mxu0 %v8051
        %v8303 = vpop.f32.mrf.mxu0
        %v8304 = vadd.f32 0.0, %v8303
        %v8305 = vpop.f32.mrf.mxu0
        %8306 = vmatprep.mubr.f32.mxu0 0.0
        %8307 = vmatmul.mubr.f32.gmra.mxu0 %v8054
        %v8308 = vpop.f32.mrf.mxu0
        %v8309 = vadd.f32 0.0, %v8308
        %v8310 = vpop.f32.mrf.mxu0
        %8311 = vmatprep.mubr.f32.mxu0 0.0
        %8312 = vmatmul.mubr.f32.gmra.mxu0 %v8057
        %v8313 = vpop.f32.mrf.mxu0
        %v8314 = vadd.f32 0.0, %v8313
        %v8315 = vpop.f32.mrf.mxu0
        %8316 = vmatprep.mubr.f32.mxu0 0.0
        %8317 = vmatmul.mubr.f32.gmra.mxu0 %v8060
        %v8318 = vpop.f32.mrf.mxu0
        %v8319 = vadd.f32 0.0, %v8318
        %v8320 = vpop.f32.mrf.mxu0
        %8321 = vmatprep.mubr.f32.mxu0 0.0
        %8322 = vmatmul.mubr.f32.gmra.mxu0 %v8063
        %v8323 = vpop.f32.mrf.mxu0
        %v8324 = vadd.f32 0.0, %v8323
        %v8325 = vpop.f32.mrf.mxu0
        %8326 = vmatprep.mubr.f32.mxu0 0.0
        %8327 = vmatmul.mubr.f32.gmra.mxu0 %v8066
        %v8328 = vpop.f32.mrf.mxu0
        %v8329 = vadd.f32 0.0, %v8328
        %v8330 = vpop.f32.mrf.mxu0
        %8331 = vmatprep.mubr.f32.mxu0 0.0
        %8332 = vmatmul.mubr.f32.gmra.mxu0 %v8069
        %v8333 = vpop.f32.mrf.mxu0
        %v8334 = vadd.f32 0.0, %v8333
        %v8335 = vpop.f32.mrf.mxu0
        %8336 = vmatprep.mubr.f32.mxu0 0.0
        %8337 = vmatmul.mubr.f32.gmra.mxu0 %v8072
        %v8338 = vpop.f32.mrf.mxu0
        %v8339 = vadd.f32 0.0, %v8338
        %v8340 = vpop.f32.mrf.mxu0
        %8341 = vmatprep.mubr.f32.mxu0 0.0
        %8342 = vmatmul.mubr.f32.gmra.mxu0 %v8075
        %v8343 = vpop.f32.mrf.mxu0
        %v8344 = vadd.f32 0.0, %v8343
        %v8345 = vpop.f32.mrf.mxu0
        %8346 = vdwg.mxu0
        %v8347 = vadd.f32 %v7868, %v8144
        %v8348 = vadd.f32 %v7869, %v8149
        %v8349 = vadd.f32 %v7870, %v8154
        %v8350 = vadd.f32 %v7871, %v8159
        %v8351 = vadd.f32 %v7872, %v8164
        %v8352 = vadd.f32 %v7873, %v8169
        %v8353 = vadd.f32 %v7874, %v8174
        %v8354 = vadd.f32 %v7875, %v8179
        %v8355 = vadd.f32 %v7876, %v8184
        %v8356 = vadd.f32 %v7877, %v8189
        %v8357 = vadd.f32 %v7878, %v8194
        %v8358 = vadd.f32 %v7879, %v8199
        %v8359 = vadd.f32 %v7880, %v8204
        %v8360 = vadd.f32 %v7881, %v8209
        %v8361 = vadd.f32 %v7882, %v8214
        %v8362 = vadd.f32 %v7883, %v8219
        %v8363 = vadd.f32 %v7884, %v8224
        %v8364 = vadd.f32 %v7885, %v8229
        %v8365 = vadd.f32 %v7886, %v8234
        %v8366 = vadd.f32 %v7887, %v8239
        %v8367 = vadd.f32 %v7888, %v8244
        %v8368 = vadd.f32 %v7889, %v8249
        %v8369 = vadd.f32 %v7890, %v8254
        %v8370 = vadd.f32 %v7891, %v8259
        %v8371 = vadd.f32 %v7892, %v8264
        %v8372 = vadd.f32 %v7893, %v8269
        %v8373 = vadd.f32 %v7894, %v8274
        %v8374 = vadd.f32 %v7895, %v8279
        %v8375 = vadd.f32 %v7896, %v8284
        %v8376 = vadd.f32 %v7897, %v8289
        %v8377 = vadd.f32 %v7898, %v8294
        %v8378 = vadd.f32 %v7899, %v8299
        %v8379 = vadd.f32 %v7900, %v8304
        %v8380 = vadd.f32 %v7901, %v8309
        %v8381 = vadd.f32 %v7902, %v8314
        %v8382 = vadd.f32 %v7903, %v8319
        %v8383 = vadd.f32 %v7904, %v8324
        %v8384 = vadd.f32 %v7905, %v8329
        %v8385 = vadd.f32 %v7906, %v8334
        %v8386 = vadd.f32 %v7907, %v8339
        %v8387 = vadd.f32 %v7908, %v8344
        %v8388 = vld [vmem:[#allocation2 + $0x25] sm:$0xff]
        %v8389 = vld [vmem:[#allocation2 + $0x2d] sm:$0xff]
        %v8390 = vld [vmem:[#allocation2 + $0x35] sm:$0xff]
        %v8391 = vld [vmem:[#allocation2 + $0x3d] sm:$0xff]
        %v8392 = vld [vmem:[#allocation2 + $0x45] sm:$0xff]
        %v8393 = vld [vmem:[#allocation2 + $0x4d] sm:$0xff]
        %v8394 = vld [vmem:[#allocation2 + $0x55] sm:$0xff]
        %v8395 = vld [vmem:[#allocation2 + $0x5d] sm:$0xff]
        %v8396 = vld [vmem:[#allocation2 + $0x65] sm:$0xff]
        %v8397 = vld [vmem:[#allocation2 + $0x6d] sm:$0xff]
        %v8398 = vld [vmem:[#allocation2 + $0x75] sm:$0xff]
        %v8399 = vld [vmem:[#allocation2 + $0x7d] sm:$0xff]
        %v8400 = vld [vmem:[#allocation2 + $0x85] sm:$0xff]
        %v8401 = vld [vmem:[#allocation2 + $0x8d] sm:$0xff]
        %v8402 = vld [vmem:[#allocation2 + $0x95] sm:$0xff]
        %v8403 = vld [vmem:[#allocation2 + $0x9d] sm:$0xff]
        %v8404 = vld [vmem:[#allocation2 + $0xa5] sm:$0xff]
        %v8405 = vld [vmem:[#allocation2 + $0xad] sm:$0xff]
        %v8406 = vld [vmem:[#allocation2 + $0xb5] sm:$0xff]
        %v8407 = vld [vmem:[#allocation2 + $0xbd] sm:$0xff]
        %v8408 = vld [vmem:[#allocation2 + $0xc5] sm:$0xff]
        %v8409 = vld [vmem:[#allocation2 + $0xcd] sm:$0xff]
        %v8410 = vld [vmem:[#allocation2 + $0xd5] sm:$0xff]
        %v8411 = vld [vmem:[#allocation2 + $0xdd] sm:$0xff]
        %v8412 = vld [vmem:[#allocation2 + $0xe5] sm:$0xff]
        %v8413 = vld [vmem:[#allocation2 + $0xed] sm:$0xff]
        %v8414 = vld [vmem:[#allocation2 + $0xf5] sm:$0xff]
        %v8415 = vld [vmem:[#allocation2 + $0xfd] sm:$0xff]
        %v8416 = vld [vmem:[#allocation2 + $0x105] sm:$0xff]
        %v8417 = vld [vmem:[#allocation2 + $0x10d] sm:$0xff]
        %v8418 = vld [vmem:[#allocation2 + $0x115] sm:$0xff]
        %v8419 = vld [vmem:[#allocation2 + $0x11d] sm:$0xff]
        %v8420 = vld [vmem:[#allocation2 + $0x125] sm:$0xff]
        %v8421 = vld [vmem:[#allocation2 + $0x12d] sm:$0xff]
        %v8422 = vld [vmem:[#allocation2 + $0x135] sm:$0xff]
        %v8423 = vld [vmem:[#allocation2 + $0x13d] sm:$0xff]
        %v8424 = vld [vmem:[#allocation2 + $0x145] sm:$0xff]
        %v8425 = vld [vmem:[#allocation2 + $0x14d] sm:$0xff]
        %v8426 = vld [vmem:[#allocation2 + $0x155] sm:$0xff]
        %v8427 = vld [vmem:[#allocation2 + $0x15d] sm:$0xff]
        %v8428 = vld [vmem:[#allocation2 + $0x165] sm:$0xf]
        %v8429 = vld [vmem:[%s5 + $0xe0] sm:$0xff]
        %v8430 = vld [vmem:[%s5 + $0xe8] sm:$0xff]
        %v8431 = vld [vmem:[%s5 + $0xf0] sm:$0xff]
        %v8432 = vld [vmem:[%s5 + $0xf8] sm:$0xff]
        %v8434 = vsel %vm4978, %v8388, 0
        %v8437 = vsel %vm4978, %v8389, 0
        %v8440 = vsel %vm4978, %v8390, 0
        %v8443 = vsel %vm4978, %v8391, 0
        %v8446 = vsel %vm4978, %v8392, 0
        %v8449 = vsel %vm4978, %v8393, 0
        %v8452 = vsel %vm4978, %v8394, 0
        %v8455 = vsel %vm4978, %v8395, 0
        %v8458 = vsel %vm4978, %v8396, 0
        %v8461 = vsel %vm4978, %v8397, 0
        %v8464 = vsel %vm4978, %v8398, 0
        %v8467 = vsel %vm4978, %v8399, 0
        %v8470 = vsel %vm4978, %v8400, 0
        %v8473 = vsel %vm4978, %v8401, 0
        %v8476 = vsel %vm4978, %v8402, 0
        %v8479 = vsel %vm4978, %v8403, 0
        %v8482 = vsel %vm4978, %v8404, 0
        %v8485 = vsel %vm4978, %v8405, 0
        %v8488 = vsel %vm4978, %v8406, 0
        %v8491 = vsel %vm4978, %v8407, 0
        %v8494 = vsel %vm4978, %v8408, 0
        %v8497 = vsel %vm4978, %v8409, 0
        %v8500 = vsel %vm4978, %v8410, 0
        %v8503 = vsel %vm4978, %v8411, 0
        %v8506 = vsel %vm4978, %v8412, 0
        %v8509 = vsel %vm4978, %v8413, 0
        %v8512 = vsel %vm4978, %v8414, 0
        %v8515 = vsel %vm4978, %v8415, 0
        %v8518 = vsel %vm4978, %v8416, 0
        %v8521 = vsel %vm4978, %v8417, 0
        %v8524 = vsel %vm4978, %v8418, 0
        %v8527 = vsel %vm4978, %v8419, 0
        %v8530 = vsel %vm4978, %v8420, 0
        %v8533 = vsel %vm4978, %v8421, 0
        %v8536 = vsel %vm4978, %v8422, 0
        %v8539 = vsel %vm4978, %v8423, 0
        %v8542 = vsel %vm4978, %v8424, 0
        %v8545 = vsel %vm4978, %v8425, 0
        %v8548 = vsel %vm4978, %v8426, 0
        %v8551 = vsel %vm4978, %v8427, 0
        %v8554 = vsel %vm4978, %v8428, 0
        %8556 = vmatprep.subr.mxu0 0.0
        %8557 = vmatpush1.msra.mxu0 0.0
        %8558 = vmatprep.subr.mxu0 0.0
        %8559 = vmatpush1.msra.mxu0 0.0
        %8560 = vmatprep.subr.mxu0 0.0
        %8561 = vmatpush1.msra.mxu0 0.0
        %8562 = vmatprep.subr.mxu0 0.0
        %8563 = vmatpush1.msra.mxu0 0.0
        %8564 = vmatprep.subr.mxu0 0.0
        %8565 = vmatpush1.msra.mxu0 0.0
        %8566 = vmatprep.subr.mxu0 0.0
        %8567 = vmatpush1.msra.mxu0 0.0
        %8568 = vmatprep.subr.mxu0 0.0
        %8569 = vmatpush1.msra.mxu0 0.0
        %8570 = vmatprep.subr.mxu0 0.0
        %8571 = vmatpush1.msra.mxu0 0.0
        %8572 = vmatprep.subr.mxu0 0.0
        %8573 = vmatpush1.msra.mxu0 0.0
        %8574 = vmatprep.subr.mxu0 0.0
        %8575 = vmatpush1.msra.mxu0 0.0
        %8576 = vmatprep.subr.mxu0 0.0
        %8577 = vmatpush1.msra.mxu0 0.0
        %8578 = vmatprep.subr.mxu0 0.0
        %8579 = vmatpush1.msra.mxu0 0.0
        %8580 = vmatprep.subr.mxu0 0.0
        %8581 = vmatpush1.msra.mxu0 %v8432
        %8582 = vmatprep.subr.mxu0 0.0
        %8583 = vmatpush1.msra.mxu0 %v8431
        %8584 = vmatprep.subr.mxu0 0.0
        %8585 = vmatpush1.msra.mxu0 %v8430
        %8586 = vmatprep.subr.mxu0 0.0
        %8587 = vmatpush1.msra.mxu0 %v8429
        %8588 = vmatprep.subr.mxu0 0.0
        %8589 = vmatpush2.msra.mxu0 0.0
        %8590 = vmatprep.subr.mxu0 0.0
        %8591 = vmatpush2.msra.mxu0 0.0
        %8592 = vmatprep.subr.mxu0 0.0
        %8593 = vmatpush2.msra.mxu0 0.0
        %8594 = vmatprep.subr.mxu0 0.0
        %8595 = vmatpush2.msra.mxu0 0.0
        %8596 = vmatprep.subr.mxu0 0.0
        %8597 = vmatpush2.msra.mxu0 0.0
        %8598 = vmatprep.subr.mxu0 0.0
        %8599 = vmatpush2.msra.mxu0 0.0
        %8600 = vmatprep.subr.mxu0 0.0
        %8601 = vmatpush2.msra.mxu0 0.0
        %8602 = vmatprep.subr.mxu0 0.0
        %8603 = vmatpush2.msra.mxu0 0.0
        %8604 = vmatprep.subr.mxu0 0.0
        %8605 = vmatpush2.msra.mxu0 0.0
        %8606 = vmatprep.subr.mxu0 0.0
        %8607 = vmatpush2.msra.mxu0 0.0
        %8608 = vmatprep.subr.mxu0 0.0
        %8609 = vmatpush2.msra.mxu0 0.0
        %8610 = vmatprep.subr.mxu0 0.0
        %8611 = vmatpush2.msra.mxu0 0.0
        %8612 = vmatprep.subr.mxu0 0.0
        %8613 = vmatpush2.msra.mxu0 0.0
        %8614 = vmatprep.subr.mxu0 0.0
        %8615 = vmatpush2.msra.mxu0 0.0
        %8616 = vmatprep.subr.mxu0 0.0
        %8617 = vmatpush2.msra.mxu0 0.0
        %8618 = vmatprep.subr.mxu0 0.0
        %8619 = vmatpush2.msra.mxu0 0.0
        %8620 = vmatprep.mubr.f32.mxu0 0.0
        %8621 = vmatmul.mubr.f32.gmra.mxu0 %v8434
        %v8622 = vpop.f32.mrf.mxu0
        %v8623 = vadd.f32 0.0, %v8622
        %v8624 = vpop.f32.mrf.mxu0
        %8625 = vmatprep.mubr.f32.mxu0 0.0
        %8626 = vmatmul.mubr.f32.gmra.mxu0 %v8437
        %v8627 = vpop.f32.mrf.mxu0
        %v8628 = vadd.f32 0.0, %v8627
        %v8629 = vpop.f32.mrf.mxu0
        %8630 = vmatprep.mubr.f32.mxu0 0.0
        %8631 = vmatmul.mubr.f32.gmra.mxu0 %v8440
        %v8632 = vpop.f32.mrf.mxu0
        %v8633 = vadd.f32 0.0, %v8632
        %v8634 = vpop.f32.mrf.mxu0
        %8635 = vmatprep.mubr.f32.mxu0 0.0
        %8636 = vmatmul.mubr.f32.gmra.mxu0 %v8443
        %v8637 = vpop.f32.mrf.mxu0
        %v8638 = vadd.f32 0.0, %v8637
        %v8639 = vpop.f32.mrf.mxu0
        %8640 = vmatprep.mubr.f32.mxu0 0.0
        %8641 = vmatmul.mubr.f32.gmra.mxu0 %v8446
        %v8642 = vpop.f32.mrf.mxu0
        %v8643 = vadd.f32 0.0, %v8642
        %v8644 = vpop.f32.mrf.mxu0
        %8645 = vmatprep.mubr.f32.mxu0 0.0
        %8646 = vmatmul.mubr.f32.gmra.mxu0 %v8449
        %v8647 = vpop.f32.mrf.mxu0
        %v8648 = vadd.f32 0.0, %v8647
        %v8649 = vpop.f32.mrf.mxu0
        %8650 = vmatprep.mubr.f32.mxu0 0.0
        %8651 = vmatmul.mubr.f32.gmra.mxu0 %v8452
        %v8652 = vpop.f32.mrf.mxu0
        %v8653 = vadd.f32 0.0, %v8652
        %v8654 = vpop.f32.mrf.mxu0
        %8655 = vmatprep.mubr.f32.mxu0 0.0
        %8656 = vmatmul.mubr.f32.gmra.mxu0 %v8455
        %v8657 = vpop.f32.mrf.mxu0
        %v8658 = vadd.f32 0.0, %v8657
        %v8659 = vpop.f32.mrf.mxu0
        %8660 = vmatprep.mubr.f32.mxu0 0.0
        %8661 = vmatmul.mubr.f32.gmra.mxu0 %v8458
        %v8662 = vpop.f32.mrf.mxu0
        %v8663 = vadd.f32 0.0, %v8662
        %v8664 = vpop.f32.mrf.mxu0
        %8665 = vmatprep.mubr.f32.mxu0 0.0
        %8666 = vmatmul.mubr.f32.gmra.mxu0 %v8461
        %v8667 = vpop.f32.mrf.mxu0
        %v8668 = vadd.f32 0.0, %v8667
        %v8669 = vpop.f32.mrf.mxu0
        %8670 = vmatprep.mubr.f32.mxu0 0.0
        %8671 = vmatmul.mubr.f32.gmra.mxu0 %v8464
        %v8672 = vpop.f32.mrf.mxu0
        %v8673 = vadd.f32 0.0, %v8672
        %v8674 = vpop.f32.mrf.mxu0
        %8675 = vmatprep.mubr.f32.mxu0 0.0
        %8676 = vmatmul.mubr.f32.gmra.mxu0 %v8467
        %v8677 = vpop.f32.mrf.mxu0
        %v8678 = vadd.f32 0.0, %v8677
        %v8679 = vpop.f32.mrf.mxu0
        %8680 = vmatprep.mubr.f32.mxu0 0.0
        %8681 = vmatmul.mubr.f32.gmra.mxu0 %v8470
        %v8682 = vpop.f32.mrf.mxu0
        %v8683 = vadd.f32 0.0, %v8682
        %v8684 = vpop.f32.mrf.mxu0
        %8685 = vmatprep.mubr.f32.mxu0 0.0
        %8686 = vmatmul.mubr.f32.gmra.mxu0 %v8473
        %v8687 = vpop.f32.mrf.mxu0
        %v8688 = vadd.f32 0.0, %v8687
        %v8689 = vpop.f32.mrf.mxu0
        %8690 = vmatprep.mubr.f32.mxu0 0.0
        %8691 = vmatmul.mubr.f32.gmra.mxu0 %v8476
        %v8692 = vpop.f32.mrf.mxu0
        %v8693 = vadd.f32 0.0, %v8692
        %v8694 = vpop.f32.mrf.mxu0
        %8695 = vmatprep.mubr.f32.mxu0 0.0
        %8696 = vmatmul.mubr.f32.gmra.mxu0 %v8479
        %v8697 = vpop.f32.mrf.mxu0
        %v8698 = vadd.f32 0.0, %v8697
        %v8699 = vpop.f32.mrf.mxu0
        %8700 = vmatprep.mubr.f32.mxu0 0.0
        %8701 = vmatmul.mubr.f32.gmra.mxu0 %v8482
        %v8702 = vpop.f32.mrf.mxu0
        %v8703 = vadd.f32 0.0, %v8702
        %v8704 = vpop.f32.mrf.mxu0
        %8705 = vmatprep.mubr.f32.mxu0 0.0
        %8706 = vmatmul.mubr.f32.gmra.mxu0 %v8485
        %v8707 = vpop.f32.mrf.mxu0
        %v8708 = vadd.f32 0.0, %v8707
        %v8709 = vpop.f32.mrf.mxu0
        %8710 = vmatprep.mubr.f32.mxu0 0.0
        %8711 = vmatmul.mubr.f32.gmra.mxu0 %v8488
        %v8712 = vpop.f32.mrf.mxu0
        %v8713 = vadd.f32 0.0, %v8712
        %v8714 = vpop.f32.mrf.mxu0
        %8715 = vmatprep.mubr.f32.mxu0 0.0
        %8716 = vmatmul.mubr.f32.gmra.mxu0 %v8491
        %v8717 = vpop.f32.mrf.mxu0
        %v8718 = vadd.f32 0.0, %v8717
        %v8719 = vpop.f32.mrf.mxu0
        %8720 = vmatprep.mubr.f32.mxu0 0.0
        %8721 = vmatmul.mubr.f32.gmra.mxu0 %v8494
        %v8722 = vpop.f32.mrf.mxu0
        %v8723 = vadd.f32 0.0, %v8722
        %v8724 = vpop.f32.mrf.mxu0
        %8725 = vmatprep.mubr.f32.mxu0 0.0
        %8726 = vmatmul.mubr.f32.gmra.mxu0 %v8497
        %v8727 = vpop.f32.mrf.mxu0
        %v8728 = vadd.f32 0.0, %v8727
        %v8729 = vpop.f32.mrf.mxu0
        %8730 = vmatprep.mubr.f32.mxu0 0.0
        %8731 = vmatmul.mubr.f32.gmra.mxu0 %v8500
        %v8732 = vpop.f32.mrf.mxu0
        %v8733 = vadd.f32 0.0, %v8732
        %v8734 = vpop.f32.mrf.mxu0
        %8735 = vmatprep.mubr.f32.mxu0 0.0
        %8736 = vmatmul.mubr.f32.gmra.mxu0 %v8503
        %v8737 = vpop.f32.mrf.mxu0
        %v8738 = vadd.f32 0.0, %v8737
        %v8739 = vpop.f32.mrf.mxu0
        %8740 = vmatprep.mubr.f32.mxu0 0.0
        %8741 = vmatmul.mubr.f32.gmra.mxu0 %v8506
        %v8742 = vpop.f32.mrf.mxu0
        %v8743 = vadd.f32 0.0, %v8742
        %v8744 = vpop.f32.mrf.mxu0
        %8745 = vmatprep.mubr.f32.mxu0 0.0
        %8746 = vmatmul.mubr.f32.gmra.mxu0 %v8509
        %v8747 = vpop.f32.mrf.mxu0
        %v8748 = vadd.f32 0.0, %v8747
        %v8749 = vpop.f32.mrf.mxu0
        %8750 = vmatprep.mubr.f32.mxu0 0.0
        %8751 = vmatmul.mubr.f32.gmra.mxu0 %v8512
        %v8752 = vpop.f32.mrf.mxu0
        %v8753 = vadd.f32 0.0, %v8752
        %v8754 = vpop.f32.mrf.mxu0
        %8755 = vmatprep.mubr.f32.mxu0 0.0
        %8756 = vmatmul.mubr.f32.gmra.mxu0 %v8515
        %v8757 = vpop.f32.mrf.mxu0
        %v8758 = vadd.f32 0.0, %v8757
        %v8759 = vpop.f32.mrf.mxu0
        %8760 = vmatprep.mubr.f32.mxu0 0.0
        %8761 = vmatmul.mubr.f32.gmra.mxu0 %v8518
        %v8762 = vpop.f32.mrf.mxu0
        %v8763 = vadd.f32 0.0, %v8762
        %v8764 = vpop.f32.mrf.mxu0
        %8765 = vmatprep.mubr.f32.mxu0 0.0
        %8766 = vmatmul.mubr.f32.gmra.mxu0 %v8521
        %v8767 = vpop.f32.mrf.mxu0
        %v8768 = vadd.f32 0.0, %v8767
        %v8769 = vpop.f32.mrf.mxu0
        %8770 = vmatprep.mubr.f32.mxu0 0.0
        %8771 = vmatmul.mubr.f32.gmra.mxu0 %v8524
        %v8772 = vpop.f32.mrf.mxu0
        %v8773 = vadd.f32 0.0, %v8772
        %v8774 = vpop.f32.mrf.mxu0
        %8775 = vmatprep.mubr.f32.mxu0 0.0
        %8776 = vmatmul.mubr.f32.gmra.mxu0 %v8527
        %v8777 = vpop.f32.mrf.mxu0
        %v8778 = vadd.f32 0.0, %v8777
        %v8779 = vpop.f32.mrf.mxu0
        %8780 = vmatprep.mubr.f32.mxu0 0.0
        %8781 = vmatmul.mubr.f32.gmra.mxu0 %v8530
        %v8782 = vpop.f32.mrf.mxu0
        %v8783 = vadd.f32 0.0, %v8782
        %v8784 = vpop.f32.mrf.mxu0
        %8785 = vmatprep.mubr.f32.mxu0 0.0
        %8786 = vmatmul.mubr.f32.gmra.mxu0 %v8533
        %v8787 = vpop.f32.mrf.mxu0
        %v8788 = vadd.f32 0.0, %v8787
        %v8789 = vpop.f32.mrf.mxu0
        %8790 = vmatprep.mubr.f32.mxu0 0.0
        %8791 = vmatmul.mubr.f32.gmra.mxu0 %v8536
        %v8792 = vpop.f32.mrf.mxu0
        %v8793 = vadd.f32 0.0, %v8792
        %v8794 = vpop.f32.mrf.mxu0
        %8795 = vmatprep.mubr.f32.mxu0 0.0
        %8796 = vmatmul.mubr.f32.gmra.mxu0 %v8539
        %v8797 = vpop.f32.mrf.mxu0
        %v8798 = vadd.f32 0.0, %v8797
        %v8799 = vpop.f32.mrf.mxu0
        %8800 = vmatprep.mubr.f32.mxu0 0.0
        %8801 = vmatmul.mubr.f32.gmra.mxu0 %v8542
        %v8802 = vpop.f32.mrf.mxu0
        %v8803 = vadd.f32 0.0, %v8802
        %v8804 = vpop.f32.mrf.mxu0
        %8805 = vmatprep.mubr.f32.mxu0 0.0
        %8806 = vmatmul.mubr.f32.gmra.mxu0 %v8545
        %v8807 = vpop.f32.mrf.mxu0
        %v8808 = vadd.f32 0.0, %v8807
        %v8809 = vpop.f32.mrf.mxu0
        %8810 = vmatprep.mubr.f32.mxu0 0.0
        %8811 = vmatmul.mubr.f32.gmra.mxu0 %v8548
        %v8812 = vpop.f32.mrf.mxu0
        %v8813 = vadd.f32 0.0, %v8812
        %v8814 = vpop.f32.mrf.mxu0
        %8815 = vmatprep.mubr.f32.mxu0 0.0
        %8816 = vmatmul.mubr.f32.gmra.mxu0 %v8551
        %v8817 = vpop.f32.mrf.mxu0
        %v8818 = vadd.f32 0.0, %v8817
        %v8819 = vpop.f32.mrf.mxu0
        %8820 = vmatprep.mubr.f32.mxu0 0.0
        %8821 = vmatmul.mubr.f32.gmra.mxu0 %v8554
        %v8822 = vpop.f32.mrf.mxu0
        %v8823 = vadd.f32 0.0, %v8822
        %v8824 = vpop.f32.mrf.mxu0
        %8825 = vdwg.mxu0
        %v8826 = vadd.f32 %v8347, %v8623
        %v8827 = vadd.f32 %v8348, %v8628
        %v8828 = vadd.f32 %v8349, %v8633
        %v8829 = vadd.f32 %v8350, %v8638
        %v8830 = vadd.f32 %v8351, %v8643
        %v8831 = vadd.f32 %v8352, %v8648
        %v8832 = vadd.f32 %v8353, %v8653
        %v8833 = vadd.f32 %v8354, %v8658
        %v8834 = vadd.f32 %v8355, %v8663
        %v8835 = vadd.f32 %v8356, %v8668
        %v8836 = vadd.f32 %v8357, %v8673
        %v8837 = vadd.f32 %v8358, %v8678
        %v8838 = vadd.f32 %v8359, %v8683
        %v8839 = vadd.f32 %v8360, %v8688
        %v8840 = vadd.f32 %v8361, %v8693
        %v8841 = vadd.f32 %v8362, %v8698
        %v8842 = vadd.f32 %v8363, %v8703
        %v8843 = vadd.f32 %v8364, %v8708
        %v8844 = vadd.f32 %v8365, %v8713
        %v8845 = vadd.f32 %v8366, %v8718
        %v8846 = vadd.f32 %v8367, %v8723
        %v8847 = vadd.f32 %v8368, %v8728
        %v8848 = vadd.f32 %v8369, %v8733
        %v8849 = vadd.f32 %v8370, %v8738
        %v8850 = vadd.f32 %v8371, %v8743
        %v8851 = vadd.f32 %v8372, %v8748
        %v8852 = vadd.f32 %v8373, %v8753
        %v8853 = vadd.f32 %v8374, %v8758
        %v8854 = vadd.f32 %v8375, %v8763
        %v8855 = vadd.f32 %v8376, %v8768
        %v8856 = vadd.f32 %v8377, %v8773
        %v8857 = vadd.f32 %v8378, %v8778
        %v8858 = vadd.f32 %v8379, %v8783
        %v8859 = vadd.f32 %v8380, %v8788
        %v8860 = vadd.f32 %v8381, %v8793
        %v8861 = vadd.f32 %v8382, %v8798
        %v8862 = vadd.f32 %v8383, %v8803
        %v8863 = vadd.f32 %v8384, %v8808
        %v8864 = vadd.f32 %v8385, %v8813
        %v8865 = vadd.f32 %v8386, %v8818
        %v8866 = vadd.f32 %v8387, %v8823
        %v8867 = vld [vmem:[#allocation2 + $0x26] sm:$0xff]
        %v8868 = vld [vmem:[#allocation2 + $0x2e] sm:$0xff]
        %v8869 = vld [vmem:[#allocation2 + $0x36] sm:$0xff]
        %v8870 = vld [vmem:[#allocation2 + $0x3e] sm:$0xff]
        %v8871 = vld [vmem:[#allocation2 + $0x46] sm:$0xff]
        %v8872 = vld [vmem:[#allocation2 + $0x4e] sm:$0xff]
        %v8873 = vld [vmem:[#allocation2 + $0x56] sm:$0xff]
        %v8874 = vld [vmem:[#allocation2 + $0x5e] sm:$0xff]
        %v8875 = vld [vmem:[#allocation2 + $0x66] sm:$0xff]
        %v8876 = vld [vmem:[#allocation2 + $0x6e] sm:$0xff]
        %v8877 = vld [vmem:[#allocation2 + $0x76] sm:$0xff]
        %v8878 = vld [vmem:[#allocation2 + $0x7e] sm:$0xff]
        %v8879 = vld [vmem:[#allocation2 + $0x86] sm:$0xff]
        %v8880 = vld [vmem:[#allocation2 + $0x8e] sm:$0xff]
        %v8881 = vld [vmem:[#allocation2 + $0x96] sm:$0xff]
        %v8882 = vld [vmem:[#allocation2 + $0x9e] sm:$0xff]
        %v8883 = vld [vmem:[#allocation2 + $0xa6] sm:$0xff]
        %v8884 = vld [vmem:[#allocation2 + $0xae] sm:$0xff]
        %v8885 = vld [vmem:[#allocation2 + $0xb6] sm:$0xff]
        %v8886 = vld [vmem:[#allocation2 + $0xbe] sm:$0xff]
        %v8887 = vld [vmem:[#allocation2 + $0xc6] sm:$0xff]
        %v8888 = vld [vmem:[#allocation2 + $0xce] sm:$0xff]
        %v8889 = vld [vmem:[#allocation2 + $0xd6] sm:$0xff]
        %v8890 = vld [vmem:[#allocation2 + $0xde] sm:$0xff]
        %v8891 = vld [vmem:[#allocation2 + $0xe6] sm:$0xff]
        %v8892 = vld [vmem:[#allocation2 + $0xee] sm:$0xff]
        %v8893 = vld [vmem:[#allocation2 + $0xf6] sm:$0xff]
        %v8894 = vld [vmem:[#allocation2 + $0xfe] sm:$0xff]
        %v8895 = vld [vmem:[#allocation2 + $0x106] sm:$0xff]
        %v8896 = vld [vmem:[#allocation2 + $0x10e] sm:$0xff]
        %v8897 = vld [vmem:[#allocation2 + $0x116] sm:$0xff]
        %v8898 = vld [vmem:[#allocation2 + $0x11e] sm:$0xff]
        %v8899 = vld [vmem:[#allocation2 + $0x126] sm:$0xff]
        %v8900 = vld [vmem:[#allocation2 + $0x12e] sm:$0xff]
        %v8901 = vld [vmem:[#allocation2 + $0x136] sm:$0xff]
        %v8902 = vld [vmem:[#allocation2 + $0x13e] sm:$0xff]
        %v8903 = vld [vmem:[#allocation2 + $0x146] sm:$0xff]
        %v8904 = vld [vmem:[#allocation2 + $0x14e] sm:$0xff]
        %v8905 = vld [vmem:[#allocation2 + $0x156] sm:$0xff]
        %v8906 = vld [vmem:[#allocation2 + $0x15e] sm:$0xff]
        %v8907 = vld [vmem:[#allocation2 + $0x166] sm:$0xf]
        %v8908 = vld [vmem:[%s5 + $0x100] sm:$0xff]
        %v8909 = vld [vmem:[%s5 + $0x108] sm:$0xff]
        %v8910 = vld [vmem:[%s5 + $0x110] sm:$0xff]
        %v8911 = vld [vmem:[%s5 + $0x118] sm:$0xff]
        %v8913 = vsel %vm4978, %v8867, 0
        %v8916 = vsel %vm4978, %v8868, 0
        %v8919 = vsel %vm4978, %v8869, 0
        %v8922 = vsel %vm4978, %v8870, 0
        %v8925 = vsel %vm4978, %v8871, 0
        %v8928 = vsel %vm4978, %v8872, 0
        %v8931 = vsel %vm4978, %v8873, 0
        %v8934 = vsel %vm4978, %v8874, 0
        %v8937 = vsel %vm4978, %v8875, 0
        %v8940 = vsel %vm4978, %v8876, 0
        %v8943 = vsel %vm4978, %v8877, 0
        %v8946 = vsel %vm4978, %v8878, 0
        %v8949 = vsel %vm4978, %v8879, 0
        %v8952 = vsel %vm4978, %v8880, 0
        %v8955 = vsel %vm4978, %v8881, 0
        %v8958 = vsel %vm4978, %v8882, 0
        %v8961 = vsel %vm4978, %v8883, 0
        %v8964 = vsel %vm4978, %v8884, 0
        %v8967 = vsel %vm4978, %v8885, 0
        %v8970 = vsel %vm4978, %v8886, 0
        %v8973 = vsel %vm4978, %v8887, 0
        %v8976 = vsel %vm4978, %v8888, 0
        %v8979 = vsel %vm4978, %v8889, 0
        %v8982 = vsel %vm4978, %v8890, 0
        %v8985 = vsel %vm4978, %v8891, 0
        %v8988 = vsel %vm4978, %v8892, 0
        %v8991 = vsel %vm4978, %v8893, 0
        %v8994 = vsel %vm4978, %v8894, 0
        %v8997 = vsel %vm4978, %v8895, 0
        %v9000 = vsel %vm4978, %v8896, 0
        %v9003 = vsel %vm4978, %v8897, 0
        %v9006 = vsel %vm4978, %v8898, 0
        %v9009 = vsel %vm4978, %v8899, 0
        %v9012 = vsel %vm4978, %v8900, 0
        %v9015 = vsel %vm4978, %v8901, 0
        %v9018 = vsel %vm4978, %v8902, 0
        %v9021 = vsel %vm4978, %v8903, 0
        %v9024 = vsel %vm4978, %v8904, 0
        %v9027 = vsel %vm4978, %v8905, 0
        %v9030 = vsel %vm4978, %v8906, 0
        %v9033 = vsel %vm4978, %v8907, 0
        %9035 = vmatprep.subr.mxu0 0.0
        %9036 = vmatpush1.msra.mxu0 0.0
        %9037 = vmatprep.subr.mxu0 0.0
        %9038 = vmatpush1.msra.mxu0 0.0
        %9039 = vmatprep.subr.mxu0 0.0
        %9040 = vmatpush1.msra.mxu0 0.0
        %9041 = vmatprep.subr.mxu0 0.0
        %9042 = vmatpush1.msra.mxu0 0.0
        %9043 = vmatprep.subr.mxu0 0.0
        %9044 = vmatpush1.msra.mxu0 0.0
        %9045 = vmatprep.subr.mxu0 0.0
        %9046 = vmatpush1.msra.mxu0 0.0
        %9047 = vmatprep.subr.mxu0 0.0
        %9048 = vmatpush1.msra.mxu0 0.0
        %9049 = vmatprep.subr.mxu0 0.0
        %9050 = vmatpush1.msra.mxu0 0.0
        %9051 = vmatprep.subr.mxu0 0.0
        %9052 = vmatpush1.msra.mxu0 0.0
        %9053 = vmatprep.subr.mxu0 0.0
        %9054 = vmatpush1.msra.mxu0 0.0
        %9055 = vmatprep.subr.mxu0 0.0
        %9056 = vmatpush1.msra.mxu0 0.0
        %9057 = vmatprep.subr.mxu0 0.0
        %9058 = vmatpush1.msra.mxu0 0.0
        %9059 = vmatprep.subr.mxu0 0.0
        %9060 = vmatpush1.msra.mxu0 %v8911
        %9061 = vmatprep.subr.mxu0 0.0
        %9062 = vmatpush1.msra.mxu0 %v8910
        %9063 = vmatprep.subr.mxu0 0.0
        %9064 = vmatpush1.msra.mxu0 %v8909
        %9065 = vmatprep.subr.mxu0 0.0
        %9066 = vmatpush1.msra.mxu0 %v8908
        %9067 = vmatprep.subr.mxu0 0.0
        %9068 = vmatpush2.msra.mxu0 0.0
        %9069 = vmatprep.subr.mxu0 0.0
        %9070 = vmatpush2.msra.mxu0 0.0
        %9071 = vmatprep.subr.mxu0 0.0
        %9072 = vmatpush2.msra.mxu0 0.0
        %9073 = vmatprep.subr.mxu0 0.0
        %9074 = vmatpush2.msra.mxu0 0.0
        %9075 = vmatprep.subr.mxu0 0.0
        %9076 = vmatpush2.msra.mxu0 0.0
        %9077 = vmatprep.subr.mxu0 0.0
        %9078 = vmatpush2.msra.mxu0 0.0
        %9079 = vmatprep.subr.mxu0 0.0
        %9080 = vmatpush2.msra.mxu0 0.0
        %9081 = vmatprep.subr.mxu0 0.0
        %9082 = vmatpush2.msra.mxu0 0.0
        %9083 = vmatprep.subr.mxu0 0.0
        %9084 = vmatpush2.msra.mxu0 0.0
        %9085 = vmatprep.subr.mxu0 0.0
        %9086 = vmatpush2.msra.mxu0 0.0
        %9087 = vmatprep.subr.mxu0 0.0
        %9088 = vmatpush2.msra.mxu0 0.0
        %9089 = vmatprep.subr.mxu0 0.0
        %9090 = vmatpush2.msra.mxu0 0.0
        %9091 = vmatprep.subr.mxu0 0.0
        %9092 = vmatpush2.msra.mxu0 0.0
        %9093 = vmatprep.subr.mxu0 0.0
        %9094 = vmatpush2.msra.mxu0 0.0
        %9095 = vmatprep.subr.mxu0 0.0
        %9096 = vmatpush2.msra.mxu0 0.0
        %9097 = vmatprep.subr.mxu0 0.0
        %9098 = vmatpush2.msra.mxu0 0.0
        %9099 = vmatprep.mubr.f32.mxu0 0.0
        %9100 = vmatmul.mubr.f32.gmra.mxu0 %v8913
        %v9101 = vpop.f32.mrf.mxu0
        %v9102 = vadd.f32 0.0, %v9101
        %v9103 = vpop.f32.mrf.mxu0
        %9104 = vmatprep.mubr.f32.mxu0 0.0
        %9105 = vmatmul.mubr.f32.gmra.mxu0 %v8916
        %v9106 = vpop.f32.mrf.mxu0
        %v9107 = vadd.f32 0.0, %v9106
        %v9108 = vpop.f32.mrf.mxu0
        %9109 = vmatprep.mubr.f32.mxu0 0.0
        %9110 = vmatmul.mubr.f32.gmra.mxu0 %v8919
        %v9111 = vpop.f32.mrf.mxu0
        %v9112 = vadd.f32 0.0, %v9111
        %v9113 = vpop.f32.mrf.mxu0
        %9114 = vmatprep.mubr.f32.mxu0 0.0
        %9115 = vmatmul.mubr.f32.gmra.mxu0 %v8922
        %v9116 = vpop.f32.mrf.mxu0
        %v9117 = vadd.f32 0.0, %v9116
        %v9118 = vpop.f32.mrf.mxu0
        %9119 = vmatprep.mubr.f32.mxu0 0.0
        %9120 = vmatmul.mubr.f32.gmra.mxu0 %v8925
        %v9121 = vpop.f32.mrf.mxu0
        %v9122 = vadd.f32 0.0, %v9121
        %v9123 = vpop.f32.mrf.mxu0
        %9124 = vmatprep.mubr.f32.mxu0 0.0
        %9125 = vmatmul.mubr.f32.gmra.mxu0 %v8928
        %v9126 = vpop.f32.mrf.mxu0
        %v9127 = vadd.f32 0.0, %v9126
        %v9128 = vpop.f32.mrf.mxu0
        %9129 = vmatprep.mubr.f32.mxu0 0.0
        %9130 = vmatmul.mubr.f32.gmra.mxu0 %v8931
        %v9131 = vpop.f32.mrf.mxu0
        %v9132 = vadd.f32 0.0, %v9131
        %v9133 = vpop.f32.mrf.mxu0
        %9134 = vmatprep.mubr.f32.mxu0 0.0
        %9135 = vmatmul.mubr.f32.gmra.mxu0 %v8934
        %v9136 = vpop.f32.mrf.mxu0
        %v9137 = vadd.f32 0.0, %v9136
        %v9138 = vpop.f32.mrf.mxu0
        %9139 = vmatprep.mubr.f32.mxu0 0.0
        %9140 = vmatmul.mubr.f32.gmra.mxu0 %v8937
        %v9141 = vpop.f32.mrf.mxu0
        %v9142 = vadd.f32 0.0, %v9141
        %v9143 = vpop.f32.mrf.mxu0
        %9144 = vmatprep.mubr.f32.mxu0 0.0
        %9145 = vmatmul.mubr.f32.gmra.mxu0 %v8940
        %v9146 = vpop.f32.mrf.mxu0
        %v9147 = vadd.f32 0.0, %v9146
        %v9148 = vpop.f32.mrf.mxu0
        %9149 = vmatprep.mubr.f32.mxu0 0.0
        %9150 = vmatmul.mubr.f32.gmra.mxu0 %v8943
        %v9151 = vpop.f32.mrf.mxu0
        %v9152 = vadd.f32 0.0, %v9151
        %v9153 = vpop.f32.mrf.mxu0
        %9154 = vmatprep.mubr.f32.mxu0 0.0
        %9155 = vmatmul.mubr.f32.gmra.mxu0 %v8946
        %v9156 = vpop.f32.mrf.mxu0
        %v9157 = vadd.f32 0.0, %v9156
        %v9158 = vpop.f32.mrf.mxu0
        %9159 = vmatprep.mubr.f32.mxu0 0.0
        %9160 = vmatmul.mubr.f32.gmra.mxu0 %v8949
        %v9161 = vpop.f32.mrf.mxu0
        %v9162 = vadd.f32 0.0, %v9161
        %v9163 = vpop.f32.mrf.mxu0
        %9164 = vmatprep.mubr.f32.mxu0 0.0
        %9165 = vmatmul.mubr.f32.gmra.mxu0 %v8952
        %v9166 = vpop.f32.mrf.mxu0
        %v9167 = vadd.f32 0.0, %v9166
        %v9168 = vpop.f32.mrf.mxu0
        %9169 = vmatprep.mubr.f32.mxu0 0.0
        %9170 = vmatmul.mubr.f32.gmra.mxu0 %v8955
        %v9171 = vpop.f32.mrf.mxu0
        %v9172 = vadd.f32 0.0, %v9171
        %v9173 = vpop.f32.mrf.mxu0
        %9174 = vmatprep.mubr.f32.mxu0 0.0
        %9175 = vmatmul.mubr.f32.gmra.mxu0 %v8958
        %v9176 = vpop.f32.mrf.mxu0
        %v9177 = vadd.f32 0.0, %v9176
        %v9178 = vpop.f32.mrf.mxu0
        %9179 = vmatprep.mubr.f32.mxu0 0.0
        %9180 = vmatmul.mubr.f32.gmra.mxu0 %v8961
        %v9181 = vpop.f32.mrf.mxu0
        %v9182 = vadd.f32 0.0, %v9181
        %v9183 = vpop.f32.mrf.mxu0
        %9184 = vmatprep.mubr.f32.mxu0 0.0
        %9185 = vmatmul.mubr.f32.gmra.mxu0 %v8964
        %v9186 = vpop.f32.mrf.mxu0
        %v9187 = vadd.f32 0.0, %v9186
        %v9188 = vpop.f32.mrf.mxu0
        %9189 = vmatprep.mubr.f32.mxu0 0.0
        %9190 = vmatmul.mubr.f32.gmra.mxu0 %v8967
        %v9191 = vpop.f32.mrf.mxu0
        %v9192 = vadd.f32 0.0, %v9191
        %v9193 = vpop.f32.mrf.mxu0
        %9194 = vmatprep.mubr.f32.mxu0 0.0
        %9195 = vmatmul.mubr.f32.gmra.mxu0 %v8970
        %v9196 = vpop.f32.mrf.mxu0
        %v9197 = vadd.f32 0.0, %v9196
        %v9198 = vpop.f32.mrf.mxu0
        %9199 = vmatprep.mubr.f32.mxu0 0.0
        %9200 = vmatmul.mubr.f32.gmra.mxu0 %v8973
        %v9201 = vpop.f32.mrf.mxu0
        %v9202 = vadd.f32 0.0, %v9201
        %v9203 = vpop.f32.mrf.mxu0
        %9204 = vmatprep.mubr.f32.mxu0 0.0
        %9205 = vmatmul.mubr.f32.gmra.mxu0 %v8976
        %v9206 = vpop.f32.mrf.mxu0
        %v9207 = vadd.f32 0.0, %v9206
        %v9208 = vpop.f32.mrf.mxu0
        %9209 = vmatprep.mubr.f32.mxu0 0.0
        %9210 = vmatmul.mubr.f32.gmra.mxu0 %v8979
        %v9211 = vpop.f32.mrf.mxu0
        %v9212 = vadd.f32 0.0, %v9211
        %v9213 = vpop.f32.mrf.mxu0
        %9214 = vmatprep.mubr.f32.mxu0 0.0
        %9215 = vmatmul.mubr.f32.gmra.mxu0 %v8982
        %v9216 = vpop.f32.mrf.mxu0
        %v9217 = vadd.f32 0.0, %v9216
        %v9218 = vpop.f32.mrf.mxu0
        %9219 = vmatprep.mubr.f32.mxu0 0.0
        %9220 = vmatmul.mubr.f32.gmra.mxu0 %v8985
        %v9221 = vpop.f32.mrf.mxu0
        %v9222 = vadd.f32 0.0, %v9221
        %v9223 = vpop.f32.mrf.mxu0
        %9224 = vmatprep.mubr.f32.mxu0 0.0
        %9225 = vmatmul.mubr.f32.gmra.mxu0 %v8988
        %v9226 = vpop.f32.mrf.mxu0
        %v9227 = vadd.f32 0.0, %v9226
        %v9228 = vpop.f32.mrf.mxu0
        %9229 = vmatprep.mubr.f32.mxu0 0.0
        %9230 = vmatmul.mubr.f32.gmra.mxu0 %v8991
        %v9231 = vpop.f32.mrf.mxu0
        %v9232 = vadd.f32 0.0, %v9231
        %v9233 = vpop.f32.mrf.mxu0
        %9234 = vmatprep.mubr.f32.mxu0 0.0
        %9235 = vmatmul.mubr.f32.gmra.mxu0 %v8994
        %v9236 = vpop.f32.mrf.mxu0
        %v9237 = vadd.f32 0.0, %v9236
        %v9238 = vpop.f32.mrf.mxu0
        %9239 = vmatprep.mubr.f32.mxu0 0.0
        %9240 = vmatmul.mubr.f32.gmra.mxu0 %v8997
        %v9241 = vpop.f32.mrf.mxu0
        %v9242 = vadd.f32 0.0, %v9241
        %v9243 = vpop.f32.mrf.mxu0
        %9244 = vmatprep.mubr.f32.mxu0 0.0
        %9245 = vmatmul.mubr.f32.gmra.mxu0 %v9000
        %v9246 = vpop.f32.mrf.mxu0
        %v9247 = vadd.f32 0.0, %v9246
        %v9248 = vpop.f32.mrf.mxu0
        %9249 = vmatprep.mubr.f32.mxu0 0.0
        %9250 = vmatmul.mubr.f32.gmra.mxu0 %v9003
        %v9251 = vpop.f32.mrf.mxu0
        %v9252 = vadd.f32 0.0, %v9251
        %v9253 = vpop.f32.mrf.mxu0
        %9254 = vmatprep.mubr.f32.mxu0 0.0
        %9255 = vmatmul.mubr.f32.gmra.mxu0 %v9006
        %v9256 = vpop.f32.mrf.mxu0
        %v9257 = vadd.f32 0.0, %v9256
        %v9258 = vpop.f32.mrf.mxu0
        %9259 = vmatprep.mubr.f32.mxu0 0.0
        %9260 = vmatmul.mubr.f32.gmra.mxu0 %v9009
        %v9261 = vpop.f32.mrf.mxu0
        %v9262 = vadd.f32 0.0, %v9261
        %v9263 = vpop.f32.mrf.mxu0
        %9264 = vmatprep.mubr.f32.mxu0 0.0
        %9265 = vmatmul.mubr.f32.gmra.mxu0 %v9012
        %v9266 = vpop.f32.mrf.mxu0
        %v9267 = vadd.f32 0.0, %v9266
        %v9268 = vpop.f32.mrf.mxu0
        %9269 = vmatprep.mubr.f32.mxu0 0.0
        %9270 = vmatmul.mubr.f32.gmra.mxu0 %v9015
        %v9271 = vpop.f32.mrf.mxu0
        %v9272 = vadd.f32 0.0, %v9271
        %v9273 = vpop.f32.mrf.mxu0
        %9274 = vmatprep.mubr.f32.mxu0 0.0
        %9275 = vmatmul.mubr.f32.gmra.mxu0 %v9018
        %v9276 = vpop.f32.mrf.mxu0
        %v9277 = vadd.f32 0.0, %v9276
        %v9278 = vpop.f32.mrf.mxu0
        %9279 = vmatprep.mubr.f32.mxu0 0.0
        %9280 = vmatmul.mubr.f32.gmra.mxu0 %v9021
        %v9281 = vpop.f32.mrf.mxu0
        %v9282 = vadd.f32 0.0, %v9281
        %v9283 = vpop.f32.mrf.mxu0
        %9284 = vmatprep.mubr.f32.mxu0 0.0
        %9285 = vmatmul.mubr.f32.gmra.mxu0 %v9024
        %v9286 = vpop.f32.mrf.mxu0
        %v9287 = vadd.f32 0.0, %v9286
        %v9288 = vpop.f32.mrf.mxu0
        %9289 = vmatprep.mubr.f32.mxu0 0.0
        %9290 = vmatmul.mubr.f32.gmra.mxu0 %v9027
        %v9291 = vpop.f32.mrf.mxu0
        %v9292 = vadd.f32 0.0, %v9291
        %v9293 = vpop.f32.mrf.mxu0
        %9294 = vmatprep.mubr.f32.mxu0 0.0
        %9295 = vmatmul.mubr.f32.gmra.mxu0 %v9030
        %v9296 = vpop.f32.mrf.mxu0
        %v9297 = vadd.f32 0.0, %v9296
        %v9298 = vpop.f32.mrf.mxu0
        %9299 = vmatprep.mubr.f32.mxu0 0.0
        %9300 = vmatmul.mubr.f32.gmra.mxu0 %v9033
        %v9301 = vpop.f32.mrf.mxu0
        %v9302 = vadd.f32 0.0, %v9301
        %v9303 = vpop.f32.mrf.mxu0
        %9304 = vdwg.mxu0
        %v9305 = vadd.f32 %v8826, %v9102
        %v9306 = vadd.f32 %v8827, %v9107
        %v9307 = vadd.f32 %v8828, %v9112
        %v9308 = vadd.f32 %v8829, %v9117
        %v9309 = vadd.f32 %v8830, %v9122
        %v9310 = vadd.f32 %v8831, %v9127
        %v9311 = vadd.f32 %v8832, %v9132
        %v9312 = vadd.f32 %v8833, %v9137
        %v9313 = vadd.f32 %v8834, %v9142
        %v9314 = vadd.f32 %v8835, %v9147
        %v9315 = vadd.f32 %v8836, %v9152
        %v9316 = vadd.f32 %v8837, %v9157
        %v9317 = vadd.f32 %v8838, %v9162
        %v9318 = vadd.f32 %v8839, %v9167
        %v9319 = vadd.f32 %v8840, %v9172
        %v9320 = vadd.f32 %v8841, %v9177
        %v9321 = vadd.f32 %v8842, %v9182
        %v9322 = vadd.f32 %v8843, %v9187
        %v9323 = vadd.f32 %v8844, %v9192
        %v9324 = vadd.f32 %v8845, %v9197
        %v9325 = vadd.f32 %v8846, %v9202
        %v9326 = vadd.f32 %v8847, %v9207
        %v9327 = vadd.f32 %v8848, %v9212
        %v9328 = vadd.f32 %v8849, %v9217
        %v9329 = vadd.f32 %v8850, %v9222
        %v9330 = vadd.f32 %v8851, %v9227
        %v9331 = vadd.f32 %v8852, %v9232
        %v9332 = vadd.f32 %v8853, %v9237
        %v9333 = vadd.f32 %v8854, %v9242
        %v9334 = vadd.f32 %v8855, %v9247
        %v9335 = vadd.f32 %v8856, %v9252
        %v9336 = vadd.f32 %v8857, %v9257
        %v9337 = vadd.f32 %v8858, %v9262
        %v9338 = vadd.f32 %v8859, %v9267
        %v9339 = vadd.f32 %v8860, %v9272
        %v9340 = vadd.f32 %v8861, %v9277
        %v9341 = vadd.f32 %v8862, %v9282
        %v9342 = vadd.f32 %v8863, %v9287
        %v9343 = vadd.f32 %v8864, %v9292
        %v9344 = vadd.f32 %v8865, %v9297
        %v9345 = vadd.f32 %v8866, %v9302
        %v9346 = vmax.f32 %v9305, 0.0
        %v9347 = vmax.f32 %v9306, 0.0
        %v9348 = vmax.f32 %v9307, 0.0
        %v9349 = vmax.f32 %v9308, 0.0
        %v9350 = vmax.f32 %v9309, 0.0
        %v9351 = vmax.f32 %v9310, 0.0
        %v9352 = vmax.f32 %v9311, 0.0
        %v9353 = vmax.f32 %v9312, 0.0
        %v9354 = vmax.f32 %v9313, 0.0
        %v9355 = vmax.f32 %v9314, 0.0
        %v9356 = vmax.f32 %v9315, 0.0
        %v9357 = vmax.f32 %v9316, 0.0
        %v9358 = vmax.f32 %v9317, 0.0
        %v9359 = vmax.f32 %v9318, 0.0
        %v9360 = vmax.f32 %v9319, 0.0
        %v9361 = vmax.f32 %v9320, 0.0
        %v9362 = vmax.f32 %v9321, 0.0
        %v9363 = vmax.f32 %v9322, 0.0
        %v9364 = vmax.f32 %v9323, 0.0
        %v9365 = vmax.f32 %v9324, 0.0
        %v9366 = vmax.f32 %v9325, 0.0
        %v9367 = vmax.f32 %v9326, 0.0
        %v9368 = vmax.f32 %v9327, 0.0
        %v9369 = vmax.f32 %v9328, 0.0
        %v9370 = vmax.f32 %v9329, 0.0
        %v9371 = vmax.f32 %v9330, 0.0
        %v9372 = vmax.f32 %v9331, 0.0
        %v9373 = vmax.f32 %v9332, 0.0
        %v9374 = vmax.f32 %v9333, 0.0
        %v9375 = vmax.f32 %v9334, 0.0
        %v9376 = vmax.f32 %v9335, 0.0
        %v9377 = vmax.f32 %v9336, 0.0
        %v9378 = vmax.f32 %v9337, 0.0
        %v9379 = vmax.f32 %v9338, 0.0
        %v9380 = vmax.f32 %v9339, 0.0
        %v9381 = vmax.f32 %v9340, 0.0
        %v9382 = vmax.f32 %v9341, 0.0
        %v9383 = vmax.f32 %v9342, 0.0
        %v9384 = vmax.f32 %v9343, 0.0
        %v9385 = vmax.f32 %v9344, 0.0
        %v9386 = vmax.f32 %v9345, 0.0
        %v9387 = vld [vmem:[%s2] sm:$0x7]
        %v9389 = vlaneseq
        %v9390 = vshrl.u32 %v9389, 7
        %v9391 = vsub.s32 0, %v9390
        %v9392 = vrot.slane %v9387, %v9391
        %v9393 = vlaneseq
        %v9394 = vshrl.u32 %v9393, 7
        %v9395 = vsub.s32 1, %v9394
        %v9396 = vrot.slane %v9387, %v9395
        %v9397 = vlaneseq
        %v9398 = vshrl.u32 %v9397, 7
        %v9399 = vsub.s32 2, %v9398
        %v9400 = vrot.slane %v9387, %v9399
        %vm9403 = vcmask 556032
        %v9404 = vsel %vm9403, %v9400, 0
        %v9407 = vsel %vm503, %v9386, 0
        %9409 = vmatprep.subr.mxu0 0.0
        %9410 = vmatpush1.msra.mxu0 %v9361
        %9411 = vmatprep.subr.mxu0 0.0
        %9412 = vmatpush1.msra.mxu0 %v9360
        %9413 = vmatprep.subr.mxu0 0.0
        %9414 = vmatpush1.msra.mxu0 %v9359
        %9415 = vmatprep.subr.mxu0 0.0
        %9416 = vmatpush1.msra.mxu0 %v9358
        %9417 = vmatprep.subr.mxu0 0.0
        %9418 = vmatpush1.msra.mxu0 %v9357
        %9419 = vmatprep.subr.mxu0 0.0
        %9420 = vmatpush1.msra.mxu0 %v9356
        %9421 = vmatprep.subr.mxu0 0.0
        %9422 = vmatpush1.msra.mxu0 %v9355
        %9423 = vmatprep.subr.mxu0 0.0
        %9424 = vmatpush1.msra.mxu0 %v9354
        %9425 = vmatprep.subr.mxu0 0.0
        %9426 = vmatpush1.msra.mxu0 %v9353
        %9427 = vmatprep.subr.mxu0 0.0
        %9428 = vmatpush1.msra.mxu0 %v9352
        %9429 = vmatprep.subr.mxu0 0.0
        %9430 = vmatpush1.msra.mxu0 %v9351
        %9431 = vmatprep.subr.mxu0 0.0
        %9432 = vmatpush1.msra.mxu0 %v9350
        %9433 = vmatprep.subr.mxu0 0.0
        %9434 = vmatpush1.msra.mxu0 %v9349
        %9435 = vmatprep.subr.mxu0 0.0
        %9436 = vmatpush1.msra.mxu0 %v9348
        %9437 = vmatprep.subr.mxu0 0.0
        %9438 = vmatpush1.msra.mxu0 %v9347
        %9439 = vmatprep.subr.mxu0 0.0
        %9440 = vmatpush1.msra.mxu0 %v9346
        %9441 = vmatprep.subr.mxu0 0.0
        %9442 = vmatpush2.msra.mxu0 %v9377
        %9443 = vmatprep.subr.mxu0 0.0
        %9444 = vmatpush2.msra.mxu0 %v9376
        %9445 = vmatprep.subr.mxu0 0.0
        %9446 = vmatpush2.msra.mxu0 %v9375
        %9447 = vmatprep.subr.mxu0 0.0
        %9448 = vmatpush2.msra.mxu0 %v9374
        %9449 = vmatprep.subr.mxu0 0.0
        %9450 = vmatpush2.msra.mxu0 %v9373
        %9451 = vmatprep.subr.mxu0 0.0
        %9452 = vmatpush2.msra.mxu0 %v9372
        %9453 = vmatprep.subr.mxu0 0.0
        %9454 = vmatpush2.msra.mxu0 %v9371
        %9455 = vmatprep.subr.mxu0 0.0
        %9456 = vmatpush2.msra.mxu0 %v9370
        %9457 = vmatprep.subr.mxu0 0.0
        %9458 = vmatpush2.msra.mxu0 %v9369
        %9459 = vmatprep.subr.mxu0 0.0
        %9460 = vmatpush2.msra.mxu0 %v9368
        %9461 = vmatprep.subr.mxu0 0.0
        %9462 = vmatpush2.msra.mxu0 %v9367
        %9463 = vmatprep.subr.mxu0 0.0
        %9464 = vmatpush2.msra.mxu0 %v9366
        %9465 = vmatprep.subr.mxu0 0.0
        %9466 = vmatpush2.msra.mxu0 %v9365
        %9467 = vmatprep.subr.mxu0 0.0
        %9468 = vmatpush2.msra.mxu0 %v9364
        %9469 = vmatprep.subr.mxu0 0.0
        %9470 = vmatpush2.msra.mxu0 %v9363
        %9471 = vmatprep.subr.mxu0 0.0
        %9472 = vmatpush2.msra.mxu0 %v9362
        %9473 = vmatprep.mubr.f32.mxu0 %v9396
        %9474 = vmatmul.mubr.f32.gmra.mxu0 %v9392
        %v9475 = vpop.f32.mrf.mxu0
        %v9476 = vadd.f32 0.0, %v9475
        %v9477 = vpop.f32.mrf.mxu0
        %9478 = vdwg.mxu0
        %9479 = vmatprep.subr.mxu0 0.0
        %9480 = vmatpush1.msra.mxu0 0.0
        %9481 = vmatprep.subr.mxu0 0.0
        %9482 = vmatpush1.msra.mxu0 0.0
        %9483 = vmatprep.subr.mxu0 0.0
        %9484 = vmatpush1.msra.mxu0 0.0
        %9485 = vmatprep.subr.mxu0 0.0
        %9486 = vmatpush1.msra.mxu0 0.0
        %9487 = vmatprep.subr.mxu0 0.0
        %9488 = vmatpush1.msra.mxu0 0.0
        %9489 = vmatprep.subr.mxu0 0.0
        %9490 = vmatpush1.msra.mxu0 0.0
        %9491 = vmatprep.subr.mxu0 0.0
        %9492 = vmatpush1.msra.mxu0 0.0
        %9493 = vmatprep.subr.mxu0 0.0
        %9494 = vmatpush1.msra.mxu0 %v9407
        %9495 = vmatprep.subr.mxu0 0.0
        %9496 = vmatpush1.msra.mxu0 %v9385
        %9497 = vmatprep.subr.mxu0 0.0
        %9498 = vmatpush1.msra.mxu0 %v9384
        %9499 = vmatprep.subr.mxu0 0.0
        %9500 = vmatpush1.msra.mxu0 %v9383
        %9501 = vmatprep.subr.mxu0 0.0
        %9502 = vmatpush1.msra.mxu0 %v9382
        %9503 = vmatprep.subr.mxu0 0.0
        %9504 = vmatpush1.msra.mxu0 %v9381
        %9505 = vmatprep.subr.mxu0 0.0
        %9506 = vmatpush1.msra.mxu0 %v9380
        %9507 = vmatprep.subr.mxu0 0.0
        %9508 = vmatpush1.msra.mxu0 %v9379
        %9509 = vmatprep.subr.mxu0 0.0
        %9510 = vmatpush1.msra.mxu0 %v9378
        %9511 = vmatprep.subr.mxu0 0.0
        %9512 = vmatpush2.msra.mxu0 0.0
        %9513 = vmatprep.subr.mxu0 0.0
        %9514 = vmatpush2.msra.mxu0 0.0
        %9515 = vmatprep.subr.mxu0 0.0
        %9516 = vmatpush2.msra.mxu0 0.0
        %9517 = vmatprep.subr.mxu0 0.0
        %9518 = vmatpush2.msra.mxu0 0.0
        %9519 = vmatprep.subr.mxu0 0.0
        %9520 = vmatpush2.msra.mxu0 0.0
        %9521 = vmatprep.subr.mxu0 0.0
        %9522 = vmatpush2.msra.mxu0 0.0
        %9523 = vmatprep.subr.mxu0 0.0
        %9524 = vmatpush2.msra.mxu0 0.0
        %9525 = vmatprep.subr.mxu0 0.0
        %9526 = vmatpush2.msra.mxu0 0.0
        %9527 = vmatprep.subr.mxu0 0.0
        %9528 = vmatpush2.msra.mxu0 0.0
        %9529 = vmatprep.subr.mxu0 0.0
        %9530 = vmatpush2.msra.mxu0 0.0
        %9531 = vmatprep.subr.mxu0 0.0
        %9532 = vmatpush2.msra.mxu0 0.0
        %9533 = vmatprep.subr.mxu0 0.0
        %9534 = vmatpush2.msra.mxu0 0.0
        %9535 = vmatprep.subr.mxu0 0.0
        %9536 = vmatpush2.msra.mxu0 0.0
        %9537 = vmatprep.subr.mxu0 0.0
        %9538 = vmatpush2.msra.mxu0 0.0
        %9539 = vmatprep.subr.mxu0 0.0
        %9540 = vmatpush2.msra.mxu0 0.0
        %9541 = vmatprep.subr.mxu0 0.0
        %9542 = vmatpush2.msra.mxu0 0.0
        %9543 = vmatprep.mubr.f32.mxu0 0.0
        %9544 = vmatmul.mubr.f32.gmra.mxu0 %v9404
        %v9545 = vpop.f32.mrf.mxu0
        %v9546 = vadd.f32 %v9476, %v9545
        %v9547 = vpop.f32.mrf.mxu0
        %9548 = vdwg.mxu0
        %v9549 = vld [vmem:[%s7] sm:$0xff]
        %v9550 = vld [vmem:[%s7 + $0x8] sm:$0xff]
        %v9551 = vld [vmem:[%s7 + $0x10] sm:$0xff]
        %v9552 = vld [vmem:[%s7 + $0x18] sm:$0xff]
        %v9553 = vld [vmem:[%s7 + $0x20] sm:$0xff]
        %v9554 = vld [vmem:[%s7 + $0x28] sm:$0xff]
        %v9555 = vld [vmem:[%s7 + $0x30] sm:$0xff]
        %v9556 = vld [vmem:[%s7 + $0x38] sm:$0xff]
        %v9557 = vld [vmem:[%s8] sm:$0x1]
        %vm9558 = vcmask 523264
        %v9560 = vsel %vm9558, %v9546, 0
        %9562 = vmatprep.subr.mxu0 0.0
        %9563 = vmatpush1.msra.mxu0 0.0
        %9564 = vmatprep.subr.mxu0 0.0
        %9565 = vmatpush1.msra.mxu0 0.0
        %9566 = vmatprep.subr.mxu0 0.0
        %9567 = vmatpush1.msra.mxu0 0.0
        %9568 = vmatprep.subr.mxu0 0.0
        %9569 = vmatpush1.msra.mxu0 0.0
        %9570 = vmatprep.subr.mxu0 0.0
        %9571 = vmatpush1.msra.mxu0 0.0
        %9572 = vmatprep.subr.mxu0 0.0
        %9573 = vmatpush1.msra.mxu0 0.0
        %9574 = vmatprep.subr.mxu0 0.0
        %9575 = vmatpush1.msra.mxu0 0.0
        %9576 = vmatprep.subr.mxu0 0.0
        %9577 = vmatpush1.msra.mxu0 0.0
        %9578 = vmatprep.subr.mxu0 0.0
        %9579 = vmatpush1.msra.mxu0 %v9556
        %9580 = vmatprep.subr.mxu0 0.0
        %9581 = vmatpush1.msra.mxu0 %v9555
        %9582 = vmatprep.subr.mxu0 0.0
        %9583 = vmatpush1.msra.mxu0 %v9554
        %9584 = vmatprep.subr.mxu0 0.0
        %9585 = vmatpush1.msra.mxu0 %v9553
        %9586 = vmatprep.subr.mxu0 0.0
        %9587 = vmatpush1.msra.mxu0 %v9552
        %9588 = vmatprep.subr.mxu0 0.0
        %9589 = vmatpush1.msra.mxu0 %v9551
        %9590 = vmatprep.subr.mxu0 0.0
        %9591 = vmatpush1.msra.mxu0 %v9550
        %9592 = vmatprep.subr.mxu0 0.0
        %9593 = vmatpush1.msra.mxu0 %v9549
        %9594 = vmatprep.subr.mxu0 0.0
        %9595 = vmatpush2.msra.mxu0 0.0
        %9596 = vmatprep.subr.mxu0 0.0
        %9597 = vmatpush2.msra.mxu0 0.0
        %9598 = vmatprep.subr.mxu0 0.0
        %9599 = vmatpush2.msra.mxu0 0.0
        %9600 = vmatprep.subr.mxu0 0.0
        %9601 = vmatpush2.msra.mxu0 0.0
        %9602 = vmatprep.subr.mxu0 0.0
        %9603 = vmatpush2.msra.mxu0 0.0
        %9604 = vmatprep.subr.mxu0 0.0
        %9605 = vmatpush2.msra.mxu0 0.0
        %9606 = vmatprep.subr.mxu0 0.0
        %9607 = vmatpush2.msra.mxu0 0.0
        %9608 = vmatprep.subr.mxu0 0.0
        %9609 = vmatpush2.msra.mxu0 0.0
        %9610 = vmatprep.subr.mxu0 0.0
        %9611 = vmatpush2.msra.mxu0 0.0
        %9612 = vmatprep.subr.mxu0 0.0
        %9613 = vmatpush2.msra.mxu0 0.0
        %9614 = vmatprep.subr.mxu0 0.0
        %9615 = vmatpush2.msra.mxu0 0.0
        %9616 = vmatprep.subr.mxu0 0.0
        %9617 = vmatpush2.msra.mxu0 0.0
        %9618 = vmatprep.subr.mxu0 0.0
        %9619 = vmatpush2.msra.mxu0 0.0
        %9620 = vmatprep.subr.mxu0 0.0
        %9621 = vmatpush2.msra.mxu0 0.0
        %9622 = vmatprep.subr.mxu0 0.0
        %9623 = vmatpush2.msra.mxu0 0.0
        %9624 = vmatprep.subr.mxu0 0.0
        %9625 = vmatpush2.msra.mxu0 0.0
        %9626 = vmatprep.mubr.f32.mxu0 0.0
        %9627 = vmatmul.mubr.f32.gmra.mxu0 %v9560
        %v9628 = vpop.f32.mrf.mxu0
        %v9629 = vadd.f32 %v9557, %v9628
        %v9630 = vpop.f32.mrf.mxu0
        %9631 = vdwg.mxu0
        %vm9632 = vcmask 32768
        %9633 = vst.msk [vmem:[%s324] sm:$0x1] %vm9632, %v9629
        %s9634 = sand.u32 %s225, 1
        %s9635 = scalar_lea.sflag [#allocation4], %s9634
        %s9636 = sand.u32 %s225, 1
        %s9637 = scalar_lea.vmem [#allocation3], %s9636
        // Predicated region
        $region57: #{cnn_encoder_forward.1} parent=55 // pred_check
          %p9638 = pneg %p235
        $region58: #{cnn_encoder_forward.1} parent=55 // pred_check_branch
          %9640 = sbr.rel (%p9638) target = $region60
        $region59: #{cnn_encoder_forward.1} parent=55 // pred_region
          %s9642 = ssub.s32 16, 16
          %9643 = vsyncadd %s9635, %s9642
          %s9644 = smul.addr %s23, 16
          %s9645 = scalar_lea.hbm %s9, %s9644
          %s9647 = sshll.u32 %s9637, 4
          %s9648 = int_to_ptr.vmem [resolvable:$true] %s9647
          %9650 = dma.vmem_to_hbm [thread:$0]  %s9648, 16, %s9645, %s9635
        $region60: #{cnn_encoder_forward.1} parent=55 // pred_fallthru
          _
      $region56: #{cnn_encoder_forward.1} parent=5 // pred_fallthru
        _
      %p9651 = scmp.le.s32.totalorder 2, %s18
      // Predicated region
      $region61: #{cnn_encoder_forward.1} parent=5 // pred_check
        %p9652 = pneg %p9651
      $region62: #{cnn_encoder_forward.1} parent=5 // pred_check_branch
        %9654 = sbr.rel (%p9652) target = $region64
      $region63: #{cnn_encoder_forward.1} parent=5 // pred_region
        %s9655 = ssub.s32 %s18, 2
        // Predicated region
        $region65: #{cnn_encoder_forward.1} parent=63 // pred_check
          %p9656 = pneg %p241
        $region66: #{cnn_encoder_forward.1} parent=63 // pred_check_branch
          %9658 = sbr.rel (%p9656) target = $region68
        $region67: #{cnn_encoder_forward.1} parent=63 // pred_region
          %s9659 = sand.u32 %s226, 1
          %s9660 = scalar_lea.sflag [#allocation4], %s9659
          %s9661 = sand.u32 %s226, 1
          %s9662 = scalar_lea.vmem [#allocation3], %s9661
          %9663 = dma.done %s9660, 16
        $region68: #{cnn_encoder_forward.1} parent=63 // pred_fallthru
          _
      $region64: #{cnn_encoder_forward.1} parent=5 // pred_fallthru
        _
    $region6: #{cnn_encoder_forward.1} parent=1 // loop_footer
      %s22 = sadd.s32 1, %s18
    $region7: #{cnn_encoder_forward.1} parent=1 // loop_footer_branch
      %17 = sbr.rel target = $region3
    $region8: #{cnn_encoder_forward.1} parent=1 // loop_exit
      _
    %9664 = vsyncpa [#allocation4], 1
    %s9665 = scalar_lea.sflag [#allocation4], 1
    %9666 = vsyncpa %s9665, 1

</llo_original>
